<compile_context>
chip_gen: v6e
topology: v6e:2x2x1
jax: 0.10.0
libtpu: 0.0.40
codegen_flags: <defaults>
</compile_context>

<pallas_src>
import math

import jax
import jax.numpy as jnp
from jax.experimental import pallas as pl
from jax.experimental.pallas import tpu as pltpu

# ---------------------------------------------------------------------------
# model config (small synthetic shapes)
# ---------------------------------------------------------------------------
VOCAB = 97
MAX_POS = 32
HIDDEN = 32
NUM_HEADS = 4
HEAD_DIM = HIDDEN // NUM_HEADS
FFN = 64
NUM_LAYERS = 2
NUM_CLASSES_A = 4
NUM_CLASSES_B = 2
PACKED_LOGITS = 128          # lane-dense packed output (A | B | zero pad)
LN_EPS = 1e-12

# ---- packed small-vector slab layout: one (row, 128) f32 row per vector ----
ROW_EMB_G, ROW_EMB_B, ROW_BP, ROW_BAB = 0, 1, 2, 3
ROW_L0 = 4
VEC_PER_LAYER = 10           # bq, bk, bv, bo, ln1_g, ln1_b, b1, b2, ln2_g, ln2_b
N_VEC_ROWS = ROW_L0 + VEC_PER_LAYER * NUM_LAYERS      # 24
# ---- packed square-weight slab: [wq0,wk0,wv0,wo0, wq1,wk1,wv1,wo1, wp] -----
W_POOL = 4 * NUM_LAYERS
N_SQ_W = 4 * NUM_LAYERS + 1


# ---------------------------------------------------------------------------
# in-kernel helpers
# ---------------------------------------------------------------------------
def _ln(x, gamma, beta):
    mu = jnp.mean(x, axis=-1, keepdims=True)
    var = jnp.mean((x - mu) ** 2, axis=-1, keepdims=True)
    return (x - mu) * jax.lax.rsqrt(var + LN_EPS) * gamma + beta


# ---------------------------------------------------------------------------
# fused forward kernel (single invocation, whole batch end-to-end)
# ---------------------------------------------------------------------------
def fused_forward_kernel(ids_ref, mask_ref, wemb_ref, pemb_ref, vecs_ref,
                         wsq_ref, w1_ref, w2_ref, wab_ref, logits_ref):
    B, S = mask_ref.shape
    BS = B * S

    def vec(row, n):
        # static slice, starts at lane 0 -> no lane rotation
        return vecs_ref[row:row + 1, 0:n]                       # (1, n) f32

    # ---- embeddings: one-hot MXU "gather" + position add + LN ----
    ids = ids_ref[...]                                          # (BS, 1) int32
    vocab_iota = jax.lax.broadcasted_iota(jnp.int32, (BS, VOCAB), 1)
    onehot = (ids == vocab_iota).astype(jnp.float32)            # (BS, VOCAB)
    x = jnp.dot(onehot, wemb_ref[...],
                preferred_element_type=jnp.float32)             # (BS, H)
    pos = pemb_ref[0:S, :]                                      # (S, H)
    x = x + jnp.concatenate([pos] * B, axis=0)                  # (BS, H)
    x = _ln(x, vec(ROW_EMB_G, HIDDEN), vec(ROW_EMB_B, HIDDEN))

    # additive attention bias built once from the int32 mask, hoisted
    maskf = mask_ref[...].astype(jnp.float32)                   # (B, S)
    neg = (1.0 - maskf) * -1e9                                  # (B, S)
    bias = [neg[b:b + 1, :][None] for b in range(B)]            # B x (1,1,S)

    for l in range(NUM_LAYERS):      # static unroll; weights VMEM-resident
        base = ROW_L0 + VEC_PER_LAYER * l
        xb = x.astype(jnp.bfloat16)

        # ---- separate Q / K / V projections over all B*S rows ----
        # (1/sqrt(HEAD_DIM) scale is folded into WQ / bq at init)
        q = jnp.dot(xb, wsq_ref[4 * l + 0],
                    preferred_element_type=jnp.float32) + vec(base + 0, HIDDEN)
        k = jnp.dot(xb, wsq_ref[4 * l + 1],
                    preferred_element_type=jnp.float32) + vec(base + 1, HIDDEN)
        v = jnp.dot(xb, wsq_ref[4 * l + 2],
                    preferred_element_type=jnp.float32) + vec(base + 2, HIDDEN)

        # ---- per-batch, per-head score / context (tiny, static loop) ----
        ctx_parts = []
        for b in range(B):
            r0, r1 = b * S, (b + 1) * S
            qb = q[r0:r1].reshape(S, NUM_HEADS, HEAD_DIM).astype(jnp.bfloat16)
            kb = k[r0:r1].reshape(S, NUM_HEADS, HEAD_DIM).astype(jnp.bfloat16)
            vb = v[r0:r1].reshape(S, NUM_HEADS, HEAD_DIM).astype(jnp.bfloat16)

            s = jnp.einsum('qhd,khd->hqk', qb, kb,
                           preferred_element_type=jnp.float32)   # (NH, S, S)
            s = s + bias[b]
            s = s - jnp.max(s, axis=-1, keepdims=True)
            p = jnp.exp(s)
            p = p * pl.reciprocal(jnp.sum(p, axis=-1, keepdims=True),
                                  approx=True)

            cb = jnp.einsum('hqk,khd->qhd', p.astype(jnp.bfloat16), vb,
                            preferred_element_type=jnp.float32)  # (S, NH, HD)
            ctx_parts.append(cb.reshape(S, HIDDEN))
        ctx = jnp.concatenate(ctx_parts, axis=0)                 # (BS, H)

        attn = jnp.dot(ctx.astype(jnp.bfloat16), wsq_ref[4 * l + 3],
                       preferred_element_type=jnp.float32) + vec(base + 3, HIDDEN)
        x = _ln(x + attn, vec(base + 4, HIDDEN), vec(base + 5, HIDDEN))

        # ---- feed-forward (all B*S rows in one matmul) ----
        h = jnp.dot(x.astype(jnp.bfloat16), w1_ref[l],
                    preferred_element_type=jnp.float32) + vec(base + 6, FFN)
        # TODO(synk): HF MPNet uses exact (erf) GELU; tanh approximation here.
        h = jax.nn.gelu(h, approximate=True)
        y = jnp.dot(h.astype(jnp.bfloat16), w2_ref[l],
                    preferred_element_type=jnp.float32) + vec(base + 7, HIDDEN)
        x = _ln(x + y, vec(base + 8, HIDDEN), vec(base + 9, HIDDEN))

    # ---- pooler (token 0 of each sequence) + both heads, lane-dense out ----
    cls = jnp.concatenate([x[b * S:b * S + 1, :] for b in range(B)], axis=0)
    pooled = jnp.tanh(jnp.dot(cls.astype(jnp.bfloat16), wsq_ref[W_POOL],
                              preferred_element_type=jnp.float32)
                      + vec(ROW_BP, HIDDEN))                     # (B, H)
    logits_ref[...] = (jnp.dot(pooled.astype(jnp.bfloat16), wab_ref[...],
                               preferred_element_type=jnp.float32)
                       + vec(ROW_BAB, PACKED_LOGITS))            # (B, 128)


# ---------------------------------------------------------------------------
# pallas_call wrapper (no grid: one launch, no pipeline double-buffers)
# ---------------------------------------------------------------------------
def mpnet_fused_call(ids2, mask, p):
    B = mask.shape[0]
    args = (ids2, mask, p["word_emb"], p["pos_emb"], p["vecs"],
            p["wsq"], p["w1"], p["w2"], p["wab"])
    return pl.pallas_call(
        fused_forward_kernel,
        out_shape=jax.ShapeDtypeStruct((B, PACKED_LOGITS), jnp.float32),
        in_specs=[pl.BlockSpec(memory_space=pltpu.MemorySpace.VMEM)
                  for _ in args],
        out_specs=pl.BlockSpec(memory_space=pltpu.MemorySpace.VMEM),
    )(*args)


# ---------------------------------------------------------------------------
# parameter init (deterministic, synthetic; matmul weights in bf16)
# ---------------------------------------------------------------------------
def init_params(key):
    std = 0.02
    ks = list(jax.random.split(key, 20))

    def nrm(shape):
        return std * jax.random.normal(ks.pop(0), shape, jnp.float32)

    # square-weight slab: [wq0,wk0,wv0,wo0, wq1,wk1,wv1,wo1, wp]
    scale = 1.0 / math.sqrt(HEAD_DIM)
    sq = []
    for _ in range(NUM_LAYERS):
        sq.append(nrm((HIDDEN, HIDDEN)) * scale)   # WQ with 1/sqrt(HD) folded in
        sq.append(nrm((HIDDEN, HIDDEN)))           # WK
        sq.append(nrm((HIDDEN, HIDDEN)))           # WV
        sq.append(nrm((HIDDEN, HIDDEN)))           # WO
    sq.append(nrm((HIDDEN, HIDDEN)))               # pooler dense
    wsq = jnp.stack(sq).astype(jnp.bfloat16)       # (N_SQ_W, H, H)

    w1 = jnp.stack([nrm((HIDDEN, FFN)) for _ in range(NUM_LAYERS)]
                   ).astype(jnp.bfloat16)          # (L, H, FFN)
    w2 = jnp.stack([nrm((FFN, HIDDEN)) for _ in range(NUM_LAYERS)]
                   ).astype(jnp.bfloat16)          # (L, FFN, H)

    # packed classification heads (A | B | zero pad)
    wa = nrm((HIDDEN, NUM_CLASSES_A))
    wb = nrm((HIDDEN, NUM_CLASSES_B))
    wab = jnp.zeros((HIDDEN, PACKED_LOGITS), jnp.float32)
    wab = wab.at[:, :NUM_CLASSES_A].set(wa)
    wab = wab.at[:, NUM_CLASSES_A:NUM_CLASSES_A + NUM_CLASSES_B].set(wb)
    wab = wab.astype(jnp.bfloat16)

    # lane-dense small-vector slab: one row per bias / LN vector.
    # All biases and LN betas are zero; LN gammas are one.
    # NOTE: the 1/sqrt(HEAD_DIM) fold would also scale bq, which is zero.
    vecs = jnp.zeros((N_VEC_ROWS, PACKED_LOGITS), jnp.float32)
    vecs = vecs.at[ROW_EMB_G, :HIDDEN].set(1.0)
    for l in range(NUM_LAYERS):
        base = ROW_L0 + VEC_PER_LAYER * l
        vecs = vecs.at[base + 4, :HIDDEN].set(1.0)   # ln1 gamma
        vecs = vecs.at[base + 8, :HIDDEN].set(1.0)   # ln2 gamma

    return {
        "word_emb": nrm((VOCAB, HIDDEN)),
        "pos_emb": nrm((MAX_POS, HIDDEN)),
        "vecs": vecs,
        "wsq": wsq,
        "w1": w1,
        "w2": w2,
        "wab": wab,
    }


# ---------------------------------------------------------------------------
# forward pass (mirrors MultiTaskMPNet.forward)
# ---------------------------------------------------------------------------
def multitask_mpnet_forward(params, input_ids, attention_mask):
    B, S = input_ids.shape
    ids2 = input_ids.reshape(B * S, 1).astype(jnp.int32)     # (B*S, 1)
    mask = attention_mask.astype(jnp.int32)                  # (B, S)

    packed = mpnet_fused_call(ids2, mask, params)            # (B, 128)
    logits_a = packed[:, :NUM_CLASSES_A]
    logits_b = packed[:, NUM_CLASSES_A:NUM_CLASSES_A + NUM_CLASSES_B]
    return {"logits_a": logits_a, "logits_b": logits_b}


# ---------------------------------------------------------------------------
# main
# ---------------------------------------------------------------------------
if __name__ == "__main__":
    key = jax.random.PRNGKey(0)
    k_param, k_ids = jax.random.split(key)

    B, S = 2, 8
    params = init_params(k_param)
    input_ids = jax.random.randint(k_ids, (B, S), 0, VOCAB, dtype=jnp.int32)
    attention_mask = jnp.array(
        [[1, 1, 1, 1, 1, 1, 1, 1],
         [1, 1, 1, 1, 1, 0, 0, 0]], dtype=jnp.int32)

    fwd = jax.jit(multitask_mpnet_forward)
    out = fwd(params, input_ids, attention_mask)
    jax.block_until_ready(out)

    assert out["logits_a"].shape == (B, NUM_CLASSES_A)
    assert out["logits_b"].shape == (B, NUM_CLASSES_B)
    assert bool(jnp.all(jnp.isfinite(out["logits_a"])))
    assert bool(jnp.all(jnp.isfinite(out["logits_b"])))
    print("KERNEL_OK")
</pallas_src>

<mosaic_0001>
module attributes {stable_mosaic.version = 11 : i64} {
  func.func @fused_forward_kernel(%arg0: memref<16x1xi32, #tpu.memory_space<vmem>>, %arg1: memref<2x8xi32, #tpu.memory_space<vmem>>, %arg2: memref<97x32xf32, #tpu.memory_space<vmem>>, %arg3: memref<32x32xf32, #tpu.memory_space<vmem>>, %arg4: memref<24x128xf32, #tpu.memory_space<vmem>>, %arg5: memref<9x32x32xbf16, #tpu.memory_space<vmem>>, %arg6: memref<2x32x64xbf16, #tpu.memory_space<vmem>>, %arg7: memref<2x64x32xbf16, #tpu.memory_space<vmem>>, %arg8: memref<32x128xbf16, #tpu.memory_space<vmem>>, %arg9: memref<2x128xf32, #tpu.memory_space<vmem>>) attributes {dimension_semantics = [], scalar_prefetch = 0 : i64, scratch_operands = 0 : i64, tpu.core_type = #tpu.core_type<tc>} {
    %c0 = arith.constant 0 : index
    %c0_0 = arith.constant 0 : index
    %0 = vector.load %arg0[%c0, %c0_0] : memref<16x1xi32, #tpu.memory_space<vmem>>, vector<16x1xi32>
    %1 = tpu.iota {dimensions = array<i32: 1>} : vector<16x97xi32>
    %2 = vector.broadcast %0 : vector<16x1xi32> to vector<16x97xi32>
    %3 = arith.cmpi eq, %2, %1 : vector<16x97xi32>
    %4 = arith.extui %3 : vector<16x97xi1> to vector<16x97xi32>
    %5 = arith.sitofp %4 : vector<16x97xi32> to vector<16x97xf32>
    %c0_1 = arith.constant 0 : index
    %c0_2 = arith.constant 0 : index
    %6 = vector.load %arg2[%c0_1, %c0_2] : memref<97x32xf32, #tpu.memory_space<vmem>>, vector<97x32xf32>
    %cst = arith.constant dense<0.000000e+00> : vector<16x32xf32>
    %7 = tpu.matmul %5, %6, %cst {dimension_numbers = #tpu.dot_dimension_numbers<[1], [0], [0], [1], [0, 0, 1, 1], [], []>} : vector<16x97xf32>, vector<97x32xf32>, vector<16x32xf32> -> vector<16x32xf32>
    %c0_3 = arith.constant 0 : index
    %c0_4 = arith.constant 0 : index
    %8 = vector.load %arg3[%c0_3, %c0_4] : memref<32x32xf32, #tpu.memory_space<vmem>>, vector<8x32xf32>
    %9 = tpu.concatenate %8, %8 in 0 : vector<8x32xf32>, vector<8x32xf32> -> vector<16x32xf32>
    %10 = arith.addf %7, %9 : vector<16x32xf32>
    %c0_5 = arith.constant 0 : index
    %c0_6 = arith.constant 0 : index
    %11 = vector.load %arg4[%c0_5, %c0_6] : memref<24x128xf32, #tpu.memory_space<vmem>>, vector<1x32xf32>
    %c1 = arith.constant 1 : index
    %c0_7 = arith.constant 0 : index
    %12 = vector.load %arg4[%c1, %c0_7] : memref<24x128xf32, #tpu.memory_space<vmem>>, vector<1x32xf32>
    %cst_8 = arith.constant dense<0.000000e+00> : vector<16xf32>
    %13 = vector.multi_reduction <add>, %10, %cst_8 [1] : vector<16x32xf32> to vector<16xf32>
    %14 = vector.shape_cast %13 : vector<16xf32> to vector<16x1xf32>
    %cst_9 = arith.constant 3.200000e+01 : f32
    %15 = vector.broadcast %cst_9 : f32 to vector<16x1xf32>
    %16 = arith.divf %14, %15 : vector<16x1xf32>
    %17 = vector.broadcast %16 : vector<16x1xf32> to vector<16x32xf32>
    %18 = arith.subf %10, %17 : vector<16x32xf32>
    %19 = arith.mulf %18, %18 : vector<16x32xf32>
    %cst_10 = arith.constant dense<0.000000e+00> : vector<16xf32>
    %20 = vector.multi_reduction <add>, %19, %cst_10 [1] : vector<16x32xf32> to vector<16xf32>
    %21 = vector.shape_cast %20 : vector<16xf32> to vector<16x1xf32>
    %cst_11 = arith.constant 3.200000e+01 : f32
    %22 = vector.broadcast %cst_11 : f32 to vector<16x1xf32>
    %23 = arith.divf %21, %22 : vector<16x1xf32>
    %24 = vector.broadcast %16 : vector<16x1xf32> to vector<16x32xf32>
    %25 = arith.subf %10, %24 : vector<16x32xf32>
    %cst_12 = arith.constant 9.99999996E-13 : f32
    %26 = vector.broadcast %cst_12 : f32 to vector<16x1xf32>
    %27 = arith.addf %23, %26 : vector<16x1xf32>
    %28 = math.rsqrt %27 : vector<16x1xf32>
    %29 = vector.broadcast %28 : vector<16x1xf32> to vector<16x32xf32>
    %30 = arith.mulf %25, %29 : vector<16x32xf32>
    %31 = vector.broadcast %11 : vector<1x32xf32> to vector<16x32xf32>
    %32 = arith.mulf %30, %31 : vector<16x32xf32>
    %33 = vector.broadcast %12 : vector<1x32xf32> to vector<16x32xf32>
    %34 = arith.addf %32, %33 : vector<16x32xf32>
    %c0_13 = arith.constant 0 : index
    %c0_14 = arith.constant 0 : index
    %35 = vector.load %arg1[%c0_13, %c0_14] : memref<2x8xi32, #tpu.memory_space<vmem>>, vector<2x8xi32>
    %36 = arith.sitofp %35 : vector<2x8xi32> to vector<2x8xf32>
    %cst_15 = arith.constant 1.000000e+00 : f32
    %37 = vector.broadcast %cst_15 : f32 to vector<2x8xf32>
    %38 = arith.subf %37, %36 : vector<2x8xf32>
    %cst_16 = arith.constant -1.000000e+09 : f32
    %39 = vector.broadcast %cst_16 : f32 to vector<2x8xf32>
    %40 = arith.mulf %38, %39 : vector<2x8xf32>
    %41 = vector.extract_strided_slice %40 {offsets = [0, 0], sizes = [1, 8], strides = [1, 1]} : vector<2x8xf32> to vector<1x8xf32>
    %42 = vector.shape_cast %41 : vector<1x8xf32> to vector<1x1x8xf32>
    %43 = vector.extract_strided_slice %40 {offsets = [1, 0], sizes = [1, 8], strides = [1, 1]} : vector<2x8xf32> to vector<1x8xf32>
    %44 = vector.shape_cast %43 : vector<1x8xf32> to vector<1x1x8xf32>
    %45 = arith.truncf %34 : vector<16x32xf32> to vector<16x32xbf16>
    %c0_17 = arith.constant 0 : index
    %c0_18 = arith.constant 0 : index
    %c0_19 = arith.constant 0 : index
    %46 = vector.load %arg5[%c0_17, %c0_18, %c0_19] : memref<9x32x32xbf16, #tpu.memory_space<vmem>>, vector<1x32x32xbf16>
    %47 = vector.shape_cast %46 : vector<1x32x32xbf16> to vector<32x32xbf16>
    %cst_20 = arith.constant dense<0.000000e+00> : vector<16x32xf32>
    %48 = tpu.matmul %45, %47, %cst_20 {dimension_numbers = #tpu.dot_dimension_numbers<[1], [0], [0], [1], [0, 0, 1, 1], [], []>} : vector<16x32xbf16>, vector<32x32xbf16>, vector<16x32xf32> -> vector<16x32xf32>
    %c4 = arith.constant 4 : index
    %c0_21 = arith.constant 0 : index
    %49 = vector.load %arg4[%c4, %c0_21] : memref<24x128xf32, #tpu.memory_space<vmem>>, vector<1x32xf32>
    %50 = vector.broadcast %49 : vector<1x32xf32> to vector<16x32xf32>
    %51 = arith.addf %48, %50 : vector<16x32xf32>
    %c1_22 = arith.constant 1 : index
    %c0_23 = arith.constant 0 : index
    %c0_24 = arith.constant 0 : index
    %52 = vector.load %arg5[%c1_22, %c0_23, %c0_24] : memref<9x32x32xbf16, #tpu.memory_space<vmem>>, vector<1x32x32xbf16>
    %53 = vector.shape_cast %52 : vector<1x32x32xbf16> to vector<32x32xbf16>
    %cst_25 = arith.constant dense<0.000000e+00> : vector<16x32xf32>
    %54 = tpu.matmul %45, %53, %cst_25 {dimension_numbers = #tpu.dot_dimension_numbers<[1], [0], [0], [1], [0, 0, 1, 1], [], []>} : vector<16x32xbf16>, vector<32x32xbf16>, vector<16x32xf32> -> vector<16x32xf32>
    %c5 = arith.constant 5 : index
    %c0_26 = arith.constant 0 : index
    %55 = vector.load %arg4[%c5, %c0_26] : memref<24x128xf32, #tpu.memory_space<vmem>>, vector<1x32xf32>
    %56 = vector.broadcast %55 : vector<1x32xf32> to vector<16x32xf32>
    %57 = arith.addf %54, %56 : vector<16x32xf32>
    %c2 = arith.constant 2 : index
    %c0_27 = arith.constant 0 : index
    %c0_28 = arith.constant 0 : index
    %58 = vector.load %arg5[%c2, %c0_27, %c0_28] : memref<9x32x32xbf16, #tpu.memory_space<vmem>>, vector<1x32x32xbf16>
    %59 = vector.shape_cast %58 : vector<1x32x32xbf16> to vector<32x32xbf16>
    %cst_29 = arith.constant dense<0.000000e+00> : vector<16x32xf32>
    %60 = tpu.matmul %45, %59, %cst_29 {dimension_numbers = #tpu.dot_dimension_numbers<[1], [0], [0], [1], [0, 0, 1, 1], [], []>} : vector<16x32xbf16>, vector<32x32xbf16>, vector<16x32xf32> -> vector<16x32xf32>
    %c6 = arith.constant 6 : index
    %c0_30 = arith.constant 0 : index
    %61 = vector.load %arg4[%c6, %c0_30] : memref<24x128xf32, #tpu.memory_space<vmem>>, vector<1x32xf32>
    %62 = vector.broadcast %61 : vector<1x32xf32> to vector<16x32xf32>
    %63 = arith.addf %60, %62 : vector<16x32xf32>
    %64 = vector.extract_strided_slice %51 {offsets = [0, 0], sizes = [8, 32], strides = [1, 1]} : vector<16x32xf32> to vector<8x32xf32>
    %65 = vector.shape_cast %64 : vector<8x32xf32> to vector<8x4x8xf32>
    %66 = arith.truncf %65 : vector<8x4x8xf32> to vector<8x4x8xbf16>
    %67 = vector.extract_strided_slice %57 {offsets = [0, 0], sizes = [8, 32], strides = [1, 1]} : vector<16x32xf32> to vector<8x32xf32>
    %68 = vector.shape_cast %67 : vector<8x32xf32> to vector<8x4x8xf32>
    %69 = arith.truncf %68 : vector<8x4x8xf32> to vector<8x4x8xbf16>
    %70 = vector.extract_strided_slice %63 {offsets = [0, 0], sizes = [8, 32], strides = [1, 1]} : vector<16x32xf32> to vector<8x32xf32>
    %71 = vector.shape_cast %70 : vector<8x32xf32> to vector<8x4x8xf32>
    %72 = arith.truncf %71 : vector<8x4x8xf32> to vector<8x4x8xbf16>
    "tpu.trace_start"() <{level = 10 : i32, message = "qhd,khd->hqk"}> : () -> ()
    %cst_31 = arith.constant dense<0.000000e+00> : vector<4x8x8xf32>
    %73 = tpu.matmul %66, %69, %cst_31 {dimension_numbers = #tpu.dot_dimension_numbers<[2], [2], [0], [0], [0, 1, 0, 0, 1, 0], [1], [1]>} : vector<8x4x8xbf16>, vector<8x4x8xbf16>, vector<4x8x8xf32> -> vector<4x8x8xf32>
    "tpu.trace_stop"() : () -> ()
    %74 = vector.broadcast %42 : vector<1x1x8xf32> to vector<4x8x8xf32>
    %75 = arith.addf %73, %74 : vector<4x8x8xf32>
    %cst_32 = arith.constant dense<0xFF800000> : vector<4x8xf32>
    %76 = vector.multi_reduction <maximumf>, %75, %cst_32 [2] : vector<4x8x8xf32> to vector<4x8xf32>
    %77 = vector.shape_cast %76 : vector<4x8xf32> to vector<4x8x1xf32>
    %78 = vector.broadcast %77 : vector<4x8x1xf32> to vector<4x8x8xf32>
    %79 = arith.subf %75, %78 : vector<4x8x8xf32>
    %80 = math.exp %79 : vector<4x8x8xf32>
    %cst_33 = arith.constant dense<0.000000e+00> : vector<4x8xf32>
    %81 = vector.multi_reduction <add>, %80, %cst_33 [2] : vector<4x8x8xf32> to vector<4x8xf32>
    %82 = vector.shape_cast %81 : vector<4x8xf32> to vector<4x8x1xf32>
    %83 = tpu.reciprocal %82 {approx = true} : vector<4x8x1xf32> -> vector<4x8x1xf32>
    %84 = vector.broadcast %83 : vector<4x8x1xf32> to vector<4x8x8xf32>
    %85 = arith.mulf %80, %84 : vector<4x8x8xf32>
    %86 = arith.truncf %85 : vector<4x8x8xf32> to vector<4x8x8xbf16>
    "tpu.trace_start"() <{level = 10 : i32, message = "hqk,khd->qhd"}> : () -> ()
    %cst_34 = arith.constant dense<0.000000e+00> : vector<4x8x8xf32>
    %87 = tpu.matmul %72, %86, %cst_34 {dimension_numbers = #tpu.dot_dimension_numbers<[0], [2], [2], [1], [0, 1, 0, 2, 1, 1], [1], [0]>} : vector<8x4x8xbf16>, vector<4x8x8xbf16>, vector<4x8x8xf32> -> vector<4x8x8xf32>
    %88 = tpu.transpose %87, [2, 0, 1] : vector<4x8x8xf32> -> vector<8x4x8xf32>
    "tpu.trace_stop"() : () -> ()
    %89 = vector.shape_cast %88 : vector<8x4x8xf32> to vector<8x32xf32>
    %90 = vector.extract_strided_slice %51 {offsets = [8, 0], sizes = [8, 32], strides = [1, 1]} : vector<16x32xf32> to vector<8x32xf32>
    %91 = vector.shape_cast %90 : vector<8x32xf32> to vector<8x4x8xf32>
    %92 = arith.truncf %91 : vector<8x4x8xf32> to vector<8x4x8xbf16>
    %93 = vector.extract_strided_slice %57 {offsets = [8, 0], sizes = [8, 32], strides = [1, 1]} : vector<16x32xf32> to vector<8x32xf32>
    %94 = vector.shape_cast %93 : vector<8x32xf32> to vector<8x4x8xf32>
    %95 = arith.truncf %94 : vector<8x4x8xf32> to vector<8x4x8xbf16>
    %96 = vector.extract_strided_slice %63 {offsets = [8, 0], sizes = [8, 32], strides = [1, 1]} : vector<16x32xf32> to vector<8x32xf32>
    %97 = vector.shape_cast %96 : vector<8x32xf32> to vector<8x4x8xf32>
    %98 = arith.truncf %97 : vector<8x4x8xf32> to vector<8x4x8xbf16>
    "tpu.trace_start"() <{level = 10 : i32, message = "qhd,khd->hqk"}> : () -> ()
    %cst_35 = arith.constant dense<0.000000e+00> : vector<4x8x8xf32>
    %99 = tpu.matmul %92, %95, %cst_35 {dimension_numbers = #tpu.dot_dimension_numbers<[2], [2], [0], [0], [0, 1, 0, 0, 1, 0], [1], [1]>} : vector<8x4x8xbf16>, vector<8x4x8xbf16>, vector<4x8x8xf32> -> vector<4x8x8xf32>
    "tpu.trace_stop"() : () -> ()
    %100 = vector.broadcast %44 : vector<1x1x8xf32> to vector<4x8x8xf32>
    %101 = arith.addf %99, %100 : vector<4x8x8xf32>
    %cst_36 = arith.constant dense<0xFF800000> : vector<4x8xf32>
    %102 = vector.multi_reduction <maximumf>, %101, %cst_36 [2] : vector<4x8x8xf32> to vector<4x8xf32>
    %103 = vector.shape_cast %102 : vector<4x8xf32> to vector<4x8x1xf32>
    %104 = vector.broadcast %103 : vector<4x8x1xf32> to vector<4x8x8xf32>
    %105 = arith.subf %101, %104 : vector<4x8x8xf32>
    %106 = math.exp %105 : vector<4x8x8xf32>
    %cst_37 = arith.constant dense<0.000000e+00> : vector<4x8xf32>
    %107 = vector.multi_reduction <add>, %106, %cst_37 [2] : vector<4x8x8xf32> to vector<4x8xf32>
    %108 = vector.shape_cast %107 : vector<4x8xf32> to vector<4x8x1xf32>
    %109 = tpu.reciprocal %108 {approx = true} : vector<4x8x1xf32> -> vector<4x8x1xf32>
    %110 = vector.broadcast %109 : vector<4x8x1xf32> to vector<4x8x8xf32>
    %111 = arith.mulf %106, %110 : vector<4x8x8xf32>
    %112 = arith.truncf %111 : vector<4x8x8xf32> to vector<4x8x8xbf16>
    "tpu.trace_start"() <{level = 10 : i32, message = "hqk,khd->qhd"}> : () -> ()
    %cst_38 = arith.constant dense<0.000000e+00> : vector<4x8x8xf32>
    %113 = tpu.matmul %98, %112, %cst_38 {dimension_numbers = #tpu.dot_dimension_numbers<[0], [2], [2], [1], [0, 1, 0, 2, 1, 1], [1], [0]>} : vector<8x4x8xbf16>, vector<4x8x8xbf16>, vector<4x8x8xf32> -> vector<4x8x8xf32>
    %114 = tpu.transpose %113, [2, 0, 1] : vector<4x8x8xf32> -> vector<8x4x8xf32>
    "tpu.trace_stop"() : () -> ()
    %115 = vector.shape_cast %114 : vector<8x4x8xf32> to vector<8x32xf32>
    %116 = tpu.concatenate %89, %115 in 0 : vector<8x32xf32>, vector<8x32xf32> -> vector<16x32xf32>
    %117 = arith.truncf %116 : vector<16x32xf32> to vector<16x32xbf16>
    %c3 = arith.constant 3 : index
    %c0_39 = arith.constant 0 : index
    %c0_40 = arith.constant 0 : index
    %118 = vector.load %arg5[%c3, %c0_39, %c0_40] : memref<9x32x32xbf16, #tpu.memory_space<vmem>>, vector<1x32x32xbf16>
    %119 = vector.shape_cast %118 : vector<1x32x32xbf16> to vector<32x32xbf16>
    %cst_41 = arith.constant dense<0.000000e+00> : vector<16x32xf32>
    %120 = tpu.matmul %117, %119, %cst_41 {dimension_numbers = #tpu.dot_dimension_numbers<[1], [0], [0], [1], [0, 0, 1, 1], [], []>} : vector<16x32xbf16>, vector<32x32xbf16>, vector<16x32xf32> -> vector<16x32xf32>
    %c7 = arith.constant 7 : index
    %c0_42 = arith.constant 0 : index
    %121 = vector.load %arg4[%c7, %c0_42] : memref<24x128xf32, #tpu.memory_space<vmem>>, vector<1x32xf32>
    %122 = vector.broadcast %121 : vector<1x32xf32> to vector<16x32xf32>
    %123 = arith.addf %120, %122 : vector<16x32xf32>
    %124 = arith.addf %34, %123 : vector<16x32xf32>
    %c8 = arith.constant 8 : index
    %c0_43 = arith.constant 0 : index
    %125 = vector.load %arg4[%c8, %c0_43] : memref<24x128xf32, #tpu.memory_space<vmem>>, vector<1x32xf32>
    %c9 = arith.constant 9 : index
    %c0_44 = arith.constant 0 : index
    %126 = vector.load %arg4[%c9, %c0_44] : memref<24x128xf32, #tpu.memory_space<vmem>>, vector<1x32xf32>
    %cst_45 = arith.constant dense<0.000000e+00> : vector<16xf32>
    %127 = vector.multi_reduction <add>, %124, %cst_45 [1] : vector<16x32xf32> to vector<16xf32>
    %128 = vector.shape_cast %127 : vector<16xf32> to vector<16x1xf32>
    %cst_46 = arith.constant 3.200000e+01 : f32
    %129 = vector.broadcast %cst_46 : f32 to vector<16x1xf32>
    %130 = arith.divf %128, %129 : vector<16x1xf32>
    %131 = vector.broadcast %130 : vector<16x1xf32> to vector<16x32xf32>
    %132 = arith.subf %124, %131 : vector<16x32xf32>
    %133 = arith.mulf %132, %132 : vector<16x32xf32>
    %cst_47 = arith.constant dense<0.000000e+00> : vector<16xf32>
    %134 = vector.multi_reduction <add>, %133, %cst_47 [1] : vector<16x32xf32> to vector<16xf32>
    %135 = vector.shape_cast %134 : vector<16xf32> to vector<16x1xf32>
    %cst_48 = arith.constant 3.200000e+01 : f32
    %136 = vector.broadcast %cst_48 : f32 to vector<16x1xf32>
    %137 = arith.divf %135, %136 : vector<16x1xf32>
    %138 = vector.broadcast %130 : vector<16x1xf32> to vector<16x32xf32>
    %139 = arith.subf %124, %138 : vector<16x32xf32>
    %cst_49 = arith.constant 9.99999996E-13 : f32
    %140 = vector.broadcast %cst_49 : f32 to vector<16x1xf32>
    %141 = arith.addf %137, %140 : vector<16x1xf32>
    %142 = math.rsqrt %141 : vector<16x1xf32>
    %143 = vector.broadcast %142 : vector<16x1xf32> to vector<16x32xf32>
    %144 = arith.mulf %139, %143 : vector<16x32xf32>
    %145 = vector.broadcast %125 : vector<1x32xf32> to vector<16x32xf32>
    %146 = arith.mulf %144, %145 : vector<16x32xf32>
    %147 = vector.broadcast %126 : vector<1x32xf32> to vector<16x32xf32>
    %148 = arith.addf %146, %147 : vector<16x32xf32>
    %149 = arith.truncf %148 : vector<16x32xf32> to vector<16x32xbf16>
    %c0_50 = arith.constant 0 : index
    %c0_51 = arith.constant 0 : index
    %c0_52 = arith.constant 0 : index
    %150 = vector.load %arg6[%c0_50, %c0_51, %c0_52] : memref<2x32x64xbf16, #tpu.memory_space<vmem>>, vector<1x32x64xbf16>
    %151 = vector.shape_cast %150 : vector<1x32x64xbf16> to vector<32x64xbf16>
    %cst_53 = arith.constant dense<0.000000e+00> : vector<16x64xf32>
    %152 = tpu.matmul %149, %151, %cst_53 {dimension_numbers = #tpu.dot_dimension_numbers<[1], [0], [0], [1], [0, 0, 1, 1], [], []>} : vector<16x32xbf16>, vector<32x64xbf16>, vector<16x64xf32> -> vector<16x64xf32>
    %c10 = arith.constant 10 : index
    %c0_54 = arith.constant 0 : index
    %153 = vector.load %arg4[%c10, %c0_54] : memref<24x128xf32, #tpu.memory_space<vmem>>, vector<1x64xf32>
    %154 = vector.broadcast %153 : vector<1x64xf32> to vector<16x64xf32>
    %155 = arith.addf %152, %154 : vector<16x64xf32>
    %156 = arith.mulf %155, %155 : vector<16x64xf32>
    %157 = arith.mulf %155, %156 : vector<16x64xf32>
    %cst_55 = arith.constant 4.471500e-02 : f32
    %158 = vector.broadcast %cst_55 : f32 to vector<16x64xf32>
    %159 = arith.mulf %158, %157 : vector<16x64xf32>
    %160 = arith.addf %155, %159 : vector<16x64xf32>
    %cst_56 = arith.constant 0.797884583 : f32
    %161 = vector.broadcast %cst_56 : f32 to vector<16x64xf32>
    %162 = arith.mulf %161, %160 : vector<16x64xf32>
    %163 = math.tanh %162 : vector<16x64xf32>
    %cst_57 = arith.constant 1.000000e+00 : f32
    %164 = vector.broadcast %cst_57 : f32 to vector<16x64xf32>
    %165 = arith.addf %164, %163 : vector<16x64xf32>
    %cst_58 = arith.constant 5.000000e-01 : f32
    %166 = vector.broadcast %cst_58 : f32 to vector<16x64xf32>
    %167 = arith.mulf %166, %165 : vector<16x64xf32>
    %168 = arith.mulf %155, %167 : vector<16x64xf32>
    %169 = arith.truncf %168 : vector<16x64xf32> to vector<16x64xbf16>
    %c0_59 = arith.constant 0 : index
    %c0_60 = arith.constant 0 : index
    %c0_61 = arith.constant 0 : index
    %170 = vector.load %arg7[%c0_59, %c0_60, %c0_61] : memref<2x64x32xbf16, #tpu.memory_space<vmem>>, vector<1x64x32xbf16>
    %171 = vector.shape_cast %170 : vector<1x64x32xbf16> to vector<64x32xbf16>
    %cst_62 = arith.constant dense<0.000000e+00> : vector<16x32xf32>
    %172 = tpu.matmul %169, %171, %cst_62 {dimension_numbers = #tpu.dot_dimension_numbers<[1], [0], [0], [1], [0, 0, 1, 1], [], []>} : vector<16x64xbf16>, vector<64x32xbf16>, vector<16x32xf32> -> vector<16x32xf32>
    %c11 = arith.constant 11 : index
    %c0_63 = arith.constant 0 : index
    %173 = vector.load %arg4[%c11, %c0_63] : memref<24x128xf32, #tpu.memory_space<vmem>>, vector<1x32xf32>
    %174 = vector.broadcast %173 : vector<1x32xf32> to vector<16x32xf32>
    %175 = arith.addf %172, %174 : vector<16x32xf32>
    %176 = arith.addf %148, %175 : vector<16x32xf32>
    %c12 = arith.constant 12 : index
    %c0_64 = arith.constant 0 : index
    %177 = vector.load %arg4[%c12, %c0_64] : memref<24x128xf32, #tpu.memory_space<vmem>>, vector<1x32xf32>
    %c13 = arith.constant 13 : index
    %c0_65 = arith.constant 0 : index
    %178 = vector.load %arg4[%c13, %c0_65] : memref<24x128xf32, #tpu.memory_space<vmem>>, vector<1x32xf32>
    %cst_66 = arith.constant dense<0.000000e+00> : vector<16xf32>
    %179 = vector.multi_reduction <add>, %176, %cst_66 [1] : vector<16x32xf32> to vector<16xf32>
    %180 = vector.shape_cast %179 : vector<16xf32> to vector<16x1xf32>
    %cst_67 = arith.constant 3.200000e+01 : f32
    %181 = vector.broadcast %cst_67 : f32 to vector<16x1xf32>
    %182 = arith.divf %180, %181 : vector<16x1xf32>
    %183 = vector.broadcast %182 : vector<16x1xf32> to vector<16x32xf32>
    %184 = arith.subf %176, %183 : vector<16x32xf32>
    %185 = arith.mulf %184, %184 : vector<16x32xf32>
    %cst_68 = arith.constant dense<0.000000e+00> : vector<16xf32>
    %186 = vector.multi_reduction <add>, %185, %cst_68 [1] : vector<16x32xf32> to vector<16xf32>
    %187 = vector.shape_cast %186 : vector<16xf32> to vector<16x1xf32>
    %cst_69 = arith.constant 3.200000e+01 : f32
    %188 = vector.broadcast %cst_69 : f32 to vector<16x1xf32>
    %189 = arith.divf %187, %188 : vector<16x1xf32>
    %190 = vector.broadcast %182 : vector<16x1xf32> to vector<16x32xf32>
    %191 = arith.subf %176, %190 : vector<16x32xf32>
    %cst_70 = arith.constant 9.99999996E-13 : f32
    %192 = vector.broadcast %cst_70 : f32 to vector<16x1xf32>
    %193 = arith.addf %189, %192 : vector<16x1xf32>
    %194 = math.rsqrt %193 : vector<16x1xf32>
    %195 = vector.broadcast %194 : vector<16x1xf32> to vector<16x32xf32>
    %196 = arith.mulf %191, %195 : vector<16x32xf32>
    %197 = vector.broadcast %177 : vector<1x32xf32> to vector<16x32xf32>
    %198 = arith.mulf %196, %197 : vector<16x32xf32>
    %199 = vector.broadcast %178 : vector<1x32xf32> to vector<16x32xf32>
    %200 = arith.addf %198, %199 : vector<16x32xf32>
    %201 = arith.truncf %200 : vector<16x32xf32> to vector<16x32xbf16>
    %c4_71 = arith.constant 4 : index
    %c0_72 = arith.constant 0 : index
    %c0_73 = arith.constant 0 : index
    %202 = vector.load %arg5[%c4_71, %c0_72, %c0_73] : memref<9x32x32xbf16, #tpu.memory_space<vmem>>, vector<1x32x32xbf16>
    %203 = vector.shape_cast %202 : vector<1x32x32xbf16> to vector<32x32xbf16>
    %cst_74 = arith.constant dense<0.000000e+00> : vector<16x32xf32>
    %204 = tpu.matmul %201, %203, %cst_74 {dimension_numbers = #tpu.dot_dimension_numbers<[1], [0], [0], [1], [0, 0, 1, 1], [], []>} : vector<16x32xbf16>, vector<32x32xbf16>, vector<16x32xf32> -> vector<16x32xf32>
    %c14 = arith.constant 14 : index
    %c0_75 = arith.constant 0 : index
    %205 = vector.load %arg4[%c14, %c0_75] : memref<24x128xf32, #tpu.memory_space<vmem>>, vector<1x32xf32>
    %206 = vector.broadcast %205 : vector<1x32xf32> to vector<16x32xf32>
    %207 = arith.addf %204, %206 : vector<16x32xf32>
    %c5_76 = arith.constant 5 : index
    %c0_77 = arith.constant 0 : index
    %c0_78 = arith.constant 0 : index
    %208 = vector.load %arg5[%c5_76, %c0_77, %c0_78] : memref<9x32x32xbf16, #tpu.memory_space<vmem>>, vector<1x32x32xbf16>
    %209 = vector.shape_cast %208 : vector<1x32x32xbf16> to vector<32x32xbf16>
    %cst_79 = arith.constant dense<0.000000e+00> : vector<16x32xf32>
    %210 = tpu.matmul %201, %209, %cst_79 {dimension_numbers = #tpu.dot_dimension_numbers<[1], [0], [0], [1], [0, 0, 1, 1], [], []>} : vector<16x32xbf16>, vector<32x32xbf16>, vector<16x32xf32> -> vector<16x32xf32>
    %c15 = arith.constant 15 : index
    %c0_80 = arith.constant 0 : index
    %211 = vector.load %arg4[%c15, %c0_80] : memref<24x128xf32, #tpu.memory_space<vmem>>, vector<1x32xf32>
    %212 = vector.broadcast %211 : vector<1x32xf32> to vector<16x32xf32>
    %213 = arith.addf %210, %212 : vector<16x32xf32>
    %c6_81 = arith.constant 6 : index
    %c0_82 = arith.constant 0 : index
    %c0_83 = arith.constant 0 : index
    %214 = vector.load %arg5[%c6_81, %c0_82, %c0_83] : memref<9x32x32xbf16, #tpu.memory_space<vmem>>, vector<1x32x32xbf16>
    %215 = vector.shape_cast %214 : vector<1x32x32xbf16> to vector<32x32xbf16>
    %cst_84 = arith.constant dense<0.000000e+00> : vector<16x32xf32>
    %216 = tpu.matmul %201, %215, %cst_84 {dimension_numbers = #tpu.dot_dimension_numbers<[1], [0], [0], [1], [0, 0, 1, 1], [], []>} : vector<16x32xbf16>, vector<32x32xbf16>, vector<16x32xf32> -> vector<16x32xf32>
    %c16 = arith.constant 16 : index
    %c0_85 = arith.constant 0 : index
    %217 = vector.load %arg4[%c16, %c0_85] : memref<24x128xf32, #tpu.memory_space<vmem>>, vector<1x32xf32>
    %218 = vector.broadcast %217 : vector<1x32xf32> to vector<16x32xf32>
    %219 = arith.addf %216, %218 : vector<16x32xf32>
    %220 = vector.extract_strided_slice %207 {offsets = [0, 0], sizes = [8, 32], strides = [1, 1]} : vector<16x32xf32> to vector<8x32xf32>
    %221 = vector.shape_cast %220 : vector<8x32xf32> to vector<8x4x8xf32>
    %222 = arith.truncf %221 : vector<8x4x8xf32> to vector<8x4x8xbf16>
    %223 = vector.extract_strided_slice %213 {offsets = [0, 0], sizes = [8, 32], strides = [1, 1]} : vector<16x32xf32> to vector<8x32xf32>
    %224 = vector.shape_cast %223 : vector<8x32xf32> to vector<8x4x8xf32>
    %225 = arith.truncf %224 : vector<8x4x8xf32> to vector<8x4x8xbf16>
    %226 = vector.extract_strided_slice %219 {offsets = [0, 0], sizes = [8, 32], strides = [1, 1]} : vector<16x32xf32> to vector<8x32xf32>
    %227 = vector.shape_cast %226 : vector<8x32xf32> to vector<8x4x8xf32>
    %228 = arith.truncf %227 : vector<8x4x8xf32> to vector<8x4x8xbf16>
    "tpu.trace_start"() <{level = 10 : i32, message = "qhd,khd->hqk"}> : () -> ()
    %cst_86 = arith.constant dense<0.000000e+00> : vector<4x8x8xf32>
    %229 = tpu.matmul %222, %225, %cst_86 {dimension_numbers = #tpu.dot_dimension_numbers<[2], [2], [0], [0], [0, 1, 0, 0, 1, 0], [1], [1]>} : vector<8x4x8xbf16>, vector<8x4x8xbf16>, vector<4x8x8xf32> -> vector<4x8x8xf32>
    "tpu.trace_stop"() : () -> ()
    %230 = vector.broadcast %42 : vector<1x1x8xf32> to vector<4x8x8xf32>
    %231 = arith.addf %229, %230 : vector<4x8x8xf32>
    %cst_87 = arith.constant dense<0xFF800000> : vector<4x8xf32>
    %232 = vector.multi_reduction <maximumf>, %231, %cst_87 [2] : vector<4x8x8xf32> to vector<4x8xf32>
    %233 = vector.shape_cast %232 : vector<4x8xf32> to vector<4x8x1xf32>
    %234 = vector.broadcast %233 : vector<4x8x1xf32> to vector<4x8x8xf32>
    %235 = arith.subf %231, %234 : vector<4x8x8xf32>
    %236 = math.exp %235 : vector<4x8x8xf32>
    %cst_88 = arith.constant dense<0.000000e+00> : vector<4x8xf32>
    %237 = vector.multi_reduction <add>, %236, %cst_88 [2] : vector<4x8x8xf32> to vector<4x8xf32>
    %238 = vector.shape_cast %237 : vector<4x8xf32> to vector<4x8x1xf32>
    %239 = tpu.reciprocal %238 {approx = true} : vector<4x8x1xf32> -> vector<4x8x1xf32>
    %240 = vector.broadcast %239 : vector<4x8x1xf32> to vector<4x8x8xf32>
    %241 = arith.mulf %236, %240 : vector<4x8x8xf32>
    %242 = arith.truncf %241 : vector<4x8x8xf32> to vector<4x8x8xbf16>
    "tpu.trace_start"() <{level = 10 : i32, message = "hqk,khd->qhd"}> : () -> ()
    %cst_89 = arith.constant dense<0.000000e+00> : vector<4x8x8xf32>
    %243 = tpu.matmul %228, %242, %cst_89 {dimension_numbers = #tpu.dot_dimension_numbers<[0], [2], [2], [1], [0, 1, 0, 2, 1, 1], [1], [0]>} : vector<8x4x8xbf16>, vector<4x8x8xbf16>, vector<4x8x8xf32> -> vector<4x8x8xf32>
    %244 = tpu.transpose %243, [2, 0, 1] : vector<4x8x8xf32> -> vector<8x4x8xf32>
    "tpu.trace_stop"() : () -> ()
    %245 = vector.shape_cast %244 : vector<8x4x8xf32> to vector<8x32xf32>
    %246 = vector.extract_strided_slice %207 {offsets = [8, 0], sizes = [8, 32], strides = [1, 1]} : vector<16x32xf32> to vector<8x32xf32>
    %247 = vector.shape_cast %246 : vector<8x32xf32> to vector<8x4x8xf32>
    %248 = arith.truncf %247 : vector<8x4x8xf32> to vector<8x4x8xbf16>
    %249 = vector.extract_strided_slice %213 {offsets = [8, 0], sizes = [8, 32], strides = [1, 1]} : vector<16x32xf32> to vector<8x32xf32>
    %250 = vector.shape_cast %249 : vector<8x32xf32> to vector<8x4x8xf32>
    %251 = arith.truncf %250 : vector<8x4x8xf32> to vector<8x4x8xbf16>
    %252 = vector.extract_strided_slice %219 {offsets = [8, 0], sizes = [8, 32], strides = [1, 1]} : vector<16x32xf32> to vector<8x32xf32>
    %253 = vector.shape_cast %252 : vector<8x32xf32> to vector<8x4x8xf32>
    %254 = arith.truncf %253 : vector<8x4x8xf32> to vector<8x4x8xbf16>
    "tpu.trace_start"() <{level = 10 : i32, message = "qhd,khd->hqk"}> : () -> ()
    %cst_90 = arith.constant dense<0.000000e+00> : vector<4x8x8xf32>
    %255 = tpu.matmul %248, %251, %cst_90 {dimension_numbers = #tpu.dot_dimension_numbers<[2], [2], [0], [0], [0, 1, 0, 0, 1, 0], [1], [1]>} : vector<8x4x8xbf16>, vector<8x4x8xbf16>, vector<4x8x8xf32> -> vector<4x8x8xf32>
    "tpu.trace_stop"() : () -> ()
    %256 = vector.broadcast %44 : vector<1x1x8xf32> to vector<4x8x8xf32>
    %257 = arith.addf %255, %256 : vector<4x8x8xf32>
    %cst_91 = arith.constant dense<0xFF800000> : vector<4x8xf32>
    %258 = vector.multi_reduction <maximumf>, %257, %cst_91 [2] : vector<4x8x8xf32> to vector<4x8xf32>
    %259 = vector.shape_cast %258 : vector<4x8xf32> to vector<4x8x1xf32>
    %260 = vector.broadcast %259 : vector<4x8x1xf32> to vector<4x8x8xf32>
    %261 = arith.subf %257, %260 : vector<4x8x8xf32>
    %262 = math.exp %261 : vector<4x8x8xf32>
    %cst_92 = arith.constant dense<0.000000e+00> : vector<4x8xf32>
    %263 = vector.multi_reduction <add>, %262, %cst_92 [2] : vector<4x8x8xf32> to vector<4x8xf32>
    %264 = vector.shape_cast %263 : vector<4x8xf32> to vector<4x8x1xf32>
    %265 = tpu.reciprocal %264 {approx = true} : vector<4x8x1xf32> -> vector<4x8x1xf32>
    %266 = vector.broadcast %265 : vector<4x8x1xf32> to vector<4x8x8xf32>
    %267 = arith.mulf %262, %266 : vector<4x8x8xf32>
    %268 = arith.truncf %267 : vector<4x8x8xf32> to vector<4x8x8xbf16>
    "tpu.trace_start"() <{level = 10 : i32, message = "hqk,khd->qhd"}> : () -> ()
    %cst_93 = arith.constant dense<0.000000e+00> : vector<4x8x8xf32>
    %269 = tpu.matmul %254, %268, %cst_93 {dimension_numbers = #tpu.dot_dimension_numbers<[0], [2], [2], [1], [0, 1, 0, 2, 1, 1], [1], [0]>} : vector<8x4x8xbf16>, vector<4x8x8xbf16>, vector<4x8x8xf32> -> vector<4x8x8xf32>
    %270 = tpu.transpose %269, [2, 0, 1] : vector<4x8x8xf32> -> vector<8x4x8xf32>
    "tpu.trace_stop"() : () -> ()
    %271 = vector.shape_cast %270 : vector<8x4x8xf32> to vector<8x32xf32>
    %272 = tpu.concatenate %245, %271 in 0 : vector<8x32xf32>, vector<8x32xf32> -> vector<16x32xf32>
    %273 = arith.truncf %272 : vector<16x32xf32> to vector<16x32xbf16>
    %c7_94 = arith.constant 7 : index
    %c0_95 = arith.constant 0 : index
    %c0_96 = arith.constant 0 : index
    %274 = vector.load %arg5[%c7_94, %c0_95, %c0_96] : memref<9x32x32xbf16, #tpu.memory_space<vmem>>, vector<1x32x32xbf16>
    %275 = vector.shape_cast %274 : vector<1x32x32xbf16> to vector<32x32xbf16>
    %cst_97 = arith.constant dense<0.000000e+00> : vector<16x32xf32>
    %276 = tpu.matmul %273, %275, %cst_97 {dimension_numbers = #tpu.dot_dimension_numbers<[1], [0], [0], [1], [0, 0, 1, 1], [], []>} : vector<16x32xbf16>, vector<32x32xbf16>, vector<16x32xf32> -> vector<16x32xf32>
    %c17 = arith.constant 17 : index
    %c0_98 = arith.constant 0 : index
    %277 = vector.load %arg4[%c17, %c0_98] : memref<24x128xf32, #tpu.memory_space<vmem>>, vector<1x32xf32>
    %278 = vector.broadcast %277 : vector<1x32xf32> to vector<16x32xf32>
    %279 = arith.addf %276, %278 : vector<16x32xf32>
    %280 = arith.addf %200, %279 : vector<16x32xf32>
    %c18 = arith.constant 18 : index
    %c0_99 = arith.constant 0 : index
    %281 = vector.load %arg4[%c18, %c0_99] : memref<24x128xf32, #tpu.memory_space<vmem>>, vector<1x32xf32>
    %c19 = arith.constant 19 : index
    %c0_100 = arith.constant 0 : index
    %282 = vector.load %arg4[%c19, %c0_100] : memref<24x128xf32, #tpu.memory_space<vmem>>, vector<1x32xf32>
    %cst_101 = arith.constant dense<0.000000e+00> : vector<16xf32>
    %283 = vector.multi_reduction <add>, %280, %cst_101 [1] : vector<16x32xf32> to vector<16xf32>
    %284 = vector.shape_cast %283 : vector<16xf32> to vector<16x1xf32>
    %cst_102 = arith.constant 3.200000e+01 : f32
    %285 = vector.broadcast %cst_102 : f32 to vector<16x1xf32>
    %286 = arith.divf %284, %285 : vector<16x1xf32>
    %287 = vector.broadcast %286 : vector<16x1xf32> to vector<16x32xf32>
    %288 = arith.subf %280, %287 : vector<16x32xf32>
    %289 = arith.mulf %288, %288 : vector<16x32xf32>
    %cst_103 = arith.constant dense<0.000000e+00> : vector<16xf32>
    %290 = vector.multi_reduction <add>, %289, %cst_103 [1] : vector<16x32xf32> to vector<16xf32>
    %291 = vector.shape_cast %290 : vector<16xf32> to vector<16x1xf32>
    %cst_104 = arith.constant 3.200000e+01 : f32
    %292 = vector.broadcast %cst_104 : f32 to vector<16x1xf32>
    %293 = arith.divf %291, %292 : vector<16x1xf32>
    %294 = vector.broadcast %286 : vector<16x1xf32> to vector<16x32xf32>
    %295 = arith.subf %280, %294 : vector<16x32xf32>
    %cst_105 = arith.constant 9.99999996E-13 : f32
    %296 = vector.broadcast %cst_105 : f32 to vector<16x1xf32>
    %297 = arith.addf %293, %296 : vector<16x1xf32>
    %298 = math.rsqrt %297 : vector<16x1xf32>
    %299 = vector.broadcast %298 : vector<16x1xf32> to vector<16x32xf32>
    %300 = arith.mulf %295, %299 : vector<16x32xf32>
    %301 = vector.broadcast %281 : vector<1x32xf32> to vector<16x32xf32>
    %302 = arith.mulf %300, %301 : vector<16x32xf32>
    %303 = vector.broadcast %282 : vector<1x32xf32> to vector<16x32xf32>
    %304 = arith.addf %302, %303 : vector<16x32xf32>
    %305 = arith.truncf %304 : vector<16x32xf32> to vector<16x32xbf16>
    %c1_106 = arith.constant 1 : index
    %c0_107 = arith.constant 0 : index
    %c0_108 = arith.constant 0 : index
    %306 = vector.load %arg6[%c1_106, %c0_107, %c0_108] : memref<2x32x64xbf16, #tpu.memory_space<vmem>>, vector<1x32x64xbf16>
    %307 = vector.shape_cast %306 : vector<1x32x64xbf16> to vector<32x64xbf16>
    %cst_109 = arith.constant dense<0.000000e+00> : vector<16x64xf32>
    %308 = tpu.matmul %305, %307, %cst_109 {dimension_numbers = #tpu.dot_dimension_numbers<[1], [0], [0], [1], [0, 0, 1, 1], [], []>} : vector<16x32xbf16>, vector<32x64xbf16>, vector<16x64xf32> -> vector<16x64xf32>
    %c20 = arith.constant 20 : index
    %c0_110 = arith.constant 0 : index
    %309 = vector.load %arg4[%c20, %c0_110] : memref<24x128xf32, #tpu.memory_space<vmem>>, vector<1x64xf32>
    %310 = vector.broadcast %309 : vector<1x64xf32> to vector<16x64xf32>
    %311 = arith.addf %308, %310 : vector<16x64xf32>
    %312 = arith.mulf %311, %311 : vector<16x64xf32>
    %313 = arith.mulf %311, %312 : vector<16x64xf32>
    %cst_111 = arith.constant 4.471500e-02 : f32
    %314 = vector.broadcast %cst_111 : f32 to vector<16x64xf32>
    %315 = arith.mulf %314, %313 : vector<16x64xf32>
    %316 = arith.addf %311, %315 : vector<16x64xf32>
    %cst_112 = arith.constant 0.797884583 : f32
    %317 = vector.broadcast %cst_112 : f32 to vector<16x64xf32>
    %318 = arith.mulf %317, %316 : vector<16x64xf32>
    %319 = math.tanh %318 : vector<16x64xf32>
    %cst_113 = arith.constant 1.000000e+00 : f32
    %320 = vector.broadcast %cst_113 : f32 to vector<16x64xf32>
    %321 = arith.addf %320, %319 : vector<16x64xf32>
    %cst_114 = arith.constant 5.000000e-01 : f32
    %322 = vector.broadcast %cst_114 : f32 to vector<16x64xf32>
    %323 = arith.mulf %322, %321 : vector<16x64xf32>
    %324 = arith.mulf %311, %323 : vector<16x64xf32>
    %325 = arith.truncf %324 : vector<16x64xf32> to vector<16x64xbf16>
    %c1_115 = arith.constant 1 : index
    %c0_116 = arith.constant 0 : index
    %c0_117 = arith.constant 0 : index
    %326 = vector.load %arg7[%c1_115, %c0_116, %c0_117] : memref<2x64x32xbf16, #tpu.memory_space<vmem>>, vector<1x64x32xbf16>
    %327 = vector.shape_cast %326 : vector<1x64x32xbf16> to vector<64x32xbf16>
    %cst_118 = arith.constant dense<0.000000e+00> : vector<16x32xf32>
    %328 = tpu.matmul %325, %327, %cst_118 {dimension_numbers = #tpu.dot_dimension_numbers<[1], [0], [0], [1], [0, 0, 1, 1], [], []>} : vector<16x64xbf16>, vector<64x32xbf16>, vector<16x32xf32> -> vector<16x32xf32>
    %c21 = arith.constant 21 : index
    %c0_119 = arith.constant 0 : index
    %329 = vector.load %arg4[%c21, %c0_119] : memref<24x128xf32, #tpu.memory_space<vmem>>, vector<1x32xf32>
    %330 = vector.broadcast %329 : vector<1x32xf32> to vector<16x32xf32>
    %331 = arith.addf %328, %330 : vector<16x32xf32>
    %332 = arith.addf %304, %331 : vector<16x32xf32>
    %c22 = arith.constant 22 : index
    %c0_120 = arith.constant 0 : index
    %333 = vector.load %arg4[%c22, %c0_120] : memref<24x128xf32, #tpu.memory_space<vmem>>, vector<1x32xf32>
    %c23 = arith.constant 23 : index
    %c0_121 = arith.constant 0 : index
    %334 = vector.load %arg4[%c23, %c0_121] : memref<24x128xf32, #tpu.memory_space<vmem>>, vector<1x32xf32>
    %cst_122 = arith.constant dense<0.000000e+00> : vector<16xf32>
    %335 = vector.multi_reduction <add>, %332, %cst_122 [1] : vector<16x32xf32> to vector<16xf32>
    %336 = vector.shape_cast %335 : vector<16xf32> to vector<16x1xf32>
    %cst_123 = arith.constant 3.200000e+01 : f32
    %337 = vector.broadcast %cst_123 : f32 to vector<16x1xf32>
    %338 = arith.divf %336, %337 : vector<16x1xf32>
    %339 = vector.broadcast %338 : vector<16x1xf32> to vector<16x32xf32>
    %340 = arith.subf %332, %339 : vector<16x32xf32>
    %341 = arith.mulf %340, %340 : vector<16x32xf32>
    %cst_124 = arith.constant dense<0.000000e+00> : vector<16xf32>
    %342 = vector.multi_reduction <add>, %341, %cst_124 [1] : vector<16x32xf32> to vector<16xf32>
    %343 = vector.shape_cast %342 : vector<16xf32> to vector<16x1xf32>
    %cst_125 = arith.constant 3.200000e+01 : f32
    %344 = vector.broadcast %cst_125 : f32 to vector<16x1xf32>
    %345 = arith.divf %343, %344 : vector<16x1xf32>
    %346 = vector.broadcast %338 : vector<16x1xf32> to vector<16x32xf32>
    %347 = arith.subf %332, %346 : vector<16x32xf32>
    %cst_126 = arith.constant 9.99999996E-13 : f32
    %348 = vector.broadcast %cst_126 : f32 to vector<16x1xf32>
    %349 = arith.addf %345, %348 : vector<16x1xf32>
    %350 = math.rsqrt %349 : vector<16x1xf32>
    %351 = vector.broadcast %350 : vector<16x1xf32> to vector<16x32xf32>
    %352 = arith.mulf %347, %351 : vector<16x32xf32>
    %353 = vector.broadcast %333 : vector<1x32xf32> to vector<16x32xf32>
    %354 = arith.mulf %352, %353 : vector<16x32xf32>
    %355 = vector.broadcast %334 : vector<1x32xf32> to vector<16x32xf32>
    %356 = arith.addf %354, %355 : vector<16x32xf32>
    %357 = vector.extract_strided_slice %356 {offsets = [0, 0], sizes = [1, 32], strides = [1, 1]} : vector<16x32xf32> to vector<1x32xf32>
    %358 = vector.extract_strided_slice %356 {offsets = [8, 0], sizes = [1, 32], strides = [1, 1]} : vector<16x32xf32> to vector<1x32xf32>
    %359 = tpu.concatenate %357, %358 in 0 : vector<1x32xf32>, vector<1x32xf32> -> vector<2x32xf32>
    %360 = arith.truncf %359 : vector<2x32xf32> to vector<2x32xbf16>
    %c8_127 = arith.constant 8 : index
    %c0_128 = arith.constant 0 : index
    %c0_129 = arith.constant 0 : index
    %361 = vector.load %arg5[%c8_127, %c0_128, %c0_129] : memref<9x32x32xbf16, #tpu.memory_space<vmem>>, vector<1x32x32xbf16>
    %362 = vector.shape_cast %361 : vector<1x32x32xbf16> to vector<32x32xbf16>
    %cst_130 = arith.constant dense<0.000000e+00> : vector<2x32xf32>
    %363 = tpu.matmul %360, %362, %cst_130 {dimension_numbers = #tpu.dot_dimension_numbers<[1], [0], [0], [1], [0, 0, 1, 1], [], []>} : vector<2x32xbf16>, vector<32x32xbf16>, vector<2x32xf32> -> vector<2x32xf32>
    %c2_131 = arith.constant 2 : index
    %c0_132 = arith.constant 0 : index
    %364 = vector.load %arg4[%c2_131, %c0_132] : memref<24x128xf32, #tpu.memory_space<vmem>>, vector<1x32xf32>
    %365 = vector.broadcast %364 : vector<1x32xf32> to vector<2x32xf32>
    %366 = arith.addf %363, %365 : vector<2x32xf32>
    %367 = math.tanh %366 : vector<2x32xf32>
    %368 = arith.truncf %367 : vector<2x32xf32> to vector<2x32xbf16>
    %c0_133 = arith.constant 0 : index
    %c0_134 = arith.constant 0 : index
    %369 = vector.load %arg8[%c0_133, %c0_134] : memref<32x128xbf16, #tpu.memory_space<vmem>>, vector<32x128xbf16>
    %cst_135 = arith.constant dense<0.000000e+00> : vector<2x128xf32>
    %370 = tpu.matmul %368, %369, %cst_135 {dimension_numbers = #tpu.dot_dimension_numbers<[1], [0], [0], [1], [0, 0, 1, 1], [], []>} : vector<2x32xbf16>, vector<32x128xbf16>, vector<2x128xf32> -> vector<2x128xf32>
    %c3_136 = arith.constant 3 : index
    %c0_137 = arith.constant 0 : index
    %371 = vector.load %arg4[%c3_136, %c0_137] : memref<24x128xf32, #tpu.memory_space<vmem>>, vector<1x128xf32>
    %372 = vector.broadcast %371 : vector<1x128xf32> to vector<2x128xf32>
    %373 = arith.addf %370, %372 : vector<2x128xf32>
    %c0_138 = arith.constant 0 : index
    %c0_139 = arith.constant 0 : index
    %374 = vector.load %arg9[%c0_138, %c0_139] : memref<2x128xf32, #tpu.memory_space<vmem>>, vector<2x128xf32>
    tpu.vector_store %arg9[%c0_138, %c0_139], %373 {strides = array<i32>} : memref<2x128xf32, #tpu.memory_space<vmem>>, vector<2x128xf32>,
    return
  }
}

</mosaic_0001>

<llo_original>
// kernel: multitask_mpnet_forward.1
$region0: #{multitask_mpnet_forward.1}
  #allocation0 [shape = 'u32[]', space=smem, size = 0x4, offset = 0x4, fixed_abs, tag = 'smem constant byte address 0x4 - core index']
  #allocation1 [shape = 'u32[144,128]{1,0:T(1,128)}', space=vmem, size = 0x12000, scoped, tag = 'internal scratch']
  %s0 = inlined_call_operand.vmem [shape: s32[16,1], index: 0, kind: input, shape index: {}]
  %s1 = inlined_call_operand.vmem [shape: s32[2,8], index: 1, kind: input, shape index: {}]
  %s2 = inlined_call_operand.vmem [shape: f32[97,32], index: 2, kind: input, shape index: {}]
  %s3 = inlined_call_operand.vmem [shape: f32[32,32], index: 3, kind: input, shape index: {}]
  %s4 = inlined_call_operand.vmem [shape: f32[24,128], index: 4, kind: input, shape index: {}]
  %s5 = inlined_call_operand.vmem [shape: bf16[9,32,32], index: 5, kind: input, shape index: {}]
  %s6 = inlined_call_operand.vmem [shape: bf16[2,32,64], index: 6, kind: input, shape index: {}]
  %s7 = inlined_call_operand.vmem [shape: bf16[2,64,32], index: 7, kind: input, shape index: {}]
  %s8 = inlined_call_operand.vmem [shape: bf16[32,128], index: 8, kind: input, shape index: {}]
  %s9 = inlined_call_operand.vmem [shape: f32[2,128], index: 9, kind: output, shape index: {}]
  %s10 = sld [smem:[#allocation0]]
  $region46: #{multitask_mpnet_forward.1} parent=0
    _
  %s12 = ssub.s32 1, %s10
  %s13 = scalar_select 0, %s12, %s10
  // Predicated region
  $region2: #{multitask_mpnet_forward.1} parent=0 // pred_check
    _
  $region3: #{multitask_mpnet_forward.1} parent=0 // pred_check_branch
    %15 = sbr.rel (0) target = $region5
  $region4: #{multitask_mpnet_forward.1} parent=0 // pred_region
    _
  $region5: #{multitask_mpnet_forward.1} parent=0 // pred_fallthru
    _
  // Predicated region
  $region6: #{multitask_mpnet_forward.1} parent=0 // pred_check
    _
  $region7: #{multitask_mpnet_forward.1} parent=0 // pred_check_branch
    %17 = sbr.rel (0) target = $region9
  $region8: #{multitask_mpnet_forward.1} parent=0 // pred_region
    _
  $region9: #{multitask_mpnet_forward.1} parent=0 // pred_fallthru
    _
  // Predicated region
  $region10: #{multitask_mpnet_forward.1} parent=0 // pred_check
    _
  $region11: #{multitask_mpnet_forward.1} parent=0 // pred_check_branch
    %19 = sbr.rel (0) target = $region13
  $region12: #{multitask_mpnet_forward.1} parent=0 // pred_region
    _
  $region13: #{multitask_mpnet_forward.1} parent=0 // pred_fallthru
    _
  // Predicated region
  $region14: #{multitask_mpnet_forward.1} parent=0 // pred_check
    _
  $region15: #{multitask_mpnet_forward.1} parent=0 // pred_check_branch
    %21 = sbr.rel (0) target = $region17
  $region16: #{multitask_mpnet_forward.1} parent=0 // pred_region
    _
  $region17: #{multitask_mpnet_forward.1} parent=0 // pred_fallthru
    _
  // Predicated region
  $region18: #{multitask_mpnet_forward.1} parent=0 // pred_check
    _
  $region19: #{multitask_mpnet_forward.1} parent=0 // pred_check_branch
    %23 = sbr.rel (0) target = $region21
  $region20: #{multitask_mpnet_forward.1} parent=0 // pred_region
    _
  $region21: #{multitask_mpnet_forward.1} parent=0 // pred_fallthru
    _
  // Predicated region
  $region22: #{multitask_mpnet_forward.1} parent=0 // pred_check
    _
  $region23: #{multitask_mpnet_forward.1} parent=0 // pred_check_branch
    %25 = sbr.rel (0) target = $region25
  $region24: #{multitask_mpnet_forward.1} parent=0 // pred_region
    _
  $region25: #{multitask_mpnet_forward.1} parent=0 // pred_fallthru
    _
  // Predicated region
  $region26: #{multitask_mpnet_forward.1} parent=0 // pred_check
    _
  $region27: #{multitask_mpnet_forward.1} parent=0 // pred_check_branch
    %27 = sbr.rel (0) target = $region29
  $region28: #{multitask_mpnet_forward.1} parent=0 // pred_region
    _
  $region29: #{multitask_mpnet_forward.1} parent=0 // pred_fallthru
    _
  // Predicated region
  $region30: #{multitask_mpnet_forward.1} parent=0 // pred_check
    _
  $region31: #{multitask_mpnet_forward.1} parent=0 // pred_check_branch
    %29 = sbr.rel (0) target = $region33
  $region32: #{multitask_mpnet_forward.1} parent=0 // pred_region
    _
  $region33: #{multitask_mpnet_forward.1} parent=0 // pred_fallthru
    _
  // Predicated region
  $region34: #{multitask_mpnet_forward.1} parent=0 // pred_check
    _
  $region35: #{multitask_mpnet_forward.1} parent=0 // pred_check_branch
    %31 = sbr.rel (0) target = $region37
  $region36: #{multitask_mpnet_forward.1} parent=0 // pred_region
    _
  $region37: #{multitask_mpnet_forward.1} parent=0 // pred_fallthru
    _
  %v33 = vld [vmem:[%s0] sm:$0xff]
  %v34 = vld [vmem:[%s0 + $0x8] sm:$0xff]
  %v35 = vlaneseq
  %v36 = vand.u32 %v35, 127
  %37 = vset.pattern.permute.xlu0 0
  %38 = vperm.xlu0 %37, %v33
  %v39 = vpop.permute.xlu0 %38
  %40 = vset.pattern.permute.xlu0 0
  %41 = vperm.xlu0 %40, %v34
  %v42 = vpop.permute.xlu0 %41
  %vm43 = vcmp.eq.s32.totalorder %v39, %v36
  %vm44 = vcmp.eq.s32.totalorder %v42, %v36
  %v45 = vsel %vm43, 1, 0
  %v46 = vsel %vm44, 1, 0
  %v47 = vcvt.s32.f32 %v45
  %v48 = vcvt.s32.f32 %v46
  %v49 = vld [vmem:[%s2] sm:$0xff]
  %v50 = vld [vmem:[%s2 + $0x8] sm:$0xff]
  %v51 = vld [vmem:[%s2 + $0x10] sm:$0xff]
  %v52 = vld [vmem:[%s2 + $0x18] sm:$0xff]
  %v53 = vld [vmem:[%s2 + $0x20] sm:$0xff]
  %v54 = vld [vmem:[%s2 + $0x28] sm:$0xff]
  %v55 = vld [vmem:[%s2 + $0x30] sm:$0xff]
  %v56 = vld [vmem:[%s2 + $0x38] sm:$0xff]
  %v57 = vld [vmem:[%s2 + $0x40] sm:$0xff]
  %v58 = vld [vmem:[%s2 + $0x48] sm:$0xff]
  %v59 = vld [vmem:[%s2 + $0x50] sm:$0xff]
  %v60 = vld [vmem:[%s2 + $0x58] sm:$0xff]
  %v61 = vld [vmem:[%s2 + $0x60] sm:$0x1]
  %v62 = vld [vmem:[%s3] sm:$0xff]
  %vm63 = vcmask 793600
  %v65 = vsel %vm63, %v47, 0
  %v68 = vsel %vm63, %v48, 0
  %vm70 = vcmask 1040384
  %v72 = vsel %vm70, %v61, 0
  %74 = vmatprep.subr.mxu0 0.0
  %75 = vmatpush1.msra.mxu0 0.0
  %76 = vmatprep.subr.mxu0 0.0
  %77 = vmatpush1.msra.mxu0 0.0
  %78 = vmatprep.subr.mxu0 0.0
  %79 = vmatpush1.msra.mxu0 0.0
  %80 = vmatprep.subr.mxu0 0.0
  %81 = vmatpush1.msra.mxu0 %v72
  %82 = vmatprep.subr.mxu0 0.0
  %83 = vmatpush1.msra.mxu0 %v60
  %84 = vmatprep.subr.mxu0 0.0
  %85 = vmatpush1.msra.mxu0 %v59
  %86 = vmatprep.subr.mxu0 0.0
  %87 = vmatpush1.msra.mxu0 %v58
  %88 = vmatprep.subr.mxu0 0.0
  %89 = vmatpush1.msra.mxu0 %v57
  %90 = vmatprep.subr.mxu0 0.0
  %91 = vmatpush1.msra.mxu0 %v56
  %92 = vmatprep.subr.mxu0 0.0
  %93 = vmatpush1.msra.mxu0 %v55
  %94 = vmatprep.subr.mxu0 0.0
  %95 = vmatpush1.msra.mxu0 %v54
  %96 = vmatprep.subr.mxu0 0.0
  %97 = vmatpush1.msra.mxu0 %v53
  %98 = vmatprep.subr.mxu0 0.0
  %99 = vmatpush1.msra.mxu0 %v52
  %100 = vmatprep.subr.mxu0 0.0
  %101 = vmatpush1.msra.mxu0 %v51
  %102 = vmatprep.subr.mxu0 0.0
  %103 = vmatpush1.msra.mxu0 %v50
  %104 = vmatprep.subr.mxu0 0.0
  %105 = vmatpush1.msra.mxu0 %v49
  %106 = vmatprep.subr.mxu0 0.0
  %107 = vmatpush2.msra.mxu0 0.0
  %108 = vmatprep.subr.mxu0 0.0
  %109 = vmatpush2.msra.mxu0 0.0
  %110 = vmatprep.subr.mxu0 0.0
  %111 = vmatpush2.msra.mxu0 0.0
  %112 = vmatprep.subr.mxu0 0.0
  %113 = vmatpush2.msra.mxu0 0.0
  %114 = vmatprep.subr.mxu0 0.0
  %115 = vmatpush2.msra.mxu0 0.0
  %116 = vmatprep.subr.mxu0 0.0
  %117 = vmatpush2.msra.mxu0 0.0
  %118 = vmatprep.subr.mxu0 0.0
  %119 = vmatpush2.msra.mxu0 0.0
  %120 = vmatprep.subr.mxu0 0.0
  %121 = vmatpush2.msra.mxu0 0.0
  %122 = vmatprep.subr.mxu0 0.0
  %123 = vmatpush2.msra.mxu0 0.0
  %124 = vmatprep.subr.mxu0 0.0
  %125 = vmatpush2.msra.mxu0 0.0
  %126 = vmatprep.subr.mxu0 0.0
  %127 = vmatpush2.msra.mxu0 0.0
  %128 = vmatprep.subr.mxu0 0.0
  %129 = vmatpush2.msra.mxu0 0.0
  %130 = vmatprep.subr.mxu0 0.0
  %131 = vmatpush2.msra.mxu0 0.0
  %132 = vmatprep.subr.mxu0 0.0
  %133 = vmatpush2.msra.mxu0 0.0
  %134 = vmatprep.subr.mxu0 0.0
  %135 = vmatpush2.msra.mxu0 0.0
  %136 = vmatprep.subr.mxu0 0.0
  %137 = vmatpush2.msra.mxu0 0.0
  %138 = vmatprep.mubr.f32.mxu0 0.0
  %139 = vmatmul.mubr.f32.gmra.mxu0 %v65
  %v140 = vpop.f32.mrf.mxu0
  %v141 = vadd.f32 %v62, %v140
  %v142 = vpop.f32.mrf.mxu0
  %143 = vmatprep.mubr.f32.mxu0 0.0
  %144 = vmatmul.mubr.f32.gmra.mxu0 %v68
  %v145 = vpop.f32.mrf.mxu0
  %v146 = vadd.f32 %v62, %v145
  %v147 = vpop.f32.mrf.mxu0
  %148 = vdwg.mxu0
  %v149 = vld [vmem:[%s4] sm:$0x1]
  %v150 = vld [vmem:[%s4 + $0x1] sm:$0x1]
  %vm151 = vcmask 261120
  %v152 = vsel %vm151, %v141, 0.0
  %153 = vadd.xlane.f32.xlu0 %v152
  %v154 = vpop.xlane.xlu0 %153
  %v155 = vsel %vm151, %v146, 0.0
  %156 = vadd.xlane.f32.xlu0 %v155
  %v157 = vpop.xlane.xlu0 %156
  %v158 = vrcp.pop 32.0
  %v159 = vmul.f32 %v154, %v158
  %v160 = vmul.f32 %v157, %v158
  %v161 = vsub.f32 %v141, %v159
  %v162 = vsub.f32 %v146, %v160
  %v163 = vmul.f32 %v161, %v161
  %v164 = vmul.f32 %v162, %v162
  %v165 = vsel %vm151, %v163, 0.0
  %166 = vadd.xlane.f32.xlu0 %v165
  %v167 = vpop.xlane.xlu0 %166
  %v168 = vsel %vm151, %v164, 0.0
  %169 = vadd.xlane.f32.xlu0 %v168
  %v170 = vpop.xlane.xlu0 %169
  %v171 = vmul.f32 %v167, %v158
  %v172 = vmul.f32 %v170, %v158
  %v173 = vadd.f32 %v171, 1e-12
  %v174 = vadd.f32 %v172, 1e-12
  %v175 = vrsqrt.pop %v173
  %v176 = vrsqrt.pop %v174
  %v177 = vmul.f32 %v161, %v175
  %v178 = vmul.f32 %v162, %v176
  %v179 = vlaneseq
  %v180 = vshrl.u32 %v179, 7
  %v181 = vsub.s32 0, %v180
  %v182 = vrot.slane %v149, %v181
  %v183 = vmul.f32 %v177, %v182
  %v184 = vmul.f32 %v178, %v182
  %v185 = vlaneseq
  %v186 = vshrl.u32 %v185, 7
  %v187 = vsub.s32 0, %v186
  %v188 = vrot.slane %v150, %v187
  %v189 = vadd.f32 %v183, %v188
  %v190 = vadd.f32 %v184, %v188
  %v191 = vld [vmem:[%s1] sm:$0x3]
  %v192 = vcvt.s32.f32 %v191
  %v193 = vsub.f32 1.0, %v192
  %v194 = vmul.f32 %v193, -1e+09
  %v195 = vpack.c.bf16 %v190, %v189
  %v196 = vld [vmem:[%s5] sm:$0xf]
  %v197 = vld [vmem:[%s5 + $0x4] sm:$0xf]
  %v198 = vld [vmem:[%s5 + $0x8] sm:$0xf]
  %v199 = vld [vmem:[%s5 + $0xc] sm:$0xf]
  %v200 = vld [vmem:[%s4 + $0x4] sm:$0x1]
  %v201 = vlaneseq
  %v202 = vshrl.u32 %v201, 7
  %v203 = vsub.s32 0, %v202
  %v204 = vrot.slane %v200, %v203
  %v209 = vunpack.c.l.b16 %v196
  %v210 = vunpack.c.l.b16 %v197
  %v211 = vunpack.c.l.b16 %v198
  %v212 = vunpack.c.l.b16 %v199
  %v213 = vpack.c.b16 %v210, %v209
  %v214 = vpack.c.b16 %v212, %v211
  %v218 = vsel %vm151, %v195, 0
  %220 = vmatprep.subr.bf16.mxu0 0
  %221 = vmatpush1.bf16.msra.mxu0 0
  %222 = vmatprep.subr.bf16.mxu0 0
  %223 = vmatpush1.bf16.msra.mxu0 0
  %224 = vmatprep.subr.bf16.mxu0 0
  %225 = vmatpush1.bf16.msra.mxu0 0
  %226 = vmatprep.subr.bf16.mxu0 0
  %227 = vmatpush1.bf16.msra.mxu0 0
  %228 = vmatprep.subr.bf16.mxu0 0
  %229 = vmatpush1.bf16.msra.mxu0 0
  %230 = vmatprep.subr.bf16.mxu0 0
  %231 = vmatpush1.bf16.msra.mxu0 0
  %232 = vmatprep.subr.bf16.mxu0 0
  %233 = vmatpush1.bf16.msra.mxu0 %v214
  %234 = vmatprep.subr.bf16.mxu0 0
  %235 = vmatpush1.bf16.msra.mxu0 %v213
  %236 = vmatprep.subr.bf16.mxu0 0
  %237 = vmatpush2.bf16.msra.mxu0 0
  %238 = vmatprep.subr.bf16.mxu0 0
  %239 = vmatpush2.bf16.msra.mxu0 0
  %240 = vmatprep.subr.bf16.mxu0 0
  %241 = vmatpush2.bf16.msra.mxu0 0
  %242 = vmatprep.subr.bf16.mxu0 0
  %243 = vmatpush2.bf16.msra.mxu0 0
  %244 = vmatprep.subr.bf16.mxu0 0
  %245 = vmatpush2.bf16.msra.mxu0 0
  %246 = vmatprep.subr.bf16.mxu0 0
  %247 = vmatpush2.bf16.msra.mxu0 0
  %248 = vmatprep.subr.bf16.mxu0 0
  %249 = vmatpush2.bf16.msra.mxu0 0
  %250 = vmatprep.subr.bf16.mxu0 0
  %251 = vmatpush2.bf16.msra.mxu0 0
  %252 = vmatprep.mubr.bf16.mxu0 0
  %253 = vmatmul.mubr.bf16.gmra.mxu0 %v218
  %v254 = vpop.f32.mrf.mxu0
  %v255 = vadd.f32 %v204, %v254
  %v256 = vpop.f32.mrf.mxu0
  %v257 = vpop.f32.mrf.mxu0
  %v258 = vadd.f32 %v204, %v257
  %v259 = vpop.f32.mrf.mxu0
  %260 = vdwg.mxu0
  %s261 = scalar_lea.vmem %s5, 16
  %v262 = vld [vmem:[%s261] sm:$0xf]
  %v263 = vld [vmem:[%s261 + $0x4] sm:$0xf]
  %v264 = vld [vmem:[%s261 + $0x8] sm:$0xf]
  %v265 = vld [vmem:[%s261 + $0xc] sm:$0xf]
  %v266 = vld [vmem:[%s4 + $0x5] sm:$0x1]
  %v267 = vlaneseq
  %v268 = vshrl.u32 %v267, 7
  %v269 = vsub.s32 0, %v268
  %v270 = vrot.slane %v266, %v269
  %v275 = vunpack.c.l.b16 %v262
  %v276 = vunpack.c.l.b16 %v263
  %v277 = vunpack.c.l.b16 %v264
  %v278 = vunpack.c.l.b16 %v265
  %v279 = vpack.c.b16 %v276, %v275
  %v280 = vpack.c.b16 %v278, %v277
  %283 = vmatprep.subr.bf16.mxu0 0
  %284 = vmatpush1.bf16.msra.mxu0 0
  %285 = vmatprep.subr.bf16.mxu0 0
  %286 = vmatpush1.bf16.msra.mxu0 0
  %287 = vmatprep.subr.bf16.mxu0 0
  %288 = vmatpush1.bf16.msra.mxu0 0
  %289 = vmatprep.subr.bf16.mxu0 0
  %290 = vmatpush1.bf16.msra.mxu0 0
  %291 = vmatprep.subr.bf16.mxu0 0
  %292 = vmatpush1.bf16.msra.mxu0 0
  %293 = vmatprep.subr.bf16.mxu0 0
  %294 = vmatpush1.bf16.msra.mxu0 0
  %295 = vmatprep.subr.bf16.mxu0 0
  %296 = vmatpush1.bf16.msra.mxu0 %v280
  %297 = vmatprep.subr.bf16.mxu0 0
  %298 = vmatpush1.bf16.msra.mxu0 %v279
  %299 = vmatprep.subr.bf16.mxu0 0
  %300 = vmatpush2.bf16.msra.mxu0 0
  %301 = vmatprep.subr.bf16.mxu0 0
  %302 = vmatpush2.bf16.msra.mxu0 0
  %303 = vmatprep.subr.bf16.mxu0 0
  %304 = vmatpush2.bf16.msra.mxu0 0
  %305 = vmatprep.subr.bf16.mxu0 0
  %306 = vmatpush2.bf16.msra.mxu0 0
  %307 = vmatprep.subr.bf16.mxu0 0
  %308 = vmatpush2.bf16.msra.mxu0 0
  %309 = vmatprep.subr.bf16.mxu0 0
  %310 = vmatpush2.bf16.msra.mxu0 0
  %311 = vmatprep.subr.bf16.mxu0 0
  %312 = vmatpush2.bf16.msra.mxu0 0
  %313 = vmatprep.subr.bf16.mxu0 0
  %314 = vmatpush2.bf16.msra.mxu0 0
  %315 = vmatprep.mubr.bf16.mxu0 0
  %316 = vmatmul.mubr.bf16.gmra.mxu0 %v218
  %v317 = vpop.f32.mrf.mxu0
  %v318 = vadd.f32 %v270, %v317
  %v319 = vpop.f32.mrf.mxu0
  %v320 = vpop.f32.mrf.mxu0
  %v321 = vadd.f32 %v270, %v320
  %v322 = vpop.f32.mrf.mxu0
  %323 = vdwg.mxu0
  %s324 = scalar_lea.vmem %s5, 32
  %v325 = vld [vmem:[%s324] sm:$0xf]
  %v326 = vld [vmem:[%s324 + $0x4] sm:$0xf]
  %v327 = vld [vmem:[%s324 + $0x8] sm:$0xf]
  %v328 = vld [vmem:[%s324 + $0xc] sm:$0xf]
  %v329 = vld [vmem:[%s4 + $0x6] sm:$0x1]
  %v330 = vlaneseq
  %v331 = vshrl.u32 %v330, 7
  %v332 = vsub.s32 0, %v331
  %v333 = vrot.slane %v329, %v332
  %v338 = vunpack.c.l.b16 %v325
  %v339 = vunpack.c.l.b16 %v326
  %v340 = vunpack.c.l.b16 %v327
  %v341 = vunpack.c.l.b16 %v328
  %v342 = vpack.c.b16 %v339, %v338
  %v343 = vpack.c.b16 %v341, %v340
  %346 = vmatprep.subr.bf16.mxu0 0
  %347 = vmatpush1.bf16.msra.mxu0 0
  %348 = vmatprep.subr.bf16.mxu0 0
  %349 = vmatpush1.bf16.msra.mxu0 0
  %350 = vmatprep.subr.bf16.mxu0 0
  %351 = vmatpush1.bf16.msra.mxu0 0
  %352 = vmatprep.subr.bf16.mxu0 0
  %353 = vmatpush1.bf16.msra.mxu0 0
  %354 = vmatprep.subr.bf16.mxu0 0
  %355 = vmatpush1.bf16.msra.mxu0 0
  %356 = vmatprep.subr.bf16.mxu0 0
  %357 = vmatpush1.bf16.msra.mxu0 0
  %358 = vmatprep.subr.bf16.mxu0 0
  %359 = vmatpush1.bf16.msra.mxu0 %v343
  %360 = vmatprep.subr.bf16.mxu0 0
  %361 = vmatpush1.bf16.msra.mxu0 %v342
  %362 = vmatprep.subr.bf16.mxu0 0
  %363 = vmatpush2.bf16.msra.mxu0 0
  %364 = vmatprep.subr.bf16.mxu0 0
  %365 = vmatpush2.bf16.msra.mxu0 0
  %366 = vmatprep.subr.bf16.mxu0 0
  %367 = vmatpush2.bf16.msra.mxu0 0
  %368 = vmatprep.subr.bf16.mxu0 0
  %369 = vmatpush2.bf16.msra.mxu0 0
  %370 = vmatprep.subr.bf16.mxu0 0
  %371 = vmatpush2.bf16.msra.mxu0 0
  %372 = vmatprep.subr.bf16.mxu0 0
  %373 = vmatpush2.bf16.msra.mxu0 0
  %374 = vmatprep.subr.bf16.mxu0 0
  %375 = vmatpush2.bf16.msra.mxu0 0
  %376 = vmatprep.subr.bf16.mxu0 0
  %377 = vmatpush2.bf16.msra.mxu0 0
  %378 = vmatprep.mubr.bf16.mxu0 0
  %379 = vmatmul.mubr.bf16.gmra.mxu0 %v218
  %v380 = vpop.f32.mrf.mxu0
  %v381 = vadd.f32 %v333, %v380
  %v382 = vpop.f32.mrf.mxu0
  %v383 = vpop.f32.mrf.mxu0
  %v384 = vadd.f32 %v333, %v383
  %v385 = vpop.f32.mrf.mxu0
  %386 = vdwg.mxu0
  %388 = vrot.lane.b32.xlu0 %v255, 120
  %v389 = vpop.permute.xlu0 %388
  %391 = vrot.lane.b32.xlu0 %v255, 112
  %v392 = vpop.permute.xlu0 %391
  %394 = vrot.lane.b32.xlu0 %v255, 104
  %v395 = vpop.permute.xlu0 %394
  %v397 = vcombine.low %v255, %v392
  %v398 = vcombine.high %v255, %v392
  %v400 = vunpack.c.l.s4 1983009808
  %v401 = vunpack.c.0.s8 %v400
  %v402 = vlaneseq
  %v403 = vshrl.u32 %v402, 7
  %v404 = vsub.s32 %v401, %v403
  %v405 = vrot.slane %v397, %v404
  %v407 = vunpack.c.l.s4 1983009808
  %v408 = vunpack.c.0.s8 %v407
  %v409 = vlaneseq
  %v410 = vshrl.u32 %v409, 7
  %v411 = vsub.s32 %v408, %v410
  %v412 = vrot.slane %v398, %v411
  %v413 = vcombine.low %v389, %v395
  %v414 = vcombine.high %v389, %v395
  %v416 = vunpack.c.l.s4 1983009808
  %v417 = vunpack.c.0.s8 %v416
  %v418 = vlaneseq
  %v419 = vshrl.u32 %v418, 7
  %v420 = vsub.s32 %v417, %v419
  %v421 = vrot.slane %v413, %v420
  %v423 = vunpack.c.l.s4 1983009808
  %v424 = vunpack.c.0.s8 %v423
  %v425 = vlaneseq
  %v426 = vshrl.u32 %v425, 7
  %v427 = vsub.s32 %v424, %v426
  %v428 = vrot.slane %v414, %v427
  %v429 = vcombine.low %v405, %v421
  %v430 = vcombine.high %v405, %v421
  %v432 = vunpack.c.l.s4 1934713408
  %v433 = vunpack.c.0.s8 %v432
  %v434 = vlaneseq
  %v435 = vshrl.u32 %v434, 7
  %v436 = vsub.s32 %v433, %v435
  %v437 = vrot.slane %v429, %v436
  %v439 = vunpack.c.l.s4 1934713408
  %v440 = vunpack.c.0.s8 %v439
  %v441 = vlaneseq
  %v442 = vshrl.u32 %v441, 7
  %v443 = vsub.s32 %v440, %v442
  %v444 = vrot.slane %v430, %v443
  %v445 = vcombine.low %v412, %v428
  %v446 = vcombine.high %v412, %v428
  %v448 = vunpack.c.l.s4 1934713408
  %v449 = vunpack.c.0.s8 %v448
  %v450 = vlaneseq
  %v451 = vshrl.u32 %v450, 7
  %v452 = vsub.s32 %v449, %v451
  %v453 = vrot.slane %v445, %v452
  %v455 = vunpack.c.l.s4 1934713408
  %v456 = vunpack.c.0.s8 %v455
  %v457 = vlaneseq
  %v458 = vshrl.u32 %v457, 7
  %v459 = vsub.s32 %v456, %v458
  %v460 = vrot.slane %v446, %v459
  %v461 = vcombine.high %v437, 0.0
  %v462 = vcombine.high %v444, 0.0
  %v463 = vcombine.high %v453, 0.0
  %v464 = vcombine.high %v460, 0.0
  %v465 = vpack.c.bf16 %v437, %v437
  %v466 = vpack.c.bf16 %v461, %v461
  %v467 = vpack.c.bf16 %v444, %v444
  %v468 = vpack.c.bf16 %v462, %v462
  %v469 = vpack.c.bf16 %v453, %v453
  %v470 = vpack.c.bf16 %v463, %v463
  %v471 = vpack.c.bf16 %v460, %v460
  %v472 = vpack.c.bf16 %v464, %v464
  %474 = vrot.lane.b32.xlu0 %v318, 120
  %v475 = vpop.permute.xlu0 %474
  %477 = vrot.lane.b32.xlu0 %v318, 112
  %v478 = vpop.permute.xlu0 %477
  %480 = vrot.lane.b32.xlu0 %v318, 104
  %v481 = vpop.permute.xlu0 %480
  %v483 = vcombine.low %v318, %v478
  %v484 = vcombine.high %v318, %v478
  %v486 = vunpack.c.l.s4 1983009808
  %v487 = vunpack.c.0.s8 %v486
  %v488 = vlaneseq
  %v489 = vshrl.u32 %v488, 7
  %v490 = vsub.s32 %v487, %v489
  %v491 = vrot.slane %v483, %v490
  %v493 = vunpack.c.l.s4 1983009808
  %v494 = vunpack.c.0.s8 %v493
  %v495 = vlaneseq
  %v496 = vshrl.u32 %v495, 7
  %v497 = vsub.s32 %v494, %v496
  %v498 = vrot.slane %v484, %v497
  %v499 = vcombine.low %v475, %v481
  %v500 = vcombine.high %v475, %v481
  %v502 = vunpack.c.l.s4 1983009808
  %v503 = vunpack.c.0.s8 %v502
  %v504 = vlaneseq
  %v505 = vshrl.u32 %v504, 7
  %v506 = vsub.s32 %v503, %v505
  %v507 = vrot.slane %v499, %v506
  %v509 = vunpack.c.l.s4 1983009808
  %v510 = vunpack.c.0.s8 %v509
  %v511 = vlaneseq
  %v512 = vshrl.u32 %v511, 7
  %v513 = vsub.s32 %v510, %v512
  %v514 = vrot.slane %v500, %v513
  %v515 = vcombine.low %v491, %v507
  %v516 = vcombine.high %v491, %v507
  %v518 = vunpack.c.l.s4 1934713408
  %v519 = vunpack.c.0.s8 %v518
  %v520 = vlaneseq
  %v521 = vshrl.u32 %v520, 7
  %v522 = vsub.s32 %v519, %v521
  %v523 = vrot.slane %v515, %v522
  %v525 = vunpack.c.l.s4 1934713408
  %v526 = vunpack.c.0.s8 %v525
  %v527 = vlaneseq
  %v528 = vshrl.u32 %v527, 7
  %v529 = vsub.s32 %v526, %v528
  %v530 = vrot.slane %v516, %v529
  %v531 = vcombine.low %v498, %v514
  %v532 = vcombine.high %v498, %v514
  %v534 = vunpack.c.l.s4 1934713408
  %v535 = vunpack.c.0.s8 %v534
  %v536 = vlaneseq
  %v537 = vshrl.u32 %v536, 7
  %v538 = vsub.s32 %v535, %v537
  %v539 = vrot.slane %v531, %v538
  %v541 = vunpack.c.l.s4 1934713408
  %v542 = vunpack.c.0.s8 %v541
  %v543 = vlaneseq
  %v544 = vshrl.u32 %v543, 7
  %v545 = vsub.s32 %v542, %v544
  %v546 = vrot.slane %v532, %v545
  %v547 = vcombine.high %v523, 0.0
  %v548 = vcombine.high %v530, 0.0
  %v549 = vcombine.high %v539, 0.0
  %v550 = vcombine.high %v546, 0.0
  %v551 = vpack.c.bf16 %v523, %v523
  %v552 = vpack.c.bf16 %v547, %v547
  %v553 = vpack.c.bf16 %v530, %v530
  %v554 = vpack.c.bf16 %v548, %v548
  %v555 = vpack.c.bf16 %v539, %v539
  %v556 = vpack.c.bf16 %v549, %v549
  %v557 = vpack.c.bf16 %v546, %v546
  %v558 = vpack.c.bf16 %v550, %v550
  %560 = vrot.lane.b32.xlu0 %v381, 120
  %v561 = vpop.permute.xlu0 %560
  %563 = vrot.lane.b32.xlu0 %v381, 112
  %v564 = vpop.permute.xlu0 %563
  %566 = vrot.lane.b32.xlu0 %v381, 104
  %v567 = vpop.permute.xlu0 %566
  %v569 = vcombine.low %v381, %v564
  %v570 = vcombine.high %v381, %v564
  %v572 = vunpack.c.l.s4 1983009808
  %v573 = vunpack.c.0.s8 %v572
  %v574 = vlaneseq
  %v575 = vshrl.u32 %v574, 7
  %v576 = vsub.s32 %v573, %v575
  %v577 = vrot.slane %v569, %v576
  %v579 = vunpack.c.l.s4 1983009808
  %v580 = vunpack.c.0.s8 %v579
  %v581 = vlaneseq
  %v582 = vshrl.u32 %v581, 7
  %v583 = vsub.s32 %v580, %v582
  %v584 = vrot.slane %v570, %v583
  %v585 = vcombine.low %v561, %v567
  %v586 = vcombine.high %v561, %v567
  %v588 = vunpack.c.l.s4 1983009808
  %v589 = vunpack.c.0.s8 %v588
  %v590 = vlaneseq
  %v591 = vshrl.u32 %v590, 7
  %v592 = vsub.s32 %v589, %v591
  %v593 = vrot.slane %v585, %v592
  %v595 = vunpack.c.l.s4 1983009808
  %v596 = vunpack.c.0.s8 %v595
  %v597 = vlaneseq
  %v598 = vshrl.u32 %v597, 7
  %v599 = vsub.s32 %v596, %v598
  %v600 = vrot.slane %v586, %v599
  %v601 = vcombine.low %v577, %v593
  %v602 = vcombine.high %v577, %v593
  %v604 = vunpack.c.l.s4 1934713408
  %v605 = vunpack.c.0.s8 %v604
  %v606 = vlaneseq
  %v607 = vshrl.u32 %v606, 7
  %v608 = vsub.s32 %v605, %v607
  %v609 = vrot.slane %v601, %v608
  %v611 = vunpack.c.l.s4 1934713408
  %v612 = vunpack.c.0.s8 %v611
  %v613 = vlaneseq
  %v614 = vshrl.u32 %v613, 7
  %v615 = vsub.s32 %v612, %v614
  %v616 = vrot.slane %v602, %v615
  %v617 = vcombine.low %v584, %v600
  %v618 = vcombine.high %v584, %v600
  %v620 = vunpack.c.l.s4 1934713408
  %v621 = vunpack.c.0.s8 %v620
  %v622 = vlaneseq
  %v623 = vshrl.u32 %v622, 7
  %v624 = vsub.s32 %v621, %v623
  %v625 = vrot.slane %v617, %v624
  %v627 = vunpack.c.l.s4 1934713408
  %v628 = vunpack.c.0.s8 %v627
  %v629 = vlaneseq
  %v630 = vshrl.u32 %v629, 7
  %v631 = vsub.s32 %v628, %v630
  %v632 = vrot.slane %v618, %v631
  %v633 = vcombine.high %v609, 0.0
  %v634 = vcombine.high %v616, 0.0
  %v635 = vcombine.high %v625, 0.0
  %v636 = vcombine.high %v632, 0.0
  %v637 = vpack.c.bf16 %v609, %v609
  %v638 = vpack.c.bf16 %v633, %v633
  %v639 = vpack.c.bf16 %v616, %v616
  %v640 = vpack.c.bf16 %v634, %v634
  %v641 = vpack.c.bf16 %v625, %v625
  %v642 = vpack.c.bf16 %v635, %v635
  %v643 = vpack.c.bf16 %v632, %v632
  %v644 = vpack.c.bf16 %v636, %v636
  %v645 = vlaneseq
  %v646 = vshrl.u32 %v645, 7
  %v647 = vsub.s32 0, %v646
  %v648 = vrot.slane %v194, %v647
  %v649 = vcombine.low %v465, %v469
  %v651 = vunpack.c.l.s4 1983009808
  %v652 = vunpack.c.0.s8 %v651
  %v653 = vlaneseq
  %v654 = vshrl.u32 %v653, 7
  %v655 = vsub.s32 %v652, %v654
  %v656 = vrot.slane %v649, %v655
  %v657 = vcombine.low %v467, %v471
  %v659 = vunpack.c.l.s4 1983009808
  %v660 = vunpack.c.0.s8 %v659
  %v661 = vlaneseq
  %v662 = vshrl.u32 %v661, 7
  %v663 = vsub.s32 %v660, %v662
  %v664 = vrot.slane %v657, %v663
  %v665 = vcombine.low %v656, %v664
  %v667 = vunpack.c.l.s4 1934713408
  %v668 = vunpack.c.0.s8 %v667
  %v669 = vlaneseq
  %v670 = vshrl.u32 %v669, 7
  %v671 = vsub.s32 %v668, %v670
  %v672 = vrot.slane %v665, %v671
  %v673 = vcombine.high %v672, 0
  %v674 = vcombine.low %v466, %v470
  %v676 = vunpack.c.l.s4 1983009808
  %v677 = vunpack.c.0.s8 %v676
  %v678 = vlaneseq
  %v679 = vshrl.u32 %v678, 7
  %v680 = vsub.s32 %v677, %v679
  %v681 = vrot.slane %v674, %v680
  %v682 = vcombine.low %v468, %v472
  %v684 = vunpack.c.l.s4 1983009808
  %v685 = vunpack.c.0.s8 %v684
  %v686 = vlaneseq
  %v687 = vshrl.u32 %v686, 7
  %v688 = vsub.s32 %v685, %v687
  %v689 = vrot.slane %v682, %v688
  %v690 = vcombine.low %v681, %v689
  %v692 = vunpack.c.l.s4 1934713408
  %v693 = vunpack.c.0.s8 %v692
  %v694 = vlaneseq
  %v695 = vshrl.u32 %v694, 7
  %v696 = vsub.s32 %v693, %v695
  %v697 = vrot.slane %v690, %v696
  %v698 = vcombine.high %v697, 0
  %v701 = vpack.i.b16 %v697, %v672
  %v702 = vshrl.u32 %v672, 16
  %v703 = vshrl.u32 %v697, 16
  %v704 = vpack.i.b16 %v703, %v702
  %v707 = vpack.i.b16 %v698, %v673
  %v708 = vshrl.u32 %v673, 16
  %v709 = vshrl.u32 %v698, 16
  %v710 = vpack.i.b16 %v709, %v708
  %711 = vxpose.xlu0.c.b16.start [1/8] %v551, 128
  %712 = vxpose.xlu0.c.b16.cont [2/8] 0, 128
  %713 = vxpose.xlu0.c.b16.cont [3/8] 0, 128
  %714 = vxpose.xlu0.c.b16.cont [4/8] 0, 128
  %715 = vxpose.xlu0.c.b16.cont [5/8] 0, 128
  %716 = vxpose.xlu0.c.b16.cont [6/8] 0, 128
  %717 = vxpose.xlu0.c.b16.cont [7/8] 0, 128
  %718 = vxpose.xlu0.c.b16.end [8/8] 0, 128
  %v719 = vpop.trf.xlu0
  %v720 = vpop.trf.xlu0
  %v721 = vpop.trf.xlu0
  %v722 = vpop.trf.xlu0
  %v723 = vpop.trf.xlu0
  %v724 = vpop.trf.xlu0
  %v725 = vpop.trf.xlu0
  %v726 = vpop.trf.xlu0
  %727 = vxpose.xlu0.c.b16.start [1/8] %v552, 128
  %728 = vxpose.xlu0.c.b16.cont [2/8] 0, 128
  %729 = vxpose.xlu0.c.b16.cont [3/8] 0, 128
  %730 = vxpose.xlu0.c.b16.cont [4/8] 0, 128
  %731 = vxpose.xlu0.c.b16.cont [5/8] 0, 128
  %732 = vxpose.xlu0.c.b16.cont [6/8] 0, 128
  %733 = vxpose.xlu0.c.b16.cont [7/8] 0, 128
  %734 = vxpose.xlu0.c.b16.end [8/8] 0, 128
  %v735 = vpop.trf.xlu0
  %v736 = vpop.trf.xlu0
  %v737 = vpop.trf.xlu0
  %v738 = vpop.trf.xlu0
  %v739 = vpop.trf.xlu0
  %v740 = vpop.trf.xlu0
  %v741 = vpop.trf.xlu0
  %v742 = vpop.trf.xlu0
  %743 = vxpose.xlu0.c.b16.start [1/8] %v553, 128
  %744 = vxpose.xlu0.c.b16.cont [2/8] 0, 128
  %745 = vxpose.xlu0.c.b16.cont [3/8] 0, 128
  %746 = vxpose.xlu0.c.b16.cont [4/8] 0, 128
  %747 = vxpose.xlu0.c.b16.cont [5/8] 0, 128
  %748 = vxpose.xlu0.c.b16.cont [6/8] 0, 128
  %749 = vxpose.xlu0.c.b16.cont [7/8] 0, 128
  %750 = vxpose.xlu0.c.b16.end [8/8] 0, 128
  %v751 = vpop.trf.xlu0
  %v752 = vpop.trf.xlu0
  %v753 = vpop.trf.xlu0
  %v754 = vpop.trf.xlu0
  %v755 = vpop.trf.xlu0
  %v756 = vpop.trf.xlu0
  %v757 = vpop.trf.xlu0
  %v758 = vpop.trf.xlu0
  %759 = vxpose.xlu0.c.b16.start [1/8] %v554, 128
  %760 = vxpose.xlu0.c.b16.cont [2/8] 0, 128
  %761 = vxpose.xlu0.c.b16.cont [3/8] 0, 128
  %762 = vxpose.xlu0.c.b16.cont [4/8] 0, 128
  %763 = vxpose.xlu0.c.b16.cont [5/8] 0, 128
  %764 = vxpose.xlu0.c.b16.cont [6/8] 0, 128
  %765 = vxpose.xlu0.c.b16.cont [7/8] 0, 128
  %766 = vxpose.xlu0.c.b16.end [8/8] 0, 128
  %v767 = vpop.trf.xlu0
  %v768 = vpop.trf.xlu0
  %v769 = vpop.trf.xlu0
  %v770 = vpop.trf.xlu0
  %v771 = vpop.trf.xlu0
  %v772 = vpop.trf.xlu0
  %v773 = vpop.trf.xlu0
  %v774 = vpop.trf.xlu0
  %775 = vxpose.xlu0.c.b16.start [1/8] %v555, 128
  %776 = vxpose.xlu0.c.b16.cont [2/8] 0, 128
  %777 = vxpose.xlu0.c.b16.cont [3/8] 0, 128
  %778 = vxpose.xlu0.c.b16.cont [4/8] 0, 128
  %779 = vxpose.xlu0.c.b16.cont [5/8] 0, 128
  %780 = vxpose.xlu0.c.b16.cont [6/8] 0, 128
  %781 = vxpose.xlu0.c.b16.cont [7/8] 0, 128
  %782 = vxpose.xlu0.c.b16.end [8/8] 0, 128
  %v783 = vpop.trf.xlu0
  %v784 = vpop.trf.xlu0
  %v785 = vpop.trf.xlu0
  %v786 = vpop.trf.xlu0
  %v787 = vpop.trf.xlu0
  %v788 = vpop.trf.xlu0
  %v789 = vpop.trf.xlu0
  %v790 = vpop.trf.xlu0
  %791 = vxpose.xlu0.c.b16.start [1/8] %v556, 128
  %792 = vxpose.xlu0.c.b16.cont [2/8] 0, 128
  %793 = vxpose.xlu0.c.b16.cont [3/8] 0, 128
  %794 = vxpose.xlu0.c.b16.cont [4/8] 0, 128
  %795 = vxpose.xlu0.c.b16.cont [5/8] 0, 128
  %796 = vxpose.xlu0.c.b16.cont [6/8] 0, 128
  %797 = vxpose.xlu0.c.b16.cont [7/8] 0, 128
  %798 = vxpose.xlu0.c.b16.end [8/8] 0, 128
  %v799 = vpop.trf.xlu0
  %v800 = vpop.trf.xlu0
  %v801 = vpop.trf.xlu0
  %v802 = vpop.trf.xlu0
  %v803 = vpop.trf.xlu0
  %v804 = vpop.trf.xlu0
  %v805 = vpop.trf.xlu0
  %v806 = vpop.trf.xlu0
  %807 = vxpose.xlu0.c.b16.start [1/8] %v557, 128
  %808 = vxpose.xlu0.c.b16.cont [2/8] 0, 128
  %809 = vxpose.xlu0.c.b16.cont [3/8] 0, 128
  %810 = vxpose.xlu0.c.b16.cont [4/8] 0, 128
  %811 = vxpose.xlu0.c.b16.cont [5/8] 0, 128
  %812 = vxpose.xlu0.c.b16.cont [6/8] 0, 128
  %813 = vxpose.xlu0.c.b16.cont [7/8] 0, 128
  %814 = vxpose.xlu0.c.b16.end [8/8] 0, 128
  %v815 = vpop.trf.xlu0
  %v816 = vpop.trf.xlu0
  %v817 = vpop.trf.xlu0
  %v818 = vpop.trf.xlu0
  %v819 = vpop.trf.xlu0
  %v820 = vpop.trf.xlu0
  %v821 = vpop.trf.xlu0
  %v822 = vpop.trf.xlu0
  %823 = vxpose.xlu0.c.b16.start [1/8] %v558, 128
  %824 = vxpose.xlu0.c.b16.cont [2/8] 0, 128
  %825 = vxpose.xlu0.c.b16.cont [3/8] 0, 128
  %826 = vxpose.xlu0.c.b16.cont [4/8] 0, 128
  %827 = vxpose.xlu0.c.b16.cont [5/8] 0, 128
  %828 = vxpose.xlu0.c.b16.cont [6/8] 0, 128
  %829 = vxpose.xlu0.c.b16.cont [7/8] 0, 128
  %830 = vxpose.xlu0.c.b16.end [8/8] 0, 128
  %v831 = vpop.trf.xlu0
  %v832 = vpop.trf.xlu0
  %v833 = vpop.trf.xlu0
  %v834 = vpop.trf.xlu0
  %v835 = vpop.trf.xlu0
  %v836 = vpop.trf.xlu0
  %v837 = vpop.trf.xlu0
  %v838 = vpop.trf.xlu0
  %v839 = vcombine.low %v719, %v783
  %v841 = vunpack.c.l.s4 1983009808
  %v842 = vunpack.c.0.s8 %v841
  %v843 = vlaneseq
  %v844 = vshrl.u32 %v843, 7
  %v845 = vsub.s32 %v842, %v844
  %v846 = vrot.slane %v839, %v845
  %v847 = vcombine.low %v751, %v815
  %v849 = vunpack.c.l.s4 1983009808
  %v850 = vunpack.c.0.s8 %v849
  %v851 = vlaneseq
  %v852 = vshrl.u32 %v851, 7
  %v853 = vsub.s32 %v850, %v852
  %v854 = vrot.slane %v847, %v853
  %v855 = vcombine.low %v846, %v854
  %v856 = vcombine.high %v846, %v854
  %v858 = vunpack.c.l.s4 1934713408
  %v859 = vunpack.c.0.s8 %v858
  %v860 = vlaneseq
  %v861 = vshrl.u32 %v860, 7
  %v862 = vsub.s32 %v859, %v861
  %v863 = vrot.slane %v855, %v862
  %v865 = vunpack.c.l.s4 1934713408
  %v866 = vunpack.c.0.s8 %v865
  %v867 = vlaneseq
  %v868 = vshrl.u32 %v867, 7
  %v869 = vsub.s32 %v866, %v868
  %v870 = vrot.slane %v856, %v869
  %v871 = vcombine.high %v863, 0
  %v872 = vcombine.high %v870, 0
  %v873 = vcombine.low %v735, %v799
  %v875 = vunpack.c.l.s4 1983009808
  %v876 = vunpack.c.0.s8 %v875
  %v877 = vlaneseq
  %v878 = vshrl.u32 %v877, 7
  %v879 = vsub.s32 %v876, %v878
  %v880 = vrot.slane %v873, %v879
  %v881 = vcombine.low %v767, %v831
  %v883 = vunpack.c.l.s4 1983009808
  %v884 = vunpack.c.0.s8 %v883
  %v885 = vlaneseq
  %v886 = vshrl.u32 %v885, 7
  %v887 = vsub.s32 %v884, %v886
  %v888 = vrot.slane %v881, %v887
  %v889 = vcombine.low %v880, %v888
  %v890 = vcombine.high %v880, %v888
  %v892 = vunpack.c.l.s4 1934713408
  %v893 = vunpack.c.0.s8 %v892
  %v894 = vlaneseq
  %v895 = vshrl.u32 %v894, 7
  %v896 = vsub.s32 %v893, %v895
  %v897 = vrot.slane %v889, %v896
  %v899 = vunpack.c.l.s4 1934713408
  %v900 = vunpack.c.0.s8 %v899
  %v901 = vlaneseq
  %v902 = vshrl.u32 %v901, 7
  %v903 = vsub.s32 %v900, %v902
  %v904 = vrot.slane %v890, %v903
  %v905 = vcombine.high %v897, 0
  %v906 = vcombine.high %v904, 0
  %v909 = vpack.i.b16 %v897, %v863
  %v911 = vshrl.u32 %v863, 16
  %v912 = vshrl.u32 %v897, 16
  %v913 = vpack.i.b16 %v912, %v911
  %v917 = vpack.i.b16 %v905, %v871
  %v919 = vshrl.u32 %v871, 16
  %v920 = vshrl.u32 %v905, 16
  %v921 = vpack.i.b16 %v920, %v919
  %v925 = vpack.i.b16 %v904, %v870
  %v927 = vshrl.u32 %v870, 16
  %v928 = vshrl.u32 %v904, 16
  %v929 = vpack.i.b16 %v928, %v927
  %v933 = vpack.i.b16 %v906, %v872
  %v935 = vshrl.u32 %v872, 16
  %v936 = vshrl.u32 %v906, 16
  %v937 = vpack.i.b16 %v936, %v935
  %939 = vxpose.xlu0.c.b16.start [1/8] %v909, 128
  %940 = vxpose.xlu0.c.b16.cont [2/8] 0, 128
  %941 = vxpose.xlu0.c.b16.cont [3/8] 0, 128
  %942 = vxpose.xlu0.c.b16.cont [4/8] 0, 128
  %943 = vxpose.xlu0.c.b16.cont [5/8] 0, 128
  %944 = vxpose.xlu0.c.b16.cont [6/8] 0, 128
  %945 = vxpose.xlu0.c.b16.cont [7/8] 0, 128
  %946 = vxpose.xlu0.c.b16.end [8/8] 0, 128
  %v947 = vpop.trf.xlu0
  %v948 = vpop.trf.xlu0
  %v949 = vpop.trf.xlu0
  %v950 = vpop.trf.xlu0
  %v951 = vpop.trf.xlu0
  %v952 = vpop.trf.xlu0
  %v953 = vpop.trf.xlu0
  %v954 = vpop.trf.xlu0
  %955 = vxpose.xlu0.c.b16.start [1/8] %v913, 128
  %956 = vxpose.xlu0.c.b16.cont [2/8] 0, 128
  %957 = vxpose.xlu0.c.b16.cont [3/8] 0, 128
  %958 = vxpose.xlu0.c.b16.cont [4/8] 0, 128
  %959 = vxpose.xlu0.c.b16.cont [5/8] 0, 128
  %960 = vxpose.xlu0.c.b16.cont [6/8] 0, 128
  %961 = vxpose.xlu0.c.b16.cont [7/8] 0, 128
  %962 = vxpose.xlu0.c.b16.end [8/8] 0, 128
  %v963 = vpop.trf.xlu0
  %v964 = vpop.trf.xlu0
  %v965 = vpop.trf.xlu0
  %v966 = vpop.trf.xlu0
  %v967 = vpop.trf.xlu0
  %v968 = vpop.trf.xlu0
  %v969 = vpop.trf.xlu0
  %v970 = vpop.trf.xlu0
  %971 = vxpose.xlu0.c.b16.start [1/8] %v917, 128
  %972 = vxpose.xlu0.c.b16.cont [2/8] 0, 128
  %973 = vxpose.xlu0.c.b16.cont [3/8] 0, 128
  %974 = vxpose.xlu0.c.b16.cont [4/8] 0, 128
  %975 = vxpose.xlu0.c.b16.cont [5/8] 0, 128
  %976 = vxpose.xlu0.c.b16.cont [6/8] 0, 128
  %977 = vxpose.xlu0.c.b16.cont [7/8] 0, 128
  %978 = vxpose.xlu0.c.b16.end [8/8] 0, 128
  %v979 = vpop.trf.xlu0
  %v980 = vpop.trf.xlu0
  %v981 = vpop.trf.xlu0
  %v982 = vpop.trf.xlu0
  %v983 = vpop.trf.xlu0
  %v984 = vpop.trf.xlu0
  %v985 = vpop.trf.xlu0
  %v986 = vpop.trf.xlu0
  %987 = vxpose.xlu0.c.b16.start [1/8] %v921, 128
  %988 = vxpose.xlu0.c.b16.cont [2/8] 0, 128
  %989 = vxpose.xlu0.c.b16.cont [3/8] 0, 128
  %990 = vxpose.xlu0.c.b16.cont [4/8] 0, 128
  %991 = vxpose.xlu0.c.b16.cont [5/8] 0, 128
  %992 = vxpose.xlu0.c.b16.cont [6/8] 0, 128
  %993 = vxpose.xlu0.c.b16.cont [7/8] 0, 128
  %994 = vxpose.xlu0.c.b16.end [8/8] 0, 128
  %v995 = vpop.trf.xlu0
  %v996 = vpop.trf.xlu0
  %v997 = vpop.trf.xlu0
  %v998 = vpop.trf.xlu0
  %v999 = vpop.trf.xlu0
  %v1000 = vpop.trf.xlu0
  %v1001 = vpop.trf.xlu0
  %v1002 = vpop.trf.xlu0
  %1003 = vxpose.xlu0.c.b16.start [1/8] %v925, 128
  %1004 = vxpose.xlu0.c.b16.cont [2/8] 0, 128
  %1005 = vxpose.xlu0.c.b16.cont [3/8] 0, 128
  %1006 = vxpose.xlu0.c.b16.cont [4/8] 0, 128
  %1007 = vxpose.xlu0.c.b16.cont [5/8] 0, 128
  %1008 = vxpose.xlu0.c.b16.cont [6/8] 0, 128
  %1009 = vxpose.xlu0.c.b16.cont [7/8] 0, 128
  %1010 = vxpose.xlu0.c.b16.end [8/8] 0, 128
  %v1011 = vpop.trf.xlu0
  %v1012 = vpop.trf.xlu0
  %v1013 = vpop.trf.xlu0
  %v1014 = vpop.trf.xlu0
  %v1015 = vpop.trf.xlu0
  %v1016 = vpop.trf.xlu0
  %v1017 = vpop.trf.xlu0
  %v1018 = vpop.trf.xlu0
  %1019 = vxpose.xlu0.c.b16.start [1/8] %v929, 128
  %1020 = vxpose.xlu0.c.b16.cont [2/8] 0, 128
  %1021 = vxpose.xlu0.c.b16.cont [3/8] 0, 128
  %1022 = vxpose.xlu0.c.b16.cont [4/8] 0, 128
  %1023 = vxpose.xlu0.c.b16.cont [5/8] 0, 128
  %1024 = vxpose.xlu0.c.b16.cont [6/8] 0, 128
  %1025 = vxpose.xlu0.c.b16.cont [7/8] 0, 128
  %1026 = vxpose.xlu0.c.b16.end [8/8] 0, 128
  %v1027 = vpop.trf.xlu0
  %v1028 = vpop.trf.xlu0
  %v1029 = vpop.trf.xlu0
  %v1030 = vpop.trf.xlu0
  %v1031 = vpop.trf.xlu0
  %v1032 = vpop.trf.xlu0
  %v1033 = vpop.trf.xlu0
  %v1034 = vpop.trf.xlu0
  %1035 = vxpose.xlu0.c.b16.start [1/8] %v933, 128
  %1036 = vxpose.xlu0.c.b16.cont [2/8] 0, 128
  %1037 = vxpose.xlu0.c.b16.cont [3/8] 0, 128
  %1038 = vxpose.xlu0.c.b16.cont [4/8] 0, 128
  %1039 = vxpose.xlu0.c.b16.cont [5/8] 0, 128
  %1040 = vxpose.xlu0.c.b16.cont [6/8] 0, 128
  %1041 = vxpose.xlu0.c.b16.cont [7/8] 0, 128
  %1042 = vxpose.xlu0.c.b16.end [8/8] 0, 128
  %v1043 = vpop.trf.xlu0
  %v1044 = vpop.trf.xlu0
  %v1045 = vpop.trf.xlu0
  %v1046 = vpop.trf.xlu0
  %v1047 = vpop.trf.xlu0
  %v1048 = vpop.trf.xlu0
  %v1049 = vpop.trf.xlu0
  %v1050 = vpop.trf.xlu0
  %1051 = vxpose.xlu0.c.b16.start [1/8] %v937, 128
  %1052 = vxpose.xlu0.c.b16.cont [2/8] 0, 128
  %1053 = vxpose.xlu0.c.b16.cont [3/8] 0, 128
  %1054 = vxpose.xlu0.c.b16.cont [4/8] 0, 128
  %1055 = vxpose.xlu0.c.b16.cont [5/8] 0, 128
  %1056 = vxpose.xlu0.c.b16.cont [6/8] 0, 128
  %1057 = vxpose.xlu0.c.b16.cont [7/8] 0, 128
  %1058 = vxpose.xlu0.c.b16.end [8/8] 0, 128
  %v1059 = vpop.trf.xlu0
  %v1060 = vpop.trf.xlu0
  %v1061 = vpop.trf.xlu0
  %v1062 = vpop.trf.xlu0
  %v1063 = vpop.trf.xlu0
  %v1064 = vpop.trf.xlu0
  %v1065 = vpop.trf.xlu0
  %v1066 = vpop.trf.xlu0
  %v1067 = vcombine.low %v947, %v1011
  %v1069 = vunpack.c.l.s4 1983009808
  %v1070 = vunpack.c.0.s8 %v1069
  %v1071 = vlaneseq
  %v1072 = vshrl.u32 %v1071, 7
  %v1073 = vsub.s32 %v1070, %v1072
  %v1074 = vrot.slane %v1067, %v1073
  %v1075 = vcombine.low %v979, %v1043
  %v1077 = vunpack.c.l.s4 1983009808
  %v1078 = vunpack.c.0.s8 %v1077
  %v1079 = vlaneseq
  %v1080 = vshrl.u32 %v1079, 7
  %v1081 = vsub.s32 %v1078, %v1080
  %v1082 = vrot.slane %v1075, %v1081
  %v1083 = vcombine.low %v1074, %v1082
  %v1085 = vunpack.c.l.s4 1934713408
  %v1086 = vunpack.c.0.s8 %v1085
  %v1087 = vlaneseq
  %v1088 = vshrl.u32 %v1087, 7
  %v1089 = vsub.s32 %v1086, %v1088
  %v1090 = vrot.slane %v1083, %v1089
  %v1091 = vcombine.high %v1090, 0
  %v1092 = vcombine.low %v963, %v1027
  %v1094 = vunpack.c.l.s4 1983009808
  %v1095 = vunpack.c.0.s8 %v1094
  %v1096 = vlaneseq
  %v1097 = vshrl.u32 %v1096, 7
  %v1098 = vsub.s32 %v1095, %v1097
  %v1099 = vrot.slane %v1092, %v1098
  %v1100 = vcombine.low %v995, %v1059
  %v1102 = vunpack.c.l.s4 1983009808
  %v1103 = vunpack.c.0.s8 %v1102
  %v1104 = vlaneseq
  %v1105 = vshrl.u32 %v1104, 7
  %v1106 = vsub.s32 %v1103, %v1105
  %v1107 = vrot.slane %v1100, %v1106
  %v1108 = vcombine.low %v1099, %v1107
  %v1110 = vunpack.c.l.s4 1934713408
  %v1111 = vunpack.c.0.s8 %v1110
  %v1112 = vlaneseq
  %v1113 = vshrl.u32 %v1112, 7
  %v1114 = vsub.s32 %v1111, %v1113
  %v1115 = vrot.slane %v1108, %v1114
  %v1116 = vcombine.high %v1115, 0
  %v1119 = vpack.i.b16 %v1115, %v1090
  %v1120 = vshrl.u32 %v1090, 16
  %v1121 = vshrl.u32 %v1115, 16
  %v1122 = vpack.i.b16 %v1121, %v1120
  %v1125 = vpack.i.b16 %v1116, %v1091
  %v1126 = vshrl.u32 %v1091, 16
  %v1127 = vshrl.u32 %v1116, 16
  %v1128 = vpack.i.b16 %v1127, %v1126
  %vm1129 = vcmask 64512
  %v1131 = vsel %vm1129, %v701, 0
  %vm1133 = vcmask 1043456
  %v1135 = vsel %vm1133, %v1119, 0
  %1137 = vmatprep.subr.bf16.mxu0 0
  %1138 = vmatpush1.bf16.msra.mxu0 0
  %1139 = vmatprep.subr.bf16.mxu0 0
  %1140 = vmatpush1.bf16.msra.mxu0 0
  %1141 = vmatprep.subr.bf16.mxu0 0
  %1142 = vmatpush1.bf16.msra.mxu0 0
  %1143 = vmatprep.subr.bf16.mxu0 0
  %1144 = vmatpush1.bf16.msra.mxu0 0
  %1145 = vmatprep.subr.bf16.mxu0 0
  %1146 = vmatpush1.bf16.msra.mxu0 0
  %1147 = vmatprep.subr.bf16.mxu0 0
  %1148 = vmatpush1.bf16.msra.mxu0 0
  %1149 = vmatprep.subr.bf16.mxu0 0
  %1150 = vmatpush1.bf16.msra.mxu0 0
  %1151 = vmatprep.subr.bf16.mxu0 0
  %1152 = vmatpush1.bf16.msra.mxu0 %v1135
  %1153 = vmatprep.subr.bf16.mxu0 0
  %1154 = vmatpush2.bf16.msra.mxu0 0
  %1155 = vmatprep.subr.bf16.mxu0 0
  %1156 = vmatpush2.bf16.msra.mxu0 0
  %1157 = vmatprep.subr.bf16.mxu0 0
  %1158 = vmatpush2.bf16.msra.mxu0 0
  %1159 = vmatprep.subr.bf16.mxu0 0
  %1160 = vmatpush2.bf16.msra.mxu0 0
  %1161 = vmatprep.subr.bf16.mxu0 0
  %1162 = vmatpush2.bf16.msra.mxu0 0
  %1163 = vmatprep.subr.bf16.mxu0 0
  %1164 = vmatpush2.bf16.msra.mxu0 0
  %1165 = vmatprep.subr.bf16.mxu0 0
  %1166 = vmatpush2.bf16.msra.mxu0 0
  %1167 = vmatprep.subr.bf16.mxu0 0
  %1168 = vmatpush2.bf16.msra.mxu0 0
  %1169 = vmatprep.mubr.bf16.mxu0 0
  %1170 = vmatmul.mubr.bf16.gmra.mxu0 %v1131
  %v1171 = vpop.f32.mrf.mxu0
  %v1172 = vadd.f32 %v648, %v1171
  %v1173 = vpop.f32.mrf.mxu0
  %v1174 = vpop.f32.mrf.mxu0
  %v1175 = vpop.f32.mrf.mxu0
  %1176 = vdwg.mxu0
  %v1178 = vsel %vm1129, %v704, 0
  %v1181 = vsel %vm1133, %v1122, 0
  %1183 = vmatprep.subr.bf16.mxu0 0
  %1184 = vmatpush1.bf16.msra.mxu0 0
  %1185 = vmatprep.subr.bf16.mxu0 0
  %1186 = vmatpush1.bf16.msra.mxu0 0
  %1187 = vmatprep.subr.bf16.mxu0 0
  %1188 = vmatpush1.bf16.msra.mxu0 0
  %1189 = vmatprep.subr.bf16.mxu0 0
  %1190 = vmatpush1.bf16.msra.mxu0 0
  %1191 = vmatprep.subr.bf16.mxu0 0
  %1192 = vmatpush1.bf16.msra.mxu0 0
  %1193 = vmatprep.subr.bf16.mxu0 0
  %1194 = vmatpush1.bf16.msra.mxu0 0
  %1195 = vmatprep.subr.bf16.mxu0 0
  %1196 = vmatpush1.bf16.msra.mxu0 0
  %1197 = vmatprep.subr.bf16.mxu0 0
  %1198 = vmatpush1.bf16.msra.mxu0 %v1181
  %1199 = vmatprep.subr.bf16.mxu0 0
  %1200 = vmatpush2.bf16.msra.mxu0 0
  %1201 = vmatprep.subr.bf16.mxu0 0
  %1202 = vmatpush2.bf16.msra.mxu0 0
  %1203 = vmatprep.subr.bf16.mxu0 0
  %1204 = vmatpush2.bf16.msra.mxu0 0
  %1205 = vmatprep.subr.bf16.mxu0 0
  %1206 = vmatpush2.bf16.msra.mxu0 0
  %1207 = vmatprep.subr.bf16.mxu0 0
  %1208 = vmatpush2.bf16.msra.mxu0 0
  %1209 = vmatprep.subr.bf16.mxu0 0
  %1210 = vmatpush2.bf16.msra.mxu0 0
  %1211 = vmatprep.subr.bf16.mxu0 0
  %1212 = vmatpush2.bf16.msra.mxu0 0
  %1213 = vmatprep.subr.bf16.mxu0 0
  %1214 = vmatpush2.bf16.msra.mxu0 0
  %1215 = vmatprep.mubr.bf16.mxu0 0
  %1216 = vmatmul.mubr.bf16.gmra.mxu0 %v1178
  %v1217 = vpop.f32.mrf.mxu0
  %v1218 = vadd.f32 %v648, %v1217
  %v1219 = vpop.f32.mrf.mxu0
  %v1220 = vpop.f32.mrf.mxu0
  %v1221 = vpop.f32.mrf.mxu0
  %1222 = vdwg.mxu0
  %v1224 = vsel %vm1129, %v707, 0
  %v1227 = vsel %vm1133, %v1125, 0
  %1229 = vmatprep.subr.bf16.mxu0 0
  %1230 = vmatpush1.bf16.msra.mxu0 0
  %1231 = vmatprep.subr.bf16.mxu0 0
  %1232 = vmatpush1.bf16.msra.mxu0 0
  %1233 = vmatprep.subr.bf16.mxu0 0
  %1234 = vmatpush1.bf16.msra.mxu0 0
  %1235 = vmatprep.subr.bf16.mxu0 0
  %1236 = vmatpush1.bf16.msra.mxu0 0
  %1237 = vmatprep.subr.bf16.mxu0 0
  %1238 = vmatpush1.bf16.msra.mxu0 0
  %1239 = vmatprep.subr.bf16.mxu0 0
  %1240 = vmatpush1.bf16.msra.mxu0 0
  %1241 = vmatprep.subr.bf16.mxu0 0
  %1242 = vmatpush1.bf16.msra.mxu0 0
  %1243 = vmatprep.subr.bf16.mxu0 0
  %1244 = vmatpush1.bf16.msra.mxu0 %v1227
  %1245 = vmatprep.subr.bf16.mxu0 0
  %1246 = vmatpush2.bf16.msra.mxu0 0
  %1247 = vmatprep.subr.bf16.mxu0 0
  %1248 = vmatpush2.bf16.msra.mxu0 0
  %1249 = vmatprep.subr.bf16.mxu0 0
  %1250 = vmatpush2.bf16.msra.mxu0 0
  %1251 = vmatprep.subr.bf16.mxu0 0
  %1252 = vmatpush2.bf16.msra.mxu0 0
  %1253 = vmatprep.subr.bf16.mxu0 0
  %1254 = vmatpush2.bf16.msra.mxu0 0
  %1255 = vmatprep.subr.bf16.mxu0 0
  %1256 = vmatpush2.bf16.msra.mxu0 0
  %1257 = vmatprep.subr.bf16.mxu0 0
  %1258 = vmatpush2.bf16.msra.mxu0 0
  %1259 = vmatprep.subr.bf16.mxu0 0
  %1260 = vmatpush2.bf16.msra.mxu0 0
  %1261 = vmatprep.mubr.bf16.mxu0 0
  %1262 = vmatmul.mubr.bf16.gmra.mxu0 %v1224
  %v1263 = vpop.f32.mrf.mxu0
  %v1264 = vadd.f32 %v648, %v1263
  %v1265 = vpop.f32.mrf.mxu0
  %v1266 = vpop.f32.mrf.mxu0
  %v1267 = vpop.f32.mrf.mxu0
  %1268 = vdwg.mxu0
  %v1270 = vsel %vm1129, %v710, 0
  %v1273 = vsel %vm1133, %v1128, 0
  %1275 = vmatprep.subr.bf16.mxu0 0
  %1276 = vmatpush1.bf16.msra.mxu0 0
  %1277 = vmatprep.subr.bf16.mxu0 0
  %1278 = vmatpush1.bf16.msra.mxu0 0
  %1279 = vmatprep.subr.bf16.mxu0 0
  %1280 = vmatpush1.bf16.msra.mxu0 0
  %1281 = vmatprep.subr.bf16.mxu0 0
  %1282 = vmatpush1.bf16.msra.mxu0 0
  %1283 = vmatprep.subr.bf16.mxu0 0
  %1284 = vmatpush1.bf16.msra.mxu0 0
  %1285 = vmatprep.subr.bf16.mxu0 0
  %1286 = vmatpush1.bf16.msra.mxu0 0
  %1287 = vmatprep.subr.bf16.mxu0 0
  %1288 = vmatpush1.bf16.msra.mxu0 0
  %1289 = vmatprep.subr.bf16.mxu0 0
  %1290 = vmatpush1.bf16.msra.mxu0 %v1273
  %1291 = vmatprep.subr.bf16.mxu0 0
  %1292 = vmatpush2.bf16.msra.mxu0 0
  %1293 = vmatprep.subr.bf16.mxu0 0
  %1294 = vmatpush2.bf16.msra.mxu0 0
  %1295 = vmatprep.subr.bf16.mxu0 0
  %1296 = vmatpush2.bf16.msra.mxu0 0
  %1297 = vmatprep.subr.bf16.mxu0 0
  %1298 = vmatpush2.bf16.msra.mxu0 0
  %1299 = vmatprep.subr.bf16.mxu0 0
  %1300 = vmatpush2.bf16.msra.mxu0 0
  %1301 = vmatprep.subr.bf16.mxu0 0
  %1302 = vmatpush2.bf16.msra.mxu0 0
  %1303 = vmatprep.subr.bf16.mxu0 0
  %1304 = vmatpush2.bf16.msra.mxu0 0
  %1305 = vmatprep.subr.bf16.mxu0 0
  %1306 = vmatpush2.bf16.msra.mxu0 0
  %1307 = vmatprep.mubr.bf16.mxu0 0
  %1308 = vmatmul.mubr.bf16.gmra.mxu0 %v1270
  %v1309 = vpop.f32.mrf.mxu0
  %v1310 = vadd.f32 %v648, %v1309
  %v1311 = vpop.f32.mrf.mxu0
  %v1312 = vpop.f32.mrf.mxu0
  %v1313 = vpop.f32.mrf.mxu0
  %1314 = vdwg.mxu0
  %v1315 = vsel %vm1129, %v1172, -inf
  %1316 = vmax.xlane.f32.xlu0 %v1315
  %v1317 = vpop.xlane.xlu0 %1316
  %v1318 = vsel %vm1129, %v1218, -inf
  %1319 = vmax.xlane.f32.xlu0 %v1318
  %v1320 = vpop.xlane.xlu0 %1319
  %v1321 = vsel %vm1129, %v1264, -inf
  %1322 = vmax.xlane.f32.xlu0 %v1321
  %v1323 = vpop.xlane.xlu0 %1322
  %v1324 = vsel %vm1129, %v1310, -inf
  %1325 = vmax.xlane.f32.xlu0 %v1324
  %v1326 = vpop.xlane.xlu0 %1325
  %v1327 = vsub.f32 %v1172, %v1317
  %v1328 = vsub.f32 %v1218, %v1320
  %v1329 = vsub.f32 %v1264, %v1323
  %v1330 = vsub.f32 %v1310, %v1326
  %v1331 = vmul.f32 %v1327, 1.442695
  %v1332 = vpow.pop %v1331
  %v1333 = vmul.f32 %v1328, 1.442695
  %v1334 = vpow.pop %v1333
  %v1335 = vmul.f32 %v1329, 1.442695
  %v1336 = vpow.pop %v1335
  %v1337 = vmul.f32 %v1330, 1.442695
  %v1338 = vpow.pop %v1337
  %v1339 = vsel %vm1129, %v1332, 0.0
  %1340 = vadd.xlane.f32.xlu0 %v1339
  %v1341 = vpop.xlane.xlu0 %1340
  %v1342 = vsel %vm1129, %v1334, 0.0
  %1343 = vadd.xlane.f32.xlu0 %v1342
  %v1344 = vpop.xlane.xlu0 %1343
  %v1345 = vsel %vm1129, %v1336, 0.0
  %1346 = vadd.xlane.f32.xlu0 %v1345
  %v1347 = vpop.xlane.xlu0 %1346
  %v1348 = vsel %vm1129, %v1338, 0.0
  %1349 = vadd.xlane.f32.xlu0 %v1348
  %v1350 = vpop.xlane.xlu0 %1349
  %v1351 = vrcp.pop %v1341
  %v1352 = vrcp.pop %v1344
  %v1353 = vrcp.pop %v1347
  %v1354 = vrcp.pop %v1350
  %v1355 = vmul.f32 %v1332, %v1351
  %v1356 = vmul.f32 %v1334, %v1352
  %v1357 = vmul.f32 %v1336, %v1353
  %v1358 = vmul.f32 %v1338, %v1354
  %v1359 = vpack.c.bf16 %v1355, %v1355
  %v1360 = vpack.c.bf16 %v1356, %v1356
  %v1361 = vpack.c.bf16 %v1357, %v1357
  %v1362 = vpack.c.bf16 %v1358, %v1358
  %1363 = vxpose.xlu0.c.b16.start [1/8] %v637, 128
  %1364 = vxpose.xlu0.c.b16.cont [2/8] 0, 128
  %1365 = vxpose.xlu0.c.b16.cont [3/8] 0, 128
  %1366 = vxpose.xlu0.c.b16.cont [4/8] 0, 128
  %1367 = vxpose.xlu0.c.b16.cont [5/8] 0, 128
  %1368 = vxpose.xlu0.c.b16.cont [6/8] 0, 128
  %1369 = vxpose.xlu0.c.b16.cont [7/8] 0, 128
  %1370 = vxpose.xlu0.c.b16.end [8/8] 0, 128
  %v1371 = vpop.trf.xlu0
  %v1372 = vpop.trf.xlu0
  %v1373 = vpop.trf.xlu0
  %v1374 = vpop.trf.xlu0
  %v1375 = vpop.trf.xlu0
  %v1376 = vpop.trf.xlu0
  %v1377 = vpop.trf.xlu0
  %v1378 = vpop.trf.xlu0
  %1379 = vxpose.xlu0.c.b16.start [1/8] %v638, 128
  %1380 = vxpose.xlu0.c.b16.cont [2/8] 0, 128
  %1381 = vxpose.xlu0.c.b16.cont [3/8] 0, 128
  %1382 = vxpose.xlu0.c.b16.cont [4/8] 0, 128
  %1383 = vxpose.xlu0.c.b16.cont [5/8] 0, 128
  %1384 = vxpose.xlu0.c.b16.cont [6/8] 0, 128
  %1385 = vxpose.xlu0.c.b16.cont [7/8] 0, 128
  %1386 = vxpose.xlu0.c.b16.end [8/8] 0, 128
  %v1387 = vpop.trf.xlu0
  %v1388 = vpop.trf.xlu0
  %v1389 = vpop.trf.xlu0
  %v1390 = vpop.trf.xlu0
  %v1391 = vpop.trf.xlu0
  %v1392 = vpop.trf.xlu0
  %v1393 = vpop.trf.xlu0
  %v1394 = vpop.trf.xlu0
  %1395 = vxpose.xlu0.c.b16.start [1/8] %v639, 128
  %1396 = vxpose.xlu0.c.b16.cont [2/8] 0, 128
  %1397 = vxpose.xlu0.c.b16.cont [3/8] 0, 128
  %1398 = vxpose.xlu0.c.b16.cont [4/8] 0, 128
  %1399 = vxpose.xlu0.c.b16.cont [5/8] 0, 128
  %1400 = vxpose.xlu0.c.b16.cont [6/8] 0, 128
  %1401 = vxpose.xlu0.c.b16.cont [7/8] 0, 128
  %1402 = vxpose.xlu0.c.b16.end [8/8] 0, 128
  %v1403 = vpop.trf.xlu0
  %v1404 = vpop.trf.xlu0
  %v1405 = vpop.trf.xlu0
  %v1406 = vpop.trf.xlu0
  %v1407 = vpop.trf.xlu0
  %v1408 = vpop.trf.xlu0
  %v1409 = vpop.trf.xlu0
  %v1410 = vpop.trf.xlu0
  %1411 = vxpose.xlu0.c.b16.start [1/8] %v640, 128
  %1412 = vxpose.xlu0.c.b16.cont [2/8] 0, 128
  %1413 = vxpose.xlu0.c.b16.cont [3/8] 0, 128
  %1414 = vxpose.xlu0.c.b16.cont [4/8] 0, 128
  %1415 = vxpose.xlu0.c.b16.cont [5/8] 0, 128
  %1416 = vxpose.xlu0.c.b16.cont [6/8] 0, 128
  %1417 = vxpose.xlu0.c.b16.cont [7/8] 0, 128
  %1418 = vxpose.xlu0.c.b16.end [8/8] 0, 128
  %v1419 = vpop.trf.xlu0
  %v1420 = vpop.trf.xlu0
  %v1421 = vpop.trf.xlu0
  %v1422 = vpop.trf.xlu0
  %v1423 = vpop.trf.xlu0
  %v1424 = vpop.trf.xlu0
  %v1425 = vpop.trf.xlu0
  %v1426 = vpop.trf.xlu0
  %1427 = vxpose.xlu0.c.b16.start [1/8] %v641, 128
  %1428 = vxpose.xlu0.c.b16.cont [2/8] 0, 128
  %1429 = vxpose.xlu0.c.b16.cont [3/8] 0, 128
  %1430 = vxpose.xlu0.c.b16.cont [4/8] 0, 128
  %1431 = vxpose.xlu0.c.b16.cont [5/8] 0, 128
  %1432 = vxpose.xlu0.c.b16.cont [6/8] 0, 128
  %1433 = vxpose.xlu0.c.b16.cont [7/8] 0, 128
  %1434 = vxpose.xlu0.c.b16.end [8/8] 0, 128
  %v1435 = vpop.trf.xlu0
  %v1436 = vpop.trf.xlu0
  %v1437 = vpop.trf.xlu0
  %v1438 = vpop.trf.xlu0
  %v1439 = vpop.trf.xlu0
  %v1440 = vpop.trf.xlu0
  %v1441 = vpop.trf.xlu0
  %v1442 = vpop.trf.xlu0
  %1443 = vxpose.xlu0.c.b16.start [1/8] %v642, 128
  %1444 = vxpose.xlu0.c.b16.cont [2/8] 0, 128
  %1445 = vxpose.xlu0.c.b16.cont [3/8] 0, 128
  %1446 = vxpose.xlu0.c.b16.cont [4/8] 0, 128
  %1447 = vxpose.xlu0.c.b16.cont [5/8] 0, 128
  %1448 = vxpose.xlu0.c.b16.cont [6/8] 0, 128
  %1449 = vxpose.xlu0.c.b16.cont [7/8] 0, 128
  %1450 = vxpose.xlu0.c.b16.end [8/8] 0, 128
  %v1451 = vpop.trf.xlu0
  %v1452 = vpop.trf.xlu0
  %v1453 = vpop.trf.xlu0
  %v1454 = vpop.trf.xlu0
  %v1455 = vpop.trf.xlu0
  %v1456 = vpop.trf.xlu0
  %v1457 = vpop.trf.xlu0
  %v1458 = vpop.trf.xlu0
  %1459 = vxpose.xlu0.c.b16.start [1/8] %v643, 128
  %1460 = vxpose.xlu0.c.b16.cont [2/8] 0, 128
  %1461 = vxpose.xlu0.c.b16.cont [3/8] 0, 128
  %1462 = vxpose.xlu0.c.b16.cont [4/8] 0, 128
  %1463 = vxpose.xlu0.c.b16.cont [5/8] 0, 128
  %1464 = vxpose.xlu0.c.b16.cont [6/8] 0, 128
  %1465 = vxpose.xlu0.c.b16.cont [7/8] 0, 128
  %1466 = vxpose.xlu0.c.b16.end [8/8] 0, 128
  %v1467 = vpop.trf.xlu0
  %v1468 = vpop.trf.xlu0
  %v1469 = vpop.trf.xlu0
  %v1470 = vpop.trf.xlu0
  %v1471 = vpop.trf.xlu0
  %v1472 = vpop.trf.xlu0
  %v1473 = vpop.trf.xlu0
  %v1474 = vpop.trf.xlu0
  %1475 = vxpose.xlu0.c.b16.start [1/8] %v644, 128
  %1476 = vxpose.xlu0.c.b16.cont [2/8] 0, 128
  %1477 = vxpose.xlu0.c.b16.cont [3/8] 0, 128
  %1478 = vxpose.xlu0.c.b16.cont [4/8] 0, 128
  %1479 = vxpose.xlu0.c.b16.cont [5/8] 0, 128
  %1480 = vxpose.xlu0.c.b16.cont [6/8] 0, 128
  %1481 = vxpose.xlu0.c.b16.cont [7/8] 0, 128
  %1482 = vxpose.xlu0.c.b16.end [8/8] 0, 128
  %v1483 = vpop.trf.xlu0
  %v1484 = vpop.trf.xlu0
  %v1485 = vpop.trf.xlu0
  %v1486 = vpop.trf.xlu0
  %v1487 = vpop.trf.xlu0
  %v1488 = vpop.trf.xlu0
  %v1489 = vpop.trf.xlu0
  %v1490 = vpop.trf.xlu0
  %v1491 = vcombine.low %v1371, %v1435
  %v1493 = vunpack.c.l.s4 1983009808
  %v1494 = vunpack.c.0.s8 %v1493
  %v1495 = vlaneseq
  %v1496 = vshrl.u32 %v1495, 7
  %v1497 = vsub.s32 %v1494, %v1496
  %v1498 = vrot.slane %v1491, %v1497
  %v1499 = vcombine.low %v1403, %v1467
  %v1501 = vunpack.c.l.s4 1983009808
  %v1502 = vunpack.c.0.s8 %v1501
  %v1503 = vlaneseq
  %v1504 = vshrl.u32 %v1503, 7
  %v1505 = vsub.s32 %v1502, %v1504
  %v1506 = vrot.slane %v1499, %v1505
  %v1507 = vcombine.low %v1498, %v1506
  %v1508 = vcombine.high %v1498, %v1506
  %v1510 = vunpack.c.l.s4 1934713408
  %v1511 = vunpack.c.0.s8 %v1510
  %v1512 = vlaneseq
  %v1513 = vshrl.u32 %v1512, 7
  %v1514 = vsub.s32 %v1511, %v1513
  %v1515 = vrot.slane %v1507, %v1514
  %v1517 = vunpack.c.l.s4 1934713408
  %v1518 = vunpack.c.0.s8 %v1517
  %v1519 = vlaneseq
  %v1520 = vshrl.u32 %v1519, 7
  %v1521 = vsub.s32 %v1518, %v1520
  %v1522 = vrot.slane %v1508, %v1521
  %v1523 = vcombine.high %v1515, 0
  %v1524 = vcombine.high %v1522, 0
  %v1525 = vcombine.low %v1387, %v1451
  %v1527 = vunpack.c.l.s4 1983009808
  %v1528 = vunpack.c.0.s8 %v1527
  %v1529 = vlaneseq
  %v1530 = vshrl.u32 %v1529, 7
  %v1531 = vsub.s32 %v1528, %v1530
  %v1532 = vrot.slane %v1525, %v1531
  %v1533 = vcombine.low %v1419, %v1483
  %v1535 = vunpack.c.l.s4 1983009808
  %v1536 = vunpack.c.0.s8 %v1535
  %v1537 = vlaneseq
  %v1538 = vshrl.u32 %v1537, 7
  %v1539 = vsub.s32 %v1536, %v1538
  %v1540 = vrot.slane %v1533, %v1539
  %v1541 = vcombine.low %v1532, %v1540
  %v1542 = vcombine.high %v1532, %v1540
  %v1544 = vunpack.c.l.s4 1934713408
  %v1545 = vunpack.c.0.s8 %v1544
  %v1546 = vlaneseq
  %v1547 = vshrl.u32 %v1546, 7
  %v1548 = vsub.s32 %v1545, %v1547
  %v1549 = vrot.slane %v1541, %v1548
  %v1551 = vunpack.c.l.s4 1934713408
  %v1552 = vunpack.c.0.s8 %v1551
  %v1553 = vlaneseq
  %v1554 = vshrl.u32 %v1553, 7
  %v1555 = vsub.s32 %v1552, %v1554
  %v1556 = vrot.slane %v1542, %v1555
  %v1557 = vcombine.high %v1549, 0
  %v1558 = vcombine.high %v1556, 0
  %v1561 = vpack.i.b16 %v1549, %v1515
  %v1563 = vshrl.u32 %v1515, 16
  %v1564 = vshrl.u32 %v1549, 16
  %v1565 = vpack.i.b16 %v1564, %v1563
  %v1569 = vpack.i.b16 %v1557, %v1523
  %v1571 = vshrl.u32 %v1523, 16
  %v1572 = vshrl.u32 %v1557, 16
  %v1573 = vpack.i.b16 %v1572, %v1571
  %v1577 = vpack.i.b16 %v1556, %v1522
  %v1579 = vshrl.u32 %v1522, 16
  %v1580 = vshrl.u32 %v1556, 16
  %v1581 = vpack.i.b16 %v1580, %v1579
  %v1585 = vpack.i.b16 %v1558, %v1524
  %v1587 = vshrl.u32 %v1524, 16
  %v1588 = vshrl.u32 %v1558, 16
  %v1589 = vpack.i.b16 %v1588, %v1587
  %1591 = vxpose.xlu0.c.b16.start [1/8] %v1561, 128
  %1592 = vxpose.xlu0.c.b16.cont [2/8] 0, 128
  %1593 = vxpose.xlu0.c.b16.cont [3/8] 0, 128
  %1594 = vxpose.xlu0.c.b16.cont [4/8] 0, 128
  %1595 = vxpose.xlu0.c.b16.cont [5/8] 0, 128
  %1596 = vxpose.xlu0.c.b16.cont [6/8] 0, 128
  %1597 = vxpose.xlu0.c.b16.cont [7/8] 0, 128
  %1598 = vxpose.xlu0.c.b16.end [8/8] 0, 128
  %v1599 = vpop.trf.xlu0
  %v1600 = vpop.trf.xlu0
  %v1601 = vpop.trf.xlu0
  %v1602 = vpop.trf.xlu0
  %v1603 = vpop.trf.xlu0
  %v1604 = vpop.trf.xlu0
  %v1605 = vpop.trf.xlu0
  %v1606 = vpop.trf.xlu0
  %1607 = vxpose.xlu0.c.b16.start [1/8] %v1565, 128
  %1608 = vxpose.xlu0.c.b16.cont [2/8] 0, 128
  %1609 = vxpose.xlu0.c.b16.cont [3/8] 0, 128
  %1610 = vxpose.xlu0.c.b16.cont [4/8] 0, 128
  %1611 = vxpose.xlu0.c.b16.cont [5/8] 0, 128
  %1612 = vxpose.xlu0.c.b16.cont [6/8] 0, 128
  %1613 = vxpose.xlu0.c.b16.cont [7/8] 0, 128
  %1614 = vxpose.xlu0.c.b16.end [8/8] 0, 128
  %v1615 = vpop.trf.xlu0
  %v1616 = vpop.trf.xlu0
  %v1617 = vpop.trf.xlu0
  %v1618 = vpop.trf.xlu0
  %v1619 = vpop.trf.xlu0
  %v1620 = vpop.trf.xlu0
  %v1621 = vpop.trf.xlu0
  %v1622 = vpop.trf.xlu0
  %1623 = vxpose.xlu0.c.b16.start [1/8] %v1569, 128
  %1624 = vxpose.xlu0.c.b16.cont [2/8] 0, 128
  %1625 = vxpose.xlu0.c.b16.cont [3/8] 0, 128
  %1626 = vxpose.xlu0.c.b16.cont [4/8] 0, 128
  %1627 = vxpose.xlu0.c.b16.cont [5/8] 0, 128
  %1628 = vxpose.xlu0.c.b16.cont [6/8] 0, 128
  %1629 = vxpose.xlu0.c.b16.cont [7/8] 0, 128
  %1630 = vxpose.xlu0.c.b16.end [8/8] 0, 128
  %v1631 = vpop.trf.xlu0
  %v1632 = vpop.trf.xlu0
  %v1633 = vpop.trf.xlu0
  %v1634 = vpop.trf.xlu0
  %v1635 = vpop.trf.xlu0
  %v1636 = vpop.trf.xlu0
  %v1637 = vpop.trf.xlu0
  %v1638 = vpop.trf.xlu0
  %1639 = vxpose.xlu0.c.b16.start [1/8] %v1573, 128
  %1640 = vxpose.xlu0.c.b16.cont [2/8] 0, 128
  %1641 = vxpose.xlu0.c.b16.cont [3/8] 0, 128
  %1642 = vxpose.xlu0.c.b16.cont [4/8] 0, 128
  %1643 = vxpose.xlu0.c.b16.cont [5/8] 0, 128
  %1644 = vxpose.xlu0.c.b16.cont [6/8] 0, 128
  %1645 = vxpose.xlu0.c.b16.cont [7/8] 0, 128
  %1646 = vxpose.xlu0.c.b16.end [8/8] 0, 128
  %v1647 = vpop.trf.xlu0
  %v1648 = vpop.trf.xlu0
  %v1649 = vpop.trf.xlu0
  %v1650 = vpop.trf.xlu0
  %v1651 = vpop.trf.xlu0
  %v1652 = vpop.trf.xlu0
  %v1653 = vpop.trf.xlu0
  %v1654 = vpop.trf.xlu0
  %1655 = vxpose.xlu0.c.b16.start [1/8] %v1577, 128
  %1656 = vxpose.xlu0.c.b16.cont [2/8] 0, 128
  %1657 = vxpose.xlu0.c.b16.cont [3/8] 0, 128
  %1658 = vxpose.xlu0.c.b16.cont [4/8] 0, 128
  %1659 = vxpose.xlu0.c.b16.cont [5/8] 0, 128
  %1660 = vxpose.xlu0.c.b16.cont [6/8] 0, 128
  %1661 = vxpose.xlu0.c.b16.cont [7/8] 0, 128
  %1662 = vxpose.xlu0.c.b16.end [8/8] 0, 128
  %v1663 = vpop.trf.xlu0
  %v1664 = vpop.trf.xlu0
  %v1665 = vpop.trf.xlu0
  %v1666 = vpop.trf.xlu0
  %v1667 = vpop.trf.xlu0
  %v1668 = vpop.trf.xlu0
  %v1669 = vpop.trf.xlu0
  %v1670 = vpop.trf.xlu0
  %1671 = vxpose.xlu0.c.b16.start [1/8] %v1581, 128
  %1672 = vxpose.xlu0.c.b16.cont [2/8] 0, 128
  %1673 = vxpose.xlu0.c.b16.cont [3/8] 0, 128
  %1674 = vxpose.xlu0.c.b16.cont [4/8] 0, 128
  %1675 = vxpose.xlu0.c.b16.cont [5/8] 0, 128
  %1676 = vxpose.xlu0.c.b16.cont [6/8] 0, 128
  %1677 = vxpose.xlu0.c.b16.cont [7/8] 0, 128
  %1678 = vxpose.xlu0.c.b16.end [8/8] 0, 128
  %v1679 = vpop.trf.xlu0
  %v1680 = vpop.trf.xlu0
  %v1681 = vpop.trf.xlu0
  %v1682 = vpop.trf.xlu0
  %v1683 = vpop.trf.xlu0
  %v1684 = vpop.trf.xlu0
  %v1685 = vpop.trf.xlu0
  %v1686 = vpop.trf.xlu0
  %1687 = vxpose.xlu0.c.b16.start [1/8] %v1585, 128
  %1688 = vxpose.xlu0.c.b16.cont [2/8] 0, 128
  %1689 = vxpose.xlu0.c.b16.cont [3/8] 0, 128
  %1690 = vxpose.xlu0.c.b16.cont [4/8] 0, 128
  %1691 = vxpose.xlu0.c.b16.cont [5/8] 0, 128
  %1692 = vxpose.xlu0.c.b16.cont [6/8] 0, 128
  %1693 = vxpose.xlu0.c.b16.cont [7/8] 0, 128
  %1694 = vxpose.xlu0.c.b16.end [8/8] 0, 128
  %v1695 = vpop.trf.xlu0
  %v1696 = vpop.trf.xlu0
  %v1697 = vpop.trf.xlu0
  %v1698 = vpop.trf.xlu0
  %v1699 = vpop.trf.xlu0
  %v1700 = vpop.trf.xlu0
  %v1701 = vpop.trf.xlu0
  %v1702 = vpop.trf.xlu0
  %1703 = vxpose.xlu0.c.b16.start [1/8] %v1589, 128
  %1704 = vxpose.xlu0.c.b16.cont [2/8] 0, 128
  %1705 = vxpose.xlu0.c.b16.cont [3/8] 0, 128
  %1706 = vxpose.xlu0.c.b16.cont [4/8] 0, 128
  %1707 = vxpose.xlu0.c.b16.cont [5/8] 0, 128
  %1708 = vxpose.xlu0.c.b16.cont [6/8] 0, 128
  %1709 = vxpose.xlu0.c.b16.cont [7/8] 0, 128
  %1710 = vxpose.xlu0.c.b16.end [8/8] 0, 128
  %v1711 = vpop.trf.xlu0
  %v1712 = vpop.trf.xlu0
  %v1713 = vpop.trf.xlu0
  %v1714 = vpop.trf.xlu0
  %v1715 = vpop.trf.xlu0
  %v1716 = vpop.trf.xlu0
  %v1717 = vpop.trf.xlu0
  %v1718 = vpop.trf.xlu0
  %v1719 = vcombine.low %v1599, %v1663
  %v1721 = vunpack.c.l.s4 1983009808
  %v1722 = vunpack.c.0.s8 %v1721
  %v1723 = vlaneseq
  %v1724 = vshrl.u32 %v1723, 7
  %v1725 = vsub.s32 %v1722, %v1724
  %v1726 = vrot.slane %v1719, %v1725
  %v1727 = vcombine.low %v1631, %v1695
  %v1729 = vunpack.c.l.s4 1983009808
  %v1730 = vunpack.c.0.s8 %v1729
  %v1731 = vlaneseq
  %v1732 = vshrl.u32 %v1731, 7
  %v1733 = vsub.s32 %v1730, %v1732
  %v1734 = vrot.slane %v1727, %v1733
  %v1735 = vcombine.low %v1726, %v1734
  %v1737 = vunpack.c.l.s4 1934713408
  %v1738 = vunpack.c.0.s8 %v1737
  %v1739 = vlaneseq
  %v1740 = vshrl.u32 %v1739, 7
  %v1741 = vsub.s32 %v1738, %v1740
  %v1742 = vrot.slane %v1735, %v1741
  %v1743 = vcombine.high %v1742, 0
  %v1744 = vcombine.low %v1615, %v1679
  %v1746 = vunpack.c.l.s4 1983009808
  %v1747 = vunpack.c.0.s8 %v1746
  %v1748 = vlaneseq
  %v1749 = vshrl.u32 %v1748, 7
  %v1750 = vsub.s32 %v1747, %v1749
  %v1751 = vrot.slane %v1744, %v1750
  %v1752 = vcombine.low %v1647, %v1711
  %v1754 = vunpack.c.l.s4 1983009808
  %v1755 = vunpack.c.0.s8 %v1754
  %v1756 = vlaneseq
  %v1757 = vshrl.u32 %v1756, 7
  %v1758 = vsub.s32 %v1755, %v1757
  %v1759 = vrot.slane %v1752, %v1758
  %v1760 = vcombine.low %v1751, %v1759
  %v1762 = vunpack.c.l.s4 1934713408
  %v1763 = vunpack.c.0.s8 %v1762
  %v1764 = vlaneseq
  %v1765 = vshrl.u32 %v1764, 7
  %v1766 = vsub.s32 %v1763, %v1765
  %v1767 = vrot.slane %v1760, %v1766
  %v1768 = vcombine.high %v1767, 0
  %v1771 = vpack.i.b16 %v1767, %v1742
  %v1772 = vshrl.u32 %v1742, 16
  %v1773 = vshrl.u32 %v1767, 16
  %v1774 = vpack.i.b16 %v1773, %v1772
  %v1777 = vpack.i.b16 %v1768, %v1743
  %v1778 = vshrl.u32 %v1743, 16
  %v1779 = vshrl.u32 %v1768, 16
  %v1780 = vpack.i.b16 %v1779, %v1778
  %v1782 = vsel %vm1129, %v1771, 0
  %v1785 = vsel %vm1129, %v1359, 0
  %1787 = vmatprep.subr.bf16.mxu0 0
  %1788 = vmatpush1.bf16.xpose.msra.mxu0 0
  %1789 = vmatprep.subr.bf16.mxu0 0
  %1790 = vmatpush1.bf16.xpose.msra.mxu0 0
  %1791 = vmatprep.subr.bf16.mxu0 0
  %1792 = vmatpush1.bf16.xpose.msra.mxu0 0
  %1793 = vmatprep.subr.bf16.mxu0 0
  %1794 = vmatpush1.bf16.xpose.msra.mxu0 0
  %1795 = vmatprep.subr.bf16.mxu0 0
  %1796 = vmatpush1.bf16.xpose.msra.mxu0 0
  %1797 = vmatprep.subr.bf16.mxu0 0
  %1798 = vmatpush1.bf16.xpose.msra.mxu0 0
  %1799 = vmatprep.subr.bf16.mxu0 0
  %1800 = vmatpush1.bf16.xpose.msra.mxu0 0
  %1801 = vmatprep.subr.bf16.mxu0 0
  %1802 = vmatpush1.bf16.xpose.msra.mxu0 %v1785
  %1803 = vmatprep.subr.bf16.mxu0 0
  %1804 = vmatpush2.bf16.xpose.msra.mxu0 0
  %1805 = vmatprep.subr.bf16.mxu0 0
  %1806 = vmatpush2.bf16.xpose.msra.mxu0 0
  %1807 = vmatprep.subr.bf16.mxu0 0
  %1808 = vmatpush2.bf16.xpose.msra.mxu0 0
  %1809 = vmatprep.subr.bf16.mxu0 0
  %1810 = vmatpush2.bf16.xpose.msra.mxu0 0
  %1811 = vmatprep.subr.bf16.mxu0 0
  %1812 = vmatpush2.bf16.xpose.msra.mxu0 0
  %1813 = vmatprep.subr.bf16.mxu0 0
  %1814 = vmatpush2.bf16.xpose.msra.mxu0 0
  %1815 = vmatprep.subr.bf16.mxu0 0
  %1816 = vmatpush2.bf16.xpose.msra.mxu0 0
  %1817 = vmatprep.subr.bf16.mxu0 0
  %1818 = vmatpush2.bf16.xpose.msra.mxu0 0
  %1819 = vmatprep.mubr.bf16.mxu0 0
  %1820 = vmatmul.mubr.bf16.gmra.mxu0 %v1782
  %v1821 = vpop.f32.mrf.mxu0
  %v1822 = vadd.f32 0.0, %v1821
  %v1823 = vpop.f32.mrf.mxu0
  %v1824 = vpop.f32.mrf.mxu0
  %v1825 = vpop.f32.mrf.mxu0
  %1826 = vdwg.mxu0
  %v1828 = vsel %vm1129, %v1774, 0
  %v1831 = vsel %vm1129, %v1360, 0
  %1833 = vmatprep.subr.bf16.mxu0 0
  %1834 = vmatpush1.bf16.xpose.msra.mxu0 0
  %1835 = vmatprep.subr.bf16.mxu0 0
  %1836 = vmatpush1.bf16.xpose.msra.mxu0 0
  %1837 = vmatprep.subr.bf16.mxu0 0
  %1838 = vmatpush1.bf16.xpose.msra.mxu0 0
  %1839 = vmatprep.subr.bf16.mxu0 0
  %1840 = vmatpush1.bf16.xpose.msra.mxu0 0
  %1841 = vmatprep.subr.bf16.mxu0 0
  %1842 = vmatpush1.bf16.xpose.msra.mxu0 0
  %1843 = vmatprep.subr.bf16.mxu0 0
  %1844 = vmatpush1.bf16.xpose.msra.mxu0 0
  %1845 = vmatprep.subr.bf16.mxu0 0
  %1846 = vmatpush1.bf16.xpose.msra.mxu0 0
  %1847 = vmatprep.subr.bf16.mxu0 0
  %1848 = vmatpush1.bf16.xpose.msra.mxu0 %v1831
  %1849 = vmatprep.subr.bf16.mxu0 0
  %1850 = vmatpush2.bf16.xpose.msra.mxu0 0
  %1851 = vmatprep.subr.bf16.mxu0 0
  %1852 = vmatpush2.bf16.xpose.msra.mxu0 0
  %1853 = vmatprep.subr.bf16.mxu0 0
  %1854 = vmatpush2.bf16.xpose.msra.mxu0 0
  %1855 = vmatprep.subr.bf16.mxu0 0
  %1856 = vmatpush2.bf16.xpose.msra.mxu0 0
  %1857 = vmatprep.subr.bf16.mxu0 0
  %1858 = vmatpush2.bf16.xpose.msra.mxu0 0
  %1859 = vmatprep.subr.bf16.mxu0 0
  %1860 = vmatpush2.bf16.xpose.msra.mxu0 0
  %1861 = vmatprep.subr.bf16.mxu0 0
  %1862 = vmatpush2.bf16.xpose.msra.mxu0 0
  %1863 = vmatprep.subr.bf16.mxu0 0
  %1864 = vmatpush2.bf16.xpose.msra.mxu0 0
  %1865 = vmatprep.mubr.bf16.mxu0 0
  %1866 = vmatmul.mubr.bf16.gmra.mxu0 %v1828
  %v1867 = vpop.f32.mrf.mxu0
  %v1868 = vadd.f32 0.0, %v1867
  %v1869 = vpop.f32.mrf.mxu0
  %v1870 = vpop.f32.mrf.mxu0
  %v1871 = vpop.f32.mrf.mxu0
  %1872 = vdwg.mxu0
  %v1874 = vsel %vm1129, %v1777, 0
  %v1877 = vsel %vm1129, %v1361, 0
  %1879 = vmatprep.subr.bf16.mxu0 0
  %1880 = vmatpush1.bf16.xpose.msra.mxu0 0
  %1881 = vmatprep.subr.bf16.mxu0 0
  %1882 = vmatpush1.bf16.xpose.msra.mxu0 0
  %1883 = vmatprep.subr.bf16.mxu0 0
  %1884 = vmatpush1.bf16.xpose.msra.mxu0 0
  %1885 = vmatprep.subr.bf16.mxu0 0
  %1886 = vmatpush1.bf16.xpose.msra.mxu0 0
  %1887 = vmatprep.subr.bf16.mxu0 0
  %1888 = vmatpush1.bf16.xpose.msra.mxu0 0
  %1889 = vmatprep.subr.bf16.mxu0 0
  %1890 = vmatpush1.bf16.xpose.msra.mxu0 0
  %1891 = vmatprep.subr.bf16.mxu0 0
  %1892 = vmatpush1.bf16.xpose.msra.mxu0 0
  %1893 = vmatprep.subr.bf16.mxu0 0
  %1894 = vmatpush1.bf16.xpose.msra.mxu0 %v1877
  %1895 = vmatprep.subr.bf16.mxu0 0
  %1896 = vmatpush2.bf16.xpose.msra.mxu0 0
  %1897 = vmatprep.subr.bf16.mxu0 0
  %1898 = vmatpush2.bf16.xpose.msra.mxu0 0
  %1899 = vmatprep.subr.bf16.mxu0 0
  %1900 = vmatpush2.bf16.xpose.msra.mxu0 0
  %1901 = vmatprep.subr.bf16.mxu0 0
  %1902 = vmatpush2.bf16.xpose.msra.mxu0 0
  %1903 = vmatprep.subr.bf16.mxu0 0
  %1904 = vmatpush2.bf16.xpose.msra.mxu0 0
  %1905 = vmatprep.subr.bf16.mxu0 0
  %1906 = vmatpush2.bf16.xpose.msra.mxu0 0
  %1907 = vmatprep.subr.bf16.mxu0 0
  %1908 = vmatpush2.bf16.xpose.msra.mxu0 0
  %1909 = vmatprep.subr.bf16.mxu0 0
  %1910 = vmatpush2.bf16.xpose.msra.mxu0 0
  %1911 = vmatprep.mubr.bf16.mxu0 0
  %1912 = vmatmul.mubr.bf16.gmra.mxu0 %v1874
  %v1913 = vpop.f32.mrf.mxu0
  %v1914 = vadd.f32 0.0, %v1913
  %v1915 = vpop.f32.mrf.mxu0
  %v1916 = vpop.f32.mrf.mxu0
  %v1917 = vpop.f32.mrf.mxu0
  %1918 = vdwg.mxu0
  %v1920 = vsel %vm1129, %v1780, 0
  %v1923 = vsel %vm1129, %v1362, 0
  %1925 = vmatprep.subr.bf16.mxu0 0
  %1926 = vmatpush1.bf16.xpose.msra.mxu0 0
  %1927 = vmatprep.subr.bf16.mxu0 0
  %1928 = vmatpush1.bf16.xpose.msra.mxu0 0
  %1929 = vmatprep.subr.bf16.mxu0 0
  %1930 = vmatpush1.bf16.xpose.msra.mxu0 0
  %1931 = vmatprep.subr.bf16.mxu0 0
  %1932 = vmatpush1.bf16.xpose.msra.mxu0 0
  %1933 = vmatprep.subr.bf16.mxu0 0
  %1934 = vmatpush1.bf16.xpose.msra.mxu0 0
  %1935 = vmatprep.subr.bf16.mxu0 0
  %1936 = vmatpush1.bf16.xpose.msra.mxu0 0
  %1937 = vmatprep.subr.bf16.mxu0 0
  %1938 = vmatpush1.bf16.xpose.msra.mxu0 0
  %1939 = vmatprep.subr.bf16.mxu0 0
  %1940 = vmatpush1.bf16.xpose.msra.mxu0 %v1923
  %1941 = vmatprep.subr.bf16.mxu0 0
  %1942 = vmatpush2.bf16.xpose.msra.mxu0 0
  %1943 = vmatprep.subr.bf16.mxu0 0
  %1944 = vmatpush2.bf16.xpose.msra.mxu0 0
  %1945 = vmatprep.subr.bf16.mxu0 0
  %1946 = vmatpush2.bf16.xpose.msra.mxu0 0
  %1947 = vmatprep.subr.bf16.mxu0 0
  %1948 = vmatpush2.bf16.xpose.msra.mxu0 0
  %1949 = vmatprep.subr.bf16.mxu0 0
  %1950 = vmatpush2.bf16.xpose.msra.mxu0 0
  %1951 = vmatprep.subr.bf16.mxu0 0
  %1952 = vmatpush2.bf16.xpose.msra.mxu0 0
  %1953 = vmatprep.subr.bf16.mxu0 0
  %1954 = vmatpush2.bf16.xpose.msra.mxu0 0
  %1955 = vmatprep.subr.bf16.mxu0 0
  %1956 = vmatpush2.bf16.xpose.msra.mxu0 0
  %1957 = vmatprep.mubr.bf16.mxu0 0
  %1958 = vmatmul.mubr.bf16.gmra.mxu0 %v1920
  %v1959 = vpop.f32.mrf.mxu0
  %v1960 = vadd.f32 0.0, %v1959
  %v1961 = vpop.f32.mrf.mxu0
  %v1962 = vpop.f32.mrf.mxu0
  %v1963 = vpop.f32.mrf.mxu0
  %1964 = vdwg.mxu0
  %1965 = vxpose.xlu0.b32.start [1/16] %v1822, 128
  %1966 = vxpose.xlu0.b32.cont [2/16] 0.0, 128
  %1967 = vxpose.xlu0.b32.cont [3/16] 0.0, 128
  %1968 = vxpose.xlu0.b32.cont [4/16] 0.0, 128
  %1969 = vxpose.xlu0.b32.cont [5/16] 0.0, 128
  %1970 = vxpose.xlu0.b32.cont [6/16] 0.0, 128
  %1971 = vxpose.xlu0.b32.cont [7/16] 0.0, 128
  %1972 = vxpose.xlu0.b32.cont [8/16] 0.0, 128
  %1973 = vxpose.xlu0.b32.cont [9/16] 0.0, 128
  %1974 = vxpose.xlu0.b32.cont [10/16] 0.0, 128
  %1975 = vxpose.xlu0.b32.cont [11/16] 0.0, 128
  %1976 = vxpose.xlu0.b32.cont [12/16] 0.0, 128
  %1977 = vxpose.xlu0.b32.cont [13/16] 0.0, 128
  %1978 = vxpose.xlu0.b32.cont [14/16] 0.0, 128
  %1979 = vxpose.xlu0.b32.cont [15/16] 0.0, 128
  %1980 = vxpose.xlu0.b32.end [16/16] 0.0, 128
  %v1981 = vpop.trf.xlu0
  %v1982 = vpop.trf.xlu0
  %v1983 = vpop.trf.xlu0
  %v1984 = vpop.trf.xlu0
  %v1985 = vpop.trf.xlu0
  %v1986 = vpop.trf.xlu0
  %v1987 = vpop.trf.xlu0
  %v1988 = vpop.trf.xlu0
  %v1989 = vpop.trf.xlu0
  %v1990 = vpop.trf.xlu0
  %v1991 = vpop.trf.xlu0
  %v1992 = vpop.trf.xlu0
  %v1993 = vpop.trf.xlu0
  %v1994 = vpop.trf.xlu0
  %v1995 = vpop.trf.xlu0
  %v1996 = vpop.trf.xlu0
  %1997 = vxpose.xlu0.b32.start [1/16] %v1868, 128
  %1998 = vxpose.xlu0.b32.cont [2/16] 0.0, 128
  %1999 = vxpose.xlu0.b32.cont [3/16] 0.0, 128
  %2000 = vxpose.xlu0.b32.cont [4/16] 0.0, 128
  %2001 = vxpose.xlu0.b32.cont [5/16] 0.0, 128
  %2002 = vxpose.xlu0.b32.cont [6/16] 0.0, 128
  %2003 = vxpose.xlu0.b32.cont [7/16] 0.0, 128
  %2004 = vxpose.xlu0.b32.cont [8/16] 0.0, 128
  %2005 = vxpose.xlu0.b32.cont [9/16] 0.0, 128
  %2006 = vxpose.xlu0.b32.cont [10/16] 0.0, 128
  %2007 = vxpose.xlu0.b32.cont [11/16] 0.0, 128
  %2008 = vxpose.xlu0.b32.cont [12/16] 0.0, 128
  %2009 = vxpose.xlu0.b32.cont [13/16] 0.0, 128
  %2010 = vxpose.xlu0.b32.cont [14/16] 0.0, 128
  %2011 = vxpose.xlu0.b32.cont [15/16] 0.0, 128
  %2012 = vxpose.xlu0.b32.end [16/16] 0.0, 128
  %v2013 = vpop.trf.xlu0
  %v2014 = vpop.trf.xlu0
  %v2015 = vpop.trf.xlu0
  %v2016 = vpop.trf.xlu0
  %v2017 = vpop.trf.xlu0
  %v2018 = vpop.trf.xlu0
  %v2019 = vpop.trf.xlu0
  %v2020 = vpop.trf.xlu0
  %v2021 = vpop.trf.xlu0
  %v2022 = vpop.trf.xlu0
  %v2023 = vpop.trf.xlu0
  %v2024 = vpop.trf.xlu0
  %v2025 = vpop.trf.xlu0
  %v2026 = vpop.trf.xlu0
  %v2027 = vpop.trf.xlu0
  %v2028 = vpop.trf.xlu0
  %2029 = vxpose.xlu0.b32.start [1/16] %v1914, 128
  %2030 = vxpose.xlu0.b32.cont [2/16] 0.0, 128
  %2031 = vxpose.xlu0.b32.cont [3/16] 0.0, 128
  %2032 = vxpose.xlu0.b32.cont [4/16] 0.0, 128
  %2033 = vxpose.xlu0.b32.cont [5/16] 0.0, 128
  %2034 = vxpose.xlu0.b32.cont [6/16] 0.0, 128
  %2035 = vxpose.xlu0.b32.cont [7/16] 0.0, 128
  %2036 = vxpose.xlu0.b32.cont [8/16] 0.0, 128
  %2037 = vxpose.xlu0.b32.cont [9/16] 0.0, 128
  %2038 = vxpose.xlu0.b32.cont [10/16] 0.0, 128
  %2039 = vxpose.xlu0.b32.cont [11/16] 0.0, 128
  %2040 = vxpose.xlu0.b32.cont [12/16] 0.0, 128
  %2041 = vxpose.xlu0.b32.cont [13/16] 0.0, 128
  %2042 = vxpose.xlu0.b32.cont [14/16] 0.0, 128
  %2043 = vxpose.xlu0.b32.cont [15/16] 0.0, 128
  %2044 = vxpose.xlu0.b32.end [16/16] 0.0, 128
  %v2045 = vpop.trf.xlu0
  %v2046 = vpop.trf.xlu0
  %v2047 = vpop.trf.xlu0
  %v2048 = vpop.trf.xlu0
  %v2049 = vpop.trf.xlu0
  %v2050 = vpop.trf.xlu0
  %v2051 = vpop.trf.xlu0
  %v2052 = vpop.trf.xlu0
  %v2053 = vpop.trf.xlu0
  %v2054 = vpop.trf.xlu0
  %v2055 = vpop.trf.xlu0
  %v2056 = vpop.trf.xlu0
  %v2057 = vpop.trf.xlu0
  %v2058 = vpop.trf.xlu0
  %v2059 = vpop.trf.xlu0
  %v2060 = vpop.trf.xlu0
  %2061 = vxpose.xlu0.b32.start [1/16] %v1960, 128
  %2062 = vxpose.xlu0.b32.cont [2/16] 0.0, 128
  %2063 = vxpose.xlu0.b32.cont [3/16] 0.0, 128
  %2064 = vxpose.xlu0.b32.cont [4/16] 0.0, 128
  %2065 = vxpose.xlu0.b32.cont [5/16] 0.0, 128
  %2066 = vxpose.xlu0.b32.cont [6/16] 0.0, 128
  %2067 = vxpose.xlu0.b32.cont [7/16] 0.0, 128
  %2068 = vxpose.xlu0.b32.cont [8/16] 0.0, 128
  %2069 = vxpose.xlu0.b32.cont [9/16] 0.0, 128
  %2070 = vxpose.xlu0.b32.cont [10/16] 0.0, 128
  %2071 = vxpose.xlu0.b32.cont [11/16] 0.0, 128
  %2072 = vxpose.xlu0.b32.cont [12/16] 0.0, 128
  %2073 = vxpose.xlu0.b32.cont [13/16] 0.0, 128
  %2074 = vxpose.xlu0.b32.cont [14/16] 0.0, 128
  %2075 = vxpose.xlu0.b32.cont [15/16] 0.0, 128
  %2076 = vxpose.xlu0.b32.end [16/16] 0.0, 128
  %v2077 = vpop.trf.xlu0
  %v2078 = vpop.trf.xlu0
  %v2079 = vpop.trf.xlu0
  %v2080 = vpop.trf.xlu0
  %v2081 = vpop.trf.xlu0
  %v2082 = vpop.trf.xlu0
  %v2083 = vpop.trf.xlu0
  %v2084 = vpop.trf.xlu0
  %v2085 = vpop.trf.xlu0
  %v2086 = vpop.trf.xlu0
  %v2087 = vpop.trf.xlu0
  %v2088 = vpop.trf.xlu0
  %v2089 = vpop.trf.xlu0
  %v2090 = vpop.trf.xlu0
  %v2091 = vpop.trf.xlu0
  %v2092 = vpop.trf.xlu0
  %v2093 = vcombine.low %v1981, %v2045
  %v2094 = vcombine.high %v1981, %v2045
  %v2096 = vunpack.c.l.s4 1983009808
  %v2097 = vunpack.c.0.s8 %v2096
  %v2098 = vlaneseq
  %v2099 = vshrl.u32 %v2098, 7
  %v2100 = vsub.s32 %v2097, %v2099
  %v2101 = vrot.slane %v2093, %v2100
  %v2103 = vunpack.c.l.s4 1983009808
  %v2104 = vunpack.c.0.s8 %v2103
  %v2105 = vlaneseq
  %v2106 = vshrl.u32 %v2105, 7
  %v2107 = vsub.s32 %v2104, %v2106
  %v2108 = vrot.slane %v2094, %v2107
  %v2109 = vcombine.low %v2013, %v2077
  %v2110 = vcombine.high %v2013, %v2077
  %v2112 = vunpack.c.l.s4 1983009808
  %v2113 = vunpack.c.0.s8 %v2112
  %v2114 = vlaneseq
  %v2115 = vshrl.u32 %v2114, 7
  %v2116 = vsub.s32 %v2113, %v2115
  %v2117 = vrot.slane %v2109, %v2116
  %v2119 = vunpack.c.l.s4 1983009808
  %v2120 = vunpack.c.0.s8 %v2119
  %v2121 = vlaneseq
  %v2122 = vshrl.u32 %v2121, 7
  %v2123 = vsub.s32 %v2120, %v2122
  %v2124 = vrot.slane %v2110, %v2123
  %v2125 = vcombine.low %v2101, %v2117
  %v2126 = vcombine.high %v2101, %v2117
  %v2128 = vunpack.c.l.s4 1934713408
  %v2129 = vunpack.c.0.s8 %v2128
  %v2130 = vlaneseq
  %v2131 = vshrl.u32 %v2130, 7
  %v2132 = vsub.s32 %v2129, %v2131
  %v2133 = vrot.slane %v2125, %v2132
  %v2135 = vunpack.c.l.s4 1934713408
  %v2136 = vunpack.c.0.s8 %v2135
  %v2137 = vlaneseq
  %v2138 = vshrl.u32 %v2137, 7
  %v2139 = vsub.s32 %v2136, %v2138
  %v2140 = vrot.slane %v2126, %v2139
  %v2141 = vcombine.low %v2108, %v2124
  %v2142 = vcombine.high %v2108, %v2124
  %v2144 = vunpack.c.l.s4 1934713408
  %v2145 = vunpack.c.0.s8 %v2144
  %v2146 = vlaneseq
  %v2147 = vshrl.u32 %v2146, 7
  %v2148 = vsub.s32 %v2145, %v2147
  %v2149 = vrot.slane %v2141, %v2148
  %v2151 = vunpack.c.l.s4 1934713408
  %v2152 = vunpack.c.0.s8 %v2151
  %v2153 = vlaneseq
  %v2154 = vshrl.u32 %v2153, 7
  %v2155 = vsub.s32 %v2152, %v2154
  %v2156 = vrot.slane %v2142, %v2155
  %v2157 = vcombine.high %v2133, 0.0
  %v2158 = vcombine.high %v2140, 0.0
  %v2159 = vcombine.high %v2149, 0.0
  %v2160 = vcombine.high %v2156, 0.0
  %v2161 = vcombine.low %v2133, %v2140
  %v2163 = vunpack.c.l.s4 1983009808
  %v2164 = vunpack.c.0.s8 %v2163
  %v2165 = vlaneseq
  %v2166 = vshrl.u32 %v2165, 7
  %v2167 = vsub.s32 %v2164, %v2166
  %v2168 = vrot.slane %v2161, %v2167
  %v2169 = vcombine.low %v2157, %v2158
  %v2171 = vunpack.c.l.s4 1983009808
  %v2172 = vunpack.c.0.s8 %v2171
  %v2173 = vlaneseq
  %v2174 = vshrl.u32 %v2173, 7
  %v2175 = vsub.s32 %v2172, %v2174
  %v2176 = vrot.slane %v2169, %v2175
  %v2177 = vcombine.low %v2149, %v2156
  %v2179 = vunpack.c.l.s4 1983009808
  %v2180 = vunpack.c.0.s8 %v2179
  %v2181 = vlaneseq
  %v2182 = vshrl.u32 %v2181, 7
  %v2183 = vsub.s32 %v2180, %v2182
  %v2184 = vrot.slane %v2177, %v2183
  %v2185 = vcombine.low %v2159, %v2160
  %v2187 = vunpack.c.l.s4 1983009808
  %v2188 = vunpack.c.0.s8 %v2187
  %v2189 = vlaneseq
  %v2190 = vshrl.u32 %v2189, 7
  %v2191 = vsub.s32 %v2188, %v2190
  %v2192 = vrot.slane %v2185, %v2191
  %v2193 = vcombine.low %v2168, %v2176
  %v2194 = vcombine.high %v2168, %v2176
  %v2196 = vunpack.c.l.s4 1934713408
  %v2197 = vunpack.c.0.s8 %v2196
  %v2198 = vlaneseq
  %v2199 = vshrl.u32 %v2198, 7
  %v2200 = vsub.s32 %v2197, %v2199
  %v2201 = vrot.slane %v2193, %v2200
  %v2203 = vunpack.c.l.s4 1934713408
  %v2204 = vunpack.c.0.s8 %v2203
  %v2205 = vlaneseq
  %v2206 = vshrl.u32 %v2205, 7
  %v2207 = vsub.s32 %v2204, %v2206
  %v2208 = vrot.slane %v2194, %v2207
  %v2209 = vcombine.low %v2184, %v2192
  %v2210 = vcombine.high %v2184, %v2192
  %v2212 = vunpack.c.l.s4 1934713408
  %v2213 = vunpack.c.0.s8 %v2212
  %v2214 = vlaneseq
  %v2215 = vshrl.u32 %v2214, 7
  %v2216 = vsub.s32 %v2213, %v2215
  %v2217 = vrot.slane %v2209, %v2216
  %v2219 = vunpack.c.l.s4 1934713408
  %v2220 = vunpack.c.0.s8 %v2219
  %v2221 = vlaneseq
  %v2222 = vshrl.u32 %v2221, 7
  %v2223 = vsub.s32 %v2220, %v2222
  %v2224 = vrot.slane %v2210, %v2223
  %v2225 = vcombine.low %v2201, %v2217
  %v2226 = vcombine.high %v2201, %v2217
  %v2227 = vcombine.low %v2208, %v2224
  %v2228 = vcombine.high %v2208, %v2224
  %2230 = vrot.lane.b32.xlu0 %v2226, 8
  %v2231 = vpop.permute.xlu0 %2230
  %2234 = vrot.lane.b32.xlu0 %v2227, 16
  %v2235 = vpop.permute.xlu0 %2234
  %2238 = vrot.lane.b32.xlu0 %v2228, 24
  %v2239 = vpop.permute.xlu0 %2238
  %v2241 = vsel %vm1129, %v2225, %v2231
  %vm2242 = vcmask 130048
  %v2243 = vsel %vm2242, %v2241, %v2235
  %vm2244 = vcmask 195584
  %v2245 = vsel %vm2244, %v2243, %v2239
  %2247 = vrot.lane.b32.xlu0 %v258, 120
  %v2248 = vpop.permute.xlu0 %2247
  %2250 = vrot.lane.b32.xlu0 %v258, 112
  %v2251 = vpop.permute.xlu0 %2250
  %2253 = vrot.lane.b32.xlu0 %v258, 104
  %v2254 = vpop.permute.xlu0 %2253
  %v2256 = vcombine.low %v258, %v2251
  %v2257 = vcombine.high %v258, %v2251
  %v2259 = vunpack.c.l.s4 1983009808
  %v2260 = vunpack.c.0.s8 %v2259
  %v2261 = vlaneseq
  %v2262 = vshrl.u32 %v2261, 7
  %v2263 = vsub.s32 %v2260, %v2262
  %v2264 = vrot.slane %v2256, %v2263
  %v2266 = vunpack.c.l.s4 1983009808
  %v2267 = vunpack.c.0.s8 %v2266
  %v2268 = vlaneseq
  %v2269 = vshrl.u32 %v2268, 7
  %v2270 = vsub.s32 %v2267, %v2269
  %v2271 = vrot.slane %v2257, %v2270
  %v2272 = vcombine.low %v2248, %v2254
  %v2273 = vcombine.high %v2248, %v2254
  %v2275 = vunpack.c.l.s4 1983009808
  %v2276 = vunpack.c.0.s8 %v2275
  %v2277 = vlaneseq
  %v2278 = vshrl.u32 %v2277, 7
  %v2279 = vsub.s32 %v2276, %v2278
  %v2280 = vrot.slane %v2272, %v2279
  %v2282 = vunpack.c.l.s4 1983009808
  %v2283 = vunpack.c.0.s8 %v2282
  %v2284 = vlaneseq
  %v2285 = vshrl.u32 %v2284, 7
  %v2286 = vsub.s32 %v2283, %v2285
  %v2287 = vrot.slane %v2273, %v2286
  %v2288 = vcombine.low %v2264, %v2280
  %v2289 = vcombine.high %v2264, %v2280
  %v2291 = vunpack.c.l.s4 1934713408
  %v2292 = vunpack.c.0.s8 %v2291
  %v2293 = vlaneseq
  %v2294 = vshrl.u32 %v2293, 7
  %v2295 = vsub.s32 %v2292, %v2294
  %v2296 = vrot.slane %v2288, %v2295
  %v2298 = vunpack.c.l.s4 1934713408
  %v2299 = vunpack.c.0.s8 %v2298
  %v2300 = vlaneseq
  %v2301 = vshrl.u32 %v2300, 7
  %v2302 = vsub.s32 %v2299, %v2301
  %v2303 = vrot.slane %v2289, %v2302
  %v2304 = vcombine.low %v2271, %v2287
  %v2305 = vcombine.high %v2271, %v2287
  %v2307 = vunpack.c.l.s4 1934713408
  %v2308 = vunpack.c.0.s8 %v2307
  %v2309 = vlaneseq
  %v2310 = vshrl.u32 %v2309, 7
  %v2311 = vsub.s32 %v2308, %v2310
  %v2312 = vrot.slane %v2304, %v2311
  %v2314 = vunpack.c.l.s4 1934713408
  %v2315 = vunpack.c.0.s8 %v2314
  %v2316 = vlaneseq
  %v2317 = vshrl.u32 %v2316, 7
  %v2318 = vsub.s32 %v2315, %v2317
  %v2319 = vrot.slane %v2305, %v2318
  %v2320 = vcombine.high %v2296, 0.0
  %v2321 = vcombine.high %v2303, 0.0
  %v2322 = vcombine.high %v2312, 0.0
  %v2323 = vcombine.high %v2319, 0.0
  %v2324 = vpack.c.bf16 %v2296, %v2296
  %v2325 = vpack.c.bf16 %v2320, %v2320
  %v2326 = vpack.c.bf16 %v2303, %v2303
  %v2327 = vpack.c.bf16 %v2321, %v2321
  %v2328 = vpack.c.bf16 %v2312, %v2312
  %v2329 = vpack.c.bf16 %v2322, %v2322
  %v2330 = vpack.c.bf16 %v2319, %v2319
  %v2331 = vpack.c.bf16 %v2323, %v2323
  %2333 = vrot.lane.b32.xlu0 %v321, 120
  %v2334 = vpop.permute.xlu0 %2333
  %2336 = vrot.lane.b32.xlu0 %v321, 112
  %v2337 = vpop.permute.xlu0 %2336
  %2339 = vrot.lane.b32.xlu0 %v321, 104
  %v2340 = vpop.permute.xlu0 %2339
  %v2342 = vcombine.low %v321, %v2337
  %v2343 = vcombine.high %v321, %v2337
  %v2345 = vunpack.c.l.s4 1983009808
  %v2346 = vunpack.c.0.s8 %v2345
  %v2347 = vlaneseq
  %v2348 = vshrl.u32 %v2347, 7
  %v2349 = vsub.s32 %v2346, %v2348
  %v2350 = vrot.slane %v2342, %v2349
  %v2352 = vunpack.c.l.s4 1983009808
  %v2353 = vunpack.c.0.s8 %v2352
  %v2354 = vlaneseq
  %v2355 = vshrl.u32 %v2354, 7
  %v2356 = vsub.s32 %v2353, %v2355
  %v2357 = vrot.slane %v2343, %v2356
  %v2358 = vcombine.low %v2334, %v2340
  %v2359 = vcombine.high %v2334, %v2340
  %v2361 = vunpack.c.l.s4 1983009808
  %v2362 = vunpack.c.0.s8 %v2361
  %v2363 = vlaneseq
  %v2364 = vshrl.u32 %v2363, 7
  %v2365 = vsub.s32 %v2362, %v2364
  %v2366 = vrot.slane %v2358, %v2365
  %v2368 = vunpack.c.l.s4 1983009808
  %v2369 = vunpack.c.0.s8 %v2368
  %v2370 = vlaneseq
  %v2371 = vshrl.u32 %v2370, 7
  %v2372 = vsub.s32 %v2369, %v2371
  %v2373 = vrot.slane %v2359, %v2372
  %v2374 = vcombine.low %v2350, %v2366
  %v2375 = vcombine.high %v2350, %v2366
  %v2377 = vunpack.c.l.s4 1934713408
  %v2378 = vunpack.c.0.s8 %v2377
  %v2379 = vlaneseq
  %v2380 = vshrl.u32 %v2379, 7
  %v2381 = vsub.s32 %v2378, %v2380
  %v2382 = vrot.slane %v2374, %v2381
  %v2384 = vunpack.c.l.s4 1934713408
  %v2385 = vunpack.c.0.s8 %v2384
  %v2386 = vlaneseq
  %v2387 = vshrl.u32 %v2386, 7
  %v2388 = vsub.s32 %v2385, %v2387
  %v2389 = vrot.slane %v2375, %v2388
  %v2390 = vcombine.low %v2357, %v2373
  %v2391 = vcombine.high %v2357, %v2373
  %v2393 = vunpack.c.l.s4 1934713408
  %v2394 = vunpack.c.0.s8 %v2393
  %v2395 = vlaneseq
  %v2396 = vshrl.u32 %v2395, 7
  %v2397 = vsub.s32 %v2394, %v2396
  %v2398 = vrot.slane %v2390, %v2397
  %v2400 = vunpack.c.l.s4 1934713408
  %v2401 = vunpack.c.0.s8 %v2400
  %v2402 = vlaneseq
  %v2403 = vshrl.u32 %v2402, 7
  %v2404 = vsub.s32 %v2401, %v2403
  %v2405 = vrot.slane %v2391, %v2404
  %v2406 = vcombine.high %v2382, 0.0
  %v2407 = vcombine.high %v2389, 0.0
  %v2408 = vcombine.high %v2398, 0.0
  %v2409 = vcombine.high %v2405, 0.0
  %v2410 = vpack.c.bf16 %v2382, %v2382
  %v2411 = vpack.c.bf16 %v2406, %v2406
  %v2412 = vpack.c.bf16 %v2389, %v2389
  %v2413 = vpack.c.bf16 %v2407, %v2407
  %v2414 = vpack.c.bf16 %v2398, %v2398
  %v2415 = vpack.c.bf16 %v2408, %v2408
  %v2416 = vpack.c.bf16 %v2405, %v2405
  %v2417 = vpack.c.bf16 %v2409, %v2409
  %2419 = vrot.lane.b32.xlu0 %v384, 120
  %v2420 = vpop.permute.xlu0 %2419
  %2422 = vrot.lane.b32.xlu0 %v384, 112
  %v2423 = vpop.permute.xlu0 %2422
  %2425 = vrot.lane.b32.xlu0 %v384, 104
  %v2426 = vpop.permute.xlu0 %2425
  %v2428 = vcombine.low %v384, %v2423
  %v2429 = vcombine.high %v384, %v2423
  %v2431 = vunpack.c.l.s4 1983009808
  %v2432 = vunpack.c.0.s8 %v2431
  %v2433 = vlaneseq
  %v2434 = vshrl.u32 %v2433, 7
  %v2435 = vsub.s32 %v2432, %v2434
  %v2436 = vrot.slane %v2428, %v2435
  %v2438 = vunpack.c.l.s4 1983009808
  %v2439 = vunpack.c.0.s8 %v2438
  %v2440 = vlaneseq
  %v2441 = vshrl.u32 %v2440, 7
  %v2442 = vsub.s32 %v2439, %v2441
  %v2443 = vrot.slane %v2429, %v2442
  %v2444 = vcombine.low %v2420, %v2426
  %v2445 = vcombine.high %v2420, %v2426
  %v2447 = vunpack.c.l.s4 1983009808
  %v2448 = vunpack.c.0.s8 %v2447
  %v2449 = vlaneseq
  %v2450 = vshrl.u32 %v2449, 7
  %v2451 = vsub.s32 %v2448, %v2450
  %v2452 = vrot.slane %v2444, %v2451
  %v2454 = vunpack.c.l.s4 1983009808
  %v2455 = vunpack.c.0.s8 %v2454
  %v2456 = vlaneseq
  %v2457 = vshrl.u32 %v2456, 7
  %v2458 = vsub.s32 %v2455, %v2457
  %v2459 = vrot.slane %v2445, %v2458
  %v2460 = vcombine.low %v2436, %v2452
  %v2461 = vcombine.high %v2436, %v2452
  %v2463 = vunpack.c.l.s4 1934713408
  %v2464 = vunpack.c.0.s8 %v2463
  %v2465 = vlaneseq
  %v2466 = vshrl.u32 %v2465, 7
  %v2467 = vsub.s32 %v2464, %v2466
  %v2468 = vrot.slane %v2460, %v2467
  %v2470 = vunpack.c.l.s4 1934713408
  %v2471 = vunpack.c.0.s8 %v2470
  %v2472 = vlaneseq
  %v2473 = vshrl.u32 %v2472, 7
  %v2474 = vsub.s32 %v2471, %v2473
  %v2475 = vrot.slane %v2461, %v2474
  %v2476 = vcombine.low %v2443, %v2459
  %v2477 = vcombine.high %v2443, %v2459
  %v2479 = vunpack.c.l.s4 1934713408
  %v2480 = vunpack.c.0.s8 %v2479
  %v2481 = vlaneseq
  %v2482 = vshrl.u32 %v2481, 7
  %v2483 = vsub.s32 %v2480, %v2482
  %v2484 = vrot.slane %v2476, %v2483
  %v2486 = vunpack.c.l.s4 1934713408
  %v2487 = vunpack.c.0.s8 %v2486
  %v2488 = vlaneseq
  %v2489 = vshrl.u32 %v2488, 7
  %v2490 = vsub.s32 %v2487, %v2489
  %v2491 = vrot.slane %v2477, %v2490
  %v2492 = vcombine.high %v2468, 0.0
  %v2493 = vcombine.high %v2475, 0.0
  %v2494 = vcombine.high %v2484, 0.0
  %v2495 = vcombine.high %v2491, 0.0
  %v2496 = vpack.c.bf16 %v2468, %v2468
  %v2497 = vpack.c.bf16 %v2492, %v2492
  %v2498 = vpack.c.bf16 %v2475, %v2475
  %v2499 = vpack.c.bf16 %v2493, %v2493
  %v2500 = vpack.c.bf16 %v2484, %v2484
  %v2501 = vpack.c.bf16 %v2494, %v2494
  %v2502 = vpack.c.bf16 %v2491, %v2491
  %v2503 = vpack.c.bf16 %v2495, %v2495
  %v2504 = vlaneseq
  %v2505 = vshrl.u32 %v2504, 7
  %v2506 = vsub.s32 1, %v2505
  %v2507 = vrot.slane %v194, %v2506
  %v2508 = vcombine.low %v2324, %v2328
  %v2510 = vunpack.c.l.s4 1983009808
  %v2511 = vunpack.c.0.s8 %v2510
  %v2512 = vlaneseq
  %v2513 = vshrl.u32 %v2512, 7
  %v2514 = vsub.s32 %v2511, %v2513
  %v2515 = vrot.slane %v2508, %v2514
  %v2516 = vcombine.low %v2326, %v2330
  %v2518 = vunpack.c.l.s4 1983009808
  %v2519 = vunpack.c.0.s8 %v2518
  %v2520 = vlaneseq
  %v2521 = vshrl.u32 %v2520, 7
  %v2522 = vsub.s32 %v2519, %v2521
  %v2523 = vrot.slane %v2516, %v2522
  %v2524 = vcombine.low %v2515, %v2523
  %v2526 = vunpack.c.l.s4 1934713408
  %v2527 = vunpack.c.0.s8 %v2526
  %v2528 = vlaneseq
  %v2529 = vshrl.u32 %v2528, 7
  %v2530 = vsub.s32 %v2527, %v2529
  %v2531 = vrot.slane %v2524, %v2530
  %v2532 = vcombine.high %v2531, 0
  %v2533 = vcombine.low %v2325, %v2329
  %v2535 = vunpack.c.l.s4 1983009808
  %v2536 = vunpack.c.0.s8 %v2535
  %v2537 = vlaneseq
  %v2538 = vshrl.u32 %v2537, 7
  %v2539 = vsub.s32 %v2536, %v2538
  %v2540 = vrot.slane %v2533, %v2539
  %v2541 = vcombine.low %v2327, %v2331
  %v2543 = vunpack.c.l.s4 1983009808
  %v2544 = vunpack.c.0.s8 %v2543
  %v2545 = vlaneseq
  %v2546 = vshrl.u32 %v2545, 7
  %v2547 = vsub.s32 %v2544, %v2546
  %v2548 = vrot.slane %v2541, %v2547
  %v2549 = vcombine.low %v2540, %v2548
  %v2551 = vunpack.c.l.s4 1934713408
  %v2552 = vunpack.c.0.s8 %v2551
  %v2553 = vlaneseq
  %v2554 = vshrl.u32 %v2553, 7
  %v2555 = vsub.s32 %v2552, %v2554
  %v2556 = vrot.slane %v2549, %v2555
  %v2557 = vcombine.high %v2556, 0
  %v2560 = vpack.i.b16 %v2556, %v2531
  %v2561 = vshrl.u32 %v2531, 16
  %v2562 = vshrl.u32 %v2556, 16
  %v2563 = vpack.i.b16 %v2562, %v2561
  %v2566 = vpack.i.b16 %v2557, %v2532
  %v2567 = vshrl.u32 %v2532, 16
  %v2568 = vshrl.u32 %v2557, 16
  %v2569 = vpack.i.b16 %v2568, %v2567
  %2570 = vxpose.xlu0.c.b16.start [1/8] %v2410, 128
  %2571 = vxpose.xlu0.c.b16.cont [2/8] 0, 128
  %2572 = vxpose.xlu0.c.b16.cont [3/8] 0, 128
  %2573 = vxpose.xlu0.c.b16.cont [4/8] 0, 128
  %2574 = vxpose.xlu0.c.b16.cont [5/8] 0, 128
  %2575 = vxpose.xlu0.c.b16.cont [6/8] 0, 128
  %2576 = vxpose.xlu0.c.b16.cont [7/8] 0, 128
  %2577 = vxpose.xlu0.c.b16.end [8/8] 0, 128
  %v2578 = vpop.trf.xlu0
  %v2579 = vpop.trf.xlu0
  %v2580 = vpop.trf.xlu0
  %v2581 = vpop.trf.xlu0
  %v2582 = vpop.trf.xlu0
  %v2583 = vpop.trf.xlu0
  %v2584 = vpop.trf.xlu0
  %v2585 = vpop.trf.xlu0
  %2586 = vxpose.xlu0.c.b16.start [1/8] %v2411, 128
  %2587 = vxpose.xlu0.c.b16.cont [2/8] 0, 128
  %2588 = vxpose.xlu0.c.b16.cont [3/8] 0, 128
  %2589 = vxpose.xlu0.c.b16.cont [4/8] 0, 128
  %2590 = vxpose.xlu0.c.b16.cont [5/8] 0, 128
  %2591 = vxpose.xlu0.c.b16.cont [6/8] 0, 128
  %2592 = vxpose.xlu0.c.b16.cont [7/8] 0, 128
  %2593 = vxpose.xlu0.c.b16.end [8/8] 0, 128
  %v2594 = vpop.trf.xlu0
  %v2595 = vpop.trf.xlu0
  %v2596 = vpop.trf.xlu0
  %v2597 = vpop.trf.xlu0
  %v2598 = vpop.trf.xlu0
  %v2599 = vpop.trf.xlu0
  %v2600 = vpop.trf.xlu0
  %v2601 = vpop.trf.xlu0
  %2602 = vxpose.xlu0.c.b16.start [1/8] %v2412, 128
  %2603 = vxpose.xlu0.c.b16.cont [2/8] 0, 128
  %2604 = vxpose.xlu0.c.b16.cont [3/8] 0, 128
  %2605 = vxpose.xlu0.c.b16.cont [4/8] 0, 128
  %2606 = vxpose.xlu0.c.b16.cont [5/8] 0, 128
  %2607 = vxpose.xlu0.c.b16.cont [6/8] 0, 128
  %2608 = vxpose.xlu0.c.b16.cont [7/8] 0, 128
  %2609 = vxpose.xlu0.c.b16.end [8/8] 0, 128
  %v2610 = vpop.trf.xlu0
  %v2611 = vpop.trf.xlu0
  %v2612 = vpop.trf.xlu0
  %v2613 = vpop.trf.xlu0
  %v2614 = vpop.trf.xlu0
  %v2615 = vpop.trf.xlu0
  %v2616 = vpop.trf.xlu0
  %v2617 = vpop.trf.xlu0
  %2618 = vxpose.xlu0.c.b16.start [1/8] %v2413, 128
  %2619 = vxpose.xlu0.c.b16.cont [2/8] 0, 128
  %2620 = vxpose.xlu0.c.b16.cont [3/8] 0, 128
  %2621 = vxpose.xlu0.c.b16.cont [4/8] 0, 128
  %2622 = vxpose.xlu0.c.b16.cont [5/8] 0, 128
  %2623 = vxpose.xlu0.c.b16.cont [6/8] 0, 128
  %2624 = vxpose.xlu0.c.b16.cont [7/8] 0, 128
  %2625 = vxpose.xlu0.c.b16.end [8/8] 0, 128
  %v2626 = vpop.trf.xlu0
  %v2627 = vpop.trf.xlu0
  %v2628 = vpop.trf.xlu0
  %v2629 = vpop.trf.xlu0
  %v2630 = vpop.trf.xlu0
  %v2631 = vpop.trf.xlu0
  %v2632 = vpop.trf.xlu0
  %v2633 = vpop.trf.xlu0
  %2634 = vxpose.xlu0.c.b16.start [1/8] %v2414, 128
  %2635 = vxpose.xlu0.c.b16.cont [2/8] 0, 128
  %2636 = vxpose.xlu0.c.b16.cont [3/8] 0, 128
  %2637 = vxpose.xlu0.c.b16.cont [4/8] 0, 128
  %2638 = vxpose.xlu0.c.b16.cont [5/8] 0, 128
  %2639 = vxpose.xlu0.c.b16.cont [6/8] 0, 128
  %2640 = vxpose.xlu0.c.b16.cont [7/8] 0, 128
  %2641 = vxpose.xlu0.c.b16.end [8/8] 0, 128
  %v2642 = vpop.trf.xlu0
  %v2643 = vpop.trf.xlu0
  %v2644 = vpop.trf.xlu0
  %v2645 = vpop.trf.xlu0
  %v2646 = vpop.trf.xlu0
  %v2647 = vpop.trf.xlu0
  %v2648 = vpop.trf.xlu0
  %v2649 = vpop.trf.xlu0
  %2650 = vxpose.xlu0.c.b16.start [1/8] %v2415, 128
  %2651 = vxpose.xlu0.c.b16.cont [2/8] 0, 128
  %2652 = vxpose.xlu0.c.b16.cont [3/8] 0, 128
  %2653 = vxpose.xlu0.c.b16.cont [4/8] 0, 128
  %2654 = vxpose.xlu0.c.b16.cont [5/8] 0, 128
  %2655 = vxpose.xlu0.c.b16.cont [6/8] 0, 128
  %2656 = vxpose.xlu0.c.b16.cont [7/8] 0, 128
  %2657 = vxpose.xlu0.c.b16.end [8/8] 0, 128
  %v2658 = vpop.trf.xlu0
  %v2659 = vpop.trf.xlu0
  %v2660 = vpop.trf.xlu0
  %v2661 = vpop.trf.xlu0
  %v2662 = vpop.trf.xlu0
  %v2663 = vpop.trf.xlu0
  %v2664 = vpop.trf.xlu0
  %v2665 = vpop.trf.xlu0
  %2666 = vxpose.xlu0.c.b16.start [1/8] %v2416, 128
  %2667 = vxpose.xlu0.c.b16.cont [2/8] 0, 128
  %2668 = vxpose.xlu0.c.b16.cont [3/8] 0, 128
  %2669 = vxpose.xlu0.c.b16.cont [4/8] 0, 128
  %2670 = vxpose.xlu0.c.b16.cont [5/8] 0, 128
  %2671 = vxpose.xlu0.c.b16.cont [6/8] 0, 128
  %2672 = vxpose.xlu0.c.b16.cont [7/8] 0, 128
  %2673 = vxpose.xlu0.c.b16.end [8/8] 0, 128
  %v2674 = vpop.trf.xlu0
  %v2675 = vpop.trf.xlu0
  %v2676 = vpop.trf.xlu0
  %v2677 = vpop.trf.xlu0
  %v2678 = vpop.trf.xlu0
  %v2679 = vpop.trf.xlu0
  %v2680 = vpop.trf.xlu0
  %v2681 = vpop.trf.xlu0
  %2682 = vxpose.xlu0.c.b16.start [1/8] %v2417, 128
  %2683 = vxpose.xlu0.c.b16.cont [2/8] 0, 128
  %2684 = vxpose.xlu0.c.b16.cont [3/8] 0, 128
  %2685 = vxpose.xlu0.c.b16.cont [4/8] 0, 128
  %2686 = vxpose.xlu0.c.b16.cont [5/8] 0, 128
  %2687 = vxpose.xlu0.c.b16.cont [6/8] 0, 128
  %2688 = vxpose.xlu0.c.b16.cont [7/8] 0, 128
  %2689 = vxpose.xlu0.c.b16.end [8/8] 0, 128
  %v2690 = vpop.trf.xlu0
  %v2691 = vpop.trf.xlu0
  %v2692 = vpop.trf.xlu0
  %v2693 = vpop.trf.xlu0
  %v2694 = vpop.trf.xlu0
  %v2695 = vpop.trf.xlu0
  %v2696 = vpop.trf.xlu0
  %v2697 = vpop.trf.xlu0
  %v2698 = vcombine.low %v2578, %v2642
  %v2700 = vunpack.c.l.s4 1983009808
  %v2701 = vunpack.c.0.s8 %v2700
  %v2702 = vlaneseq
  %v2703 = vshrl.u32 %v2702, 7
  %v2704 = vsub.s32 %v2701, %v2703
  %v2705 = vrot.slane %v2698, %v2704
  %v2706 = vcombine.low %v2610, %v2674
  %v2708 = vunpack.c.l.s4 1983009808
  %v2709 = vunpack.c.0.s8 %v2708
  %v2710 = vlaneseq
  %v2711 = vshrl.u32 %v2710, 7
  %v2712 = vsub.s32 %v2709, %v2711
  %v2713 = vrot.slane %v2706, %v2712
  %v2714 = vcombine.low %v2705, %v2713
  %v2715 = vcombine.high %v2705, %v2713
  %v2717 = vunpack.c.l.s4 1934713408
  %v2718 = vunpack.c.0.s8 %v2717
  %v2719 = vlaneseq
  %v2720 = vshrl.u32 %v2719, 7
  %v2721 = vsub.s32 %v2718, %v2720
  %v2722 = vrot.slane %v2714, %v2721
  %v2724 = vunpack.c.l.s4 1934713408
  %v2725 = vunpack.c.0.s8 %v2724
  %v2726 = vlaneseq
  %v2727 = vshrl.u32 %v2726, 7
  %v2728 = vsub.s32 %v2725, %v2727
  %v2729 = vrot.slane %v2715, %v2728
  %v2730 = vcombine.high %v2722, 0
  %v2731 = vcombine.high %v2729, 0
  %v2732 = vcombine.low %v2594, %v2658
  %v2734 = vunpack.c.l.s4 1983009808
  %v2735 = vunpack.c.0.s8 %v2734
  %v2736 = vlaneseq
  %v2737 = vshrl.u32 %v2736, 7
  %v2738 = vsub.s32 %v2735, %v2737
  %v2739 = vrot.slane %v2732, %v2738
  %v2740 = vcombine.low %v2626, %v2690
  %v2742 = vunpack.c.l.s4 1983009808
  %v2743 = vunpack.c.0.s8 %v2742
  %v2744 = vlaneseq
  %v2745 = vshrl.u32 %v2744, 7
  %v2746 = vsub.s32 %v2743, %v2745
  %v2747 = vrot.slane %v2740, %v2746
  %v2748 = vcombine.low %v2739, %v2747
  %v2749 = vcombine.high %v2739, %v2747
  %v2751 = vunpack.c.l.s4 1934713408
  %v2752 = vunpack.c.0.s8 %v2751
  %v2753 = vlaneseq
  %v2754 = vshrl.u32 %v2753, 7
  %v2755 = vsub.s32 %v2752, %v2754
  %v2756 = vrot.slane %v2748, %v2755
  %v2758 = vunpack.c.l.s4 1934713408
  %v2759 = vunpack.c.0.s8 %v2758
  %v2760 = vlaneseq
  %v2761 = vshrl.u32 %v2760, 7
  %v2762 = vsub.s32 %v2759, %v2761
  %v2763 = vrot.slane %v2749, %v2762
  %v2764 = vcombine.high %v2756, 0
  %v2765 = vcombine.high %v2763, 0
  %v2768 = vpack.i.b16 %v2756, %v2722
  %v2770 = vshrl.u32 %v2722, 16
  %v2771 = vshrl.u32 %v2756, 16
  %v2772 = vpack.i.b16 %v2771, %v2770
  %v2776 = vpack.i.b16 %v2764, %v2730
  %v2778 = vshrl.u32 %v2730, 16
  %v2779 = vshrl.u32 %v2764, 16
  %v2780 = vpack.i.b16 %v2779, %v2778
  %v2784 = vpack.i.b16 %v2763, %v2729
  %v2786 = vshrl.u32 %v2729, 16
  %v2787 = vshrl.u32 %v2763, 16
  %v2788 = vpack.i.b16 %v2787, %v2786
  %v2792 = vpack.i.b16 %v2765, %v2731
  %v2794 = vshrl.u32 %v2731, 16
  %v2795 = vshrl.u32 %v2765, 16
  %v2796 = vpack.i.b16 %v2795, %v2794
  %2798 = vxpose.xlu0.c.b16.start [1/8] %v2768, 128
  %2799 = vxpose.xlu0.c.b16.cont [2/8] 0, 128
  %2800 = vxpose.xlu0.c.b16.cont [3/8] 0, 128
  %2801 = vxpose.xlu0.c.b16.cont [4/8] 0, 128
  %2802 = vxpose.xlu0.c.b16.cont [5/8] 0, 128
  %2803 = vxpose.xlu0.c.b16.cont [6/8] 0, 128
  %2804 = vxpose.xlu0.c.b16.cont [7/8] 0, 128
  %2805 = vxpose.xlu0.c.b16.end [8/8] 0, 128
  %v2806 = vpop.trf.xlu0
  %v2807 = vpop.trf.xlu0
  %v2808 = vpop.trf.xlu0
  %v2809 = vpop.trf.xlu0
  %v2810 = vpop.trf.xlu0
  %v2811 = vpop.trf.xlu0
  %v2812 = vpop.trf.xlu0
  %v2813 = vpop.trf.xlu0
  %2814 = vxpose.xlu0.c.b16.start [1/8] %v2772, 128
  %2815 = vxpose.xlu0.c.b16.cont [2/8] 0, 128
  %2816 = vxpose.xlu0.c.b16.cont [3/8] 0, 128
  %2817 = vxpose.xlu0.c.b16.cont [4/8] 0, 128
  %2818 = vxpose.xlu0.c.b16.cont [5/8] 0, 128
  %2819 = vxpose.xlu0.c.b16.cont [6/8] 0, 128
  %2820 = vxpose.xlu0.c.b16.cont [7/8] 0, 128
  %2821 = vxpose.xlu0.c.b16.end [8/8] 0, 128
  %v2822 = vpop.trf.xlu0
  %v2823 = vpop.trf.xlu0
  %v2824 = vpop.trf.xlu0
  %v2825 = vpop.trf.xlu0
  %v2826 = vpop.trf.xlu0
  %v2827 = vpop.trf.xlu0
  %v2828 = vpop.trf.xlu0
  %v2829 = vpop.trf.xlu0
  %2830 = vxpose.xlu0.c.b16.start [1/8] %v2776, 128
  %2831 = vxpose.xlu0.c.b16.cont [2/8] 0, 128
  %2832 = vxpose.xlu0.c.b16.cont [3/8] 0, 128
  %2833 = vxpose.xlu0.c.b16.cont [4/8] 0, 128
  %2834 = vxpose.xlu0.c.b16.cont [5/8] 0, 128
  %2835 = vxpose.xlu0.c.b16.cont [6/8] 0, 128
  %2836 = vxpose.xlu0.c.b16.cont [7/8] 0, 128
  %2837 = vxpose.xlu0.c.b16.end [8/8] 0, 128
  %v2838 = vpop.trf.xlu0
  %v2839 = vpop.trf.xlu0
  %v2840 = vpop.trf.xlu0
  %v2841 = vpop.trf.xlu0
  %v2842 = vpop.trf.xlu0
  %v2843 = vpop.trf.xlu0
  %v2844 = vpop.trf.xlu0
  %v2845 = vpop.trf.xlu0
  %2846 = vxpose.xlu0.c.b16.start [1/8] %v2780, 128
  %2847 = vxpose.xlu0.c.b16.cont [2/8] 0, 128
  %2848 = vxpose.xlu0.c.b16.cont [3/8] 0, 128
  %2849 = vxpose.xlu0.c.b16.cont [4/8] 0, 128
  %2850 = vxpose.xlu0.c.b16.cont [5/8] 0, 128
  %2851 = vxpose.xlu0.c.b16.cont [6/8] 0, 128
  %2852 = vxpose.xlu0.c.b16.cont [7/8] 0, 128
  %2853 = vxpose.xlu0.c.b16.end [8/8] 0, 128
  %v2854 = vpop.trf.xlu0
  %v2855 = vpop.trf.xlu0
  %v2856 = vpop.trf.xlu0
  %v2857 = vpop.trf.xlu0
  %v2858 = vpop.trf.xlu0
  %v2859 = vpop.trf.xlu0
  %v2860 = vpop.trf.xlu0
  %v2861 = vpop.trf.xlu0
  %2862 = vxpose.xlu0.c.b16.start [1/8] %v2784, 128
  %2863 = vxpose.xlu0.c.b16.cont [2/8] 0, 128
  %2864 = vxpose.xlu0.c.b16.cont [3/8] 0, 128
  %2865 = vxpose.xlu0.c.b16.cont [4/8] 0, 128
  %2866 = vxpose.xlu0.c.b16.cont [5/8] 0, 128
  %2867 = vxpose.xlu0.c.b16.cont [6/8] 0, 128
  %2868 = vxpose.xlu0.c.b16.cont [7/8] 0, 128
  %2869 = vxpose.xlu0.c.b16.end [8/8] 0, 128
  %v2870 = vpop.trf.xlu0
  %v2871 = vpop.trf.xlu0
  %v2872 = vpop.trf.xlu0
  %v2873 = vpop.trf.xlu0
  %v2874 = vpop.trf.xlu0
  %v2875 = vpop.trf.xlu0
  %v2876 = vpop.trf.xlu0
  %v2877 = vpop.trf.xlu0
  %2878 = vxpose.xlu0.c.b16.start [1/8] %v2788, 128
  %2879 = vxpose.xlu0.c.b16.cont [2/8] 0, 128
  %2880 = vxpose.xlu0.c.b16.cont [3/8] 0, 128
  %2881 = vxpose.xlu0.c.b16.cont [4/8] 0, 128
  %2882 = vxpose.xlu0.c.b16.cont [5/8] 0, 128
  %2883 = vxpose.xlu0.c.b16.cont [6/8] 0, 128
  %2884 = vxpose.xlu0.c.b16.cont [7/8] 0, 128
  %2885 = vxpose.xlu0.c.b16.end [8/8] 0, 128
  %v2886 = vpop.trf.xlu0
  %v2887 = vpop.trf.xlu0
  %v2888 = vpop.trf.xlu0
  %v2889 = vpop.trf.xlu0
  %v2890 = vpop.trf.xlu0
  %v2891 = vpop.trf.xlu0
  %v2892 = vpop.trf.xlu0
  %v2893 = vpop.trf.xlu0
  %2894 = vxpose.xlu0.c.b16.start [1/8] %v2792, 128
  %2895 = vxpose.xlu0.c.b16.cont [2/8] 0, 128
  %2896 = vxpose.xlu0.c.b16.cont [3/8] 0, 128
  %2897 = vxpose.xlu0.c.b16.cont [4/8] 0, 128
  %2898 = vxpose.xlu0.c.b16.cont [5/8] 0, 128
  %2899 = vxpose.xlu0.c.b16.cont [6/8] 0, 128
  %2900 = vxpose.xlu0.c.b16.cont [7/8] 0, 128
  %2901 = vxpose.xlu0.c.b16.end [8/8] 0, 128
  %v2902 = vpop.trf.xlu0
  %v2903 = vpop.trf.xlu0
  %v2904 = vpop.trf.xlu0
  %v2905 = vpop.trf.xlu0
  %v2906 = vpop.trf.xlu0
  %v2907 = vpop.trf.xlu0
  %v2908 = vpop.trf.xlu0
  %v2909 = vpop.trf.xlu0
  %2910 = vxpose.xlu0.c.b16.start [1/8] %v2796, 128
  %2911 = vxpose.xlu0.c.b16.cont [2/8] 0, 128
  %2912 = vxpose.xlu0.c.b16.cont [3/8] 0, 128
  %2913 = vxpose.xlu0.c.b16.cont [4/8] 0, 128
  %2914 = vxpose.xlu0.c.b16.cont [5/8] 0, 128
  %2915 = vxpose.xlu0.c.b16.cont [6/8] 0, 128
  %2916 = vxpose.xlu0.c.b16.cont [7/8] 0, 128
  %2917 = vxpose.xlu0.c.b16.end [8/8] 0, 128
  %v2918 = vpop.trf.xlu0
  %v2919 = vpop.trf.xlu0
  %v2920 = vpop.trf.xlu0
  %v2921 = vpop.trf.xlu0
  %v2922 = vpop.trf.xlu0
  %v2923 = vpop.trf.xlu0
  %v2924 = vpop.trf.xlu0
  %v2925 = vpop.trf.xlu0
  %v2926 = vcombine.low %v2806, %v2870
  %v2928 = vunpack.c.l.s4 1983009808
  %v2929 = vunpack.c.0.s8 %v2928
  %v2930 = vlaneseq
  %v2931 = vshrl.u32 %v2930, 7
  %v2932 = vsub.s32 %v2929, %v2931
  %v2933 = vrot.slane %v2926, %v2932
  %v2934 = vcombine.low %v2838, %v2902
  %v2936 = vunpack.c.l.s4 1983009808
  %v2937 = vunpack.c.0.s8 %v2936
  %v2938 = vlaneseq
  %v2939 = vshrl.u32 %v2938, 7
  %v2940 = vsub.s32 %v2937, %v2939
  %v2941 = vrot.slane %v2934, %v2940
  %v2942 = vcombine.low %v2933, %v2941
  %v2944 = vunpack.c.l.s4 1934713408
  %v2945 = vunpack.c.0.s8 %v2944
  %v2946 = vlaneseq
  %v2947 = vshrl.u32 %v2946, 7
  %v2948 = vsub.s32 %v2945, %v2947
  %v2949 = vrot.slane %v2942, %v2948
  %v2950 = vcombine.high %v2949, 0
  %v2951 = vcombine.low %v2822, %v2886
  %v2953 = vunpack.c.l.s4 1983009808
  %v2954 = vunpack.c.0.s8 %v2953
  %v2955 = vlaneseq
  %v2956 = vshrl.u32 %v2955, 7
  %v2957 = vsub.s32 %v2954, %v2956
  %v2958 = vrot.slane %v2951, %v2957
  %v2959 = vcombine.low %v2854, %v2918
  %v2961 = vunpack.c.l.s4 1983009808
  %v2962 = vunpack.c.0.s8 %v2961
  %v2963 = vlaneseq
  %v2964 = vshrl.u32 %v2963, 7
  %v2965 = vsub.s32 %v2962, %v2964
  %v2966 = vrot.slane %v2959, %v2965
  %v2967 = vcombine.low %v2958, %v2966
  %v2969 = vunpack.c.l.s4 1934713408
  %v2970 = vunpack.c.0.s8 %v2969
  %v2971 = vlaneseq
  %v2972 = vshrl.u32 %v2971, 7
  %v2973 = vsub.s32 %v2970, %v2972
  %v2974 = vrot.slane %v2967, %v2973
  %v2975 = vcombine.high %v2974, 0
  %v2978 = vpack.i.b16 %v2974, %v2949
  %v2979 = vshrl.u32 %v2949, 16
  %v2980 = vshrl.u32 %v2974, 16
  %v2981 = vpack.i.b16 %v2980, %v2979
  %v2984 = vpack.i.b16 %v2975, %v2950
  %v2985 = vshrl.u32 %v2950, 16
  %v2986 = vshrl.u32 %v2975, 16
  %v2987 = vpack.i.b16 %v2986, %v2985
  %v2989 = vsel %vm1129, %v2560, 0
  %v2992 = vsel %vm1133, %v2978, 0
  %2994 = vmatprep.subr.bf16.mxu0 0
  %2995 = vmatpush1.bf16.msra.mxu0 0
  %2996 = vmatprep.subr.bf16.mxu0 0
  %2997 = vmatpush1.bf16.msra.mxu0 0
  %2998 = vmatprep.subr.bf16.mxu0 0
  %2999 = vmatpush1.bf16.msra.mxu0 0
  %3000 = vmatprep.subr.bf16.mxu0 0
  %3001 = vmatpush1.bf16.msra.mxu0 0
  %3002 = vmatprep.subr.bf16.mxu0 0
  %3003 = vmatpush1.bf16.msra.mxu0 0
  %3004 = vmatprep.subr.bf16.mxu0 0
  %3005 = vmatpush1.bf16.msra.mxu0 0
  %3006 = vmatprep.subr.bf16.mxu0 0
  %3007 = vmatpush1.bf16.msra.mxu0 0
  %3008 = vmatprep.subr.bf16.mxu0 0
  %3009 = vmatpush1.bf16.msra.mxu0 %v2992
  %3010 = vmatprep.subr.bf16.mxu0 0
  %3011 = vmatpush2.bf16.msra.mxu0 0
  %3012 = vmatprep.subr.bf16.mxu0 0
  %3013 = vmatpush2.bf16.msra.mxu0 0
  %3014 = vmatprep.subr.bf16.mxu0 0
  %3015 = vmatpush2.bf16.msra.mxu0 0
  %3016 = vmatprep.subr.bf16.mxu0 0
  %3017 = vmatpush2.bf16.msra.mxu0 0
  %3018 = vmatprep.subr.bf16.mxu0 0
  %3019 = vmatpush2.bf16.msra.mxu0 0
  %3020 = vmatprep.subr.bf16.mxu0 0
  %3021 = vmatpush2.bf16.msra.mxu0 0
  %3022 = vmatprep.subr.bf16.mxu0 0
  %3023 = vmatpush2.bf16.msra.mxu0 0
  %3024 = vmatprep.subr.bf16.mxu0 0
  %3025 = vmatpush2.bf16.msra.mxu0 0
  %3026 = vmatprep.mubr.bf16.mxu0 0
  %3027 = vmatmul.mubr.bf16.gmra.mxu0 %v2989
  %v3028 = vpop.f32.mrf.mxu0
  %v3029 = vadd.f32 %v2507, %v3028
  %v3030 = vpop.f32.mrf.mxu0
  %v3031 = vpop.f32.mrf.mxu0
  %v3032 = vpop.f32.mrf.mxu0
  %3033 = vdwg.mxu0
  %v3035 = vsel %vm1129, %v2563, 0
  %v3038 = vsel %vm1133, %v2981, 0
  %3040 = vmatprep.subr.bf16.mxu0 0
  %3041 = vmatpush1.bf16.msra.mxu0 0
  %3042 = vmatprep.subr.bf16.mxu0 0
  %3043 = vmatpush1.bf16.msra.mxu0 0
  %3044 = vmatprep.subr.bf16.mxu0 0
  %3045 = vmatpush1.bf16.msra.mxu0 0
  %3046 = vmatprep.subr.bf16.mxu0 0
  %3047 = vmatpush1.bf16.msra.mxu0 0
  %3048 = vmatprep.subr.bf16.mxu0 0
  %3049 = vmatpush1.bf16.msra.mxu0 0
  %3050 = vmatprep.subr.bf16.mxu0 0
  %3051 = vmatpush1.bf16.msra.mxu0 0
  %3052 = vmatprep.subr.bf16.mxu0 0
  %3053 = vmatpush1.bf16.msra.mxu0 0
  %3054 = vmatprep.subr.bf16.mxu0 0
  %3055 = vmatpush1.bf16.msra.mxu0 %v3038
  %3056 = vmatprep.subr.bf16.mxu0 0
  %3057 = vmatpush2.bf16.msra.mxu0 0
  %3058 = vmatprep.subr.bf16.mxu0 0
  %3059 = vmatpush2.bf16.msra.mxu0 0
  %3060 = vmatprep.subr.bf16.mxu0 0
  %3061 = vmatpush2.bf16.msra.mxu0 0
  %3062 = vmatprep.subr.bf16.mxu0 0
  %3063 = vmatpush2.bf16.msra.mxu0 0
  %3064 = vmatprep.subr.bf16.mxu0 0
  %3065 = vmatpush2.bf16.msra.mxu0 0
  %3066 = vmatprep.subr.bf16.mxu0 0
  %3067 = vmatpush2.bf16.msra.mxu0 0
  %3068 = vmatprep.subr.bf16.mxu0 0
  %3069 = vmatpush2.bf16.msra.mxu0 0
  %3070 = vmatprep.subr.bf16.mxu0 0
  %3071 = vmatpush2.bf16.msra.mxu0 0
  %3072 = vmatprep.mubr.bf16.mxu0 0
  %3073 = vmatmul.mubr.bf16.gmra.mxu0 %v3035
  %v3074 = vpop.f32.mrf.mxu0
  %v3075 = vadd.f32 %v2507, %v3074
  %v3076 = vpop.f32.mrf.mxu0
  %v3077 = vpop.f32.mrf.mxu0
  %v3078 = vpop.f32.mrf.mxu0
  %3079 = vdwg.mxu0
  %v3081 = vsel %vm1129, %v2566, 0
  %v3084 = vsel %vm1133, %v2984, 0
  %3086 = vmatprep.subr.bf16.mxu0 0
  %3087 = vmatpush1.bf16.msra.mxu0 0
  %3088 = vmatprep.subr.bf16.mxu0 0
  %3089 = vmatpush1.bf16.msra.mxu0 0
  %3090 = vmatprep.subr.bf16.mxu0 0
  %3091 = vmatpush1.bf16.msra.mxu0 0
  %3092 = vmatprep.subr.bf16.mxu0 0
  %3093 = vmatpush1.bf16.msra.mxu0 0
  %3094 = vmatprep.subr.bf16.mxu0 0
  %3095 = vmatpush1.bf16.msra.mxu0 0
  %3096 = vmatprep.subr.bf16.mxu0 0
  %3097 = vmatpush1.bf16.msra.mxu0 0
  %3098 = vmatprep.subr.bf16.mxu0 0
  %3099 = vmatpush1.bf16.msra.mxu0 0
  %3100 = vmatprep.subr.bf16.mxu0 0
  %3101 = vmatpush1.bf16.msra.mxu0 %v3084
  %3102 = vmatprep.subr.bf16.mxu0 0
  %3103 = vmatpush2.bf16.msra.mxu0 0
  %3104 = vmatprep.subr.bf16.mxu0 0
  %3105 = vmatpush2.bf16.msra.mxu0 0
  %3106 = vmatprep.subr.bf16.mxu0 0
  %3107 = vmatpush2.bf16.msra.mxu0 0
  %3108 = vmatprep.subr.bf16.mxu0 0
  %3109 = vmatpush2.bf16.msra.mxu0 0
  %3110 = vmatprep.subr.bf16.mxu0 0
  %3111 = vmatpush2.bf16.msra.mxu0 0
  %3112 = vmatprep.subr.bf16.mxu0 0
  %3113 = vmatpush2.bf16.msra.mxu0 0
  %3114 = vmatprep.subr.bf16.mxu0 0
  %3115 = vmatpush2.bf16.msra.mxu0 0
  %3116 = vmatprep.subr.bf16.mxu0 0
  %3117 = vmatpush2.bf16.msra.mxu0 0
  %3118 = vmatprep.mubr.bf16.mxu0 0
  %3119 = vmatmul.mubr.bf16.gmra.mxu0 %v3081
  %v3120 = vpop.f32.mrf.mxu0
  %v3121 = vadd.f32 %v2507, %v3120
  %v3122 = vpop.f32.mrf.mxu0
  %v3123 = vpop.f32.mrf.mxu0
  %v3124 = vpop.f32.mrf.mxu0
  %3125 = vdwg.mxu0
  %v3127 = vsel %vm1129, %v2569, 0
  %v3130 = vsel %vm1133, %v2987, 0
  %3132 = vmatprep.subr.bf16.mxu0 0
  %3133 = vmatpush1.bf16.msra.mxu0 0
  %3134 = vmatprep.subr.bf16.mxu0 0
  %3135 = vmatpush1.bf16.msra.mxu0 0
  %3136 = vmatprep.subr.bf16.mxu0 0
  %3137 = vmatpush1.bf16.msra.mxu0 0
  %3138 = vmatprep.subr.bf16.mxu0 0
  %3139 = vmatpush1.bf16.msra.mxu0 0
  %3140 = vmatprep.subr.bf16.mxu0 0
  %3141 = vmatpush1.bf16.msra.mxu0 0
  %3142 = vmatprep.subr.bf16.mxu0 0
  %3143 = vmatpush1.bf16.msra.mxu0 0
  %3144 = vmatprep.subr.bf16.mxu0 0
  %3145 = vmatpush1.bf16.msra.mxu0 0
  %3146 = vmatprep.subr.bf16.mxu0 0
  %3147 = vmatpush1.bf16.msra.mxu0 %v3130
  %3148 = vmatprep.subr.bf16.mxu0 0
  %3149 = vmatpush2.bf16.msra.mxu0 0
  %3150 = vmatprep.subr.bf16.mxu0 0
  %3151 = vmatpush2.bf16.msra.mxu0 0
  %3152 = vmatprep.subr.bf16.mxu0 0
  %3153 = vmatpush2.bf16.msra.mxu0 0
  %3154 = vmatprep.subr.bf16.mxu0 0
  %3155 = vmatpush2.bf16.msra.mxu0 0
  %3156 = vmatprep.subr.bf16.mxu0 0
  %3157 = vmatpush2.bf16.msra.mxu0 0
  %3158 = vmatprep.subr.bf16.mxu0 0
  %3159 = vmatpush2.bf16.msra.mxu0 0
  %3160 = vmatprep.subr.bf16.mxu0 0
  %3161 = vmatpush2.bf16.msra.mxu0 0
  %3162 = vmatprep.subr.bf16.mxu0 0
  %3163 = vmatpush2.bf16.msra.mxu0 0
  %3164 = vmatprep.mubr.bf16.mxu0 0
  %3165 = vmatmul.mubr.bf16.gmra.mxu0 %v3127
  %v3166 = vpop.f32.mrf.mxu0
  %v3167 = vadd.f32 %v2507, %v3166
  %v3168 = vpop.f32.mrf.mxu0
  %v3169 = vpop.f32.mrf.mxu0
  %v3170 = vpop.f32.mrf.mxu0
  %3171 = vdwg.mxu0
  %v3172 = vsel %vm1129, %v3029, -inf
  %3173 = vmax.xlane.f32.xlu0 %v3172
  %v3174 = vpop.xlane.xlu0 %3173
  %v3175 = vsel %vm1129, %v3075, -inf
  %3176 = vmax.xlane.f32.xlu0 %v3175
  %v3177 = vpop.xlane.xlu0 %3176
  %v3178 = vsel %vm1129, %v3121, -inf
  %3179 = vmax.xlane.f32.xlu0 %v3178
  %v3180 = vpop.xlane.xlu0 %3179
  %v3181 = vsel %vm1129, %v3167, -inf
  %3182 = vmax.xlane.f32.xlu0 %v3181
  %v3183 = vpop.xlane.xlu0 %3182
  %v3184 = vsub.f32 %v3029, %v3174
  %v3185 = vsub.f32 %v3075, %v3177
  %v3186 = vsub.f32 %v3121, %v3180
  %v3187 = vsub.f32 %v3167, %v3183
  %v3188 = vmul.f32 %v3184, 1.442695
  %v3189 = vpow.pop %v3188
  %v3190 = vmul.f32 %v3185, 1.442695
  %v3191 = vpow.pop %v3190
  %v3192 = vmul.f32 %v3186, 1.442695
  %v3193 = vpow.pop %v3192
  %v3194 = vmul.f32 %v3187, 1.442695
  %v3195 = vpow.pop %v3194
  %v3196 = vsel %vm1129, %v3189, 0.0
  %3197 = vadd.xlane.f32.xlu0 %v3196
  %v3198 = vpop.xlane.xlu0 %3197
  %v3199 = vsel %vm1129, %v3191, 0.0
  %3200 = vadd.xlane.f32.xlu0 %v3199
  %v3201 = vpop.xlane.xlu0 %3200
  %v3202 = vsel %vm1129, %v3193, 0.0
  %3203 = vadd.xlane.f32.xlu0 %v3202
  %v3204 = vpop.xlane.xlu0 %3203
  %v3205 = vsel %vm1129, %v3195, 0.0
  %3206 = vadd.xlane.f32.xlu0 %v3205
  %v3207 = vpop.xlane.xlu0 %3206
  %v3208 = vrcp.pop %v3198
  %v3209 = vrcp.pop %v3201
  %v3210 = vrcp.pop %v3204
  %v3211 = vrcp.pop %v3207
  %v3212 = vmul.f32 %v3189, %v3208
  %v3213 = vmul.f32 %v3191, %v3209
  %v3214 = vmul.f32 %v3193, %v3210
  %v3215 = vmul.f32 %v3195, %v3211
  %v3216 = vpack.c.bf16 %v3212, %v3212
  %v3217 = vpack.c.bf16 %v3213, %v3213
  %v3218 = vpack.c.bf16 %v3214, %v3214
  %v3219 = vpack.c.bf16 %v3215, %v3215
  %3220 = vxpose.xlu0.c.b16.start [1/8] %v2496, 128
  %3221 = vxpose.xlu0.c.b16.cont [2/8] 0, 128
  %3222 = vxpose.xlu0.c.b16.cont [3/8] 0, 128
  %3223 = vxpose.xlu0.c.b16.cont [4/8] 0, 128
  %3224 = vxpose.xlu0.c.b16.cont [5/8] 0, 128
  %3225 = vxpose.xlu0.c.b16.cont [6/8] 0, 128
  %3226 = vxpose.xlu0.c.b16.cont [7/8] 0, 128
  %3227 = vxpose.xlu0.c.b16.end [8/8] 0, 128
  %v3228 = vpop.trf.xlu0
  %v3229 = vpop.trf.xlu0
  %v3230 = vpop.trf.xlu0
  %v3231 = vpop.trf.xlu0
  %v3232 = vpop.trf.xlu0
  %v3233 = vpop.trf.xlu0
  %v3234 = vpop.trf.xlu0
  %v3235 = vpop.trf.xlu0
  %3236 = vxpose.xlu0.c.b16.start [1/8] %v2497, 128
  %3237 = vxpose.xlu0.c.b16.cont [2/8] 0, 128
  %3238 = vxpose.xlu0.c.b16.cont [3/8] 0, 128
  %3239 = vxpose.xlu0.c.b16.cont [4/8] 0, 128
  %3240 = vxpose.xlu0.c.b16.cont [5/8] 0, 128
  %3241 = vxpose.xlu0.c.b16.cont [6/8] 0, 128
  %3242 = vxpose.xlu0.c.b16.cont [7/8] 0, 128
  %3243 = vxpose.xlu0.c.b16.end [8/8] 0, 128
  %v3244 = vpop.trf.xlu0
  %v3245 = vpop.trf.xlu0
  %v3246 = vpop.trf.xlu0
  %v3247 = vpop.trf.xlu0
  %v3248 = vpop.trf.xlu0
  %v3249 = vpop.trf.xlu0
  %v3250 = vpop.trf.xlu0
  %v3251 = vpop.trf.xlu0
  %3252 = vxpose.xlu0.c.b16.start [1/8] %v2498, 128
  %3253 = vxpose.xlu0.c.b16.cont [2/8] 0, 128
  %3254 = vxpose.xlu0.c.b16.cont [3/8] 0, 128
  %3255 = vxpose.xlu0.c.b16.cont [4/8] 0, 128
  %3256 = vxpose.xlu0.c.b16.cont [5/8] 0, 128
  %3257 = vxpose.xlu0.c.b16.cont [6/8] 0, 128
  %3258 = vxpose.xlu0.c.b16.cont [7/8] 0, 128
  %3259 = vxpose.xlu0.c.b16.end [8/8] 0, 128
  %v3260 = vpop.trf.xlu0
  %v3261 = vpop.trf.xlu0
  %v3262 = vpop.trf.xlu0
  %v3263 = vpop.trf.xlu0
  %v3264 = vpop.trf.xlu0
  %v3265 = vpop.trf.xlu0
  %v3266 = vpop.trf.xlu0
  %v3267 = vpop.trf.xlu0
  %3268 = vxpose.xlu0.c.b16.start [1/8] %v2499, 128
  %3269 = vxpose.xlu0.c.b16.cont [2/8] 0, 128
  %3270 = vxpose.xlu0.c.b16.cont [3/8] 0, 128
  %3271 = vxpose.xlu0.c.b16.cont [4/8] 0, 128
  %3272 = vxpose.xlu0.c.b16.cont [5/8] 0, 128
  %3273 = vxpose.xlu0.c.b16.cont [6/8] 0, 128
  %3274 = vxpose.xlu0.c.b16.cont [7/8] 0, 128
  %3275 = vxpose.xlu0.c.b16.end [8/8] 0, 128
  %v3276 = vpop.trf.xlu0
  %v3277 = vpop.trf.xlu0
  %v3278 = vpop.trf.xlu0
  %v3279 = vpop.trf.xlu0
  %v3280 = vpop.trf.xlu0
  %v3281 = vpop.trf.xlu0
  %v3282 = vpop.trf.xlu0
  %v3283 = vpop.trf.xlu0
  %3284 = vxpose.xlu0.c.b16.start [1/8] %v2500, 128
  %3285 = vxpose.xlu0.c.b16.cont [2/8] 0, 128
  %3286 = vxpose.xlu0.c.b16.cont [3/8] 0, 128
  %3287 = vxpose.xlu0.c.b16.cont [4/8] 0, 128
  %3288 = vxpose.xlu0.c.b16.cont [5/8] 0, 128
  %3289 = vxpose.xlu0.c.b16.cont [6/8] 0, 128
  %3290 = vxpose.xlu0.c.b16.cont [7/8] 0, 128
  %3291 = vxpose.xlu0.c.b16.end [8/8] 0, 128
  %v3292 = vpop.trf.xlu0
  %v3293 = vpop.trf.xlu0
  %v3294 = vpop.trf.xlu0
  %v3295 = vpop.trf.xlu0
  %v3296 = vpop.trf.xlu0
  %v3297 = vpop.trf.xlu0
  %v3298 = vpop.trf.xlu0
  %v3299 = vpop.trf.xlu0
  %3300 = vxpose.xlu0.c.b16.start [1/8] %v2501, 128
  %3301 = vxpose.xlu0.c.b16.cont [2/8] 0, 128
  %3302 = vxpose.xlu0.c.b16.cont [3/8] 0, 128
  %3303 = vxpose.xlu0.c.b16.cont [4/8] 0, 128
  %3304 = vxpose.xlu0.c.b16.cont [5/8] 0, 128
  %3305 = vxpose.xlu0.c.b16.cont [6/8] 0, 128
  %3306 = vxpose.xlu0.c.b16.cont [7/8] 0, 128
  %3307 = vxpose.xlu0.c.b16.end [8/8] 0, 128
  %v3308 = vpop.trf.xlu0
  %v3309 = vpop.trf.xlu0
  %v3310 = vpop.trf.xlu0
  %v3311 = vpop.trf.xlu0
  %v3312 = vpop.trf.xlu0
  %v3313 = vpop.trf.xlu0
  %v3314 = vpop.trf.xlu0
  %v3315 = vpop.trf.xlu0
  %3316 = vxpose.xlu0.c.b16.start [1/8] %v2502, 128
  %3317 = vxpose.xlu0.c.b16.cont [2/8] 0, 128
  %3318 = vxpose.xlu0.c.b16.cont [3/8] 0, 128
  %3319 = vxpose.xlu0.c.b16.cont [4/8] 0, 128
  %3320 = vxpose.xlu0.c.b16.cont [5/8] 0, 128
  %3321 = vxpose.xlu0.c.b16.cont [6/8] 0, 128
  %3322 = vxpose.xlu0.c.b16.cont [7/8] 0, 128
  %3323 = vxpose.xlu0.c.b16.end [8/8] 0, 128
  %v3324 = vpop.trf.xlu0
  %v3325 = vpop.trf.xlu0
  %v3326 = vpop.trf.xlu0
  %v3327 = vpop.trf.xlu0
  %v3328 = vpop.trf.xlu0
  %v3329 = vpop.trf.xlu0
  %v3330 = vpop.trf.xlu0
  %v3331 = vpop.trf.xlu0
  %3332 = vxpose.xlu0.c.b16.start [1/8] %v2503, 128
  %3333 = vxpose.xlu0.c.b16.cont [2/8] 0, 128
  %3334 = vxpose.xlu0.c.b16.cont [3/8] 0, 128
  %3335 = vxpose.xlu0.c.b16.cont [4/8] 0, 128
  %3336 = vxpose.xlu0.c.b16.cont [5/8] 0, 128
  %3337 = vxpose.xlu0.c.b16.cont [6/8] 0, 128
  %3338 = vxpose.xlu0.c.b16.cont [7/8] 0, 128
  %3339 = vxpose.xlu0.c.b16.end [8/8] 0, 128
  %v3340 = vpop.trf.xlu0
  %v3341 = vpop.trf.xlu0
  %v3342 = vpop.trf.xlu0
  %v3343 = vpop.trf.xlu0
  %v3344 = vpop.trf.xlu0
  %v3345 = vpop.trf.xlu0
  %v3346 = vpop.trf.xlu0
  %v3347 = vpop.trf.xlu0
  %v3348 = vcombine.low %v3228, %v3292
  %v3350 = vunpack.c.l.s4 1983009808
  %v3351 = vunpack.c.0.s8 %v3350
  %v3352 = vlaneseq
  %v3353 = vshrl.u32 %v3352, 7
  %v3354 = vsub.s32 %v3351, %v3353
  %v3355 = vrot.slane %v3348, %v3354
  %v3356 = vcombine.low %v3260, %v3324
  %v3358 = vunpack.c.l.s4 1983009808
  %v3359 = vunpack.c.0.s8 %v3358
  %v3360 = vlaneseq
  %v3361 = vshrl.u32 %v3360, 7
  %v3362 = vsub.s32 %v3359, %v3361
  %v3363 = vrot.slane %v3356, %v3362
  %v3364 = vcombine.low %v3355, %v3363
  %v3365 = vcombine.high %v3355, %v3363
  %v3367 = vunpack.c.l.s4 1934713408
  %v3368 = vunpack.c.0.s8 %v3367
  %v3369 = vlaneseq
  %v3370 = vshrl.u32 %v3369, 7
  %v3371 = vsub.s32 %v3368, %v3370
  %v3372 = vrot.slane %v3364, %v3371
  %v3374 = vunpack.c.l.s4 1934713408
  %v3375 = vunpack.c.0.s8 %v3374
  %v3376 = vlaneseq
  %v3377 = vshrl.u32 %v3376, 7
  %v3378 = vsub.s32 %v3375, %v3377
  %v3379 = vrot.slane %v3365, %v3378
  %v3380 = vcombine.high %v3372, 0
  %v3381 = vcombine.high %v3379, 0
  %v3382 = vcombine.low %v3244, %v3308
  %v3384 = vunpack.c.l.s4 1983009808
  %v3385 = vunpack.c.0.s8 %v3384
  %v3386 = vlaneseq
  %v3387 = vshrl.u32 %v3386, 7
  %v3388 = vsub.s32 %v3385, %v3387
  %v3389 = vrot.slane %v3382, %v3388
  %v3390 = vcombine.low %v3276, %v3340
  %v3392 = vunpack.c.l.s4 1983009808
  %v3393 = vunpack.c.0.s8 %v3392
  %v3394 = vlaneseq
  %v3395 = vshrl.u32 %v3394, 7
  %v3396 = vsub.s32 %v3393, %v3395
  %v3397 = vrot.slane %v3390, %v3396
  %v3398 = vcombine.low %v3389, %v3397
  %v3399 = vcombine.high %v3389, %v3397
  %v3401 = vunpack.c.l.s4 1934713408
  %v3402 = vunpack.c.0.s8 %v3401
  %v3403 = vlaneseq
  %v3404 = vshrl.u32 %v3403, 7
  %v3405 = vsub.s32 %v3402, %v3404
  %v3406 = vrot.slane %v3398, %v3405
  %v3408 = vunpack.c.l.s4 1934713408
  %v3409 = vunpack.c.0.s8 %v3408
  %v3410 = vlaneseq
  %v3411 = vshrl.u32 %v3410, 7
  %v3412 = vsub.s32 %v3409, %v3411
  %v3413 = vrot.slane %v3399, %v3412
  %v3414 = vcombine.high %v3406, 0
  %v3415 = vcombine.high %v3413, 0
  %v3418 = vpack.i.b16 %v3406, %v3372
  %v3420 = vshrl.u32 %v3372, 16
  %v3421 = vshrl.u32 %v3406, 16
  %v3422 = vpack.i.b16 %v3421, %v3420
  %v3426 = vpack.i.b16 %v3414, %v3380
  %v3428 = vshrl.u32 %v3380, 16
  %v3429 = vshrl.u32 %v3414, 16
  %v3430 = vpack.i.b16 %v3429, %v3428
  %v3434 = vpack.i.b16 %v3413, %v3379
  %v3436 = vshrl.u32 %v3379, 16
  %v3437 = vshrl.u32 %v3413, 16
  %v3438 = vpack.i.b16 %v3437, %v3436
  %v3442 = vpack.i.b16 %v3415, %v3381
  %v3444 = vshrl.u32 %v3381, 16
  %v3445 = vshrl.u32 %v3415, 16
  %v3446 = vpack.i.b16 %v3445, %v3444
  %3448 = vxpose.xlu0.c.b16.start [1/8] %v3418, 128
  %3449 = vxpose.xlu0.c.b16.cont [2/8] 0, 128
  %3450 = vxpose.xlu0.c.b16.cont [3/8] 0, 128
  %3451 = vxpose.xlu0.c.b16.cont [4/8] 0, 128
  %3452 = vxpose.xlu0.c.b16.cont [5/8] 0, 128
  %3453 = vxpose.xlu0.c.b16.cont [6/8] 0, 128
  %3454 = vxpose.xlu0.c.b16.cont [7/8] 0, 128
  %3455 = vxpose.xlu0.c.b16.end [8/8] 0, 128
  %v3456 = vpop.trf.xlu0
  %v3457 = vpop.trf.xlu0
  %v3458 = vpop.trf.xlu0
  %v3459 = vpop.trf.xlu0
  %v3460 = vpop.trf.xlu0
  %v3461 = vpop.trf.xlu0
  %v3462 = vpop.trf.xlu0
  %v3463 = vpop.trf.xlu0
  %3464 = vxpose.xlu0.c.b16.start [1/8] %v3422, 128
  %3465 = vxpose.xlu0.c.b16.cont [2/8] 0, 128
  %3466 = vxpose.xlu0.c.b16.cont [3/8] 0, 128
  %3467 = vxpose.xlu0.c.b16.cont [4/8] 0, 128
  %3468 = vxpose.xlu0.c.b16.cont [5/8] 0, 128
  %3469 = vxpose.xlu0.c.b16.cont [6/8] 0, 128
  %3470 = vxpose.xlu0.c.b16.cont [7/8] 0, 128
  %3471 = vxpose.xlu0.c.b16.end [8/8] 0, 128
  %v3472 = vpop.trf.xlu0
  %v3473 = vpop.trf.xlu0
  %v3474 = vpop.trf.xlu0
  %v3475 = vpop.trf.xlu0
  %v3476 = vpop.trf.xlu0
  %v3477 = vpop.trf.xlu0
  %v3478 = vpop.trf.xlu0
  %v3479 = vpop.trf.xlu0
  %3480 = vxpose.xlu0.c.b16.start [1/8] %v3426, 128
  %3481 = vxpose.xlu0.c.b16.cont [2/8] 0, 128
  %3482 = vxpose.xlu0.c.b16.cont [3/8] 0, 128
  %3483 = vxpose.xlu0.c.b16.cont [4/8] 0, 128
  %3484 = vxpose.xlu0.c.b16.cont [5/8] 0, 128
  %3485 = vxpose.xlu0.c.b16.cont [6/8] 0, 128
  %3486 = vxpose.xlu0.c.b16.cont [7/8] 0, 128
  %3487 = vxpose.xlu0.c.b16.end [8/8] 0, 128
  %v3488 = vpop.trf.xlu0
  %v3489 = vpop.trf.xlu0
  %v3490 = vpop.trf.xlu0
  %v3491 = vpop.trf.xlu0
  %v3492 = vpop.trf.xlu0
  %v3493 = vpop.trf.xlu0
  %v3494 = vpop.trf.xlu0
  %v3495 = vpop.trf.xlu0
  %3496 = vxpose.xlu0.c.b16.start [1/8] %v3430, 128
  %3497 = vxpose.xlu0.c.b16.cont [2/8] 0, 128
  %3498 = vxpose.xlu0.c.b16.cont [3/8] 0, 128
  %3499 = vxpose.xlu0.c.b16.cont [4/8] 0, 128
  %3500 = vxpose.xlu0.c.b16.cont [5/8] 0, 128
  %3501 = vxpose.xlu0.c.b16.cont [6/8] 0, 128
  %3502 = vxpose.xlu0.c.b16.cont [7/8] 0, 128
  %3503 = vxpose.xlu0.c.b16.end [8/8] 0, 128
  %v3504 = vpop.trf.xlu0
  %v3505 = vpop.trf.xlu0
  %v3506 = vpop.trf.xlu0
  %v3507 = vpop.trf.xlu0
  %v3508 = vpop.trf.xlu0
  %v3509 = vpop.trf.xlu0
  %v3510 = vpop.trf.xlu0
  %v3511 = vpop.trf.xlu0
  %3512 = vxpose.xlu0.c.b16.start [1/8] %v3434, 128
  %3513 = vxpose.xlu0.c.b16.cont [2/8] 0, 128
  %3514 = vxpose.xlu0.c.b16.cont [3/8] 0, 128
  %3515 = vxpose.xlu0.c.b16.cont [4/8] 0, 128
  %3516 = vxpose.xlu0.c.b16.cont [5/8] 0, 128
  %3517 = vxpose.xlu0.c.b16.cont [6/8] 0, 128
  %3518 = vxpose.xlu0.c.b16.cont [7/8] 0, 128
  %3519 = vxpose.xlu0.c.b16.end [8/8] 0, 128
  %v3520 = vpop.trf.xlu0
  %v3521 = vpop.trf.xlu0
  %v3522 = vpop.trf.xlu0
  %v3523 = vpop.trf.xlu0
  %v3524 = vpop.trf.xlu0
  %v3525 = vpop.trf.xlu0
  %v3526 = vpop.trf.xlu0
  %v3527 = vpop.trf.xlu0
  %3528 = vxpose.xlu0.c.b16.start [1/8] %v3438, 128
  %3529 = vxpose.xlu0.c.b16.cont [2/8] 0, 128
  %3530 = vxpose.xlu0.c.b16.cont [3/8] 0, 128
  %3531 = vxpose.xlu0.c.b16.cont [4/8] 0, 128
  %3532 = vxpose.xlu0.c.b16.cont [5/8] 0, 128
  %3533 = vxpose.xlu0.c.b16.cont [6/8] 0, 128
  %3534 = vxpose.xlu0.c.b16.cont [7/8] 0, 128
  %3535 = vxpose.xlu0.c.b16.end [8/8] 0, 128
  %v3536 = vpop.trf.xlu0
  %v3537 = vpop.trf.xlu0
  %v3538 = vpop.trf.xlu0
  %v3539 = vpop.trf.xlu0
  %v3540 = vpop.trf.xlu0
  %v3541 = vpop.trf.xlu0
  %v3542 = vpop.trf.xlu0
  %v3543 = vpop.trf.xlu0
  %3544 = vxpose.xlu0.c.b16.start [1/8] %v3442, 128
  %3545 = vxpose.xlu0.c.b16.cont [2/8] 0, 128
  %3546 = vxpose.xlu0.c.b16.cont [3/8] 0, 128
  %3547 = vxpose.xlu0.c.b16.cont [4/8] 0, 128
  %3548 = vxpose.xlu0.c.b16.cont [5/8] 0, 128
  %3549 = vxpose.xlu0.c.b16.cont [6/8] 0, 128
  %3550 = vxpose.xlu0.c.b16.cont [7/8] 0, 128
  %3551 = vxpose.xlu0.c.b16.end [8/8] 0, 128
  %v3552 = vpop.trf.xlu0
  %v3553 = vpop.trf.xlu0
  %v3554 = vpop.trf.xlu0
  %v3555 = vpop.trf.xlu0
  %v3556 = vpop.trf.xlu0
  %v3557 = vpop.trf.xlu0
  %v3558 = vpop.trf.xlu0
  %v3559 = vpop.trf.xlu0
  %3560 = vxpose.xlu0.c.b16.start [1/8] %v3446, 128
  %3561 = vxpose.xlu0.c.b16.cont [2/8] 0, 128
  %3562 = vxpose.xlu0.c.b16.cont [3/8] 0, 128
  %3563 = vxpose.xlu0.c.b16.cont [4/8] 0, 128
  %3564 = vxpose.xlu0.c.b16.cont [5/8] 0, 128
  %3565 = vxpose.xlu0.c.b16.cont [6/8] 0, 128
  %3566 = vxpose.xlu0.c.b16.cont [7/8] 0, 128
  %3567 = vxpose.xlu0.c.b16.end [8/8] 0, 128
  %v3568 = vpop.trf.xlu0
  %v3569 = vpop.trf.xlu0
  %v3570 = vpop.trf.xlu0
  %v3571 = vpop.trf.xlu0
  %v3572 = vpop.trf.xlu0
  %v3573 = vpop.trf.xlu0
  %v3574 = vpop.trf.xlu0
  %v3575 = vpop.trf.xlu0
  %v3576 = vcombine.low %v3456, %v3520
  %v3578 = vunpack.c.l.s4 1983009808
  %v3579 = vunpack.c.0.s8 %v3578
  %v3580 = vlaneseq
  %v3581 = vshrl.u32 %v3580, 7
  %v3582 = vsub.s32 %v3579, %v3581
  %v3583 = vrot.slane %v3576, %v3582
  %v3584 = vcombine.low %v3488, %v3552
  %v3586 = vunpack.c.l.s4 1983009808
  %v3587 = vunpack.c.0.s8 %v3586
  %v3588 = vlaneseq
  %v3589 = vshrl.u32 %v3588, 7
  %v3590 = vsub.s32 %v3587, %v3589
  %v3591 = vrot.slane %v3584, %v3590
  %v3592 = vcombine.low %v3583, %v3591
  %v3594 = vunpack.c.l.s4 1934713408
  %v3595 = vunpack.c.0.s8 %v3594
  %v3596 = vlaneseq
  %v3597 = vshrl.u32 %v3596, 7
  %v3598 = vsub.s32 %v3595, %v3597
  %v3599 = vrot.slane %v3592, %v3598
  %v3600 = vcombine.high %v3599, 0
  %v3601 = vcombine.low %v3472, %v3536
  %v3603 = vunpack.c.l.s4 1983009808
  %v3604 = vunpack.c.0.s8 %v3603
  %v3605 = vlaneseq
  %v3606 = vshrl.u32 %v3605, 7
  %v3607 = vsub.s32 %v3604, %v3606
  %v3608 = vrot.slane %v3601, %v3607
  %v3609 = vcombine.low %v3504, %v3568
  %v3611 = vunpack.c.l.s4 1983009808
  %v3612 = vunpack.c.0.s8 %v3611
  %v3613 = vlaneseq
  %v3614 = vshrl.u32 %v3613, 7
  %v3615 = vsub.s32 %v3612, %v3614
  %v3616 = vrot.slane %v3609, %v3615
  %v3617 = vcombine.low %v3608, %v3616
  %v3619 = vunpack.c.l.s4 1934713408
  %v3620 = vunpack.c.0.s8 %v3619
  %v3621 = vlaneseq
  %v3622 = vshrl.u32 %v3621, 7
  %v3623 = vsub.s32 %v3620, %v3622
  %v3624 = vrot.slane %v3617, %v3623
  %v3625 = vcombine.high %v3624, 0
  %v3628 = vpack.i.b16 %v3624, %v3599
  %v3629 = vshrl.u32 %v3599, 16
  %v3630 = vshrl.u32 %v3624, 16
  %v3631 = vpack.i.b16 %v3630, %v3629
  %v3634 = vpack.i.b16 %v3625, %v3600
  %v3635 = vshrl.u32 %v3600, 16
  %v3636 = vshrl.u32 %v3625, 16
  %v3637 = vpack.i.b16 %v3636, %v3635
  %v3639 = vsel %vm1129, %v3628, 0
  %v3642 = vsel %vm1129, %v3216, 0
  %3644 = vmatprep.subr.bf16.mxu0 0
  %3645 = vmatpush1.bf16.xpose.msra.mxu0 0
  %3646 = vmatprep.subr.bf16.mxu0 0
  %3647 = vmatpush1.bf16.xpose.msra.mxu0 0
  %3648 = vmatprep.subr.bf16.mxu0 0
  %3649 = vmatpush1.bf16.xpose.msra.mxu0 0
  %3650 = vmatprep.subr.bf16.mxu0 0
  %3651 = vmatpush1.bf16.xpose.msra.mxu0 0
  %3652 = vmatprep.subr.bf16.mxu0 0
  %3653 = vmatpush1.bf16.xpose.msra.mxu0 0
  %3654 = vmatprep.subr.bf16.mxu0 0
  %3655 = vmatpush1.bf16.xpose.msra.mxu0 0
  %3656 = vmatprep.subr.bf16.mxu0 0
  %3657 = vmatpush1.bf16.xpose.msra.mxu0 0
  %3658 = vmatprep.subr.bf16.mxu0 0
  %3659 = vmatpush1.bf16.xpose.msra.mxu0 %v3642
  %3660 = vmatprep.subr.bf16.mxu0 0
  %3661 = vmatpush2.bf16.xpose.msra.mxu0 0
  %3662 = vmatprep.subr.bf16.mxu0 0
  %3663 = vmatpush2.bf16.xpose.msra.mxu0 0
  %3664 = vmatprep.subr.bf16.mxu0 0
  %3665 = vmatpush2.bf16.xpose.msra.mxu0 0
  %3666 = vmatprep.subr.bf16.mxu0 0
  %3667 = vmatpush2.bf16.xpose.msra.mxu0 0
  %3668 = vmatprep.subr.bf16.mxu0 0
  %3669 = vmatpush2.bf16.xpose.msra.mxu0 0
  %3670 = vmatprep.subr.bf16.mxu0 0
  %3671 = vmatpush2.bf16.xpose.msra.mxu0 0
  %3672 = vmatprep.subr.bf16.mxu0 0
  %3673 = vmatpush2.bf16.xpose.msra.mxu0 0
  %3674 = vmatprep.subr.bf16.mxu0 0
  %3675 = vmatpush2.bf16.xpose.msra.mxu0 0
  %3676 = vmatprep.mubr.bf16.mxu0 0
  %3677 = vmatmul.mubr.bf16.gmra.mxu0 %v3639
  %v3678 = vpop.f32.mrf.mxu0
  %v3679 = vadd.f32 0.0, %v3678
  %v3680 = vpop.f32.mrf.mxu0
  %v3681 = vpop.f32.mrf.mxu0
  %v3682 = vpop.f32.mrf.mxu0
  %3683 = vdwg.mxu0
  %v3685 = vsel %vm1129, %v3631, 0
  %v3688 = vsel %vm1129, %v3217, 0
  %3690 = vmatprep.subr.bf16.mxu0 0
  %3691 = vmatpush1.bf16.xpose.msra.mxu0 0
  %3692 = vmatprep.subr.bf16.mxu0 0
  %3693 = vmatpush1.bf16.xpose.msra.mxu0 0
  %3694 = vmatprep.subr.bf16.mxu0 0
  %3695 = vmatpush1.bf16.xpose.msra.mxu0 0
  %3696 = vmatprep.subr.bf16.mxu0 0
  %3697 = vmatpush1.bf16.xpose.msra.mxu0 0
  %3698 = vmatprep.subr.bf16.mxu0 0
  %3699 = vmatpush1.bf16.xpose.msra.mxu0 0
  %3700 = vmatprep.subr.bf16.mxu0 0
  %3701 = vmatpush1.bf16.xpose.msra.mxu0 0
  %3702 = vmatprep.subr.bf16.mxu0 0
  %3703 = vmatpush1.bf16.xpose.msra.mxu0 0
  %3704 = vmatprep.subr.bf16.mxu0 0
  %3705 = vmatpush1.bf16.xpose.msra.mxu0 %v3688
  %3706 = vmatprep.subr.bf16.mxu0 0
  %3707 = vmatpush2.bf16.xpose.msra.mxu0 0
  %3708 = vmatprep.subr.bf16.mxu0 0
  %3709 = vmatpush2.bf16.xpose.msra.mxu0 0
  %3710 = vmatprep.subr.bf16.mxu0 0
  %3711 = vmatpush2.bf16.xpose.msra.mxu0 0
  %3712 = vmatprep.subr.bf16.mxu0 0
  %3713 = vmatpush2.bf16.xpose.msra.mxu0 0
  %3714 = vmatprep.subr.bf16.mxu0 0
  %3715 = vmatpush2.bf16.xpose.msra.mxu0 0
  %3716 = vmatprep.subr.bf16.mxu0 0
  %3717 = vmatpush2.bf16.xpose.msra.mxu0 0
  %3718 = vmatprep.subr.bf16.mxu0 0
  %3719 = vmatpush2.bf16.xpose.msra.mxu0 0
  %3720 = vmatprep.subr.bf16.mxu0 0
  %3721 = vmatpush2.bf16.xpose.msra.mxu0 0
  %3722 = vmatprep.mubr.bf16.mxu0 0
  %3723 = vmatmul.mubr.bf16.gmra.mxu0 %v3685
  %v3724 = vpop.f32.mrf.mxu0
  %v3725 = vadd.f32 0.0, %v3724
  %v3726 = vpop.f32.mrf.mxu0
  %v3727 = vpop.f32.mrf.mxu0
  %v3728 = vpop.f32.mrf.mxu0
  %3729 = vdwg.mxu0
  %v3731 = vsel %vm1129, %v3634, 0
  %v3734 = vsel %vm1129, %v3218, 0
  %3736 = vmatprep.subr.bf16.mxu0 0
  %3737 = vmatpush1.bf16.xpose.msra.mxu0 0
  %3738 = vmatprep.subr.bf16.mxu0 0
  %3739 = vmatpush1.bf16.xpose.msra.mxu0 0
  %3740 = vmatprep.subr.bf16.mxu0 0
  %3741 = vmatpush1.bf16.xpose.msra.mxu0 0
  %3742 = vmatprep.subr.bf16.mxu0 0
  %3743 = vmatpush1.bf16.xpose.msra.mxu0 0
  %3744 = vmatprep.subr.bf16.mxu0 0
  %3745 = vmatpush1.bf16.xpose.msra.mxu0 0
  %3746 = vmatprep.subr.bf16.mxu0 0
  %3747 = vmatpush1.bf16.xpose.msra.mxu0 0
  %3748 = vmatprep.subr.bf16.mxu0 0
  %3749 = vmatpush1.bf16.xpose.msra.mxu0 0
  %3750 = vmatprep.subr.bf16.mxu0 0
  %3751 = vmatpush1.bf16.xpose.msra.mxu0 %v3734
  %3752 = vmatprep.subr.bf16.mxu0 0
  %3753 = vmatpush2.bf16.xpose.msra.mxu0 0
  %3754 = vmatprep.subr.bf16.mxu0 0
  %3755 = vmatpush2.bf16.xpose.msra.mxu0 0
  %3756 = vmatprep.subr.bf16.mxu0 0
  %3757 = vmatpush2.bf16.xpose.msra.mxu0 0
  %3758 = vmatprep.subr.bf16.mxu0 0
  %3759 = vmatpush2.bf16.xpose.msra.mxu0 0
  %3760 = vmatprep.subr.bf16.mxu0 0
  %3761 = vmatpush2.bf16.xpose.msra.mxu0 0
  %3762 = vmatprep.subr.bf16.mxu0 0
  %3763 = vmatpush2.bf16.xpose.msra.mxu0 0
  %3764 = vmatprep.subr.bf16.mxu0 0
  %3765 = vmatpush2.bf16.xpose.msra.mxu0 0
  %3766 = vmatprep.subr.bf16.mxu0 0
  %3767 = vmatpush2.bf16.xpose.msra.mxu0 0
  %3768 = vmatprep.mubr.bf16.mxu0 0
  %3769 = vmatmul.mubr.bf16.gmra.mxu0 %v3731
  %v3770 = vpop.f32.mrf.mxu0
  %v3771 = vadd.f32 0.0, %v3770
  %v3772 = vpop.f32.mrf.mxu0
  %v3773 = vpop.f32.mrf.mxu0
  %v3774 = vpop.f32.mrf.mxu0
  %3775 = vdwg.mxu0
  %v3777 = vsel %vm1129, %v3637, 0
  %v3780 = vsel %vm1129, %v3219, 0
  %3782 = vmatprep.subr.bf16.mxu0 0
  %3783 = vmatpush1.bf16.xpose.msra.mxu0 0
  %3784 = vmatprep.subr.bf16.mxu0 0
  %3785 = vmatpush1.bf16.xpose.msra.mxu0 0
  %3786 = vmatprep.subr.bf16.mxu0 0
  %3787 = vmatpush1.bf16.xpose.msra.mxu0 0
  %3788 = vmatprep.subr.bf16.mxu0 0
  %3789 = vmatpush1.bf16.xpose.msra.mxu0 0
  %3790 = vmatprep.subr.bf16.mxu0 0
  %3791 = vmatpush1.bf16.xpose.msra.mxu0 0
  %3792 = vmatprep.subr.bf16.mxu0 0
  %3793 = vmatpush1.bf16.xpose.msra.mxu0 0
  %3794 = vmatprep.subr.bf16.mxu0 0
  %3795 = vmatpush1.bf16.xpose.msra.mxu0 0
  %3796 = vmatprep.subr.bf16.mxu0 0
  %3797 = vmatpush1.bf16.xpose.msra.mxu0 %v3780
  %3798 = vmatprep.subr.bf16.mxu0 0
  %3799 = vmatpush2.bf16.xpose.msra.mxu0 0
  %3800 = vmatprep.subr.bf16.mxu0 0
  %3801 = vmatpush2.bf16.xpose.msra.mxu0 0
  %3802 = vmatprep.subr.bf16.mxu0 0
  %3803 = vmatpush2.bf16.xpose.msra.mxu0 0
  %3804 = vmatprep.subr.bf16.mxu0 0
  %3805 = vmatpush2.bf16.xpose.msra.mxu0 0
  %3806 = vmatprep.subr.bf16.mxu0 0
  %3807 = vmatpush2.bf16.xpose.msra.mxu0 0
  %3808 = vmatprep.subr.bf16.mxu0 0
  %3809 = vmatpush2.bf16.xpose.msra.mxu0 0
  %3810 = vmatprep.subr.bf16.mxu0 0
  %3811 = vmatpush2.bf16.xpose.msra.mxu0 0
  %3812 = vmatprep.subr.bf16.mxu0 0
  %3813 = vmatpush2.bf16.xpose.msra.mxu0 0
  %3814 = vmatprep.mubr.bf16.mxu0 0
  %3815 = vmatmul.mubr.bf16.gmra.mxu0 %v3777
  %v3816 = vpop.f32.mrf.mxu0
  %v3817 = vadd.f32 0.0, %v3816
  %v3818 = vpop.f32.mrf.mxu0
  %v3819 = vpop.f32.mrf.mxu0
  %v3820 = vpop.f32.mrf.mxu0
  %3821 = vdwg.mxu0
  %3822 = vxpose.xlu0.b32.start [1/16] %v3679, 128
  %3823 = vxpose.xlu0.b32.cont [2/16] 0.0, 128
  %3824 = vxpose.xlu0.b32.cont [3/16] 0.0, 128
  %3825 = vxpose.xlu0.b32.cont [4/16] 0.0, 128
  %3826 = vxpose.xlu0.b32.cont [5/16] 0.0, 128
  %3827 = vxpose.xlu0.b32.cont [6/16] 0.0, 128
  %3828 = vxpose.xlu0.b32.cont [7/16] 0.0, 128
  %3829 = vxpose.xlu0.b32.cont [8/16] 0.0, 128
  %3830 = vxpose.xlu0.b32.cont [9/16] 0.0, 128
  %3831 = vxpose.xlu0.b32.cont [10/16] 0.0, 128
  %3832 = vxpose.xlu0.b32.cont [11/16] 0.0, 128
  %3833 = vxpose.xlu0.b32.cont [12/16] 0.0, 128
  %3834 = vxpose.xlu0.b32.cont [13/16] 0.0, 128
  %3835 = vxpose.xlu0.b32.cont [14/16] 0.0, 128
  %3836 = vxpose.xlu0.b32.cont [15/16] 0.0, 128
  %3837 = vxpose.xlu0.b32.end [16/16] 0.0, 128
  %v3838 = vpop.trf.xlu0
  %v3839 = vpop.trf.xlu0
  %v3840 = vpop.trf.xlu0
  %v3841 = vpop.trf.xlu0
  %v3842 = vpop.trf.xlu0
  %v3843 = vpop.trf.xlu0
  %v3844 = vpop.trf.xlu0
  %v3845 = vpop.trf.xlu0
  %v3846 = vpop.trf.xlu0
  %v3847 = vpop.trf.xlu0
  %v3848 = vpop.trf.xlu0
  %v3849 = vpop.trf.xlu0
  %v3850 = vpop.trf.xlu0
  %v3851 = vpop.trf.xlu0
  %v3852 = vpop.trf.xlu0
  %v3853 = vpop.trf.xlu0
  %3854 = vxpose.xlu0.b32.start [1/16] %v3725, 128
  %3855 = vxpose.xlu0.b32.cont [2/16] 0.0, 128
  %3856 = vxpose.xlu0.b32.cont [3/16] 0.0, 128
  %3857 = vxpose.xlu0.b32.cont [4/16] 0.0, 128
  %3858 = vxpose.xlu0.b32.cont [5/16] 0.0, 128
  %3859 = vxpose.xlu0.b32.cont [6/16] 0.0, 128
  %3860 = vxpose.xlu0.b32.cont [7/16] 0.0, 128
  %3861 = vxpose.xlu0.b32.cont [8/16] 0.0, 128
  %3862 = vxpose.xlu0.b32.cont [9/16] 0.0, 128
  %3863 = vxpose.xlu0.b32.cont [10/16] 0.0, 128
  %3864 = vxpose.xlu0.b32.cont [11/16] 0.0, 128
  %3865 = vxpose.xlu0.b32.cont [12/16] 0.0, 128
  %3866 = vxpose.xlu0.b32.cont [13/16] 0.0, 128
  %3867 = vxpose.xlu0.b32.cont [14/16] 0.0, 128
  %3868 = vxpose.xlu0.b32.cont [15/16] 0.0, 128
  %3869 = vxpose.xlu0.b32.end [16/16] 0.0, 128
  %v3870 = vpop.trf.xlu0
  %v3871 = vpop.trf.xlu0
  %v3872 = vpop.trf.xlu0
  %v3873 = vpop.trf.xlu0
  %v3874 = vpop.trf.xlu0
  %v3875 = vpop.trf.xlu0
  %v3876 = vpop.trf.xlu0
  %v3877 = vpop.trf.xlu0
  %v3878 = vpop.trf.xlu0
  %v3879 = vpop.trf.xlu0
  %v3880 = vpop.trf.xlu0
  %v3881 = vpop.trf.xlu0
  %v3882 = vpop.trf.xlu0
  %v3883 = vpop.trf.xlu0
  %v3884 = vpop.trf.xlu0
  %v3885 = vpop.trf.xlu0
  %3886 = vxpose.xlu0.b32.start [1/16] %v3771, 128
  %3887 = vxpose.xlu0.b32.cont [2/16] 0.0, 128
  %3888 = vxpose.xlu0.b32.cont [3/16] 0.0, 128
  %3889 = vxpose.xlu0.b32.cont [4/16] 0.0, 128
  %3890 = vxpose.xlu0.b32.cont [5/16] 0.0, 128
  %3891 = vxpose.xlu0.b32.cont [6/16] 0.0, 128
  %3892 = vxpose.xlu0.b32.cont [7/16] 0.0, 128
  %3893 = vxpose.xlu0.b32.cont [8/16] 0.0, 128
  %3894 = vxpose.xlu0.b32.cont [9/16] 0.0, 128
  %3895 = vxpose.xlu0.b32.cont [10/16] 0.0, 128
  %3896 = vxpose.xlu0.b32.cont [11/16] 0.0, 128
  %3897 = vxpose.xlu0.b32.cont [12/16] 0.0, 128
  %3898 = vxpose.xlu0.b32.cont [13/16] 0.0, 128
  %3899 = vxpose.xlu0.b32.cont [14/16] 0.0, 128
  %3900 = vxpose.xlu0.b32.cont [15/16] 0.0, 128
  %3901 = vxpose.xlu0.b32.end [16/16] 0.0, 128
  %v3902 = vpop.trf.xlu0
  %v3903 = vpop.trf.xlu0
  %v3904 = vpop.trf.xlu0
  %v3905 = vpop.trf.xlu0
  %v3906 = vpop.trf.xlu0
  %v3907 = vpop.trf.xlu0
  %v3908 = vpop.trf.xlu0
  %v3909 = vpop.trf.xlu0
  %v3910 = vpop.trf.xlu0
  %v3911 = vpop.trf.xlu0
  %v3912 = vpop.trf.xlu0
  %v3913 = vpop.trf.xlu0
  %v3914 = vpop.trf.xlu0
  %v3915 = vpop.trf.xlu0
  %v3916 = vpop.trf.xlu0
  %v3917 = vpop.trf.xlu0
  %3918 = vxpose.xlu0.b32.start [1/16] %v3817, 128
  %3919 = vxpose.xlu0.b32.cont [2/16] 0.0, 128
  %3920 = vxpose.xlu0.b32.cont [3/16] 0.0, 128
  %3921 = vxpose.xlu0.b32.cont [4/16] 0.0, 128
  %3922 = vxpose.xlu0.b32.cont [5/16] 0.0, 128
  %3923 = vxpose.xlu0.b32.cont [6/16] 0.0, 128
  %3924 = vxpose.xlu0.b32.cont [7/16] 0.0, 128
  %3925 = vxpose.xlu0.b32.cont [8/16] 0.0, 128
  %3926 = vxpose.xlu0.b32.cont [9/16] 0.0, 128
  %3927 = vxpose.xlu0.b32.cont [10/16] 0.0, 128
  %3928 = vxpose.xlu0.b32.cont [11/16] 0.0, 128
  %3929 = vxpose.xlu0.b32.cont [12/16] 0.0, 128
  %3930 = vxpose.xlu0.b32.cont [13/16] 0.0, 128
  %3931 = vxpose.xlu0.b32.cont [14/16] 0.0, 128
  %3932 = vxpose.xlu0.b32.cont [15/16] 0.0, 128
  %3933 = vxpose.xlu0.b32.end [16/16] 0.0, 128
  %v3934 = vpop.trf.xlu0
  %v3935 = vpop.trf.xlu0
  %v3936 = vpop.trf.xlu0
  %v3937 = vpop.trf.xlu0
  %v3938 = vpop.trf.xlu0
  %v3939 = vpop.trf.xlu0
  %v3940 = vpop.trf.xlu0
  %v3941 = vpop.trf.xlu0
  %v3942 = vpop.trf.xlu0
  %v3943 = vpop.trf.xlu0
  %v3944 = vpop.trf.xlu0
  %v3945 = vpop.trf.xlu0
  %v3946 = vpop.trf.xlu0
  %v3947 = vpop.trf.xlu0
  %v3948 = vpop.trf.xlu0
  %v3949 = vpop.trf.xlu0
  %v3950 = vcombine.low %v3838, %v3902
  %v3951 = vcombine.high %v3838, %v3902
  %v3953 = vunpack.c.l.s4 1983009808
  %v3954 = vunpack.c.0.s8 %v3953
  %v3955 = vlaneseq
  %v3956 = vshrl.u32 %v3955, 7
  %v3957 = vsub.s32 %v3954, %v3956
  %v3958 = vrot.slane %v3950, %v3957
  %v3960 = vunpack.c.l.s4 1983009808
  %v3961 = vunpack.c.0.s8 %v3960
  %v3962 = vlaneseq
  %v3963 = vshrl.u32 %v3962, 7
  %v3964 = vsub.s32 %v3961, %v3963
  %v3965 = vrot.slane %v3951, %v3964
  %v3966 = vcombine.low %v3870, %v3934
  %v3967 = vcombine.high %v3870, %v3934
  %v3969 = vunpack.c.l.s4 1983009808
  %v3970 = vunpack.c.0.s8 %v3969
  %v3971 = vlaneseq
  %v3972 = vshrl.u32 %v3971, 7
  %v3973 = vsub.s32 %v3970, %v3972
  %v3974 = vrot.slane %v3966, %v3973
  %v3976 = vunpack.c.l.s4 1983009808
  %v3977 = vunpack.c.0.s8 %v3976
  %v3978 = vlaneseq
  %v3979 = vshrl.u32 %v3978, 7
  %v3980 = vsub.s32 %v3977, %v3979
  %v3981 = vrot.slane %v3967, %v3980
  %v3982 = vcombine.low %v3958, %v3974
  %v3983 = vcombine.high %v3958, %v3974
  %v3985 = vunpack.c.l.s4 1934713408
  %v3986 = vunpack.c.0.s8 %v3985
  %v3987 = vlaneseq
  %v3988 = vshrl.u32 %v3987, 7
  %v3989 = vsub.s32 %v3986, %v3988
  %v3990 = vrot.slane %v3982, %v3989
  %v3992 = vunpack.c.l.s4 1934713408
  %v3993 = vunpack.c.0.s8 %v3992
  %v3994 = vlaneseq
  %v3995 = vshrl.u32 %v3994, 7
  %v3996 = vsub.s32 %v3993, %v3995
  %v3997 = vrot.slane %v3983, %v3996
  %v3998 = vcombine.low %v3965, %v3981
  %v3999 = vcombine.high %v3965, %v3981
  %v4001 = vunpack.c.l.s4 1934713408
  %v4002 = vunpack.c.0.s8 %v4001
  %v4003 = vlaneseq
  %v4004 = vshrl.u32 %v4003, 7
  %v4005 = vsub.s32 %v4002, %v4004
  %v4006 = vrot.slane %v3998, %v4005
  %v4008 = vunpack.c.l.s4 1934713408
  %v4009 = vunpack.c.0.s8 %v4008
  %v4010 = vlaneseq
  %v4011 = vshrl.u32 %v4010, 7
  %v4012 = vsub.s32 %v4009, %v4011
  %v4013 = vrot.slane %v3999, %v4012
  %v4014 = vcombine.high %v3990, 0.0
  %v4015 = vcombine.high %v3997, 0.0
  %v4016 = vcombine.high %v4006, 0.0
  %v4017 = vcombine.high %v4013, 0.0
  %v4018 = vcombine.low %v3990, %v3997
  %v4020 = vunpack.c.l.s4 1983009808
  %v4021 = vunpack.c.0.s8 %v4020
  %v4022 = vlaneseq
  %v4023 = vshrl.u32 %v4022, 7
  %v4024 = vsub.s32 %v4021, %v4023
  %v4025 = vrot.slane %v4018, %v4024
  %v4026 = vcombine.low %v4014, %v4015
  %v4028 = vunpack.c.l.s4 1983009808
  %v4029 = vunpack.c.0.s8 %v4028
  %v4030 = vlaneseq
  %v4031 = vshrl.u32 %v4030, 7
  %v4032 = vsub.s32 %v4029, %v4031
  %v4033 = vrot.slane %v4026, %v4032
  %v4034 = vcombine.low %v4006, %v4013
  %v4036 = vunpack.c.l.s4 1983009808
  %v4037 = vunpack.c.0.s8 %v4036
  %v4038 = vlaneseq
  %v4039 = vshrl.u32 %v4038, 7
  %v4040 = vsub.s32 %v4037, %v4039
  %v4041 = vrot.slane %v4034, %v4040
  %v4042 = vcombine.low %v4016, %v4017
  %v4044 = vunpack.c.l.s4 1983009808
  %v4045 = vunpack.c.0.s8 %v4044
  %v4046 = vlaneseq
  %v4047 = vshrl.u32 %v4046, 7
  %v4048 = vsub.s32 %v4045, %v4047
  %v4049 = vrot.slane %v4042, %v4048
  %v4050 = vcombine.low %v4025, %v4033
  %v4051 = vcombine.high %v4025, %v4033
  %v4053 = vunpack.c.l.s4 1934713408
  %v4054 = vunpack.c.0.s8 %v4053
  %v4055 = vlaneseq
  %v4056 = vshrl.u32 %v4055, 7
  %v4057 = vsub.s32 %v4054, %v4056
  %v4058 = vrot.slane %v4050, %v4057
  %v4060 = vunpack.c.l.s4 1934713408
  %v4061 = vunpack.c.0.s8 %v4060
  %v4062 = vlaneseq
  %v4063 = vshrl.u32 %v4062, 7
  %v4064 = vsub.s32 %v4061, %v4063
  %v4065 = vrot.slane %v4051, %v4064
  %v4066 = vcombine.low %v4041, %v4049
  %v4067 = vcombine.high %v4041, %v4049
  %v4069 = vunpack.c.l.s4 1934713408
  %v4070 = vunpack.c.0.s8 %v4069
  %v4071 = vlaneseq
  %v4072 = vshrl.u32 %v4071, 7
  %v4073 = vsub.s32 %v4070, %v4072
  %v4074 = vrot.slane %v4066, %v4073
  %v4076 = vunpack.c.l.s4 1934713408
  %v4077 = vunpack.c.0.s8 %v4076
  %v4078 = vlaneseq
  %v4079 = vshrl.u32 %v4078, 7
  %v4080 = vsub.s32 %v4077, %v4079
  %v4081 = vrot.slane %v4067, %v4080
  %v4082 = vcombine.low %v4058, %v4074
  %v4083 = vcombine.high %v4058, %v4074
  %v4084 = vcombine.low %v4065, %v4081
  %v4085 = vcombine.high %v4065, %v4081
  %4087 = vrot.lane.b32.xlu0 %v4083, 8
  %v4088 = vpop.permute.xlu0 %4087
  %4091 = vrot.lane.b32.xlu0 %v4084, 16
  %v4092 = vpop.permute.xlu0 %4091
  %4095 = vrot.lane.b32.xlu0 %v4085, 24
  %v4096 = vpop.permute.xlu0 %4095
  %v4098 = vsel %vm1129, %v4082, %v4088
  %v4099 = vsel %vm2242, %v4098, %v4092
  %v4100 = vsel %vm2244, %v4099, %v4096
  %v4101 = vpack.c.bf16 %v4100, %v2245
  %s4102 = scalar_lea.vmem %s5, 48
  %v4103 = vld [vmem:[%s4102] sm:$0xf]
  %v4104 = vld [vmem:[%s4102 + $0x4] sm:$0xf]
  %v4105 = vld [vmem:[%s4102 + $0x8] sm:$0xf]
  %v4106 = vld [vmem:[%s4102 + $0xc] sm:$0xf]
  %v4107 = vld [vmem:[%s4 + $0x7] sm:$0x1]
  %v4108 = vlaneseq
  %v4109 = vshrl.u32 %v4108, 7
  %v4110 = vsub.s32 0, %v4109
  %v4111 = vrot.slane %v4107, %v4110
  %v4116 = vunpack.c.l.b16 %v4103
  %v4117 = vunpack.c.l.b16 %v4104
  %v4118 = vunpack.c.l.b16 %v4105
  %v4119 = vunpack.c.l.b16 %v4106
  %v4120 = vpack.c.b16 %v4117, %v4116
  %v4121 = vpack.c.b16 %v4119, %v4118
  %v4125 = vsel %vm151, %v4101, 0
  %4127 = vmatprep.subr.bf16.mxu0 0
  %4128 = vmatpush1.bf16.msra.mxu0 0
  %4129 = vmatprep.subr.bf16.mxu0 0
  %4130 = vmatpush1.bf16.msra.mxu0 0
  %4131 = vmatprep.subr.bf16.mxu0 0
  %4132 = vmatpush1.bf16.msra.mxu0 0
  %4133 = vmatprep.subr.bf16.mxu0 0
  %4134 = vmatpush1.bf16.msra.mxu0 0
  %4135 = vmatprep.subr.bf16.mxu0 0
  %4136 = vmatpush1.bf16.msra.mxu0 0
  %4137 = vmatprep.subr.bf16.mxu0 0
  %4138 = vmatpush1.bf16.msra.mxu0 0
  %4139 = vmatprep.subr.bf16.mxu0 0
  %4140 = vmatpush1.bf16.msra.mxu0 %v4121
  %4141 = vmatprep.subr.bf16.mxu0 0
  %4142 = vmatpush1.bf16.msra.mxu0 %v4120
  %4143 = vmatprep.subr.bf16.mxu0 0
  %4144 = vmatpush2.bf16.msra.mxu0 0
  %4145 = vmatprep.subr.bf16.mxu0 0
  %4146 = vmatpush2.bf16.msra.mxu0 0
  %4147 = vmatprep.subr.bf16.mxu0 0
  %4148 = vmatpush2.bf16.msra.mxu0 0
  %4149 = vmatprep.subr.bf16.mxu0 0
  %4150 = vmatpush2.bf16.msra.mxu0 0
  %4151 = vmatprep.subr.bf16.mxu0 0
  %4152 = vmatpush2.bf16.msra.mxu0 0
  %4153 = vmatprep.subr.bf16.mxu0 0
  %4154 = vmatpush2.bf16.msra.mxu0 0
  %4155 = vmatprep.subr.bf16.mxu0 0
  %4156 = vmatpush2.bf16.msra.mxu0 0
  %4157 = vmatprep.subr.bf16.mxu0 0
  %4158 = vmatpush2.bf16.msra.mxu0 0
  %4159 = vmatprep.mubr.bf16.mxu0 0
  %4160 = vmatmul.mubr.bf16.gmra.mxu0 %v4125
  %v4161 = vpop.f32.mrf.mxu0
  %v4162 = vadd.f32 %v4111, %v4161
  %v4163 = vpop.f32.mrf.mxu0
  %v4164 = vpop.f32.mrf.mxu0
  %v4165 = vadd.f32 %v4111, %v4164
  %v4166 = vpop.f32.mrf.mxu0
  %4167 = vdwg.mxu0
  %v4168 = vadd.f32 %v189, %v4162
  %v4169 = vadd.f32 %v190, %v4165
  %v4170 = vld [vmem:[%s4 + $0x8] sm:$0x1]
  %v4171 = vld [vmem:[%s4 + $0x9] sm:$0x1]
  %v4172 = vsel %vm151, %v4168, 0.0
  %4173 = vadd.xlane.f32.xlu0 %v4172
  %v4174 = vpop.xlane.xlu0 %4173
  %v4175 = vsel %vm151, %v4169, 0.0
  %4176 = vadd.xlane.f32.xlu0 %v4175
  %v4177 = vpop.xlane.xlu0 %4176
  %v4178 = vmul.f32 %v4174, %v158
  %v4179 = vmul.f32 %v4177, %v158
  %v4180 = vsub.f32 %v4168, %v4178
  %v4181 = vsub.f32 %v4169, %v4179
  %v4182 = vmul.f32 %v4180, %v4180
  %v4183 = vmul.f32 %v4181, %v4181
  %v4184 = vsel %vm151, %v4182, 0.0
  %4185 = vadd.xlane.f32.xlu0 %v4184
  %v4186 = vpop.xlane.xlu0 %4185
  %v4187 = vsel %vm151, %v4183, 0.0
  %4188 = vadd.xlane.f32.xlu0 %v4187
  %v4189 = vpop.xlane.xlu0 %4188
  %v4190 = vmul.f32 %v4186, %v158
  %v4191 = vmul.f32 %v4189, %v158
  %v4192 = vadd.f32 %v4190, 1e-12
  %v4193 = vadd.f32 %v4191, 1e-12
  %v4194 = vrsqrt.pop %v4192
  %v4195 = vrsqrt.pop %v4193
  %v4196 = vmul.f32 %v4180, %v4194
  %v4197 = vmul.f32 %v4181, %v4195
  %v4198 = vlaneseq
  %v4199 = vshrl.u32 %v4198, 7
  %v4200 = vsub.s32 0, %v4199
  %v4201 = vrot.slane %v4170, %v4200
  %v4202 = vmul.f32 %v4196, %v4201
  %v4203 = vmul.f32 %v4197, %v4201
  %v4204 = vlaneseq
  %v4205 = vshrl.u32 %v4204, 7
  %v4206 = vsub.s32 0, %v4205
  %v4207 = vrot.slane %v4171, %v4206
  %v4208 = vadd.f32 %v4202, %v4207
  %v4209 = vadd.f32 %v4203, %v4207
  %v4210 = vpack.c.bf16 %v4209, %v4208
  %v4211 = vld [vmem:[%s6] sm:$0xf]
  %v4212 = vld [vmem:[%s6 + $0x4] sm:$0xf]
  %v4213 = vld [vmem:[%s6 + $0x8] sm:$0xf]
  %v4214 = vld [vmem:[%s6 + $0xc] sm:$0xf]
  %v4215 = vld [vmem:[%s4 + $0xa] sm:$0x1]
  %v4216 = vlaneseq
  %v4217 = vshrl.u32 %v4216, 7
  %v4218 = vsub.s32 0, %v4217
  %v4219 = vrot.slane %v4215, %v4218
  %v4224 = vunpack.c.l.b16 %v4211
  %v4225 = vunpack.c.l.b16 %v4212
  %v4226 = vunpack.c.l.b16 %v4213
  %v4227 = vunpack.c.l.b16 %v4214
  %v4228 = vpack.c.b16 %v4225, %v4224
  %v4229 = vpack.c.b16 %v4227, %v4226
  %v4233 = vsel %vm151, %v4210, 0
  %4235 = vmatprep.subr.bf16.mxu0 0
  %4236 = vmatpush1.bf16.msra.mxu0 0
  %4237 = vmatprep.subr.bf16.mxu0 0
  %4238 = vmatpush1.bf16.msra.mxu0 0
  %4239 = vmatprep.subr.bf16.mxu0 0
  %4240 = vmatpush1.bf16.msra.mxu0 0
  %4241 = vmatprep.subr.bf16.mxu0 0
  %4242 = vmatpush1.bf16.msra.mxu0 0
  %4243 = vmatprep.subr.bf16.mxu0 0
  %4244 = vmatpush1.bf16.msra.mxu0 0
  %4245 = vmatprep.subr.bf16.mxu0 0
  %4246 = vmatpush1.bf16.msra.mxu0 0
  %4247 = vmatprep.subr.bf16.mxu0 0
  %4248 = vmatpush1.bf16.msra.mxu0 %v4229
  %4249 = vmatprep.subr.bf16.mxu0 0
  %4250 = vmatpush1.bf16.msra.mxu0 %v4228
  %4251 = vmatprep.subr.bf16.mxu0 0
  %4252 = vmatpush2.bf16.msra.mxu0 0
  %4253 = vmatprep.subr.bf16.mxu0 0
  %4254 = vmatpush2.bf16.msra.mxu0 0
  %4255 = vmatprep.subr.bf16.mxu0 0
  %4256 = vmatpush2.bf16.msra.mxu0 0
  %4257 = vmatprep.subr.bf16.mxu0 0
  %4258 = vmatpush2.bf16.msra.mxu0 0
  %4259 = vmatprep.subr.bf16.mxu0 0
  %4260 = vmatpush2.bf16.msra.mxu0 0
  %4261 = vmatprep.subr.bf16.mxu0 0
  %4262 = vmatpush2.bf16.msra.mxu0 0
  %4263 = vmatprep.subr.bf16.mxu0 0
  %4264 = vmatpush2.bf16.msra.mxu0 0
  %4265 = vmatprep.subr.bf16.mxu0 0
  %4266 = vmatpush2.bf16.msra.mxu0 0
  %4267 = vmatprep.mubr.bf16.mxu0 0
  %4268 = vmatmul.mubr.bf16.gmra.mxu0 %v4233
  %v4269 = vpop.f32.mrf.mxu0
  %v4270 = vadd.f32 %v4219, %v4269
  %v4271 = vpop.f32.mrf.mxu0
  %v4272 = vpop.f32.mrf.mxu0
  %v4273 = vadd.f32 %v4219, %v4272
  %v4274 = vpop.f32.mrf.mxu0
  %4275 = vdwg.mxu0
  %v4276 = vmul.f32 %v4270, %v4270
  %v4277 = vmul.f32 %v4273, %v4273
  %v4278 = vmul.f32 %v4270, %v4276
  %v4279 = vmul.f32 %v4273, %v4277
  %v4280 = vmul.f32 %v4278, 0.044715
  %v4281 = vmul.f32 %v4279, 0.044715
  %v4282 = vadd.f32 %v4270, %v4280
  %v4283 = vadd.f32 %v4273, %v4281
  %v4284 = vmul.f32 %v4282, 0.7978846
  %v4285 = vmul.f32 %v4283, 0.7978846
  %v4286 = vtanh.pop %v4284
  %v4287 = vtanh.pop %v4285
  %v4288 = vadd.f32 %v4286, 1.0
  %v4289 = vadd.f32 %v4287, 1.0
  %v4290 = vmul.f32 %v4288, 0.5
  %v4291 = vmul.f32 %v4289, 0.5
  %v4292 = vmul.f32 %v4270, %v4290
  %v4293 = vmul.f32 %v4273, %v4291
  %v4294 = vpack.c.bf16 %v4293, %v4292
  %v4295 = vld [vmem:[%s7] sm:$0xf]
  %v4296 = vld [vmem:[%s7 + $0x4] sm:$0xf]
  %v4297 = vld [vmem:[%s7 + $0x8] sm:$0xf]
  %v4298 = vld [vmem:[%s7 + $0xc] sm:$0xf]
  %v4299 = vld [vmem:[%s7 + $0x10] sm:$0xf]
  %v4300 = vld [vmem:[%s7 + $0x14] sm:$0xf]
  %v4301 = vld [vmem:[%s7 + $0x18] sm:$0xf]
  %v4302 = vld [vmem:[%s7 + $0x1c] sm:$0xf]
  %v4303 = vld [vmem:[%s4 + $0xb] sm:$0x1]
  %v4304 = vlaneseq
  %v4305 = vshrl.u32 %v4304, 7
  %v4306 = vsub.s32 0, %v4305
  %v4307 = vrot.slane %v4303, %v4306
  %v4316 = vunpack.c.l.b16 %v4295
  %v4317 = vunpack.c.l.b16 %v4296
  %v4318 = vunpack.c.l.b16 %v4297
  %v4319 = vunpack.c.l.b16 %v4298
  %v4320 = vunpack.c.l.b16 %v4299
  %v4321 = vunpack.c.l.b16 %v4300
  %v4322 = vunpack.c.l.b16 %v4301
  %v4323 = vunpack.c.l.b16 %v4302
  %v4324 = vpack.c.b16 %v4317, %v4316
  %v4325 = vpack.c.b16 %v4319, %v4318
  %v4326 = vpack.c.b16 %v4321, %v4320
  %v4327 = vpack.c.b16 %v4323, %v4322
  %vm4332 = vcmask 523264
  %v4334 = vsel %vm4332, %v4294, 0
  %4336 = vmatprep.subr.bf16.mxu0 0
  %4337 = vmatpush1.bf16.msra.mxu0 0
  %4338 = vmatprep.subr.bf16.mxu0 0
  %4339 = vmatpush1.bf16.msra.mxu0 0
  %4340 = vmatprep.subr.bf16.mxu0 0
  %4341 = vmatpush1.bf16.msra.mxu0 0
  %4342 = vmatprep.subr.bf16.mxu0 0
  %4343 = vmatpush1.bf16.msra.mxu0 0
  %4344 = vmatprep.subr.bf16.mxu0 0
  %4345 = vmatpush1.bf16.msra.mxu0 %v4327
  %4346 = vmatprep.subr.bf16.mxu0 0
  %4347 = vmatpush1.bf16.msra.mxu0 %v4326
  %4348 = vmatprep.subr.bf16.mxu0 0
  %4349 = vmatpush1.bf16.msra.mxu0 %v4325
  %4350 = vmatprep.subr.bf16.mxu0 0
  %4351 = vmatpush1.bf16.msra.mxu0 %v4324
  %4352 = vmatprep.subr.bf16.mxu0 0
  %4353 = vmatpush2.bf16.msra.mxu0 0
  %4354 = vmatprep.subr.bf16.mxu0 0
  %4355 = vmatpush2.bf16.msra.mxu0 0
  %4356 = vmatprep.subr.bf16.mxu0 0
  %4357 = vmatpush2.bf16.msra.mxu0 0
  %4358 = vmatprep.subr.bf16.mxu0 0
  %4359 = vmatpush2.bf16.msra.mxu0 0
  %4360 = vmatprep.subr.bf16.mxu0 0
  %4361 = vmatpush2.bf16.msra.mxu0 0
  %4362 = vmatprep.subr.bf16.mxu0 0
  %4363 = vmatpush2.bf16.msra.mxu0 0
  %4364 = vmatprep.subr.bf16.mxu0 0
  %4365 = vmatpush2.bf16.msra.mxu0 0
  %4366 = vmatprep.subr.bf16.mxu0 0
  %4367 = vmatpush2.bf16.msra.mxu0 0
  %4368 = vmatprep.mubr.bf16.mxu0 0
  %4369 = vmatmul.mubr.bf16.gmra.mxu0 %v4334
  %v4370 = vpop.f32.mrf.mxu0
  %v4371 = vadd.f32 %v4307, %v4370
  %v4372 = vpop.f32.mrf.mxu0
  %v4373 = vpop.f32.mrf.mxu0
  %v4374 = vadd.f32 %v4307, %v4373
  %v4375 = vpop.f32.mrf.mxu0
  %4376 = vdwg.mxu0
  %v4377 = vadd.f32 %v4208, %v4371
  %v4378 = vadd.f32 %v4209, %v4374
  %v4379 = vld [vmem:[%s4 + $0xc] sm:$0x1]
  %v4380 = vld [vmem:[%s4 + $0xd] sm:$0x1]
  %v4381 = vsel %vm151, %v4377, 0.0
  %4382 = vadd.xlane.f32.xlu0 %v4381
  %v4383 = vpop.xlane.xlu0 %4382
  %v4384 = vsel %vm151, %v4378, 0.0
  %4385 = vadd.xlane.f32.xlu0 %v4384
  %v4386 = vpop.xlane.xlu0 %4385
  %v4387 = vmul.f32 %v4383, %v158
  %v4388 = vmul.f32 %v4386, %v158
  %v4389 = vsub.f32 %v4377, %v4387
  %v4390 = vsub.f32 %v4378, %v4388
  %v4391 = vmul.f32 %v4389, %v4389
  %v4392 = vmul.f32 %v4390, %v4390
  %v4393 = vsel %vm151, %v4391, 0.0
  %4394 = vadd.xlane.f32.xlu0 %v4393
  %v4395 = vpop.xlane.xlu0 %4394
  %v4396 = vsel %vm151, %v4392, 0.0
  %4397 = vadd.xlane.f32.xlu0 %v4396
  %v4398 = vpop.xlane.xlu0 %4397
  %v4399 = vmul.f32 %v4395, %v158
  %v4400 = vmul.f32 %v4398, %v158
  %v4401 = vadd.f32 %v4399, 1e-12
  %v4402 = vadd.f32 %v4400, 1e-12
  %v4403 = vrsqrt.pop %v4401
  %v4404 = vrsqrt.pop %v4402
  %v4405 = vmul.f32 %v4389, %v4403
  %v4406 = vmul.f32 %v4390, %v4404
  %v4407 = vlaneseq
  %v4408 = vshrl.u32 %v4407, 7
  %v4409 = vsub.s32 0, %v4408
  %v4410 = vrot.slane %v4379, %v4409
  %v4411 = vmul.f32 %v4405, %v4410
  %v4412 = vmul.f32 %v4406, %v4410
  %v4413 = vlaneseq
  %v4414 = vshrl.u32 %v4413, 7
  %v4415 = vsub.s32 0, %v4414
  %v4416 = vrot.slane %v4380, %v4415
  %v4417 = vadd.f32 %v4411, %v4416
  %v4418 = vadd.f32 %v4412, %v4416
  %v4419 = vpack.c.bf16 %v4418, %v4417
  %s4420 = scalar_lea.vmem %s5, 64
  %v4421 = vld [vmem:[%s4420] sm:$0xf]
  %v4422 = vld [vmem:[%s4420 + $0x4] sm:$0xf]
  %v4423 = vld [vmem:[%s4420 + $0x8] sm:$0xf]
  %v4424 = vld [vmem:[%s4420 + $0xc] sm:$0xf]
  %v4425 = vld [vmem:[%s4 + $0xe] sm:$0x1]
  %v4426 = vlaneseq
  %v4427 = vshrl.u32 %v4426, 7
  %v4428 = vsub.s32 0, %v4427
  %v4429 = vrot.slane %v4425, %v4428
  %v4434 = vunpack.c.l.b16 %v4421
  %v4435 = vunpack.c.l.b16 %v4422
  %v4436 = vunpack.c.l.b16 %v4423
  %v4437 = vunpack.c.l.b16 %v4424
  %v4438 = vpack.c.b16 %v4435, %v4434
  %v4439 = vpack.c.b16 %v4437, %v4436
  %v4443 = vsel %vm151, %v4419, 0
  %4445 = vmatprep.subr.bf16.mxu0 0
  %4446 = vmatpush1.bf16.msra.mxu0 0
  %4447 = vmatprep.subr.bf16.mxu0 0
  %4448 = vmatpush1.bf16.msra.mxu0 0
  %4449 = vmatprep.subr.bf16.mxu0 0
  %4450 = vmatpush1.bf16.msra.mxu0 0
  %4451 = vmatprep.subr.bf16.mxu0 0
  %4452 = vmatpush1.bf16.msra.mxu0 0
  %4453 = vmatprep.subr.bf16.mxu0 0
  %4454 = vmatpush1.bf16.msra.mxu0 0
  %4455 = vmatprep.subr.bf16.mxu0 0
  %4456 = vmatpush1.bf16.msra.mxu0 0
  %4457 = vmatprep.subr.bf16.mxu0 0
  %4458 = vmatpush1.bf16.msra.mxu0 %v4439
  %4459 = vmatprep.subr.bf16.mxu0 0
  %4460 = vmatpush1.bf16.msra.mxu0 %v4438
  %4461 = vmatprep.subr.bf16.mxu0 0
  %4462 = vmatpush2.bf16.msra.mxu0 0
  %4463 = vmatprep.subr.bf16.mxu0 0
  %4464 = vmatpush2.bf16.msra.mxu0 0
  %4465 = vmatprep.subr.bf16.mxu0 0
  %4466 = vmatpush2.bf16.msra.mxu0 0
  %4467 = vmatprep.subr.bf16.mxu0 0
  %4468 = vmatpush2.bf16.msra.mxu0 0
  %4469 = vmatprep.subr.bf16.mxu0 0
  %4470 = vmatpush2.bf16.msra.mxu0 0
  %4471 = vmatprep.subr.bf16.mxu0 0
  %4472 = vmatpush2.bf16.msra.mxu0 0
  %4473 = vmatprep.subr.bf16.mxu0 0
  %4474 = vmatpush2.bf16.msra.mxu0 0
  %4475 = vmatprep.subr.bf16.mxu0 0
  %4476 = vmatpush2.bf16.msra.mxu0 0
  %4477 = vmatprep.mubr.bf16.mxu0 0
  %4478 = vmatmul.mubr.bf16.gmra.mxu0 %v4443
  %v4479 = vpop.f32.mrf.mxu0
  %v4480 = vadd.f32 %v4429, %v4479
  %v4481 = vpop.f32.mrf.mxu0
  %v4482 = vpop.f32.mrf.mxu0
  %v4483 = vadd.f32 %v4429, %v4482
  %v4484 = vpop.f32.mrf.mxu0
  %4485 = vdwg.mxu0
  %s4486 = scalar_lea.vmem %s5, 80
  %v4487 = vld [vmem:[%s4486] sm:$0xf]
  %v4488 = vld [vmem:[%s4486 + $0x4] sm:$0xf]
  %v4489 = vld [vmem:[%s4486 + $0x8] sm:$0xf]
  %v4490 = vld [vmem:[%s4486 + $0xc] sm:$0xf]
  %v4491 = vld [vmem:[%s4 + $0xf] sm:$0x1]
  %v4492 = vlaneseq
  %v4493 = vshrl.u32 %v4492, 7
  %v4494 = vsub.s32 0, %v4493
  %v4495 = vrot.slane %v4491, %v4494
  %v4500 = vunpack.c.l.b16 %v4487
  %v4501 = vunpack.c.l.b16 %v4488
  %v4502 = vunpack.c.l.b16 %v4489
  %v4503 = vunpack.c.l.b16 %v4490
  %v4504 = vpack.c.b16 %v4501, %v4500
  %v4505 = vpack.c.b16 %v4503, %v4502
  %4508 = vmatprep.subr.bf16.mxu0 0
  %4509 = vmatpush1.bf16.msra.mxu0 0
  %4510 = vmatprep.subr.bf16.mxu0 0
  %4511 = vmatpush1.bf16.msra.mxu0 0
  %4512 = vmatprep.subr.bf16.mxu0 0
  %4513 = vmatpush1.bf16.msra.mxu0 0
  %4514 = vmatprep.subr.bf16.mxu0 0
  %4515 = vmatpush1.bf16.msra.mxu0 0
  %4516 = vmatprep.subr.bf16.mxu0 0
  %4517 = vmatpush1.bf16.msra.mxu0 0
  %4518 = vmatprep.subr.bf16.mxu0 0
  %4519 = vmatpush1.bf16.msra.mxu0 0
  %4520 = vmatprep.subr.bf16.mxu0 0
  %4521 = vmatpush1.bf16.msra.mxu0 %v4505
  %4522 = vmatprep.subr.bf16.mxu0 0
  %4523 = vmatpush1.bf16.msra.mxu0 %v4504
  %4524 = vmatprep.subr.bf16.mxu0 0
  %4525 = vmatpush2.bf16.msra.mxu0 0
  %4526 = vmatprep.subr.bf16.mxu0 0
  %4527 = vmatpush2.bf16.msra.mxu0 0
  %4528 = vmatprep.subr.bf16.mxu0 0
  %4529 = vmatpush2.bf16.msra.mxu0 0
  %4530 = vmatprep.subr.bf16.mxu0 0
  %4531 = vmatpush2.bf16.msra.mxu0 0
  %4532 = vmatprep.subr.bf16.mxu0 0
  %4533 = vmatpush2.bf16.msra.mxu0 0
  %4534 = vmatprep.subr.bf16.mxu0 0
  %4535 = vmatpush2.bf16.msra.mxu0 0
  %4536 = vmatprep.subr.bf16.mxu0 0
  %4537 = vmatpush2.bf16.msra.mxu0 0
  %4538 = vmatprep.subr.bf16.mxu0 0
  %4539 = vmatpush2.bf16.msra.mxu0 0
  %4540 = vmatprep.mubr.bf16.mxu0 0
  %4541 = vmatmul.mubr.bf16.gmra.mxu0 %v4443
  %v4542 = vpop.f32.mrf.mxu0
  %v4543 = vadd.f32 %v4495, %v4542
  %v4544 = vpop.f32.mrf.mxu0
  %v4545 = vpop.f32.mrf.mxu0
  %v4546 = vadd.f32 %v4495, %v4545
  %v4547 = vpop.f32.mrf.mxu0
  %4548 = vdwg.mxu0
  %s4549 = scalar_lea.vmem %s5, 96
  %v4550 = vld [vmem:[%s4549] sm:$0xf]
  %v4551 = vld [vmem:[%s4549 + $0x4] sm:$0xf]
  %v4552 = vld [vmem:[%s4549 + $0x8] sm:$0xf]
  %v4553 = vld [vmem:[%s4549 + $0xc] sm:$0xf]
  %v4554 = vld [vmem:[%s4 + $0x10] sm:$0x1]
  %v4555 = vlaneseq
  %v4556 = vshrl.u32 %v4555, 7
  %v4557 = vsub.s32 0, %v4556
  %v4558 = vrot.slane %v4554, %v4557
  %v4563 = vunpack.c.l.b16 %v4550
  %v4564 = vunpack.c.l.b16 %v4551
  %v4565 = vunpack.c.l.b16 %v4552
  %v4566 = vunpack.c.l.b16 %v4553
  %v4567 = vpack.c.b16 %v4564, %v4563
  %v4568 = vpack.c.b16 %v4566, %v4565
  %4571 = vmatprep.subr.bf16.mxu0 0
  %4572 = vmatpush1.bf16.msra.mxu0 0
  %4573 = vmatprep.subr.bf16.mxu0 0
  %4574 = vmatpush1.bf16.msra.mxu0 0
  %4575 = vmatprep.subr.bf16.mxu0 0
  %4576 = vmatpush1.bf16.msra.mxu0 0
  %4577 = vmatprep.subr.bf16.mxu0 0
  %4578 = vmatpush1.bf16.msra.mxu0 0
  %4579 = vmatprep.subr.bf16.mxu0 0
  %4580 = vmatpush1.bf16.msra.mxu0 0
  %4581 = vmatprep.subr.bf16.mxu0 0
  %4582 = vmatpush1.bf16.msra.mxu0 0
  %4583 = vmatprep.subr.bf16.mxu0 0
  %4584 = vmatpush1.bf16.msra.mxu0 %v4568
  %4585 = vmatprep.subr.bf16.mxu0 0
  %4586 = vmatpush1.bf16.msra.mxu0 %v4567
  %4587 = vmatprep.subr.bf16.mxu0 0
  %4588 = vmatpush2.bf16.msra.mxu0 0
  %4589 = vmatprep.subr.bf16.mxu0 0
  %4590 = vmatpush2.bf16.msra.mxu0 0
  %4591 = vmatprep.subr.bf16.mxu0 0
  %4592 = vmatpush2.bf16.msra.mxu0 0
  %4593 = vmatprep.subr.bf16.mxu0 0
  %4594 = vmatpush2.bf16.msra.mxu0 0
  %4595 = vmatprep.subr.bf16.mxu0 0
  %4596 = vmatpush2.bf16.msra.mxu0 0
  %4597 = vmatprep.subr.bf16.mxu0 0
  %4598 = vmatpush2.bf16.msra.mxu0 0
  %4599 = vmatprep.subr.bf16.mxu0 0
  %4600 = vmatpush2.bf16.msra.mxu0 0
  %4601 = vmatprep.subr.bf16.mxu0 0
  %4602 = vmatpush2.bf16.msra.mxu0 0
  %4603 = vmatprep.mubr.bf16.mxu0 0
  %4604 = vmatmul.mubr.bf16.gmra.mxu0 %v4443
  %v4605 = vpop.f32.mrf.mxu0
  %v4606 = vadd.f32 %v4558, %v4605
  %v4607 = vpop.f32.mrf.mxu0
  %v4608 = vpop.f32.mrf.mxu0
  %v4609 = vadd.f32 %v4558, %v4608
  %v4610 = vpop.f32.mrf.mxu0
  %4611 = vdwg.mxu0
  %4613 = vrot.lane.b32.xlu0 %v4480, 120
  %v4614 = vpop.permute.xlu0 %4613
  %4616 = vrot.lane.b32.xlu0 %v4480, 112
  %v4617 = vpop.permute.xlu0 %4616
  %4619 = vrot.lane.b32.xlu0 %v4480, 104
  %v4620 = vpop.permute.xlu0 %4619
  %v4622 = vcombine.low %v4480, %v4617
  %v4623 = vcombine.high %v4480, %v4617
  %v4625 = vunpack.c.l.s4 1983009808
  %v4626 = vunpack.c.0.s8 %v4625
  %v4627 = vlaneseq
  %v4628 = vshrl.u32 %v4627, 7
  %v4629 = vsub.s32 %v4626, %v4628
  %v4630 = vrot.slane %v4622, %v4629
  %v4632 = vunpack.c.l.s4 1983009808
  %v4633 = vunpack.c.0.s8 %v4632
  %v4634 = vlaneseq
  %v4635 = vshrl.u32 %v4634, 7
  %v4636 = vsub.s32 %v4633, %v4635
  %v4637 = vrot.slane %v4623, %v4636
  %v4638 = vcombine.low %v4614, %v4620
  %v4639 = vcombine.high %v4614, %v4620
  %v4641 = vunpack.c.l.s4 1983009808
  %v4642 = vunpack.c.0.s8 %v4641
  %v4643 = vlaneseq
  %v4644 = vshrl.u32 %v4643, 7
  %v4645 = vsub.s32 %v4642, %v4644
  %v4646 = vrot.slane %v4638, %v4645
  %v4648 = vunpack.c.l.s4 1983009808
  %v4649 = vunpack.c.0.s8 %v4648
  %v4650 = vlaneseq
  %v4651 = vshrl.u32 %v4650, 7
  %v4652 = vsub.s32 %v4649, %v4651
  %v4653 = vrot.slane %v4639, %v4652
  %v4654 = vcombine.low %v4630, %v4646
  %v4655 = vcombine.high %v4630, %v4646
  %v4657 = vunpack.c.l.s4 1934713408
  %v4658 = vunpack.c.0.s8 %v4657
  %v4659 = vlaneseq
  %v4660 = vshrl.u32 %v4659, 7
  %v4661 = vsub.s32 %v4658, %v4660
  %v4662 = vrot.slane %v4654, %v4661
  %v4664 = vunpack.c.l.s4 1934713408
  %v4665 = vunpack.c.0.s8 %v4664
  %v4666 = vlaneseq
  %v4667 = vshrl.u32 %v4666, 7
  %v4668 = vsub.s32 %v4665, %v4667
  %v4669 = vrot.slane %v4655, %v4668
  %v4670 = vcombine.low %v4637, %v4653
  %v4671 = vcombine.high %v4637, %v4653
  %v4673 = vunpack.c.l.s4 1934713408
  %v4674 = vunpack.c.0.s8 %v4673
  %v4675 = vlaneseq
  %v4676 = vshrl.u32 %v4675, 7
  %v4677 = vsub.s32 %v4674, %v4676
  %v4678 = vrot.slane %v4670, %v4677
  %v4680 = vunpack.c.l.s4 1934713408
  %v4681 = vunpack.c.0.s8 %v4680
  %v4682 = vlaneseq
  %v4683 = vshrl.u32 %v4682, 7
  %v4684 = vsub.s32 %v4681, %v4683
  %v4685 = vrot.slane %v4671, %v4684
  %v4686 = vcombine.high %v4662, 0.0
  %v4687 = vcombine.high %v4669, 0.0
  %v4688 = vcombine.high %v4678, 0.0
  %v4689 = vcombine.high %v4685, 0.0
  %v4690 = vpack.c.bf16 %v4662, %v4662
  %v4691 = vpack.c.bf16 %v4686, %v4686
  %v4692 = vpack.c.bf16 %v4669, %v4669
  %v4693 = vpack.c.bf16 %v4687, %v4687
  %v4694 = vpack.c.bf16 %v4678, %v4678
  %v4695 = vpack.c.bf16 %v4688, %v4688
  %v4696 = vpack.c.bf16 %v4685, %v4685
  %v4697 = vpack.c.bf16 %v4689, %v4689
  %4699 = vrot.lane.b32.xlu0 %v4543, 120
  %v4700 = vpop.permute.xlu0 %4699
  %4702 = vrot.lane.b32.xlu0 %v4543, 112
  %v4703 = vpop.permute.xlu0 %4702
  %4705 = vrot.lane.b32.xlu0 %v4543, 104
  %v4706 = vpop.permute.xlu0 %4705
  %v4708 = vcombine.low %v4543, %v4703
  %v4709 = vcombine.high %v4543, %v4703
  %v4711 = vunpack.c.l.s4 1983009808
  %v4712 = vunpack.c.0.s8 %v4711
  %v4713 = vlaneseq
  %v4714 = vshrl.u32 %v4713, 7
  %v4715 = vsub.s32 %v4712, %v4714
  %v4716 = vrot.slane %v4708, %v4715
  %v4718 = vunpack.c.l.s4 1983009808
  %v4719 = vunpack.c.0.s8 %v4718
  %v4720 = vlaneseq
  %v4721 = vshrl.u32 %v4720, 7
  %v4722 = vsub.s32 %v4719, %v4721
  %v4723 = vrot.slane %v4709, %v4722
  %v4724 = vcombine.low %v4700, %v4706
  %v4725 = vcombine.high %v4700, %v4706
  %v4727 = vunpack.c.l.s4 1983009808
  %v4728 = vunpack.c.0.s8 %v4727
  %v4729 = vlaneseq
  %v4730 = vshrl.u32 %v4729, 7
  %v4731 = vsub.s32 %v4728, %v4730
  %v4732 = vrot.slane %v4724, %v4731
  %v4734 = vunpack.c.l.s4 1983009808
  %v4735 = vunpack.c.0.s8 %v4734
  %v4736 = vlaneseq
  %v4737 = vshrl.u32 %v4736, 7
  %v4738 = vsub.s32 %v4735, %v4737
  %v4739 = vrot.slane %v4725, %v4738
  %v4740 = vcombine.low %v4716, %v4732
  %v4741 = vcombine.high %v4716, %v4732
  %v4743 = vunpack.c.l.s4 1934713408
  %v4744 = vunpack.c.0.s8 %v4743
  %v4745 = vlaneseq
  %v4746 = vshrl.u32 %v4745, 7
  %v4747 = vsub.s32 %v4744, %v4746
  %v4748 = vrot.slane %v4740, %v4747
  %v4750 = vunpack.c.l.s4 1934713408
  %v4751 = vunpack.c.0.s8 %v4750
  %v4752 = vlaneseq
  %v4753 = vshrl.u32 %v4752, 7
  %v4754 = vsub.s32 %v4751, %v4753
  %v4755 = vrot.slane %v4741, %v4754
  %v4756 = vcombine.low %v4723, %v4739
  %v4757 = vcombine.high %v4723, %v4739
  %v4759 = vunpack.c.l.s4 1934713408
  %v4760 = vunpack.c.0.s8 %v4759
  %v4761 = vlaneseq
  %v4762 = vshrl.u32 %v4761, 7
  %v4763 = vsub.s32 %v4760, %v4762
  %v4764 = vrot.slane %v4756, %v4763
  %v4766 = vunpack.c.l.s4 1934713408
  %v4767 = vunpack.c.0.s8 %v4766
  %v4768 = vlaneseq
  %v4769 = vshrl.u32 %v4768, 7
  %v4770 = vsub.s32 %v4767, %v4769
  %v4771 = vrot.slane %v4757, %v4770
  %v4772 = vcombine.high %v4748, 0.0
  %v4773 = vcombine.high %v4755, 0.0
  %v4774 = vcombine.high %v4764, 0.0
  %v4775 = vcombine.high %v4771, 0.0
  %v4776 = vpack.c.bf16 %v4748, %v4748
  %v4777 = vpack.c.bf16 %v4772, %v4772
  %v4778 = vpack.c.bf16 %v4755, %v4755
  %v4779 = vpack.c.bf16 %v4773, %v4773
  %v4780 = vpack.c.bf16 %v4764, %v4764
  %v4781 = vpack.c.bf16 %v4774, %v4774
  %v4782 = vpack.c.bf16 %v4771, %v4771
  %v4783 = vpack.c.bf16 %v4775, %v4775
  %4785 = vrot.lane.b32.xlu0 %v4606, 120
  %v4786 = vpop.permute.xlu0 %4785
  %4788 = vrot.lane.b32.xlu0 %v4606, 112
  %v4789 = vpop.permute.xlu0 %4788
  %4791 = vrot.lane.b32.xlu0 %v4606, 104
  %v4792 = vpop.permute.xlu0 %4791
  %v4794 = vcombine.low %v4606, %v4789
  %v4795 = vcombine.high %v4606, %v4789
  %v4797 = vunpack.c.l.s4 1983009808
  %v4798 = vunpack.c.0.s8 %v4797
  %v4799 = vlaneseq
  %v4800 = vshrl.u32 %v4799, 7
  %v4801 = vsub.s32 %v4798, %v4800
  %v4802 = vrot.slane %v4794, %v4801
  %v4804 = vunpack.c.l.s4 1983009808
  %v4805 = vunpack.c.0.s8 %v4804
  %v4806 = vlaneseq
  %v4807 = vshrl.u32 %v4806, 7
  %v4808 = vsub.s32 %v4805, %v4807
  %v4809 = vrot.slane %v4795, %v4808
  %v4810 = vcombine.low %v4786, %v4792
  %v4811 = vcombine.high %v4786, %v4792
  %v4813 = vunpack.c.l.s4 1983009808
  %v4814 = vunpack.c.0.s8 %v4813
  %v4815 = vlaneseq
  %v4816 = vshrl.u32 %v4815, 7
  %v4817 = vsub.s32 %v4814, %v4816
  %v4818 = vrot.slane %v4810, %v4817
  %v4820 = vunpack.c.l.s4 1983009808
  %v4821 = vunpack.c.0.s8 %v4820
  %v4822 = vlaneseq
  %v4823 = vshrl.u32 %v4822, 7
  %v4824 = vsub.s32 %v4821, %v4823
  %v4825 = vrot.slane %v4811, %v4824
  %v4826 = vcombine.low %v4802, %v4818
  %v4827 = vcombine.high %v4802, %v4818
  %v4829 = vunpack.c.l.s4 1934713408
  %v4830 = vunpack.c.0.s8 %v4829
  %v4831 = vlaneseq
  %v4832 = vshrl.u32 %v4831, 7
  %v4833 = vsub.s32 %v4830, %v4832
  %v4834 = vrot.slane %v4826, %v4833
  %v4836 = vunpack.c.l.s4 1934713408
  %v4837 = vunpack.c.0.s8 %v4836
  %v4838 = vlaneseq
  %v4839 = vshrl.u32 %v4838, 7
  %v4840 = vsub.s32 %v4837, %v4839
  %v4841 = vrot.slane %v4827, %v4840
  %v4842 = vcombine.low %v4809, %v4825
  %v4843 = vcombine.high %v4809, %v4825
  %v4845 = vunpack.c.l.s4 1934713408
  %v4846 = vunpack.c.0.s8 %v4845
  %v4847 = vlaneseq
  %v4848 = vshrl.u32 %v4847, 7
  %v4849 = vsub.s32 %v4846, %v4848
  %v4850 = vrot.slane %v4842, %v4849
  %v4852 = vunpack.c.l.s4 1934713408
  %v4853 = vunpack.c.0.s8 %v4852
  %v4854 = vlaneseq
  %v4855 = vshrl.u32 %v4854, 7
  %v4856 = vsub.s32 %v4853, %v4855
  %v4857 = vrot.slane %v4843, %v4856
  %v4858 = vcombine.high %v4834, 0.0
  %v4859 = vcombine.high %v4841, 0.0
  %v4860 = vcombine.high %v4850, 0.0
  %v4861 = vcombine.high %v4857, 0.0
  %v4862 = vpack.c.bf16 %v4834, %v4834
  %v4863 = vpack.c.bf16 %v4858, %v4858
  %v4864 = vpack.c.bf16 %v4841, %v4841
  %v4865 = vpack.c.bf16 %v4859, %v4859
  %v4866 = vpack.c.bf16 %v4850, %v4850
  %v4867 = vpack.c.bf16 %v4860, %v4860
  %v4868 = vpack.c.bf16 %v4857, %v4857
  %v4869 = vpack.c.bf16 %v4861, %v4861
  %v4870 = vcombine.low %v4690, %v4694
  %v4872 = vunpack.c.l.s4 1983009808
  %v4873 = vunpack.c.0.s8 %v4872
  %v4874 = vlaneseq
  %v4875 = vshrl.u32 %v4874, 7
  %v4876 = vsub.s32 %v4873, %v4875
  %v4877 = vrot.slane %v4870, %v4876
  %v4878 = vcombine.low %v4692, %v4696
  %v4880 = vunpack.c.l.s4 1983009808
  %v4881 = vunpack.c.0.s8 %v4880
  %v4882 = vlaneseq
  %v4883 = vshrl.u32 %v4882, 7
  %v4884 = vsub.s32 %v4881, %v4883
  %v4885 = vrot.slane %v4878, %v4884
  %v4886 = vcombine.low %v4877, %v4885
  %v4888 = vunpack.c.l.s4 1934713408
  %v4889 = vunpack.c.0.s8 %v4888
  %v4890 = vlaneseq
  %v4891 = vshrl.u32 %v4890, 7
  %v4892 = vsub.s32 %v4889, %v4891
  %v4893 = vrot.slane %v4886, %v4892
  %v4894 = vcombine.high %v4893, 0
  %v4895 = vcombine.low %v4691, %v4695
  %v4897 = vunpack.c.l.s4 1983009808
  %v4898 = vunpack.c.0.s8 %v4897
  %v4899 = vlaneseq
  %v4900 = vshrl.u32 %v4899, 7
  %v4901 = vsub.s32 %v4898, %v4900
  %v4902 = vrot.slane %v4895, %v4901
  %v4903 = vcombine.low %v4693, %v4697
  %v4905 = vunpack.c.l.s4 1983009808
  %v4906 = vunpack.c.0.s8 %v4905
  %v4907 = vlaneseq
  %v4908 = vshrl.u32 %v4907, 7
  %v4909 = vsub.s32 %v4906, %v4908
  %v4910 = vrot.slane %v4903, %v4909
  %v4911 = vcombine.low %v4902, %v4910
  %v4913 = vunpack.c.l.s4 1934713408
  %v4914 = vunpack.c.0.s8 %v4913
  %v4915 = vlaneseq
  %v4916 = vshrl.u32 %v4915, 7
  %v4917 = vsub.s32 %v4914, %v4916
  %v4918 = vrot.slane %v4911, %v4917
  %v4919 = vcombine.high %v4918, 0
  %v4922 = vpack.i.b16 %v4918, %v4893
  %v4923 = vshrl.u32 %v4893, 16
  %v4924 = vshrl.u32 %v4918, 16
  %v4925 = vpack.i.b16 %v4924, %v4923
  %v4928 = vpack.i.b16 %v4919, %v4894
  %v4929 = vshrl.u32 %v4894, 16
  %v4930 = vshrl.u32 %v4919, 16
  %v4931 = vpack.i.b16 %v4930, %v4929
  %4932 = vxpose.xlu0.c.b16.start [1/8] %v4776, 128
  %4933 = vxpose.xlu0.c.b16.cont [2/8] 0, 128
  %4934 = vxpose.xlu0.c.b16.cont [3/8] 0, 128
  %4935 = vxpose.xlu0.c.b16.cont [4/8] 0, 128
  %4936 = vxpose.xlu0.c.b16.cont [5/8] 0, 128
  %4937 = vxpose.xlu0.c.b16.cont [6/8] 0, 128
  %4938 = vxpose.xlu0.c.b16.cont [7/8] 0, 128
  %4939 = vxpose.xlu0.c.b16.end [8/8] 0, 128
  %v4940 = vpop.trf.xlu0
  %v4941 = vpop.trf.xlu0
  %v4942 = vpop.trf.xlu0
  %v4943 = vpop.trf.xlu0
  %v4944 = vpop.trf.xlu0
  %v4945 = vpop.trf.xlu0
  %v4946 = vpop.trf.xlu0
  %v4947 = vpop.trf.xlu0
  %4948 = vxpose.xlu0.c.b16.start [1/8] %v4777, 128
  %4949 = vxpose.xlu0.c.b16.cont [2/8] 0, 128
  %4950 = vxpose.xlu0.c.b16.cont [3/8] 0, 128
  %4951 = vxpose.xlu0.c.b16.cont [4/8] 0, 128
  %4952 = vxpose.xlu0.c.b16.cont [5/8] 0, 128
  %4953 = vxpose.xlu0.c.b16.cont [6/8] 0, 128
  %4954 = vxpose.xlu0.c.b16.cont [7/8] 0, 128
  %4955 = vxpose.xlu0.c.b16.end [8/8] 0, 128
  %v4956 = vpop.trf.xlu0
  %v4957 = vpop.trf.xlu0
  %v4958 = vpop.trf.xlu0
  %v4959 = vpop.trf.xlu0
  %v4960 = vpop.trf.xlu0
  %v4961 = vpop.trf.xlu0
  %v4962 = vpop.trf.xlu0
  %v4963 = vpop.trf.xlu0
  %4964 = vxpose.xlu0.c.b16.start [1/8] %v4778, 128
  %4965 = vxpose.xlu0.c.b16.cont [2/8] 0, 128
  %4966 = vxpose.xlu0.c.b16.cont [3/8] 0, 128
  %4967 = vxpose.xlu0.c.b16.cont [4/8] 0, 128
  %4968 = vxpose.xlu0.c.b16.cont [5/8] 0, 128
  %4969 = vxpose.xlu0.c.b16.cont [6/8] 0, 128
  %4970 = vxpose.xlu0.c.b16.cont [7/8] 0, 128
  %4971 = vxpose.xlu0.c.b16.end [8/8] 0, 128
  %v4972 = vpop.trf.xlu0
  %v4973 = vpop.trf.xlu0
  %v4974 = vpop.trf.xlu0
  %v4975 = vpop.trf.xlu0
  %v4976 = vpop.trf.xlu0
  %v4977 = vpop.trf.xlu0
  %v4978 = vpop.trf.xlu0
  %v4979 = vpop.trf.xlu0
  %4980 = vxpose.xlu0.c.b16.start [1/8] %v4779, 128
  %4981 = vxpose.xlu0.c.b16.cont [2/8] 0, 128
  %4982 = vxpose.xlu0.c.b16.cont [3/8] 0, 128
  %4983 = vxpose.xlu0.c.b16.cont [4/8] 0, 128
  %4984 = vxpose.xlu0.c.b16.cont [5/8] 0, 128
  %4985 = vxpose.xlu0.c.b16.cont [6/8] 0, 128
  %4986 = vxpose.xlu0.c.b16.cont [7/8] 0, 128
  %4987 = vxpose.xlu0.c.b16.end [8/8] 0, 128
  %v4988 = vpop.trf.xlu0
  %v4989 = vpop.trf.xlu0
  %v4990 = vpop.trf.xlu0
  %v4991 = vpop.trf.xlu0
  %v4992 = vpop.trf.xlu0
  %v4993 = vpop.trf.xlu0
  %v4994 = vpop.trf.xlu0
  %v4995 = vpop.trf.xlu0
  %4996 = vxpose.xlu0.c.b16.start [1/8] %v4780, 128
  %4997 = vxpose.xlu0.c.b16.cont [2/8] 0, 128
  %4998 = vxpose.xlu0.c.b16.cont [3/8] 0, 128
  %4999 = vxpose.xlu0.c.b16.cont [4/8] 0, 128
  %5000 = vxpose.xlu0.c.b16.cont [5/8] 0, 128
  %5001 = vxpose.xlu0.c.b16.cont [6/8] 0, 128
  %5002 = vxpose.xlu0.c.b16.cont [7/8] 0, 128
  %5003 = vxpose.xlu0.c.b16.end [8/8] 0, 128
  %v5004 = vpop.trf.xlu0
  %v5005 = vpop.trf.xlu0
  %v5006 = vpop.trf.xlu0
  %v5007 = vpop.trf.xlu0
  %v5008 = vpop.trf.xlu0
  %v5009 = vpop.trf.xlu0
  %v5010 = vpop.trf.xlu0
  %v5011 = vpop.trf.xlu0
  %5012 = vxpose.xlu0.c.b16.start [1/8] %v4781, 128
  %5013 = vxpose.xlu0.c.b16.cont [2/8] 0, 128
  %5014 = vxpose.xlu0.c.b16.cont [3/8] 0, 128
  %5015 = vxpose.xlu0.c.b16.cont [4/8] 0, 128
  %5016 = vxpose.xlu0.c.b16.cont [5/8] 0, 128
  %5017 = vxpose.xlu0.c.b16.cont [6/8] 0, 128
  %5018 = vxpose.xlu0.c.b16.cont [7/8] 0, 128
  %5019 = vxpose.xlu0.c.b16.end [8/8] 0, 128
  %v5020 = vpop.trf.xlu0
  %v5021 = vpop.trf.xlu0
  %v5022 = vpop.trf.xlu0
  %v5023 = vpop.trf.xlu0
  %v5024 = vpop.trf.xlu0
  %v5025 = vpop.trf.xlu0
  %v5026 = vpop.trf.xlu0
  %v5027 = vpop.trf.xlu0
  %5028 = vxpose.xlu0.c.b16.start [1/8] %v4782, 128
  %5029 = vxpose.xlu0.c.b16.cont [2/8] 0, 128
  %5030 = vxpose.xlu0.c.b16.cont [3/8] 0, 128
  %5031 = vxpose.xlu0.c.b16.cont [4/8] 0, 128
  %5032 = vxpose.xlu0.c.b16.cont [5/8] 0, 128
  %5033 = vxpose.xlu0.c.b16.cont [6/8] 0, 128
  %5034 = vxpose.xlu0.c.b16.cont [7/8] 0, 128
  %5035 = vxpose.xlu0.c.b16.end [8/8] 0, 128
  %v5036 = vpop.trf.xlu0
  %v5037 = vpop.trf.xlu0
  %v5038 = vpop.trf.xlu0
  %v5039 = vpop.trf.xlu0
  %v5040 = vpop.trf.xlu0
  %v5041 = vpop.trf.xlu0
  %v5042 = vpop.trf.xlu0
  %v5043 = vpop.trf.xlu0
  %5044 = vxpose.xlu0.c.b16.start [1/8] %v4783, 128
  %5045 = vxpose.xlu0.c.b16.cont [2/8] 0, 128
  %5046 = vxpose.xlu0.c.b16.cont [3/8] 0, 128
  %5047 = vxpose.xlu0.c.b16.cont [4/8] 0, 128
  %5048 = vxpose.xlu0.c.b16.cont [5/8] 0, 128
  %5049 = vxpose.xlu0.c.b16.cont [6/8] 0, 128
  %5050 = vxpose.xlu0.c.b16.cont [7/8] 0, 128
  %5051 = vxpose.xlu0.c.b16.end [8/8] 0, 128
  %v5052 = vpop.trf.xlu0
  %v5053 = vpop.trf.xlu0
  %v5054 = vpop.trf.xlu0
  %v5055 = vpop.trf.xlu0
  %v5056 = vpop.trf.xlu0
  %v5057 = vpop.trf.xlu0
  %v5058 = vpop.trf.xlu0
  %v5059 = vpop.trf.xlu0
  %v5060 = vcombine.low %v4940, %v5004
  %v5062 = vunpack.c.l.s4 1983009808
  %v5063 = vunpack.c.0.s8 %v5062
  %v5064 = vlaneseq
  %v5065 = vshrl.u32 %v5064, 7
  %v5066 = vsub.s32 %v5063, %v5065
  %v5067 = vrot.slane %v5060, %v5066
  %v5068 = vcombine.low %v4972, %v5036
  %v5070 = vunpack.c.l.s4 1983009808
  %v5071 = vunpack.c.0.s8 %v5070
  %v5072 = vlaneseq
  %v5073 = vshrl.u32 %v5072, 7
  %v5074 = vsub.s32 %v5071, %v5073
  %v5075 = vrot.slane %v5068, %v5074
  %v5076 = vcombine.low %v5067, %v5075
  %v5077 = vcombine.high %v5067, %v5075
  %v5079 = vunpack.c.l.s4 1934713408
  %v5080 = vunpack.c.0.s8 %v5079
  %v5081 = vlaneseq
  %v5082 = vshrl.u32 %v5081, 7
  %v5083 = vsub.s32 %v5080, %v5082
  %v5084 = vrot.slane %v5076, %v5083
  %v5086 = vunpack.c.l.s4 1934713408
  %v5087 = vunpack.c.0.s8 %v5086
  %v5088 = vlaneseq
  %v5089 = vshrl.u32 %v5088, 7
  %v5090 = vsub.s32 %v5087, %v5089
  %v5091 = vrot.slane %v5077, %v5090
  %v5092 = vcombine.high %v5084, 0
  %v5093 = vcombine.high %v5091, 0
  %v5094 = vcombine.low %v4956, %v5020
  %v5096 = vunpack.c.l.s4 1983009808
  %v5097 = vunpack.c.0.s8 %v5096
  %v5098 = vlaneseq
  %v5099 = vshrl.u32 %v5098, 7
  %v5100 = vsub.s32 %v5097, %v5099
  %v5101 = vrot.slane %v5094, %v5100
  %v5102 = vcombine.low %v4988, %v5052
  %v5104 = vunpack.c.l.s4 1983009808
  %v5105 = vunpack.c.0.s8 %v5104
  %v5106 = vlaneseq
  %v5107 = vshrl.u32 %v5106, 7
  %v5108 = vsub.s32 %v5105, %v5107
  %v5109 = vrot.slane %v5102, %v5108
  %v5110 = vcombine.low %v5101, %v5109
  %v5111 = vcombine.high %v5101, %v5109
  %v5113 = vunpack.c.l.s4 1934713408
  %v5114 = vunpack.c.0.s8 %v5113
  %v5115 = vlaneseq
  %v5116 = vshrl.u32 %v5115, 7
  %v5117 = vsub.s32 %v5114, %v5116
  %v5118 = vrot.slane %v5110, %v5117
  %v5120 = vunpack.c.l.s4 1934713408
  %v5121 = vunpack.c.0.s8 %v5120
  %v5122 = vlaneseq
  %v5123 = vshrl.u32 %v5122, 7
  %v5124 = vsub.s32 %v5121, %v5123
  %v5125 = vrot.slane %v5111, %v5124
  %v5126 = vcombine.high %v5118, 0
  %v5127 = vcombine.high %v5125, 0
  %v5130 = vpack.i.b16 %v5118, %v5084
  %v5132 = vshrl.u32 %v5084, 16
  %v5133 = vshrl.u32 %v5118, 16
  %v5134 = vpack.i.b16 %v5133, %v5132
  %v5138 = vpack.i.b16 %v5126, %v5092
  %v5140 = vshrl.u32 %v5092, 16
  %v5141 = vshrl.u32 %v5126, 16
  %v5142 = vpack.i.b16 %v5141, %v5140
  %v5146 = vpack.i.b16 %v5125, %v5091
  %v5148 = vshrl.u32 %v5091, 16
  %v5149 = vshrl.u32 %v5125, 16
  %v5150 = vpack.i.b16 %v5149, %v5148
  %v5154 = vpack.i.b16 %v5127, %v5093
  %v5156 = vshrl.u32 %v5093, 16
  %v5157 = vshrl.u32 %v5127, 16
  %v5158 = vpack.i.b16 %v5157, %v5156
  %5160 = vxpose.xlu0.c.b16.start [1/8] %v5130, 128
  %5161 = vxpose.xlu0.c.b16.cont [2/8] 0, 128
  %5162 = vxpose.xlu0.c.b16.cont [3/8] 0, 128
  %5163 = vxpose.xlu0.c.b16.cont [4/8] 0, 128
  %5164 = vxpose.xlu0.c.b16.cont [5/8] 0, 128
  %5165 = vxpose.xlu0.c.b16.cont [6/8] 0, 128
  %5166 = vxpose.xlu0.c.b16.cont [7/8] 0, 128
  %5167 = vxpose.xlu0.c.b16.end [8/8] 0, 128
  %v5168 = vpop.trf.xlu0
  %v5169 = vpop.trf.xlu0
  %v5170 = vpop.trf.xlu0
  %v5171 = vpop.trf.xlu0
  %v5172 = vpop.trf.xlu0
  %v5173 = vpop.trf.xlu0
  %v5174 = vpop.trf.xlu0
  %v5175 = vpop.trf.xlu0
  %5176 = vxpose.xlu0.c.b16.start [1/8] %v5134, 128
  %5177 = vxpose.xlu0.c.b16.cont [2/8] 0, 128
  %5178 = vxpose.xlu0.c.b16.cont [3/8] 0, 128
  %5179 = vxpose.xlu0.c.b16.cont [4/8] 0, 128
  %5180 = vxpose.xlu0.c.b16.cont [5/8] 0, 128
  %5181 = vxpose.xlu0.c.b16.cont [6/8] 0, 128
  %5182 = vxpose.xlu0.c.b16.cont [7/8] 0, 128
  %5183 = vxpose.xlu0.c.b16.end [8/8] 0, 128
  %v5184 = vpop.trf.xlu0
  %v5185 = vpop.trf.xlu0
  %v5186 = vpop.trf.xlu0
  %v5187 = vpop.trf.xlu0
  %v5188 = vpop.trf.xlu0
  %v5189 = vpop.trf.xlu0
  %v5190 = vpop.trf.xlu0
  %v5191 = vpop.trf.xlu0
  %5192 = vxpose.xlu0.c.b16.start [1/8] %v5138, 128
  %5193 = vxpose.xlu0.c.b16.cont [2/8] 0, 128
  %5194 = vxpose.xlu0.c.b16.cont [3/8] 0, 128
  %5195 = vxpose.xlu0.c.b16.cont [4/8] 0, 128
  %5196 = vxpose.xlu0.c.b16.cont [5/8] 0, 128
  %5197 = vxpose.xlu0.c.b16.cont [6/8] 0, 128
  %5198 = vxpose.xlu0.c.b16.cont [7/8] 0, 128
  %5199 = vxpose.xlu0.c.b16.end [8/8] 0, 128
  %v5200 = vpop.trf.xlu0
  %v5201 = vpop.trf.xlu0
  %v5202 = vpop.trf.xlu0
  %v5203 = vpop.trf.xlu0
  %v5204 = vpop.trf.xlu0
  %v5205 = vpop.trf.xlu0
  %v5206 = vpop.trf.xlu0
  %v5207 = vpop.trf.xlu0
  %5208 = vxpose.xlu0.c.b16.start [1/8] %v5142, 128
  %5209 = vxpose.xlu0.c.b16.cont [2/8] 0, 128
  %5210 = vxpose.xlu0.c.b16.cont [3/8] 0, 128
  %5211 = vxpose.xlu0.c.b16.cont [4/8] 0, 128
  %5212 = vxpose.xlu0.c.b16.cont [5/8] 0, 128
  %5213 = vxpose.xlu0.c.b16.cont [6/8] 0, 128
  %5214 = vxpose.xlu0.c.b16.cont [7/8] 0, 128
  %5215 = vxpose.xlu0.c.b16.end [8/8] 0, 128
  %v5216 = vpop.trf.xlu0
  %v5217 = vpop.trf.xlu0
  %v5218 = vpop.trf.xlu0
  %v5219 = vpop.trf.xlu0
  %v5220 = vpop.trf.xlu0
  %v5221 = vpop.trf.xlu0
  %v5222 = vpop.trf.xlu0
  %v5223 = vpop.trf.xlu0
  %5224 = vxpose.xlu0.c.b16.start [1/8] %v5146, 128
  %5225 = vxpose.xlu0.c.b16.cont [2/8] 0, 128
  %5226 = vxpose.xlu0.c.b16.cont [3/8] 0, 128
  %5227 = vxpose.xlu0.c.b16.cont [4/8] 0, 128
  %5228 = vxpose.xlu0.c.b16.cont [5/8] 0, 128
  %5229 = vxpose.xlu0.c.b16.cont [6/8] 0, 128
  %5230 = vxpose.xlu0.c.b16.cont [7/8] 0, 128
  %5231 = vxpose.xlu0.c.b16.end [8/8] 0, 128
  %v5232 = vpop.trf.xlu0
  %v5233 = vpop.trf.xlu0
  %v5234 = vpop.trf.xlu0
  %v5235 = vpop.trf.xlu0
  %v5236 = vpop.trf.xlu0
  %v5237 = vpop.trf.xlu0
  %v5238 = vpop.trf.xlu0
  %v5239 = vpop.trf.xlu0
  %5240 = vxpose.xlu0.c.b16.start [1/8] %v5150, 128
  %5241 = vxpose.xlu0.c.b16.cont [2/8] 0, 128
  %5242 = vxpose.xlu0.c.b16.cont [3/8] 0, 128
  %5243 = vxpose.xlu0.c.b16.cont [4/8] 0, 128
  %5244 = vxpose.xlu0.c.b16.cont [5/8] 0, 128
  %5245 = vxpose.xlu0.c.b16.cont [6/8] 0, 128
  %5246 = vxpose.xlu0.c.b16.cont [7/8] 0, 128
  %5247 = vxpose.xlu0.c.b16.end [8/8] 0, 128
  %v5248 = vpop.trf.xlu0
  %v5249 = vpop.trf.xlu0
  %v5250 = vpop.trf.xlu0
  %v5251 = vpop.trf.xlu0
  %v5252 = vpop.trf.xlu0
  %v5253 = vpop.trf.xlu0
  %v5254 = vpop.trf.xlu0
  %v5255 = vpop.trf.xlu0
  %5256 = vxpose.xlu0.c.b16.start [1/8] %v5154, 128
  %5257 = vxpose.xlu0.c.b16.cont [2/8] 0, 128
  %5258 = vxpose.xlu0.c.b16.cont [3/8] 0, 128
  %5259 = vxpose.xlu0.c.b16.cont [4/8] 0, 128
  %5260 = vxpose.xlu0.c.b16.cont [5/8] 0, 128
  %5261 = vxpose.xlu0.c.b16.cont [6/8] 0, 128
  %5262 = vxpose.xlu0.c.b16.cont [7/8] 0, 128
  %5263 = vxpose.xlu0.c.b16.end [8/8] 0, 128
  %v5264 = vpop.trf.xlu0
  %v5265 = vpop.trf.xlu0
  %v5266 = vpop.trf.xlu0
  %v5267 = vpop.trf.xlu0
  %v5268 = vpop.trf.xlu0
  %v5269 = vpop.trf.xlu0
  %v5270 = vpop.trf.xlu0
  %v5271 = vpop.trf.xlu0
  %5272 = vxpose.xlu0.c.b16.start [1/8] %v5158, 128
  %5273 = vxpose.xlu0.c.b16.cont [2/8] 0, 128
  %5274 = vxpose.xlu0.c.b16.cont [3/8] 0, 128
  %5275 = vxpose.xlu0.c.b16.cont [4/8] 0, 128
  %5276 = vxpose.xlu0.c.b16.cont [5/8] 0, 128
  %5277 = vxpose.xlu0.c.b16.cont [6/8] 0, 128
  %5278 = vxpose.xlu0.c.b16.cont [7/8] 0, 128
  %5279 = vxpose.xlu0.c.b16.end [8/8] 0, 128
  %v5280 = vpop.trf.xlu0
  %v5281 = vpop.trf.xlu0
  %v5282 = vpop.trf.xlu0
  %v5283 = vpop.trf.xlu0
  %v5284 = vpop.trf.xlu0
  %v5285 = vpop.trf.xlu0
  %v5286 = vpop.trf.xlu0
  %v5287 = vpop.trf.xlu0
  %v5288 = vcombine.low %v5168, %v5232
  %v5290 = vunpack.c.l.s4 1983009808
  %v5291 = vunpack.c.0.s8 %v5290
  %v5292 = vlaneseq
  %v5293 = vshrl.u32 %v5292, 7
  %v5294 = vsub.s32 %v5291, %v5293
  %v5295 = vrot.slane %v5288, %v5294
  %v5296 = vcombine.low %v5200, %v5264
  %v5298 = vunpack.c.l.s4 1983009808
  %v5299 = vunpack.c.0.s8 %v5298
  %v5300 = vlaneseq
  %v5301 = vshrl.u32 %v5300, 7
  %v5302 = vsub.s32 %v5299, %v5301
  %v5303 = vrot.slane %v5296, %v5302
  %v5304 = vcombine.low %v5295, %v5303
  %v5306 = vunpack.c.l.s4 1934713408
  %v5307 = vunpack.c.0.s8 %v5306
  %v5308 = vlaneseq
  %v5309 = vshrl.u32 %v5308, 7
  %v5310 = vsub.s32 %v5307, %v5309
  %v5311 = vrot.slane %v5304, %v5310
  %v5312 = vcombine.high %v5311, 0
  %v5313 = vcombine.low %v5184, %v5248
  %v5315 = vunpack.c.l.s4 1983009808
  %v5316 = vunpack.c.0.s8 %v5315
  %v5317 = vlaneseq
  %v5318 = vshrl.u32 %v5317, 7
  %v5319 = vsub.s32 %v5316, %v5318
  %v5320 = vrot.slane %v5313, %v5319
  %v5321 = vcombine.low %v5216, %v5280
  %v5323 = vunpack.c.l.s4 1983009808
  %v5324 = vunpack.c.0.s8 %v5323
  %v5325 = vlaneseq
  %v5326 = vshrl.u32 %v5325, 7
  %v5327 = vsub.s32 %v5324, %v5326
  %v5328 = vrot.slane %v5321, %v5327
  %v5329 = vcombine.low %v5320, %v5328
  %v5331 = vunpack.c.l.s4 1934713408
  %v5332 = vunpack.c.0.s8 %v5331
  %v5333 = vlaneseq
  %v5334 = vshrl.u32 %v5333, 7
  %v5335 = vsub.s32 %v5332, %v5334
  %v5336 = vrot.slane %v5329, %v5335
  %v5337 = vcombine.high %v5336, 0
  %v5340 = vpack.i.b16 %v5336, %v5311
  %v5341 = vshrl.u32 %v5311, 16
  %v5342 = vshrl.u32 %v5336, 16
  %v5343 = vpack.i.b16 %v5342, %v5341
  %v5346 = vpack.i.b16 %v5337, %v5312
  %v5347 = vshrl.u32 %v5312, 16
  %v5348 = vshrl.u32 %v5337, 16
  %v5349 = vpack.i.b16 %v5348, %v5347
  %v5351 = vsel %vm1129, %v4922, 0
  %v5354 = vsel %vm1133, %v5340, 0
  %5356 = vmatprep.subr.bf16.mxu0 0
  %5357 = vmatpush1.bf16.msra.mxu0 0
  %5358 = vmatprep.subr.bf16.mxu0 0
  %5359 = vmatpush1.bf16.msra.mxu0 0
  %5360 = vmatprep.subr.bf16.mxu0 0
  %5361 = vmatpush1.bf16.msra.mxu0 0
  %5362 = vmatprep.subr.bf16.mxu0 0
  %5363 = vmatpush1.bf16.msra.mxu0 0
  %5364 = vmatprep.subr.bf16.mxu0 0
  %5365 = vmatpush1.bf16.msra.mxu0 0
  %5366 = vmatprep.subr.bf16.mxu0 0
  %5367 = vmatpush1.bf16.msra.mxu0 0
  %5368 = vmatprep.subr.bf16.mxu0 0
  %5369 = vmatpush1.bf16.msra.mxu0 0
  %5370 = vmatprep.subr.bf16.mxu0 0
  %5371 = vmatpush1.bf16.msra.mxu0 %v5354
  %5372 = vmatprep.subr.bf16.mxu0 0
  %5373 = vmatpush2.bf16.msra.mxu0 0
  %5374 = vmatprep.subr.bf16.mxu0 0
  %5375 = vmatpush2.bf16.msra.mxu0 0
  %5376 = vmatprep.subr.bf16.mxu0 0
  %5377 = vmatpush2.bf16.msra.mxu0 0
  %5378 = vmatprep.subr.bf16.mxu0 0
  %5379 = vmatpush2.bf16.msra.mxu0 0
  %5380 = vmatprep.subr.bf16.mxu0 0
  %5381 = vmatpush2.bf16.msra.mxu0 0
  %5382 = vmatprep.subr.bf16.mxu0 0
  %5383 = vmatpush2.bf16.msra.mxu0 0
  %5384 = vmatprep.subr.bf16.mxu0 0
  %5385 = vmatpush2.bf16.msra.mxu0 0
  %5386 = vmatprep.subr.bf16.mxu0 0
  %5387 = vmatpush2.bf16.msra.mxu0 0
  %5388 = vmatprep.mubr.bf16.mxu0 0
  %5389 = vmatmul.mubr.bf16.gmra.mxu0 %v5351
  %v5390 = vpop.f32.mrf.mxu0
  %v5391 = vadd.f32 %v648, %v5390
  %v5392 = vpop.f32.mrf.mxu0
  %v5393 = vpop.f32.mrf.mxu0
  %v5394 = vpop.f32.mrf.mxu0
  %5395 = vdwg.mxu0
  %v5397 = vsel %vm1129, %v4925, 0
  %v5400 = vsel %vm1133, %v5343, 0
  %5402 = vmatprep.subr.bf16.mxu0 0
  %5403 = vmatpush1.bf16.msra.mxu0 0
  %5404 = vmatprep.subr.bf16.mxu0 0
  %5405 = vmatpush1.bf16.msra.mxu0 0
  %5406 = vmatprep.subr.bf16.mxu0 0
  %5407 = vmatpush1.bf16.msra.mxu0 0
  %5408 = vmatprep.subr.bf16.mxu0 0
  %5409 = vmatpush1.bf16.msra.mxu0 0
  %5410 = vmatprep.subr.bf16.mxu0 0
  %5411 = vmatpush1.bf16.msra.mxu0 0
  %5412 = vmatprep.subr.bf16.mxu0 0
  %5413 = vmatpush1.bf16.msra.mxu0 0
  %5414 = vmatprep.subr.bf16.mxu0 0
  %5415 = vmatpush1.bf16.msra.mxu0 0
  %5416 = vmatprep.subr.bf16.mxu0 0
  %5417 = vmatpush1.bf16.msra.mxu0 %v5400
  %5418 = vmatprep.subr.bf16.mxu0 0
  %5419 = vmatpush2.bf16.msra.mxu0 0
  %5420 = vmatprep.subr.bf16.mxu0 0
  %5421 = vmatpush2.bf16.msra.mxu0 0
  %5422 = vmatprep.subr.bf16.mxu0 0
  %5423 = vmatpush2.bf16.msra.mxu0 0
  %5424 = vmatprep.subr.bf16.mxu0 0
  %5425 = vmatpush2.bf16.msra.mxu0 0
  %5426 = vmatprep.subr.bf16.mxu0 0
  %5427 = vmatpush2.bf16.msra.mxu0 0
  %5428 = vmatprep.subr.bf16.mxu0 0
  %5429 = vmatpush2.bf16.msra.mxu0 0
  %5430 = vmatprep.subr.bf16.mxu0 0
  %5431 = vmatpush2.bf16.msra.mxu0 0
  %5432 = vmatprep.subr.bf16.mxu0 0
  %5433 = vmatpush2.bf16.msra.mxu0 0
  %5434 = vmatprep.mubr.bf16.mxu0 0
  %5435 = vmatmul.mubr.bf16.gmra.mxu0 %v5397
  %v5436 = vpop.f32.mrf.mxu0
  %v5437 = vadd.f32 %v648, %v5436
  %v5438 = vpop.f32.mrf.mxu0
  %v5439 = vpop.f32.mrf.mxu0
  %v5440 = vpop.f32.mrf.mxu0
  %5441 = vdwg.mxu0
  %v5443 = vsel %vm1129, %v4928, 0
  %v5446 = vsel %vm1133, %v5346, 0
  %5448 = vmatprep.subr.bf16.mxu0 0
  %5449 = vmatpush1.bf16.msra.mxu0 0
  %5450 = vmatprep.subr.bf16.mxu0 0
  %5451 = vmatpush1.bf16.msra.mxu0 0
  %5452 = vmatprep.subr.bf16.mxu0 0
  %5453 = vmatpush1.bf16.msra.mxu0 0
  %5454 = vmatprep.subr.bf16.mxu0 0
  %5455 = vmatpush1.bf16.msra.mxu0 0
  %5456 = vmatprep.subr.bf16.mxu0 0
  %5457 = vmatpush1.bf16.msra.mxu0 0
  %5458 = vmatprep.subr.bf16.mxu0 0
  %5459 = vmatpush1.bf16.msra.mxu0 0
  %5460 = vmatprep.subr.bf16.mxu0 0
  %5461 = vmatpush1.bf16.msra.mxu0 0
  %5462 = vmatprep.subr.bf16.mxu0 0
  %5463 = vmatpush1.bf16.msra.mxu0 %v5446
  %5464 = vmatprep.subr.bf16.mxu0 0
  %5465 = vmatpush2.bf16.msra.mxu0 0
  %5466 = vmatprep.subr.bf16.mxu0 0
  %5467 = vmatpush2.bf16.msra.mxu0 0
  %5468 = vmatprep.subr.bf16.mxu0 0
  %5469 = vmatpush2.bf16.msra.mxu0 0
  %5470 = vmatprep.subr.bf16.mxu0 0
  %5471 = vmatpush2.bf16.msra.mxu0 0
  %5472 = vmatprep.subr.bf16.mxu0 0
  %5473 = vmatpush2.bf16.msra.mxu0 0
  %5474 = vmatprep.subr.bf16.mxu0 0
  %5475 = vmatpush2.bf16.msra.mxu0 0
  %5476 = vmatprep.subr.bf16.mxu0 0
  %5477 = vmatpush2.bf16.msra.mxu0 0
  %5478 = vmatprep.subr.bf16.mxu0 0
  %5479 = vmatpush2.bf16.msra.mxu0 0
  %5480 = vmatprep.mubr.bf16.mxu0 0
  %5481 = vmatmul.mubr.bf16.gmra.mxu0 %v5443
  %v5482 = vpop.f32.mrf.mxu0
  %v5483 = vadd.f32 %v648, %v5482
  %v5484 = vpop.f32.mrf.mxu0
  %v5485 = vpop.f32.mrf.mxu0
  %v5486 = vpop.f32.mrf.mxu0
  %5487 = vdwg.mxu0
  %v5489 = vsel %vm1129, %v4931, 0
  %v5492 = vsel %vm1133, %v5349, 0
  %5494 = vmatprep.subr.bf16.mxu0 0
  %5495 = vmatpush1.bf16.msra.mxu0 0
  %5496 = vmatprep.subr.bf16.mxu0 0
  %5497 = vmatpush1.bf16.msra.mxu0 0
  %5498 = vmatprep.subr.bf16.mxu0 0
  %5499 = vmatpush1.bf16.msra.mxu0 0
  %5500 = vmatprep.subr.bf16.mxu0 0
  %5501 = vmatpush1.bf16.msra.mxu0 0
  %5502 = vmatprep.subr.bf16.mxu0 0
  %5503 = vmatpush1.bf16.msra.mxu0 0
  %5504 = vmatprep.subr.bf16.mxu0 0
  %5505 = vmatpush1.bf16.msra.mxu0 0
  %5506 = vmatprep.subr.bf16.mxu0 0
  %5507 = vmatpush1.bf16.msra.mxu0 0
  %5508 = vmatprep.subr.bf16.mxu0 0
  %5509 = vmatpush1.bf16.msra.mxu0 %v5492
  %5510 = vmatprep.subr.bf16.mxu0 0
  %5511 = vmatpush2.bf16.msra.mxu0 0
  %5512 = vmatprep.subr.bf16.mxu0 0
  %5513 = vmatpush2.bf16.msra.mxu0 0
  %5514 = vmatprep.subr.bf16.mxu0 0
  %5515 = vmatpush2.bf16.msra.mxu0 0
  %5516 = vmatprep.subr.bf16.mxu0 0
  %5517 = vmatpush2.bf16.msra.mxu0 0
  %5518 = vmatprep.subr.bf16.mxu0 0
  %5519 = vmatpush2.bf16.msra.mxu0 0
  %5520 = vmatprep.subr.bf16.mxu0 0
  %5521 = vmatpush2.bf16.msra.mxu0 0
  %5522 = vmatprep.subr.bf16.mxu0 0
  %5523 = vmatpush2.bf16.msra.mxu0 0
  %5524 = vmatprep.subr.bf16.mxu0 0
  %5525 = vmatpush2.bf16.msra.mxu0 0
  %5526 = vmatprep.mubr.bf16.mxu0 0
  %5527 = vmatmul.mubr.bf16.gmra.mxu0 %v5489
  %v5528 = vpop.f32.mrf.mxu0
  %v5529 = vadd.f32 %v648, %v5528
  %v5530 = vpop.f32.mrf.mxu0
  %v5531 = vpop.f32.mrf.mxu0
  %v5532 = vpop.f32.mrf.mxu0
  %5533 = vdwg.mxu0
  %v5534 = vsel %vm1129, %v5391, -inf
  %5535 = vmax.xlane.f32.xlu0 %v5534
  %v5536 = vpop.xlane.xlu0 %5535
  %v5537 = vsel %vm1129, %v5437, -inf
  %5538 = vmax.xlane.f32.xlu0 %v5537
  %v5539 = vpop.xlane.xlu0 %5538
  %v5540 = vsel %vm1129, %v5483, -inf
  %5541 = vmax.xlane.f32.xlu0 %v5540
  %v5542 = vpop.xlane.xlu0 %5541
  %v5543 = vsel %vm1129, %v5529, -inf
  %5544 = vmax.xlane.f32.xlu0 %v5543
  %v5545 = vpop.xlane.xlu0 %5544
  %v5546 = vsub.f32 %v5391, %v5536
  %v5547 = vsub.f32 %v5437, %v5539
  %v5548 = vsub.f32 %v5483, %v5542
  %v5549 = vsub.f32 %v5529, %v5545
  %v5550 = vmul.f32 %v5546, 1.442695
  %v5551 = vpow.pop %v5550
  %v5552 = vmul.f32 %v5547, 1.442695
  %v5553 = vpow.pop %v5552
  %v5554 = vmul.f32 %v5548, 1.442695
  %v5555 = vpow.pop %v5554
  %v5556 = vmul.f32 %v5549, 1.442695
  %v5557 = vpow.pop %v5556
  %v5558 = vsel %vm1129, %v5551, 0.0
  %5559 = vadd.xlane.f32.xlu0 %v5558
  %v5560 = vpop.xlane.xlu0 %5559
  %v5561 = vsel %vm1129, %v5553, 0.0
  %5562 = vadd.xlane.f32.xlu0 %v5561
  %v5563 = vpop.xlane.xlu0 %5562
  %v5564 = vsel %vm1129, %v5555, 0.0
  %5565 = vadd.xlane.f32.xlu0 %v5564
  %v5566 = vpop.xlane.xlu0 %5565
  %v5567 = vsel %vm1129, %v5557, 0.0
  %5568 = vadd.xlane.f32.xlu0 %v5567
  %v5569 = vpop.xlane.xlu0 %5568
  %v5570 = vrcp.pop %v5560
  %v5571 = vrcp.pop %v5563
  %v5572 = vrcp.pop %v5566
  %v5573 = vrcp.pop %v5569
  %v5574 = vmul.f32 %v5551, %v5570
  %v5575 = vmul.f32 %v5553, %v5571
  %v5576 = vmul.f32 %v5555, %v5572
  %v5577 = vmul.f32 %v5557, %v5573
  %v5578 = vpack.c.bf16 %v5574, %v5574
  %v5579 = vpack.c.bf16 %v5575, %v5575
  %v5580 = vpack.c.bf16 %v5576, %v5576
  %v5581 = vpack.c.bf16 %v5577, %v5577
  %5582 = vxpose.xlu0.c.b16.start [1/8] %v4862, 128
  %5583 = vxpose.xlu0.c.b16.cont [2/8] 0, 128
  %5584 = vxpose.xlu0.c.b16.cont [3/8] 0, 128
  %5585 = vxpose.xlu0.c.b16.cont [4/8] 0, 128
  %5586 = vxpose.xlu0.c.b16.cont [5/8] 0, 128
  %5587 = vxpose.xlu0.c.b16.cont [6/8] 0, 128
  %5588 = vxpose.xlu0.c.b16.cont [7/8] 0, 128
  %5589 = vxpose.xlu0.c.b16.end [8/8] 0, 128
  %v5590 = vpop.trf.xlu0
  %v5591 = vpop.trf.xlu0
  %v5592 = vpop.trf.xlu0
  %v5593 = vpop.trf.xlu0
  %v5594 = vpop.trf.xlu0
  %v5595 = vpop.trf.xlu0
  %v5596 = vpop.trf.xlu0
  %v5597 = vpop.trf.xlu0
  %5598 = vxpose.xlu0.c.b16.start [1/8] %v4863, 128
  %5599 = vxpose.xlu0.c.b16.cont [2/8] 0, 128
  %5600 = vxpose.xlu0.c.b16.cont [3/8] 0, 128
  %5601 = vxpose.xlu0.c.b16.cont [4/8] 0, 128
  %5602 = vxpose.xlu0.c.b16.cont [5/8] 0, 128
  %5603 = vxpose.xlu0.c.b16.cont [6/8] 0, 128
  %5604 = vxpose.xlu0.c.b16.cont [7/8] 0, 128
  %5605 = vxpose.xlu0.c.b16.end [8/8] 0, 128
  %v5606 = vpop.trf.xlu0
  %v5607 = vpop.trf.xlu0
  %v5608 = vpop.trf.xlu0
  %v5609 = vpop.trf.xlu0
  %v5610 = vpop.trf.xlu0
  %v5611 = vpop.trf.xlu0
  %v5612 = vpop.trf.xlu0
  %v5613 = vpop.trf.xlu0
  %5614 = vxpose.xlu0.c.b16.start [1/8] %v4864, 128
  %5615 = vxpose.xlu0.c.b16.cont [2/8] 0, 128
  %5616 = vxpose.xlu0.c.b16.cont [3/8] 0, 128
  %5617 = vxpose.xlu0.c.b16.cont [4/8] 0, 128
  %5618 = vxpose.xlu0.c.b16.cont [5/8] 0, 128
  %5619 = vxpose.xlu0.c.b16.cont [6/8] 0, 128
  %5620 = vxpose.xlu0.c.b16.cont [7/8] 0, 128
  %5621 = vxpose.xlu0.c.b16.end [8/8] 0, 128
  %v5622 = vpop.trf.xlu0
  %v5623 = vpop.trf.xlu0
  %v5624 = vpop.trf.xlu0
  %v5625 = vpop.trf.xlu0
  %v5626 = vpop.trf.xlu0
  %v5627 = vpop.trf.xlu0
  %v5628 = vpop.trf.xlu0
  %v5629 = vpop.trf.xlu0
  %5630 = vxpose.xlu0.c.b16.start [1/8] %v4865, 128
  %5631 = vxpose.xlu0.c.b16.cont [2/8] 0, 128
  %5632 = vxpose.xlu0.c.b16.cont [3/8] 0, 128
  %5633 = vxpose.xlu0.c.b16.cont [4/8] 0, 128
  %5634 = vxpose.xlu0.c.b16.cont [5/8] 0, 128
  %5635 = vxpose.xlu0.c.b16.cont [6/8] 0, 128
  %5636 = vxpose.xlu0.c.b16.cont [7/8] 0, 128
  %5637 = vxpose.xlu0.c.b16.end [8/8] 0, 128
  %v5638 = vpop.trf.xlu0
  %v5639 = vpop.trf.xlu0
  %v5640 = vpop.trf.xlu0
  %v5641 = vpop.trf.xlu0
  %v5642 = vpop.trf.xlu0
  %v5643 = vpop.trf.xlu0
  %v5644 = vpop.trf.xlu0
  %v5645 = vpop.trf.xlu0
  %5646 = vxpose.xlu0.c.b16.start [1/8] %v4866, 128
  %5647 = vxpose.xlu0.c.b16.cont [2/8] 0, 128
  %5648 = vxpose.xlu0.c.b16.cont [3/8] 0, 128
  %5649 = vxpose.xlu0.c.b16.cont [4/8] 0, 128
  %5650 = vxpose.xlu0.c.b16.cont [5/8] 0, 128
  %5651 = vxpose.xlu0.c.b16.cont [6/8] 0, 128
  %5652 = vxpose.xlu0.c.b16.cont [7/8] 0, 128
  %5653 = vxpose.xlu0.c.b16.end [8/8] 0, 128
  %v5654 = vpop.trf.xlu0
  %v5655 = vpop.trf.xlu0
  %v5656 = vpop.trf.xlu0
  %v5657 = vpop.trf.xlu0
  %v5658 = vpop.trf.xlu0
  %v5659 = vpop.trf.xlu0
  %v5660 = vpop.trf.xlu0
  %v5661 = vpop.trf.xlu0
  %5662 = vxpose.xlu0.c.b16.start [1/8] %v4867, 128
  %5663 = vxpose.xlu0.c.b16.cont [2/8] 0, 128
  %5664 = vxpose.xlu0.c.b16.cont [3/8] 0, 128
  %5665 = vxpose.xlu0.c.b16.cont [4/8] 0, 128
  %5666 = vxpose.xlu0.c.b16.cont [5/8] 0, 128
  %5667 = vxpose.xlu0.c.b16.cont [6/8] 0, 128
  %5668 = vxpose.xlu0.c.b16.cont [7/8] 0, 128
  %5669 = vxpose.xlu0.c.b16.end [8/8] 0, 128
  %v5670 = vpop.trf.xlu0
  %v5671 = vpop.trf.xlu0
  %v5672 = vpop.trf.xlu0
  %v5673 = vpop.trf.xlu0
  %v5674 = vpop.trf.xlu0
  %v5675 = vpop.trf.xlu0
  %v5676 = vpop.trf.xlu0
  %v5677 = vpop.trf.xlu0
  %5678 = vxpose.xlu0.c.b16.start [1/8] %v4868, 128
  %5679 = vxpose.xlu0.c.b16.cont [2/8] 0, 128
  %5680 = vxpose.xlu0.c.b16.cont [3/8] 0, 128
  %5681 = vxpose.xlu0.c.b16.cont [4/8] 0, 128
  %5682 = vxpose.xlu0.c.b16.cont [5/8] 0, 128
  %5683 = vxpose.xlu0.c.b16.cont [6/8] 0, 128
  %5684 = vxpose.xlu0.c.b16.cont [7/8] 0, 128
  %5685 = vxpose.xlu0.c.b16.end [8/8] 0, 128
  %v5686 = vpop.trf.xlu0
  %v5687 = vpop.trf.xlu0
  %v5688 = vpop.trf.xlu0
  %v5689 = vpop.trf.xlu0
  %v5690 = vpop.trf.xlu0
  %v5691 = vpop.trf.xlu0
  %v5692 = vpop.trf.xlu0
  %v5693 = vpop.trf.xlu0
  %5694 = vxpose.xlu0.c.b16.start [1/8] %v4869, 128
  %5695 = vxpose.xlu0.c.b16.cont [2/8] 0, 128
  %5696 = vxpose.xlu0.c.b16.cont [3/8] 0, 128
  %5697 = vxpose.xlu0.c.b16.cont [4/8] 0, 128
  %5698 = vxpose.xlu0.c.b16.cont [5/8] 0, 128
  %5699 = vxpose.xlu0.c.b16.cont [6/8] 0, 128
  %5700 = vxpose.xlu0.c.b16.cont [7/8] 0, 128
  %5701 = vxpose.xlu0.c.b16.end [8/8] 0, 128
  %v5702 = vpop.trf.xlu0
  %v5703 = vpop.trf.xlu0
  %v5704 = vpop.trf.xlu0
  %v5705 = vpop.trf.xlu0
  %v5706 = vpop.trf.xlu0
  %v5707 = vpop.trf.xlu0
  %v5708 = vpop.trf.xlu0
  %v5709 = vpop.trf.xlu0
  %v5710 = vcombine.low %v5590, %v5654
  %v5712 = vunpack.c.l.s4 1983009808
  %v5713 = vunpack.c.0.s8 %v5712
  %v5714 = vlaneseq
  %v5715 = vshrl.u32 %v5714, 7
  %v5716 = vsub.s32 %v5713, %v5715
  %v5717 = vrot.slane %v5710, %v5716
  %v5718 = vcombine.low %v5622, %v5686
  %v5720 = vunpack.c.l.s4 1983009808
  %v5721 = vunpack.c.0.s8 %v5720
  %v5722 = vlaneseq
  %v5723 = vshrl.u32 %v5722, 7
  %v5724 = vsub.s32 %v5721, %v5723
  %v5725 = vrot.slane %v5718, %v5724
  %v5726 = vcombine.low %v5717, %v5725
  %v5727 = vcombine.high %v5717, %v5725
  %v5729 = vunpack.c.l.s4 1934713408
  %v5730 = vunpack.c.0.s8 %v5729
  %v5731 = vlaneseq
  %v5732 = vshrl.u32 %v5731, 7
  %v5733 = vsub.s32 %v5730, %v5732
  %v5734 = vrot.slane %v5726, %v5733
  %v5736 = vunpack.c.l.s4 1934713408
  %v5737 = vunpack.c.0.s8 %v5736
  %v5738 = vlaneseq
  %v5739 = vshrl.u32 %v5738, 7
  %v5740 = vsub.s32 %v5737, %v5739
  %v5741 = vrot.slane %v5727, %v5740
  %v5742 = vcombine.high %v5734, 0
  %v5743 = vcombine.high %v5741, 0
  %v5744 = vcombine.low %v5606, %v5670
  %v5746 = vunpack.c.l.s4 1983009808
  %v5747 = vunpack.c.0.s8 %v5746
  %v5748 = vlaneseq
  %v5749 = vshrl.u32 %v5748, 7
  %v5750 = vsub.s32 %v5747, %v5749
  %v5751 = vrot.slane %v5744, %v5750
  %v5752 = vcombine.low %v5638, %v5702
  %v5754 = vunpack.c.l.s4 1983009808
  %v5755 = vunpack.c.0.s8 %v5754
  %v5756 = vlaneseq
  %v5757 = vshrl.u32 %v5756, 7
  %v5758 = vsub.s32 %v5755, %v5757
  %v5759 = vrot.slane %v5752, %v5758
  %v5760 = vcombine.low %v5751, %v5759
  %v5761 = vcombine.high %v5751, %v5759
  %v5763 = vunpack.c.l.s4 1934713408
  %v5764 = vunpack.c.0.s8 %v5763
  %v5765 = vlaneseq
  %v5766 = vshrl.u32 %v5765, 7
  %v5767 = vsub.s32 %v5764, %v5766
  %v5768 = vrot.slane %v5760, %v5767
  %v5770 = vunpack.c.l.s4 1934713408
  %v5771 = vunpack.c.0.s8 %v5770
  %v5772 = vlaneseq
  %v5773 = vshrl.u32 %v5772, 7
  %v5774 = vsub.s32 %v5771, %v5773
  %v5775 = vrot.slane %v5761, %v5774
  %v5776 = vcombine.high %v5768, 0
  %v5777 = vcombine.high %v5775, 0
  %v5780 = vpack.i.b16 %v5768, %v5734
  %v5782 = vshrl.u32 %v5734, 16
  %v5783 = vshrl.u32 %v5768, 16
  %v5784 = vpack.i.b16 %v5783, %v5782
  %v5788 = vpack.i.b16 %v5776, %v5742
  %v5790 = vshrl.u32 %v5742, 16
  %v5791 = vshrl.u32 %v5776, 16
  %v5792 = vpack.i.b16 %v5791, %v5790
  %v5796 = vpack.i.b16 %v5775, %v5741
  %v5798 = vshrl.u32 %v5741, 16
  %v5799 = vshrl.u32 %v5775, 16
  %v5800 = vpack.i.b16 %v5799, %v5798
  %v5804 = vpack.i.b16 %v5777, %v5743
  %v5806 = vshrl.u32 %v5743, 16
  %v5807 = vshrl.u32 %v5777, 16
  %v5808 = vpack.i.b16 %v5807, %v5806
  %5810 = vxpose.xlu0.c.b16.start [1/8] %v5780, 128
  %5811 = vxpose.xlu0.c.b16.cont [2/8] 0, 128
  %5812 = vxpose.xlu0.c.b16.cont [3/8] 0, 128
  %5813 = vxpose.xlu0.c.b16.cont [4/8] 0, 128
  %5814 = vxpose.xlu0.c.b16.cont [5/8] 0, 128
  %5815 = vxpose.xlu0.c.b16.cont [6/8] 0, 128
  %5816 = vxpose.xlu0.c.b16.cont [7/8] 0, 128
  %5817 = vxpose.xlu0.c.b16.end [8/8] 0, 128
  %v5818 = vpop.trf.xlu0
  %v5819 = vpop.trf.xlu0
  %v5820 = vpop.trf.xlu0
  %v5821 = vpop.trf.xlu0
  %v5822 = vpop.trf.xlu0
  %v5823 = vpop.trf.xlu0
  %v5824 = vpop.trf.xlu0
  %v5825 = vpop.trf.xlu0
  %5826 = vxpose.xlu0.c.b16.start [1/8] %v5784, 128
  %5827 = vxpose.xlu0.c.b16.cont [2/8] 0, 128
  %5828 = vxpose.xlu0.c.b16.cont [3/8] 0, 128
  %5829 = vxpose.xlu0.c.b16.cont [4/8] 0, 128
  %5830 = vxpose.xlu0.c.b16.cont [5/8] 0, 128
  %5831 = vxpose.xlu0.c.b16.cont [6/8] 0, 128
  %5832 = vxpose.xlu0.c.b16.cont [7/8] 0, 128
  %5833 = vxpose.xlu0.c.b16.end [8/8] 0, 128
  %v5834 = vpop.trf.xlu0
  %v5835 = vpop.trf.xlu0
  %v5836 = vpop.trf.xlu0
  %v5837 = vpop.trf.xlu0
  %v5838 = vpop.trf.xlu0
  %v5839 = vpop.trf.xlu0
  %v5840 = vpop.trf.xlu0
  %v5841 = vpop.trf.xlu0
  %5842 = vxpose.xlu0.c.b16.start [1/8] %v5788, 128
  %5843 = vxpose.xlu0.c.b16.cont [2/8] 0, 128
  %5844 = vxpose.xlu0.c.b16.cont [3/8] 0, 128
  %5845 = vxpose.xlu0.c.b16.cont [4/8] 0, 128
  %5846 = vxpose.xlu0.c.b16.cont [5/8] 0, 128
  %5847 = vxpose.xlu0.c.b16.cont [6/8] 0, 128
  %5848 = vxpose.xlu0.c.b16.cont [7/8] 0, 128
  %5849 = vxpose.xlu0.c.b16.end [8/8] 0, 128
  %v5850 = vpop.trf.xlu0
  %v5851 = vpop.trf.xlu0
  %v5852 = vpop.trf.xlu0
  %v5853 = vpop.trf.xlu0
  %v5854 = vpop.trf.xlu0
  %v5855 = vpop.trf.xlu0
  %v5856 = vpop.trf.xlu0
  %v5857 = vpop.trf.xlu0
  %5858 = vxpose.xlu0.c.b16.start [1/8] %v5792, 128
  %5859 = vxpose.xlu0.c.b16.cont [2/8] 0, 128
  %5860 = vxpose.xlu0.c.b16.cont [3/8] 0, 128
  %5861 = vxpose.xlu0.c.b16.cont [4/8] 0, 128
  %5862 = vxpose.xlu0.c.b16.cont [5/8] 0, 128
  %5863 = vxpose.xlu0.c.b16.cont [6/8] 0, 128
  %5864 = vxpose.xlu0.c.b16.cont [7/8] 0, 128
  %5865 = vxpose.xlu0.c.b16.end [8/8] 0, 128
  %v5866 = vpop.trf.xlu0
  %v5867 = vpop.trf.xlu0
  %v5868 = vpop.trf.xlu0
  %v5869 = vpop.trf.xlu0
  %v5870 = vpop.trf.xlu0
  %v5871 = vpop.trf.xlu0
  %v5872 = vpop.trf.xlu0
  %v5873 = vpop.trf.xlu0
  %5874 = vxpose.xlu0.c.b16.start [1/8] %v5796, 128
  %5875 = vxpose.xlu0.c.b16.cont [2/8] 0, 128
  %5876 = vxpose.xlu0.c.b16.cont [3/8] 0, 128
  %5877 = vxpose.xlu0.c.b16.cont [4/8] 0, 128
  %5878 = vxpose.xlu0.c.b16.cont [5/8] 0, 128
  %5879 = vxpose.xlu0.c.b16.cont [6/8] 0, 128
  %5880 = vxpose.xlu0.c.b16.cont [7/8] 0, 128
  %5881 = vxpose.xlu0.c.b16.end [8/8] 0, 128
  %v5882 = vpop.trf.xlu0
  %v5883 = vpop.trf.xlu0
  %v5884 = vpop.trf.xlu0
  %v5885 = vpop.trf.xlu0
  %v5886 = vpop.trf.xlu0
  %v5887 = vpop.trf.xlu0
  %v5888 = vpop.trf.xlu0
  %v5889 = vpop.trf.xlu0
  %5890 = vxpose.xlu0.c.b16.start [1/8] %v5800, 128
  %5891 = vxpose.xlu0.c.b16.cont [2/8] 0, 128
  %5892 = vxpose.xlu0.c.b16.cont [3/8] 0, 128
  %5893 = vxpose.xlu0.c.b16.cont [4/8] 0, 128
  %5894 = vxpose.xlu0.c.b16.cont [5/8] 0, 128
  %5895 = vxpose.xlu0.c.b16.cont [6/8] 0, 128
  %5896 = vxpose.xlu0.c.b16.cont [7/8] 0, 128
  %5897 = vxpose.xlu0.c.b16.end [8/8] 0, 128
  %v5898 = vpop.trf.xlu0
  %v5899 = vpop.trf.xlu0
  %v5900 = vpop.trf.xlu0
  %v5901 = vpop.trf.xlu0
  %v5902 = vpop.trf.xlu0
  %v5903 = vpop.trf.xlu0
  %v5904 = vpop.trf.xlu0
  %v5905 = vpop.trf.xlu0
  %5906 = vxpose.xlu0.c.b16.start [1/8] %v5804, 128
  %5907 = vxpose.xlu0.c.b16.cont [2/8] 0, 128
  %5908 = vxpose.xlu0.c.b16.cont [3/8] 0, 128
  %5909 = vxpose.xlu0.c.b16.cont [4/8] 0, 128
  %5910 = vxpose.xlu0.c.b16.cont [5/8] 0, 128
  %5911 = vxpose.xlu0.c.b16.cont [6/8] 0, 128
  %5912 = vxpose.xlu0.c.b16.cont [7/8] 0, 128
  %5913 = vxpose.xlu0.c.b16.end [8/8] 0, 128
  %v5914 = vpop.trf.xlu0
  %v5915 = vpop.trf.xlu0
  %v5916 = vpop.trf.xlu0
  %v5917 = vpop.trf.xlu0
  %v5918 = vpop.trf.xlu0
  %v5919 = vpop.trf.xlu0
  %v5920 = vpop.trf.xlu0
  %v5921 = vpop.trf.xlu0
  %5922 = vxpose.xlu0.c.b16.start [1/8] %v5808, 128
  %5923 = vxpose.xlu0.c.b16.cont [2/8] 0, 128
  %5924 = vxpose.xlu0.c.b16.cont [3/8] 0, 128
  %5925 = vxpose.xlu0.c.b16.cont [4/8] 0, 128
  %5926 = vxpose.xlu0.c.b16.cont [5/8] 0, 128
  %5927 = vxpose.xlu0.c.b16.cont [6/8] 0, 128
  %5928 = vxpose.xlu0.c.b16.cont [7/8] 0, 128
  %5929 = vxpose.xlu0.c.b16.end [8/8] 0, 128
  %v5930 = vpop.trf.xlu0
  %v5931 = vpop.trf.xlu0
  %v5932 = vpop.trf.xlu0
  %v5933 = vpop.trf.xlu0
  %v5934 = vpop.trf.xlu0
  %v5935 = vpop.trf.xlu0
  %v5936 = vpop.trf.xlu0
  %v5937 = vpop.trf.xlu0
  %v5938 = vcombine.low %v5818, %v5882
  %v5940 = vunpack.c.l.s4 1983009808
  %v5941 = vunpack.c.0.s8 %v5940
  %v5942 = vlaneseq
  %v5943 = vshrl.u32 %v5942, 7
  %v5944 = vsub.s32 %v5941, %v5943
  %v5945 = vrot.slane %v5938, %v5944
  %v5946 = vcombine.low %v5850, %v5914
  %v5948 = vunpack.c.l.s4 1983009808
  %v5949 = vunpack.c.0.s8 %v5948
  %v5950 = vlaneseq
  %v5951 = vshrl.u32 %v5950, 7
  %v5952 = vsub.s32 %v5949, %v5951
  %v5953 = vrot.slane %v5946, %v5952
  %v5954 = vcombine.low %v5945, %v5953
  %v5956 = vunpack.c.l.s4 1934713408
  %v5957 = vunpack.c.0.s8 %v5956
  %v5958 = vlaneseq
  %v5959 = vshrl.u32 %v5958, 7
  %v5960 = vsub.s32 %v5957, %v5959
  %v5961 = vrot.slane %v5954, %v5960
  %v5962 = vcombine.high %v5961, 0
  %v5963 = vcombine.low %v5834, %v5898
  %v5965 = vunpack.c.l.s4 1983009808
  %v5966 = vunpack.c.0.s8 %v5965
  %v5967 = vlaneseq
  %v5968 = vshrl.u32 %v5967, 7
  %v5969 = vsub.s32 %v5966, %v5968
  %v5970 = vrot.slane %v5963, %v5969
  %v5971 = vcombine.low %v5866, %v5930
  %v5973 = vunpack.c.l.s4 1983009808
  %v5974 = vunpack.c.0.s8 %v5973
  %v5975 = vlaneseq
  %v5976 = vshrl.u32 %v5975, 7
  %v5977 = vsub.s32 %v5974, %v5976
  %v5978 = vrot.slane %v5971, %v5977
  %v5979 = vcombine.low %v5970, %v5978
  %v5981 = vunpack.c.l.s4 1934713408
  %v5982 = vunpack.c.0.s8 %v5981
  %v5983 = vlaneseq
  %v5984 = vshrl.u32 %v5983, 7
  %v5985 = vsub.s32 %v5982, %v5984
  %v5986 = vrot.slane %v5979, %v5985
  %v5987 = vcombine.high %v5986, 0
  %v5990 = vpack.i.b16 %v5986, %v5961
  %v5991 = vshrl.u32 %v5961, 16
  %v5992 = vshrl.u32 %v5986, 16
  %v5993 = vpack.i.b16 %v5992, %v5991
  %v5996 = vpack.i.b16 %v5987, %v5962
  %v5997 = vshrl.u32 %v5962, 16
  %v5998 = vshrl.u32 %v5987, 16
  %v5999 = vpack.i.b16 %v5998, %v5997
  %v6001 = vsel %vm1129, %v5990, 0
  %v6004 = vsel %vm1129, %v5578, 0
  %6006 = vmatprep.subr.bf16.mxu0 0
  %6007 = vmatpush1.bf16.xpose.msra.mxu0 0
  %6008 = vmatprep.subr.bf16.mxu0 0
  %6009 = vmatpush1.bf16.xpose.msra.mxu0 0
  %6010 = vmatprep.subr.bf16.mxu0 0
  %6011 = vmatpush1.bf16.xpose.msra.mxu0 0
  %6012 = vmatprep.subr.bf16.mxu0 0
  %6013 = vmatpush1.bf16.xpose.msra.mxu0 0
  %6014 = vmatprep.subr.bf16.mxu0 0
  %6015 = vmatpush1.bf16.xpose.msra.mxu0 0
  %6016 = vmatprep.subr.bf16.mxu0 0
  %6017 = vmatpush1.bf16.xpose.msra.mxu0 0
  %6018 = vmatprep.subr.bf16.mxu0 0
  %6019 = vmatpush1.bf16.xpose.msra.mxu0 0
  %6020 = vmatprep.subr.bf16.mxu0 0
  %6021 = vmatpush1.bf16.xpose.msra.mxu0 %v6004
  %6022 = vmatprep.subr.bf16.mxu0 0
  %6023 = vmatpush2.bf16.xpose.msra.mxu0 0
  %6024 = vmatprep.subr.bf16.mxu0 0
  %6025 = vmatpush2.bf16.xpose.msra.mxu0 0
  %6026 = vmatprep.subr.bf16.mxu0 0
  %6027 = vmatpush2.bf16.xpose.msra.mxu0 0
  %6028 = vmatprep.subr.bf16.mxu0 0
  %6029 = vmatpush2.bf16.xpose.msra.mxu0 0
  %6030 = vmatprep.subr.bf16.mxu0 0
  %6031 = vmatpush2.bf16.xpose.msra.mxu0 0
  %6032 = vmatprep.subr.bf16.mxu0 0
  %6033 = vmatpush2.bf16.xpose.msra.mxu0 0
  %6034 = vmatprep.subr.bf16.mxu0 0
  %6035 = vmatpush2.bf16.xpose.msra.mxu0 0
  %6036 = vmatprep.subr.bf16.mxu0 0
  %6037 = vmatpush2.bf16.xpose.msra.mxu0 0
  %6038 = vmatprep.mubr.bf16.mxu0 0
  %6039 = vmatmul.mubr.bf16.gmra.mxu0 %v6001
  %v6040 = vpop.f32.mrf.mxu0
  %v6041 = vadd.f32 0.0, %v6040
  %v6042 = vpop.f32.mrf.mxu0
  %v6043 = vpop.f32.mrf.mxu0
  %v6044 = vpop.f32.mrf.mxu0
  %6045 = vdwg.mxu0
  %v6047 = vsel %vm1129, %v5993, 0
  %v6050 = vsel %vm1129, %v5579, 0
  %6052 = vmatprep.subr.bf16.mxu0 0
  %6053 = vmatpush1.bf16.xpose.msra.mxu0 0
  %6054 = vmatprep.subr.bf16.mxu0 0
  %6055 = vmatpush1.bf16.xpose.msra.mxu0 0
  %6056 = vmatprep.subr.bf16.mxu0 0
  %6057 = vmatpush1.bf16.xpose.msra.mxu0 0
  %6058 = vmatprep.subr.bf16.mxu0 0
  %6059 = vmatpush1.bf16.xpose.msra.mxu0 0
  %6060 = vmatprep.subr.bf16.mxu0 0
  %6061 = vmatpush1.bf16.xpose.msra.mxu0 0
  %6062 = vmatprep.subr.bf16.mxu0 0
  %6063 = vmatpush1.bf16.xpose.msra.mxu0 0
  %6064 = vmatprep.subr.bf16.mxu0 0
  %6065 = vmatpush1.bf16.xpose.msra.mxu0 0
  %6066 = vmatprep.subr.bf16.mxu0 0
  %6067 = vmatpush1.bf16.xpose.msra.mxu0 %v6050
  %6068 = vmatprep.subr.bf16.mxu0 0
  %6069 = vmatpush2.bf16.xpose.msra.mxu0 0
  %6070 = vmatprep.subr.bf16.mxu0 0
  %6071 = vmatpush2.bf16.xpose.msra.mxu0 0
  %6072 = vmatprep.subr.bf16.mxu0 0
  %6073 = vmatpush2.bf16.xpose.msra.mxu0 0
  %6074 = vmatprep.subr.bf16.mxu0 0
  %6075 = vmatpush2.bf16.xpose.msra.mxu0 0
  %6076 = vmatprep.subr.bf16.mxu0 0
  %6077 = vmatpush2.bf16.xpose.msra.mxu0 0
  %6078 = vmatprep.subr.bf16.mxu0 0
  %6079 = vmatpush2.bf16.xpose.msra.mxu0 0
  %6080 = vmatprep.subr.bf16.mxu0 0
  %6081 = vmatpush2.bf16.xpose.msra.mxu0 0
  %6082 = vmatprep.subr.bf16.mxu0 0
  %6083 = vmatpush2.bf16.xpose.msra.mxu0 0
  %6084 = vmatprep.mubr.bf16.mxu0 0
  %6085 = vmatmul.mubr.bf16.gmra.mxu0 %v6047
  %v6086 = vpop.f32.mrf.mxu0
  %v6087 = vadd.f32 0.0, %v6086
  %v6088 = vpop.f32.mrf.mxu0
  %v6089 = vpop.f32.mrf.mxu0
  %v6090 = vpop.f32.mrf.mxu0
  %6091 = vdwg.mxu0
  %v6093 = vsel %vm1129, %v5996, 0
  %v6096 = vsel %vm1129, %v5580, 0
  %6098 = vmatprep.subr.bf16.mxu0 0
  %6099 = vmatpush1.bf16.xpose.msra.mxu0 0
  %6100 = vmatprep.subr.bf16.mxu0 0
  %6101 = vmatpush1.bf16.xpose.msra.mxu0 0
  %6102 = vmatprep.subr.bf16.mxu0 0
  %6103 = vmatpush1.bf16.xpose.msra.mxu0 0
  %6104 = vmatprep.subr.bf16.mxu0 0
  %6105 = vmatpush1.bf16.xpose.msra.mxu0 0
  %6106 = vmatprep.subr.bf16.mxu0 0
  %6107 = vmatpush1.bf16.xpose.msra.mxu0 0
  %6108 = vmatprep.subr.bf16.mxu0 0
  %6109 = vmatpush1.bf16.xpose.msra.mxu0 0
  %6110 = vmatprep.subr.bf16.mxu0 0
  %6111 = vmatpush1.bf16.xpose.msra.mxu0 0
  %6112 = vmatprep.subr.bf16.mxu0 0
  %6113 = vmatpush1.bf16.xpose.msra.mxu0 %v6096
  %6114 = vmatprep.subr.bf16.mxu0 0
  %6115 = vmatpush2.bf16.xpose.msra.mxu0 0
  %6116 = vmatprep.subr.bf16.mxu0 0
  %6117 = vmatpush2.bf16.xpose.msra.mxu0 0
  %6118 = vmatprep.subr.bf16.mxu0 0
  %6119 = vmatpush2.bf16.xpose.msra.mxu0 0
  %6120 = vmatprep.subr.bf16.mxu0 0
  %6121 = vmatpush2.bf16.xpose.msra.mxu0 0
  %6122 = vmatprep.subr.bf16.mxu0 0
  %6123 = vmatpush2.bf16.xpose.msra.mxu0 0
  %6124 = vmatprep.subr.bf16.mxu0 0
  %6125 = vmatpush2.bf16.xpose.msra.mxu0 0
  %6126 = vmatprep.subr.bf16.mxu0 0
  %6127 = vmatpush2.bf16.xpose.msra.mxu0 0
  %6128 = vmatprep.subr.bf16.mxu0 0
  %6129 = vmatpush2.bf16.xpose.msra.mxu0 0
  %6130 = vmatprep.mubr.bf16.mxu0 0
  %6131 = vmatmul.mubr.bf16.gmra.mxu0 %v6093
  %v6132 = vpop.f32.mrf.mxu0
  %v6133 = vadd.f32 0.0, %v6132
  %v6134 = vpop.f32.mrf.mxu0
  %v6135 = vpop.f32.mrf.mxu0
  %v6136 = vpop.f32.mrf.mxu0
  %6137 = vdwg.mxu0
  %v6139 = vsel %vm1129, %v5999, 0
  %v6142 = vsel %vm1129, %v5581, 0
  %6144 = vmatprep.subr.bf16.mxu0 0
  %6145 = vmatpush1.bf16.xpose.msra.mxu0 0
  %6146 = vmatprep.subr.bf16.mxu0 0
  %6147 = vmatpush1.bf16.xpose.msra.mxu0 0
  %6148 = vmatprep.subr.bf16.mxu0 0
  %6149 = vmatpush1.bf16.xpose.msra.mxu0 0
  %6150 = vmatprep.subr.bf16.mxu0 0
  %6151 = vmatpush1.bf16.xpose.msra.mxu0 0
  %6152 = vmatprep.subr.bf16.mxu0 0
  %6153 = vmatpush1.bf16.xpose.msra.mxu0 0
  %6154 = vmatprep.subr.bf16.mxu0 0
  %6155 = vmatpush1.bf16.xpose.msra.mxu0 0
  %6156 = vmatprep.subr.bf16.mxu0 0
  %6157 = vmatpush1.bf16.xpose.msra.mxu0 0
  %6158 = vmatprep.subr.bf16.mxu0 0
  %6159 = vmatpush1.bf16.xpose.msra.mxu0 %v6142
  %6160 = vmatprep.subr.bf16.mxu0 0
  %6161 = vmatpush2.bf16.xpose.msra.mxu0 0
  %6162 = vmatprep.subr.bf16.mxu0 0
  %6163 = vmatpush2.bf16.xpose.msra.mxu0 0
  %6164 = vmatprep.subr.bf16.mxu0 0
  %6165 = vmatpush2.bf16.xpose.msra.mxu0 0
  %6166 = vmatprep.subr.bf16.mxu0 0
  %6167 = vmatpush2.bf16.xpose.msra.mxu0 0
  %6168 = vmatprep.subr.bf16.mxu0 0
  %6169 = vmatpush2.bf16.xpose.msra.mxu0 0
  %6170 = vmatprep.subr.bf16.mxu0 0
  %6171 = vmatpush2.bf16.xpose.msra.mxu0 0
  %6172 = vmatprep.subr.bf16.mxu0 0
  %6173 = vmatpush2.bf16.xpose.msra.mxu0 0
  %6174 = vmatprep.subr.bf16.mxu0 0
  %6175 = vmatpush2.bf16.xpose.msra.mxu0 0
  %6176 = vmatprep.mubr.bf16.mxu0 0
  %6177 = vmatmul.mubr.bf16.gmra.mxu0 %v6139
  %v6178 = vpop.f32.mrf.mxu0
  %v6179 = vadd.f32 0.0, %v6178
  %v6180 = vpop.f32.mrf.mxu0
  %v6181 = vpop.f32.mrf.mxu0
  %v6182 = vpop.f32.mrf.mxu0
  %6183 = vdwg.mxu0
  %6184 = vxpose.xlu0.b32.start [1/16] %v6041, 128
  %6185 = vxpose.xlu0.b32.cont [2/16] 0.0, 128
  %6186 = vxpose.xlu0.b32.cont [3/16] 0.0, 128
  %6187 = vxpose.xlu0.b32.cont [4/16] 0.0, 128
  %6188 = vxpose.xlu0.b32.cont [5/16] 0.0, 128
  %6189 = vxpose.xlu0.b32.cont [6/16] 0.0, 128
  %6190 = vxpose.xlu0.b32.cont [7/16] 0.0, 128
  %6191 = vxpose.xlu0.b32.cont [8/16] 0.0, 128
  %6192 = vxpose.xlu0.b32.cont [9/16] 0.0, 128
  %6193 = vxpose.xlu0.b32.cont [10/16] 0.0, 128
  %6194 = vxpose.xlu0.b32.cont [11/16] 0.0, 128
  %6195 = vxpose.xlu0.b32.cont [12/16] 0.0, 128
  %6196 = vxpose.xlu0.b32.cont [13/16] 0.0, 128
  %6197 = vxpose.xlu0.b32.cont [14/16] 0.0, 128
  %6198 = vxpose.xlu0.b32.cont [15/16] 0.0, 128
  %6199 = vxpose.xlu0.b32.end [16/16] 0.0, 128
  %v6200 = vpop.trf.xlu0
  %v6201 = vpop.trf.xlu0
  %v6202 = vpop.trf.xlu0
  %v6203 = vpop.trf.xlu0
  %v6204 = vpop.trf.xlu0
  %v6205 = vpop.trf.xlu0
  %v6206 = vpop.trf.xlu0
  %v6207 = vpop.trf.xlu0
  %v6208 = vpop.trf.xlu0
  %v6209 = vpop.trf.xlu0
  %v6210 = vpop.trf.xlu0
  %v6211 = vpop.trf.xlu0
  %v6212 = vpop.trf.xlu0
  %v6213 = vpop.trf.xlu0
  %v6214 = vpop.trf.xlu0
  %v6215 = vpop.trf.xlu0
  %6216 = vxpose.xlu0.b32.start [1/16] %v6087, 128
  %6217 = vxpose.xlu0.b32.cont [2/16] 0.0, 128
  %6218 = vxpose.xlu0.b32.cont [3/16] 0.0, 128
  %6219 = vxpose.xlu0.b32.cont [4/16] 0.0, 128
  %6220 = vxpose.xlu0.b32.cont [5/16] 0.0, 128
  %6221 = vxpose.xlu0.b32.cont [6/16] 0.0, 128
  %6222 = vxpose.xlu0.b32.cont [7/16] 0.0, 128
  %6223 = vxpose.xlu0.b32.cont [8/16] 0.0, 128
  %6224 = vxpose.xlu0.b32.cont [9/16] 0.0, 128
  %6225 = vxpose.xlu0.b32.cont [10/16] 0.0, 128
  %6226 = vxpose.xlu0.b32.cont [11/16] 0.0, 128
  %6227 = vxpose.xlu0.b32.cont [12/16] 0.0, 128
  %6228 = vxpose.xlu0.b32.cont [13/16] 0.0, 128
  %6229 = vxpose.xlu0.b32.cont [14/16] 0.0, 128
  %6230 = vxpose.xlu0.b32.cont [15/16] 0.0, 128
  %6231 = vxpose.xlu0.b32.end [16/16] 0.0, 128
  %v6232 = vpop.trf.xlu0
  %v6233 = vpop.trf.xlu0
  %v6234 = vpop.trf.xlu0
  %v6235 = vpop.trf.xlu0
  %v6236 = vpop.trf.xlu0
  %v6237 = vpop.trf.xlu0
  %v6238 = vpop.trf.xlu0
  %v6239 = vpop.trf.xlu0
  %v6240 = vpop.trf.xlu0
  %v6241 = vpop.trf.xlu0
  %v6242 = vpop.trf.xlu0
  %v6243 = vpop.trf.xlu0
  %v6244 = vpop.trf.xlu0
  %v6245 = vpop.trf.xlu0
  %v6246 = vpop.trf.xlu0
  %v6247 = vpop.trf.xlu0
  %6248 = vxpose.xlu0.b32.start [1/16] %v6133, 128
  %6249 = vxpose.xlu0.b32.cont [2/16] 0.0, 128
  %6250 = vxpose.xlu0.b32.cont [3/16] 0.0, 128
  %6251 = vxpose.xlu0.b32.cont [4/16] 0.0, 128
  %6252 = vxpose.xlu0.b32.cont [5/16] 0.0, 128
  %6253 = vxpose.xlu0.b32.cont [6/16] 0.0, 128
  %6254 = vxpose.xlu0.b32.cont [7/16] 0.0, 128
  %6255 = vxpose.xlu0.b32.cont [8/16] 0.0, 128
  %6256 = vxpose.xlu0.b32.cont [9/16] 0.0, 128
  %6257 = vxpose.xlu0.b32.cont [10/16] 0.0, 128
  %6258 = vxpose.xlu0.b32.cont [11/16] 0.0, 128
  %6259 = vxpose.xlu0.b32.cont [12/16] 0.0, 128
  %6260 = vxpose.xlu0.b32.cont [13/16] 0.0, 128
  %6261 = vxpose.xlu0.b32.cont [14/16] 0.0, 128
  %6262 = vxpose.xlu0.b32.cont [15/16] 0.0, 128
  %6263 = vxpose.xlu0.b32.end [16/16] 0.0, 128
  %v6264 = vpop.trf.xlu0
  %v6265 = vpop.trf.xlu0
  %v6266 = vpop.trf.xlu0
  %v6267 = vpop.trf.xlu0
  %v6268 = vpop.trf.xlu0
  %v6269 = vpop.trf.xlu0
  %v6270 = vpop.trf.xlu0
  %v6271 = vpop.trf.xlu0
  %v6272 = vpop.trf.xlu0
  %v6273 = vpop.trf.xlu0
  %v6274 = vpop.trf.xlu0
  %v6275 = vpop.trf.xlu0
  %v6276 = vpop.trf.xlu0
  %v6277 = vpop.trf.xlu0
  %v6278 = vpop.trf.xlu0
  %v6279 = vpop.trf.xlu0
  %6280 = vxpose.xlu0.b32.start [1/16] %v6179, 128
  %6281 = vxpose.xlu0.b32.cont [2/16] 0.0, 128
  %6282 = vxpose.xlu0.b32.cont [3/16] 0.0, 128
  %6283 = vxpose.xlu0.b32.cont [4/16] 0.0, 128
  %6284 = vxpose.xlu0.b32.cont [5/16] 0.0, 128
  %6285 = vxpose.xlu0.b32.cont [6/16] 0.0, 128
  %6286 = vxpose.xlu0.b32.cont [7/16] 0.0, 128
  %6287 = vxpose.xlu0.b32.cont [8/16] 0.0, 128
  %6288 = vxpose.xlu0.b32.cont [9/16] 0.0, 128
  %6289 = vxpose.xlu0.b32.cont [10/16] 0.0, 128
  %6290 = vxpose.xlu0.b32.cont [11/16] 0.0, 128
  %6291 = vxpose.xlu0.b32.cont [12/16] 0.0, 128
  %6292 = vxpose.xlu0.b32.cont [13/16] 0.0, 128
  %6293 = vxpose.xlu0.b32.cont [14/16] 0.0, 128
  %6294 = vxpose.xlu0.b32.cont [15/16] 0.0, 128
  %6295 = vxpose.xlu0.b32.end [16/16] 0.0, 128
  %v6296 = vpop.trf.xlu0
  %v6297 = vpop.trf.xlu0
  %v6298 = vpop.trf.xlu0
  %v6299 = vpop.trf.xlu0
  %v6300 = vpop.trf.xlu0
  %v6301 = vpop.trf.xlu0
  %v6302 = vpop.trf.xlu0
  %v6303 = vpop.trf.xlu0
  %v6304 = vpop.trf.xlu0
  %v6305 = vpop.trf.xlu0
  %v6306 = vpop.trf.xlu0
  %v6307 = vpop.trf.xlu0
  %v6308 = vpop.trf.xlu0
  %v6309 = vpop.trf.xlu0
  %v6310 = vpop.trf.xlu0
  %v6311 = vpop.trf.xlu0
  %v6312 = vcombine.low %v6200, %v6264
  %v6313 = vcombine.high %v6200, %v6264
  %v6315 = vunpack.c.l.s4 1983009808
  %v6316 = vunpack.c.0.s8 %v6315
  %v6317 = vlaneseq
  %v6318 = vshrl.u32 %v6317, 7
  %v6319 = vsub.s32 %v6316, %v6318
  %v6320 = vrot.slane %v6312, %v6319
  %v6322 = vunpack.c.l.s4 1983009808
  %v6323 = vunpack.c.0.s8 %v6322
  %v6324 = vlaneseq
  %v6325 = vshrl.u32 %v6324, 7
  %v6326 = vsub.s32 %v6323, %v6325
  %v6327 = vrot.slane %v6313, %v6326
  %v6328 = vcombine.low %v6232, %v6296
  %v6329 = vcombine.high %v6232, %v6296
  %v6331 = vunpack.c.l.s4 1983009808
  %v6332 = vunpack.c.0.s8 %v6331
  %v6333 = vlaneseq
  %v6334 = vshrl.u32 %v6333, 7
  %v6335 = vsub.s32 %v6332, %v6334
  %v6336 = vrot.slane %v6328, %v6335
  %v6338 = vunpack.c.l.s4 1983009808
  %v6339 = vunpack.c.0.s8 %v6338
  %v6340 = vlaneseq
  %v6341 = vshrl.u32 %v6340, 7
  %v6342 = vsub.s32 %v6339, %v6341
  %v6343 = vrot.slane %v6329, %v6342
  %v6344 = vcombine.low %v6320, %v6336
  %v6345 = vcombine.high %v6320, %v6336
  %v6347 = vunpack.c.l.s4 1934713408
  %v6348 = vunpack.c.0.s8 %v6347
  %v6349 = vlaneseq
  %v6350 = vshrl.u32 %v6349, 7
  %v6351 = vsub.s32 %v6348, %v6350
  %v6352 = vrot.slane %v6344, %v6351
  %v6354 = vunpack.c.l.s4 1934713408
  %v6355 = vunpack.c.0.s8 %v6354
  %v6356 = vlaneseq
  %v6357 = vshrl.u32 %v6356, 7
  %v6358 = vsub.s32 %v6355, %v6357
  %v6359 = vrot.slane %v6345, %v6358
  %v6360 = vcombine.low %v6327, %v6343
  %v6361 = vcombine.high %v6327, %v6343
  %v6363 = vunpack.c.l.s4 1934713408
  %v6364 = vunpack.c.0.s8 %v6363
  %v6365 = vlaneseq
  %v6366 = vshrl.u32 %v6365, 7
  %v6367 = vsub.s32 %v6364, %v6366
  %v6368 = vrot.slane %v6360, %v6367
  %v6370 = vunpack.c.l.s4 1934713408
  %v6371 = vunpack.c.0.s8 %v6370
  %v6372 = vlaneseq
  %v6373 = vshrl.u32 %v6372, 7
  %v6374 = vsub.s32 %v6371, %v6373
  %v6375 = vrot.slane %v6361, %v6374
  %v6376 = vcombine.high %v6352, 0.0
  %v6377 = vcombine.high %v6359, 0.0
  %v6378 = vcombine.high %v6368, 0.0
  %v6379 = vcombine.high %v6375, 0.0
  %v6380 = vcombine.low %v6352, %v6359
  %v6382 = vunpack.c.l.s4 1983009808
  %v6383 = vunpack.c.0.s8 %v6382
  %v6384 = vlaneseq
  %v6385 = vshrl.u32 %v6384, 7
  %v6386 = vsub.s32 %v6383, %v6385
  %v6387 = vrot.slane %v6380, %v6386
  %v6388 = vcombine.low %v6376, %v6377
  %v6390 = vunpack.c.l.s4 1983009808
  %v6391 = vunpack.c.0.s8 %v6390
  %v6392 = vlaneseq
  %v6393 = vshrl.u32 %v6392, 7
  %v6394 = vsub.s32 %v6391, %v6393
  %v6395 = vrot.slane %v6388, %v6394
  %v6396 = vcombine.low %v6368, %v6375
  %v6398 = vunpack.c.l.s4 1983009808
  %v6399 = vunpack.c.0.s8 %v6398
  %v6400 = vlaneseq
  %v6401 = vshrl.u32 %v6400, 7
  %v6402 = vsub.s32 %v6399, %v6401
  %v6403 = vrot.slane %v6396, %v6402
  %v6404 = vcombine.low %v6378, %v6379
  %v6406 = vunpack.c.l.s4 1983009808
  %v6407 = vunpack.c.0.s8 %v6406
  %v6408 = vlaneseq
  %v6409 = vshrl.u32 %v6408, 7
  %v6410 = vsub.s32 %v6407, %v6409
  %v6411 = vrot.slane %v6404, %v6410
  %v6412 = vcombine.low %v6387, %v6395
  %v6413 = vcombine.high %v6387, %v6395
  %v6415 = vunpack.c.l.s4 1934713408
  %v6416 = vunpack.c.0.s8 %v6415
  %v6417 = vlaneseq
  %v6418 = vshrl.u32 %v6417, 7
  %v6419 = vsub.s32 %v6416, %v6418
  %v6420 = vrot.slane %v6412, %v6419
  %v6422 = vunpack.c.l.s4 1934713408
  %v6423 = vunpack.c.0.s8 %v6422
  %v6424 = vlaneseq
  %v6425 = vshrl.u32 %v6424, 7
  %v6426 = vsub.s32 %v6423, %v6425
  %v6427 = vrot.slane %v6413, %v6426
  %v6428 = vcombine.low %v6403, %v6411
  %v6429 = vcombine.high %v6403, %v6411
  %v6431 = vunpack.c.l.s4 1934713408
  %v6432 = vunpack.c.0.s8 %v6431
  %v6433 = vlaneseq
  %v6434 = vshrl.u32 %v6433, 7
  %v6435 = vsub.s32 %v6432, %v6434
  %v6436 = vrot.slane %v6428, %v6435
  %v6438 = vunpack.c.l.s4 1934713408
  %v6439 = vunpack.c.0.s8 %v6438
  %v6440 = vlaneseq
  %v6441 = vshrl.u32 %v6440, 7
  %v6442 = vsub.s32 %v6439, %v6441
  %v6443 = vrot.slane %v6429, %v6442
  %v6444 = vcombine.low %v6420, %v6436
  %v6445 = vcombine.high %v6420, %v6436
  %v6446 = vcombine.low %v6427, %v6443
  %v6447 = vcombine.high %v6427, %v6443
  %6449 = vrot.lane.b32.xlu0 %v6445, 8
  %v6450 = vpop.permute.xlu0 %6449
  %6453 = vrot.lane.b32.xlu0 %v6446, 16
  %v6454 = vpop.permute.xlu0 %6453
  %6457 = vrot.lane.b32.xlu0 %v6447, 24
  %v6458 = vpop.permute.xlu0 %6457
  %v6460 = vsel %vm1129, %v6444, %v6450
  %v6461 = vsel %vm2242, %v6460, %v6454
  %v6462 = vsel %vm2244, %v6461, %v6458
  %6464 = vrot.lane.b32.xlu0 %v4483, 120
  %v6465 = vpop.permute.xlu0 %6464
  %6467 = vrot.lane.b32.xlu0 %v4483, 112
  %v6468 = vpop.permute.xlu0 %6467
  %6470 = vrot.lane.b32.xlu0 %v4483, 104
  %v6471 = vpop.permute.xlu0 %6470
  %v6473 = vcombine.low %v4483, %v6468
  %v6474 = vcombine.high %v4483, %v6468
  %v6476 = vunpack.c.l.s4 1983009808
  %v6477 = vunpack.c.0.s8 %v6476
  %v6478 = vlaneseq
  %v6479 = vshrl.u32 %v6478, 7
  %v6480 = vsub.s32 %v6477, %v6479
  %v6481 = vrot.slane %v6473, %v6480
  %v6483 = vunpack.c.l.s4 1983009808
  %v6484 = vunpack.c.0.s8 %v6483
  %v6485 = vlaneseq
  %v6486 = vshrl.u32 %v6485, 7
  %v6487 = vsub.s32 %v6484, %v6486
  %v6488 = vrot.slane %v6474, %v6487
  %v6489 = vcombine.low %v6465, %v6471
  %v6490 = vcombine.high %v6465, %v6471
  %v6492 = vunpack.c.l.s4 1983009808
  %v6493 = vunpack.c.0.s8 %v6492
  %v6494 = vlaneseq
  %v6495 = vshrl.u32 %v6494, 7
  %v6496 = vsub.s32 %v6493, %v6495
  %v6497 = vrot.slane %v6489, %v6496
  %v6499 = vunpack.c.l.s4 1983009808
  %v6500 = vunpack.c.0.s8 %v6499
  %v6501 = vlaneseq
  %v6502 = vshrl.u32 %v6501, 7
  %v6503 = vsub.s32 %v6500, %v6502
  %v6504 = vrot.slane %v6490, %v6503
  %v6505 = vcombine.low %v6481, %v6497
  %v6506 = vcombine.high %v6481, %v6497
  %v6508 = vunpack.c.l.s4 1934713408
  %v6509 = vunpack.c.0.s8 %v6508
  %v6510 = vlaneseq
  %v6511 = vshrl.u32 %v6510, 7
  %v6512 = vsub.s32 %v6509, %v6511
  %v6513 = vrot.slane %v6505, %v6512
  %v6515 = vunpack.c.l.s4 1934713408
  %v6516 = vunpack.c.0.s8 %v6515
  %v6517 = vlaneseq
  %v6518 = vshrl.u32 %v6517, 7
  %v6519 = vsub.s32 %v6516, %v6518
  %v6520 = vrot.slane %v6506, %v6519
  %v6521 = vcombine.low %v6488, %v6504
  %v6522 = vcombine.high %v6488, %v6504
  %v6524 = vunpack.c.l.s4 1934713408
  %v6525 = vunpack.c.0.s8 %v6524
  %v6526 = vlaneseq
  %v6527 = vshrl.u32 %v6526, 7
  %v6528 = vsub.s32 %v6525, %v6527
  %v6529 = vrot.slane %v6521, %v6528
  %v6531 = vunpack.c.l.s4 1934713408
  %v6532 = vunpack.c.0.s8 %v6531
  %v6533 = vlaneseq
  %v6534 = vshrl.u32 %v6533, 7
  %v6535 = vsub.s32 %v6532, %v6534
  %v6536 = vrot.slane %v6522, %v6535
  %v6537 = vcombine.high %v6513, 0.0
  %v6538 = vcombine.high %v6520, 0.0
  %v6539 = vcombine.high %v6529, 0.0
  %v6540 = vcombine.high %v6536, 0.0
  %v6541 = vpack.c.bf16 %v6513, %v6513
  %v6542 = vpack.c.bf16 %v6537, %v6537
  %v6543 = vpack.c.bf16 %v6520, %v6520
  %v6544 = vpack.c.bf16 %v6538, %v6538
  %v6545 = vpack.c.bf16 %v6529, %v6529
  %v6546 = vpack.c.bf16 %v6539, %v6539
  %v6547 = vpack.c.bf16 %v6536, %v6536
  %v6548 = vpack.c.bf16 %v6540, %v6540
  %6550 = vrot.lane.b32.xlu0 %v4546, 120
  %v6551 = vpop.permute.xlu0 %6550
  %6553 = vrot.lane.b32.xlu0 %v4546, 112
  %v6554 = vpop.permute.xlu0 %6553
  %6556 = vrot.lane.b32.xlu0 %v4546, 104
  %v6557 = vpop.permute.xlu0 %6556
  %v6559 = vcombine.low %v4546, %v6554
  %v6560 = vcombine.high %v4546, %v6554
  %v6562 = vunpack.c.l.s4 1983009808
  %v6563 = vunpack.c.0.s8 %v6562
  %v6564 = vlaneseq
  %v6565 = vshrl.u32 %v6564, 7
  %v6566 = vsub.s32 %v6563, %v6565
  %v6567 = vrot.slane %v6559, %v6566
  %v6569 = vunpack.c.l.s4 1983009808
  %v6570 = vunpack.c.0.s8 %v6569
  %v6571 = vlaneseq
  %v6572 = vshrl.u32 %v6571, 7
  %v6573 = vsub.s32 %v6570, %v6572
  %v6574 = vrot.slane %v6560, %v6573
  %v6575 = vcombine.low %v6551, %v6557
  %v6576 = vcombine.high %v6551, %v6557
  %v6578 = vunpack.c.l.s4 1983009808
  %v6579 = vunpack.c.0.s8 %v6578
  %v6580 = vlaneseq
  %v6581 = vshrl.u32 %v6580, 7
  %v6582 = vsub.s32 %v6579, %v6581
  %v6583 = vrot.slane %v6575, %v6582
  %v6585 = vunpack.c.l.s4 1983009808
  %v6586 = vunpack.c.0.s8 %v6585
  %v6587 = vlaneseq
  %v6588 = vshrl.u32 %v6587, 7
  %v6589 = vsub.s32 %v6586, %v6588
  %v6590 = vrot.slane %v6576, %v6589
  %v6591 = vcombine.low %v6567, %v6583
  %v6592 = vcombine.high %v6567, %v6583
  %v6594 = vunpack.c.l.s4 1934713408
  %v6595 = vunpack.c.0.s8 %v6594
  %v6596 = vlaneseq
  %v6597 = vshrl.u32 %v6596, 7
  %v6598 = vsub.s32 %v6595, %v6597
  %v6599 = vrot.slane %v6591, %v6598
  %v6601 = vunpack.c.l.s4 1934713408
  %v6602 = vunpack.c.0.s8 %v6601
  %v6603 = vlaneseq
  %v6604 = vshrl.u32 %v6603, 7
  %v6605 = vsub.s32 %v6602, %v6604
  %v6606 = vrot.slane %v6592, %v6605
  %v6607 = vcombine.low %v6574, %v6590
  %v6608 = vcombine.high %v6574, %v6590
  %v6610 = vunpack.c.l.s4 1934713408
  %v6611 = vunpack.c.0.s8 %v6610
  %v6612 = vlaneseq
  %v6613 = vshrl.u32 %v6612, 7
  %v6614 = vsub.s32 %v6611, %v6613
  %v6615 = vrot.slane %v6607, %v6614
  %v6617 = vunpack.c.l.s4 1934713408
  %v6618 = vunpack.c.0.s8 %v6617
  %v6619 = vlaneseq
  %v6620 = vshrl.u32 %v6619, 7
  %v6621 = vsub.s32 %v6618, %v6620
  %v6622 = vrot.slane %v6608, %v6621
  %v6623 = vcombine.high %v6599, 0.0
  %v6624 = vcombine.high %v6606, 0.0
  %v6625 = vcombine.high %v6615, 0.0
  %v6626 = vcombine.high %v6622, 0.0
  %v6627 = vpack.c.bf16 %v6599, %v6599
  %v6628 = vpack.c.bf16 %v6623, %v6623
  %v6629 = vpack.c.bf16 %v6606, %v6606
  %v6630 = vpack.c.bf16 %v6624, %v6624
  %v6631 = vpack.c.bf16 %v6615, %v6615
  %v6632 = vpack.c.bf16 %v6625, %v6625
  %v6633 = vpack.c.bf16 %v6622, %v6622
  %v6634 = vpack.c.bf16 %v6626, %v6626
  %6636 = vrot.lane.b32.xlu0 %v4609, 120
  %v6637 = vpop.permute.xlu0 %6636
  %6639 = vrot.lane.b32.xlu0 %v4609, 112
  %v6640 = vpop.permute.xlu0 %6639
  %6642 = vrot.lane.b32.xlu0 %v4609, 104
  %v6643 = vpop.permute.xlu0 %6642
  %v6645 = vcombine.low %v4609, %v6640
  %v6646 = vcombine.high %v4609, %v6640
  %v6648 = vunpack.c.l.s4 1983009808
  %v6649 = vunpack.c.0.s8 %v6648
  %v6650 = vlaneseq
  %v6651 = vshrl.u32 %v6650, 7
  %v6652 = vsub.s32 %v6649, %v6651
  %v6653 = vrot.slane %v6645, %v6652
  %v6655 = vunpack.c.l.s4 1983009808
  %v6656 = vunpack.c.0.s8 %v6655
  %v6657 = vlaneseq
  %v6658 = vshrl.u32 %v6657, 7
  %v6659 = vsub.s32 %v6656, %v6658
  %v6660 = vrot.slane %v6646, %v6659
  %v6661 = vcombine.low %v6637, %v6643
  %v6662 = vcombine.high %v6637, %v6643
  %v6664 = vunpack.c.l.s4 1983009808
  %v6665 = vunpack.c.0.s8 %v6664
  %v6666 = vlaneseq
  %v6667 = vshrl.u32 %v6666, 7
  %v6668 = vsub.s32 %v6665, %v6667
  %v6669 = vrot.slane %v6661, %v6668
  %v6671 = vunpack.c.l.s4 1983009808
  %v6672 = vunpack.c.0.s8 %v6671
  %v6673 = vlaneseq
  %v6674 = vshrl.u32 %v6673, 7
  %v6675 = vsub.s32 %v6672, %v6674
  %v6676 = vrot.slane %v6662, %v6675
  %v6677 = vcombine.low %v6653, %v6669
  %v6678 = vcombine.high %v6653, %v6669
  %v6680 = vunpack.c.l.s4 1934713408
  %v6681 = vunpack.c.0.s8 %v6680
  %v6682 = vlaneseq
  %v6683 = vshrl.u32 %v6682, 7
  %v6684 = vsub.s32 %v6681, %v6683
  %v6685 = vrot.slane %v6677, %v6684
  %v6687 = vunpack.c.l.s4 1934713408
  %v6688 = vunpack.c.0.s8 %v6687
  %v6689 = vlaneseq
  %v6690 = vshrl.u32 %v6689, 7
  %v6691 = vsub.s32 %v6688, %v6690
  %v6692 = vrot.slane %v6678, %v6691
  %v6693 = vcombine.low %v6660, %v6676
  %v6694 = vcombine.high %v6660, %v6676
  %v6696 = vunpack.c.l.s4 1934713408
  %v6697 = vunpack.c.0.s8 %v6696
  %v6698 = vlaneseq
  %v6699 = vshrl.u32 %v6698, 7
  %v6700 = vsub.s32 %v6697, %v6699
  %v6701 = vrot.slane %v6693, %v6700
  %v6703 = vunpack.c.l.s4 1934713408
  %v6704 = vunpack.c.0.s8 %v6703
  %v6705 = vlaneseq
  %v6706 = vshrl.u32 %v6705, 7
  %v6707 = vsub.s32 %v6704, %v6706
  %v6708 = vrot.slane %v6694, %v6707
  %v6709 = vcombine.high %v6685, 0.0
  %v6710 = vcombine.high %v6692, 0.0
  %v6711 = vcombine.high %v6701, 0.0
  %v6712 = vcombine.high %v6708, 0.0
  %v6713 = vpack.c.bf16 %v6685, %v6685
  %v6714 = vpack.c.bf16 %v6709, %v6709
  %v6715 = vpack.c.bf16 %v6692, %v6692
  %v6716 = vpack.c.bf16 %v6710, %v6710
  %v6717 = vpack.c.bf16 %v6701, %v6701
  %v6718 = vpack.c.bf16 %v6711, %v6711
  %v6719 = vpack.c.bf16 %v6708, %v6708
  %v6720 = vpack.c.bf16 %v6712, %v6712
  %v6721 = vcombine.low %v6541, %v6545
  %v6723 = vunpack.c.l.s4 1983009808
  %v6724 = vunpack.c.0.s8 %v6723
  %v6725 = vlaneseq
  %v6726 = vshrl.u32 %v6725, 7
  %v6727 = vsub.s32 %v6724, %v6726
  %v6728 = vrot.slane %v6721, %v6727
  %v6729 = vcombine.low %v6543, %v6547
  %v6731 = vunpack.c.l.s4 1983009808
  %v6732 = vunpack.c.0.s8 %v6731
  %v6733 = vlaneseq
  %v6734 = vshrl.u32 %v6733, 7
  %v6735 = vsub.s32 %v6732, %v6734
  %v6736 = vrot.slane %v6729, %v6735
  %v6737 = vcombine.low %v6728, %v6736
  %v6739 = vunpack.c.l.s4 1934713408
  %v6740 = vunpack.c.0.s8 %v6739
  %v6741 = vlaneseq
  %v6742 = vshrl.u32 %v6741, 7
  %v6743 = vsub.s32 %v6740, %v6742
  %v6744 = vrot.slane %v6737, %v6743
  %v6745 = vcombine.high %v6744, 0
  %v6746 = vcombine.low %v6542, %v6546
  %v6748 = vunpack.c.l.s4 1983009808
  %v6749 = vunpack.c.0.s8 %v6748
  %v6750 = vlaneseq
  %v6751 = vshrl.u32 %v6750, 7
  %v6752 = vsub.s32 %v6749, %v6751
  %v6753 = vrot.slane %v6746, %v6752
  %v6754 = vcombine.low %v6544, %v6548
  %v6756 = vunpack.c.l.s4 1983009808
  %v6757 = vunpack.c.0.s8 %v6756
  %v6758 = vlaneseq
  %v6759 = vshrl.u32 %v6758, 7
  %v6760 = vsub.s32 %v6757, %v6759
  %v6761 = vrot.slane %v6754, %v6760
  %v6762 = vcombine.low %v6753, %v6761
  %v6764 = vunpack.c.l.s4 1934713408
  %v6765 = vunpack.c.0.s8 %v6764
  %v6766 = vlaneseq
  %v6767 = vshrl.u32 %v6766, 7
  %v6768 = vsub.s32 %v6765, %v6767
  %v6769 = vrot.slane %v6762, %v6768
  %v6770 = vcombine.high %v6769, 0
  %v6773 = vpack.i.b16 %v6769, %v6744
  %v6774 = vshrl.u32 %v6744, 16
  %v6775 = vshrl.u32 %v6769, 16
  %v6776 = vpack.i.b16 %v6775, %v6774
  %v6779 = vpack.i.b16 %v6770, %v6745
  %v6780 = vshrl.u32 %v6745, 16
  %v6781 = vshrl.u32 %v6770, 16
  %v6782 = vpack.i.b16 %v6781, %v6780
  %6783 = vxpose.xlu0.c.b16.start [1/8] %v6627, 128
  %6784 = vxpose.xlu0.c.b16.cont [2/8] 0, 128
  %6785 = vxpose.xlu0.c.b16.cont [3/8] 0, 128
  %6786 = vxpose.xlu0.c.b16.cont [4/8] 0, 128
  %6787 = vxpose.xlu0.c.b16.cont [5/8] 0, 128
  %6788 = vxpose.xlu0.c.b16.cont [6/8] 0, 128
  %6789 = vxpose.xlu0.c.b16.cont [7/8] 0, 128
  %6790 = vxpose.xlu0.c.b16.end [8/8] 0, 128
  %v6791 = vpop.trf.xlu0
  %v6792 = vpop.trf.xlu0
  %v6793 = vpop.trf.xlu0
  %v6794 = vpop.trf.xlu0
  %v6795 = vpop.trf.xlu0
  %v6796 = vpop.trf.xlu0
  %v6797 = vpop.trf.xlu0
  %v6798 = vpop.trf.xlu0
  %6799 = vxpose.xlu0.c.b16.start [1/8] %v6628, 128
  %6800 = vxpose.xlu0.c.b16.cont [2/8] 0, 128
  %6801 = vxpose.xlu0.c.b16.cont [3/8] 0, 128
  %6802 = vxpose.xlu0.c.b16.cont [4/8] 0, 128
  %6803 = vxpose.xlu0.c.b16.cont [5/8] 0, 128
  %6804 = vxpose.xlu0.c.b16.cont [6/8] 0, 128
  %6805 = vxpose.xlu0.c.b16.cont [7/8] 0, 128
  %6806 = vxpose.xlu0.c.b16.end [8/8] 0, 128
  %v6807 = vpop.trf.xlu0
  %v6808 = vpop.trf.xlu0
  %v6809 = vpop.trf.xlu0
  %v6810 = vpop.trf.xlu0
  %v6811 = vpop.trf.xlu0
  %v6812 = vpop.trf.xlu0
  %v6813 = vpop.trf.xlu0
  %v6814 = vpop.trf.xlu0
  %6815 = vxpose.xlu0.c.b16.start [1/8] %v6629, 128
  %6816 = vxpose.xlu0.c.b16.cont [2/8] 0, 128
  %6817 = vxpose.xlu0.c.b16.cont [3/8] 0, 128
  %6818 = vxpose.xlu0.c.b16.cont [4/8] 0, 128
  %6819 = vxpose.xlu0.c.b16.cont [5/8] 0, 128
  %6820 = vxpose.xlu0.c.b16.cont [6/8] 0, 128
  %6821 = vxpose.xlu0.c.b16.cont [7/8] 0, 128
  %6822 = vxpose.xlu0.c.b16.end [8/8] 0, 128
  %v6823 = vpop.trf.xlu0
  %v6824 = vpop.trf.xlu0
  %v6825 = vpop.trf.xlu0
  %v6826 = vpop.trf.xlu0
  %v6827 = vpop.trf.xlu0
  %v6828 = vpop.trf.xlu0
  %v6829 = vpop.trf.xlu0
  %v6830 = vpop.trf.xlu0
  %6831 = vxpose.xlu0.c.b16.start [1/8] %v6630, 128
  %6832 = vxpose.xlu0.c.b16.cont [2/8] 0, 128
  %6833 = vxpose.xlu0.c.b16.cont [3/8] 0, 128
  %6834 = vxpose.xlu0.c.b16.cont [4/8] 0, 128
  %6835 = vxpose.xlu0.c.b16.cont [5/8] 0, 128
  %6836 = vxpose.xlu0.c.b16.cont [6/8] 0, 128
  %6837 = vxpose.xlu0.c.b16.cont [7/8] 0, 128
  %6838 = vxpose.xlu0.c.b16.end [8/8] 0, 128
  %v6839 = vpop.trf.xlu0
  %v6840 = vpop.trf.xlu0
  %v6841 = vpop.trf.xlu0
  %v6842 = vpop.trf.xlu0
  %v6843 = vpop.trf.xlu0
  %v6844 = vpop.trf.xlu0
  %v6845 = vpop.trf.xlu0
  %v6846 = vpop.trf.xlu0
  %6847 = vxpose.xlu0.c.b16.start [1/8] %v6631, 128
  %6848 = vxpose.xlu0.c.b16.cont [2/8] 0, 128
  %6849 = vxpose.xlu0.c.b16.cont [3/8] 0, 128
  %6850 = vxpose.xlu0.c.b16.cont [4/8] 0, 128
  %6851 = vxpose.xlu0.c.b16.cont [5/8] 0, 128
  %6852 = vxpose.xlu0.c.b16.cont [6/8] 0, 128
  %6853 = vxpose.xlu0.c.b16.cont [7/8] 0, 128
  %6854 = vxpose.xlu0.c.b16.end [8/8] 0, 128
  %v6855 = vpop.trf.xlu0
  %v6856 = vpop.trf.xlu0
  %v6857 = vpop.trf.xlu0
  %v6858 = vpop.trf.xlu0
  %v6859 = vpop.trf.xlu0
  %v6860 = vpop.trf.xlu0
  %v6861 = vpop.trf.xlu0
  %v6862 = vpop.trf.xlu0
  %6863 = vxpose.xlu0.c.b16.start [1/8] %v6632, 128
  %6864 = vxpose.xlu0.c.b16.cont [2/8] 0, 128
  %6865 = vxpose.xlu0.c.b16.cont [3/8] 0, 128
  %6866 = vxpose.xlu0.c.b16.cont [4/8] 0, 128
  %6867 = vxpose.xlu0.c.b16.cont [5/8] 0, 128
  %6868 = vxpose.xlu0.c.b16.cont [6/8] 0, 128
  %6869 = vxpose.xlu0.c.b16.cont [7/8] 0, 128
  %6870 = vxpose.xlu0.c.b16.end [8/8] 0, 128
  %v6871 = vpop.trf.xlu0
  %v6872 = vpop.trf.xlu0
  %v6873 = vpop.trf.xlu0
  %v6874 = vpop.trf.xlu0
  %v6875 = vpop.trf.xlu0
  %v6876 = vpop.trf.xlu0
  %v6877 = vpop.trf.xlu0
  %v6878 = vpop.trf.xlu0
  %6879 = vxpose.xlu0.c.b16.start [1/8] %v6633, 128
  %6880 = vxpose.xlu0.c.b16.cont [2/8] 0, 128
  %6881 = vxpose.xlu0.c.b16.cont [3/8] 0, 128
  %6882 = vxpose.xlu0.c.b16.cont [4/8] 0, 128
  %6883 = vxpose.xlu0.c.b16.cont [5/8] 0, 128
  %6884 = vxpose.xlu0.c.b16.cont [6/8] 0, 128
  %6885 = vxpose.xlu0.c.b16.cont [7/8] 0, 128
  %6886 = vxpose.xlu0.c.b16.end [8/8] 0, 128
  %v6887 = vpop.trf.xlu0
  %v6888 = vpop.trf.xlu0
  %v6889 = vpop.trf.xlu0
  %v6890 = vpop.trf.xlu0
  %v6891 = vpop.trf.xlu0
  %v6892 = vpop.trf.xlu0
  %v6893 = vpop.trf.xlu0
  %v6894 = vpop.trf.xlu0
  %6895 = vxpose.xlu0.c.b16.start [1/8] %v6634, 128
  %6896 = vxpose.xlu0.c.b16.cont [2/8] 0, 128
  %6897 = vxpose.xlu0.c.b16.cont [3/8] 0, 128
  %6898 = vxpose.xlu0.c.b16.cont [4/8] 0, 128
  %6899 = vxpose.xlu0.c.b16.cont [5/8] 0, 128
  %6900 = vxpose.xlu0.c.b16.cont [6/8] 0, 128
  %6901 = vxpose.xlu0.c.b16.cont [7/8] 0, 128
  %6902 = vxpose.xlu0.c.b16.end [8/8] 0, 128
  %v6903 = vpop.trf.xlu0
  %v6904 = vpop.trf.xlu0
  %v6905 = vpop.trf.xlu0
  %v6906 = vpop.trf.xlu0
  %v6907 = vpop.trf.xlu0
  %v6908 = vpop.trf.xlu0
  %v6909 = vpop.trf.xlu0
  %v6910 = vpop.trf.xlu0
  %v6911 = vcombine.low %v6791, %v6855
  %v6913 = vunpack.c.l.s4 1983009808
  %v6914 = vunpack.c.0.s8 %v6913
  %v6915 = vlaneseq
  %v6916 = vshrl.u32 %v6915, 7
  %v6917 = vsub.s32 %v6914, %v6916
  %v6918 = vrot.slane %v6911, %v6917
  %v6919 = vcombine.low %v6823, %v6887
  %v6921 = vunpack.c.l.s4 1983009808
  %v6922 = vunpack.c.0.s8 %v6921
  %v6923 = vlaneseq
  %v6924 = vshrl.u32 %v6923, 7
  %v6925 = vsub.s32 %v6922, %v6924
  %v6926 = vrot.slane %v6919, %v6925
  %v6927 = vcombine.low %v6918, %v6926
  %v6928 = vcombine.high %v6918, %v6926
  %v6930 = vunpack.c.l.s4 1934713408
  %v6931 = vunpack.c.0.s8 %v6930
  %v6932 = vlaneseq
  %v6933 = vshrl.u32 %v6932, 7
  %v6934 = vsub.s32 %v6931, %v6933
  %v6935 = vrot.slane %v6927, %v6934
  %v6937 = vunpack.c.l.s4 1934713408
  %v6938 = vunpack.c.0.s8 %v6937
  %v6939 = vlaneseq
  %v6940 = vshrl.u32 %v6939, 7
  %v6941 = vsub.s32 %v6938, %v6940
  %v6942 = vrot.slane %v6928, %v6941
  %v6943 = vcombine.high %v6935, 0
  %v6944 = vcombine.high %v6942, 0
  %v6945 = vcombine.low %v6807, %v6871
  %v6947 = vunpack.c.l.s4 1983009808
  %v6948 = vunpack.c.0.s8 %v6947
  %v6949 = vlaneseq
  %v6950 = vshrl.u32 %v6949, 7
  %v6951 = vsub.s32 %v6948, %v6950
  %v6952 = vrot.slane %v6945, %v6951
  %v6953 = vcombine.low %v6839, %v6903
  %v6955 = vunpack.c.l.s4 1983009808
  %v6956 = vunpack.c.0.s8 %v6955
  %v6957 = vlaneseq
  %v6958 = vshrl.u32 %v6957, 7
  %v6959 = vsub.s32 %v6956, %v6958
  %v6960 = vrot.slane %v6953, %v6959
  %v6961 = vcombine.low %v6952, %v6960
  %v6962 = vcombine.high %v6952, %v6960
  %v6964 = vunpack.c.l.s4 1934713408
  %v6965 = vunpack.c.0.s8 %v6964
  %v6966 = vlaneseq
  %v6967 = vshrl.u32 %v6966, 7
  %v6968 = vsub.s32 %v6965, %v6967
  %v6969 = vrot.slane %v6961, %v6968
  %v6971 = vunpack.c.l.s4 1934713408
  %v6972 = vunpack.c.0.s8 %v6971
  %v6973 = vlaneseq
  %v6974 = vshrl.u32 %v6973, 7
  %v6975 = vsub.s32 %v6972, %v6974
  %v6976 = vrot.slane %v6962, %v6975
  %v6977 = vcombine.high %v6969, 0
  %v6978 = vcombine.high %v6976, 0
  %v6981 = vpack.i.b16 %v6969, %v6935
  %v6983 = vshrl.u32 %v6935, 16
  %v6984 = vshrl.u32 %v6969, 16
  %v6985 = vpack.i.b16 %v6984, %v6983
  %v6989 = vpack.i.b16 %v6977, %v6943
  %v6991 = vshrl.u32 %v6943, 16
  %v6992 = vshrl.u32 %v6977, 16
  %v6993 = vpack.i.b16 %v6992, %v6991
  %v6997 = vpack.i.b16 %v6976, %v6942
  %v6999 = vshrl.u32 %v6942, 16
  %v7000 = vshrl.u32 %v6976, 16
  %v7001 = vpack.i.b16 %v7000, %v6999
  %v7005 = vpack.i.b16 %v6978, %v6944
  %v7007 = vshrl.u32 %v6944, 16
  %v7008 = vshrl.u32 %v6978, 16
  %v7009 = vpack.i.b16 %v7008, %v7007
  %7011 = vxpose.xlu0.c.b16.start [1/8] %v6981, 128
  %7012 = vxpose.xlu0.c.b16.cont [2/8] 0, 128
  %7013 = vxpose.xlu0.c.b16.cont [3/8] 0, 128
  %7014 = vxpose.xlu0.c.b16.cont [4/8] 0, 128
  %7015 = vxpose.xlu0.c.b16.cont [5/8] 0, 128
  %7016 = vxpose.xlu0.c.b16.cont [6/8] 0, 128
  %7017 = vxpose.xlu0.c.b16.cont [7/8] 0, 128
  %7018 = vxpose.xlu0.c.b16.end [8/8] 0, 128
  %v7019 = vpop.trf.xlu0
  %v7020 = vpop.trf.xlu0
  %v7021 = vpop.trf.xlu0
  %v7022 = vpop.trf.xlu0
  %v7023 = vpop.trf.xlu0
  %v7024 = vpop.trf.xlu0
  %v7025 = vpop.trf.xlu0
  %v7026 = vpop.trf.xlu0
  %7027 = vxpose.xlu0.c.b16.start [1/8] %v6985, 128
  %7028 = vxpose.xlu0.c.b16.cont [2/8] 0, 128
  %7029 = vxpose.xlu0.c.b16.cont [3/8] 0, 128
  %7030 = vxpose.xlu0.c.b16.cont [4/8] 0, 128
  %7031 = vxpose.xlu0.c.b16.cont [5/8] 0, 128
  %7032 = vxpose.xlu0.c.b16.cont [6/8] 0, 128
  %7033 = vxpose.xlu0.c.b16.cont [7/8] 0, 128
  %7034 = vxpose.xlu0.c.b16.end [8/8] 0, 128
  %v7035 = vpop.trf.xlu0
  %v7036 = vpop.trf.xlu0
  %v7037 = vpop.trf.xlu0
  %v7038 = vpop.trf.xlu0
  %v7039 = vpop.trf.xlu0
  %v7040 = vpop.trf.xlu0
  %v7041 = vpop.trf.xlu0
  %v7042 = vpop.trf.xlu0
  %7043 = vxpose.xlu0.c.b16.start [1/8] %v6989, 128
  %7044 = vxpose.xlu0.c.b16.cont [2/8] 0, 128
  %7045 = vxpose.xlu0.c.b16.cont [3/8] 0, 128
  %7046 = vxpose.xlu0.c.b16.cont [4/8] 0, 128
  %7047 = vxpose.xlu0.c.b16.cont [5/8] 0, 128
  %7048 = vxpose.xlu0.c.b16.cont [6/8] 0, 128
  %7049 = vxpose.xlu0.c.b16.cont [7/8] 0, 128
  %7050 = vxpose.xlu0.c.b16.end [8/8] 0, 128
  %v7051 = vpop.trf.xlu0
  %v7052 = vpop.trf.xlu0
  %v7053 = vpop.trf.xlu0
  %v7054 = vpop.trf.xlu0
  %v7055 = vpop.trf.xlu0
  %v7056 = vpop.trf.xlu0
  %v7057 = vpop.trf.xlu0
  %v7058 = vpop.trf.xlu0
  %7059 = vxpose.xlu0.c.b16.start [1/8] %v6993, 128
  %7060 = vxpose.xlu0.c.b16.cont [2/8] 0, 128
  %7061 = vxpose.xlu0.c.b16.cont [3/8] 0, 128
  %7062 = vxpose.xlu0.c.b16.cont [4/8] 0, 128
  %7063 = vxpose.xlu0.c.b16.cont [5/8] 0, 128
  %7064 = vxpose.xlu0.c.b16.cont [6/8] 0, 128
  %7065 = vxpose.xlu0.c.b16.cont [7/8] 0, 128
  %7066 = vxpose.xlu0.c.b16.end [8/8] 0, 128
  %v7067 = vpop.trf.xlu0
  %v7068 = vpop.trf.xlu0
  %v7069 = vpop.trf.xlu0
  %v7070 = vpop.trf.xlu0
  %v7071 = vpop.trf.xlu0
  %v7072 = vpop.trf.xlu0
  %v7073 = vpop.trf.xlu0
  %v7074 = vpop.trf.xlu0
  %7075 = vxpose.xlu0.c.b16.start [1/8] %v6997, 128
  %7076 = vxpose.xlu0.c.b16.cont [2/8] 0, 128
  %7077 = vxpose.xlu0.c.b16.cont [3/8] 0, 128
  %7078 = vxpose.xlu0.c.b16.cont [4/8] 0, 128
  %7079 = vxpose.xlu0.c.b16.cont [5/8] 0, 128
  %7080 = vxpose.xlu0.c.b16.cont [6/8] 0, 128
  %7081 = vxpose.xlu0.c.b16.cont [7/8] 0, 128
  %7082 = vxpose.xlu0.c.b16.end [8/8] 0, 128
  %v7083 = vpop.trf.xlu0
  %v7084 = vpop.trf.xlu0
  %v7085 = vpop.trf.xlu0
  %v7086 = vpop.trf.xlu0
  %v7087 = vpop.trf.xlu0
  %v7088 = vpop.trf.xlu0
  %v7089 = vpop.trf.xlu0
  %v7090 = vpop.trf.xlu0
  %7091 = vxpose.xlu0.c.b16.start [1/8] %v7001, 128
  %7092 = vxpose.xlu0.c.b16.cont [2/8] 0, 128
  %7093 = vxpose.xlu0.c.b16.cont [3/8] 0, 128
  %7094 = vxpose.xlu0.c.b16.cont [4/8] 0, 128
  %7095 = vxpose.xlu0.c.b16.cont [5/8] 0, 128
  %7096 = vxpose.xlu0.c.b16.cont [6/8] 0, 128
  %7097 = vxpose.xlu0.c.b16.cont [7/8] 0, 128
  %7098 = vxpose.xlu0.c.b16.end [8/8] 0, 128
  %v7099 = vpop.trf.xlu0
  %v7100 = vpop.trf.xlu0
  %v7101 = vpop.trf.xlu0
  %v7102 = vpop.trf.xlu0
  %v7103 = vpop.trf.xlu0
  %v7104 = vpop.trf.xlu0
  %v7105 = vpop.trf.xlu0
  %v7106 = vpop.trf.xlu0
  %7107 = vxpose.xlu0.c.b16.start [1/8] %v7005, 128
  %7108 = vxpose.xlu0.c.b16.cont [2/8] 0, 128
  %7109 = vxpose.xlu0.c.b16.cont [3/8] 0, 128
  %7110 = vxpose.xlu0.c.b16.cont [4/8] 0, 128
  %7111 = vxpose.xlu0.c.b16.cont [5/8] 0, 128
  %7112 = vxpose.xlu0.c.b16.cont [6/8] 0, 128
  %7113 = vxpose.xlu0.c.b16.cont [7/8] 0, 128
  %7114 = vxpose.xlu0.c.b16.end [8/8] 0, 128
  %v7115 = vpop.trf.xlu0
  %v7116 = vpop.trf.xlu0
  %v7117 = vpop.trf.xlu0
  %v7118 = vpop.trf.xlu0
  %v7119 = vpop.trf.xlu0
  %v7120 = vpop.trf.xlu0
  %v7121 = vpop.trf.xlu0
  %v7122 = vpop.trf.xlu0
  %7123 = vxpose.xlu0.c.b16.start [1/8] %v7009, 128
  %7124 = vxpose.xlu0.c.b16.cont [2/8] 0, 128
  %7125 = vxpose.xlu0.c.b16.cont [3/8] 0, 128
  %7126 = vxpose.xlu0.c.b16.cont [4/8] 0, 128
  %7127 = vxpose.xlu0.c.b16.cont [5/8] 0, 128
  %7128 = vxpose.xlu0.c.b16.cont [6/8] 0, 128
  %7129 = vxpose.xlu0.c.b16.cont [7/8] 0, 128
  %7130 = vxpose.xlu0.c.b16.end [8/8] 0, 128
  %v7131 = vpop.trf.xlu0
  %v7132 = vpop.trf.xlu0
  %v7133 = vpop.trf.xlu0
  %v7134 = vpop.trf.xlu0
  %v7135 = vpop.trf.xlu0
  %v7136 = vpop.trf.xlu0
  %v7137 = vpop.trf.xlu0
  %v7138 = vpop.trf.xlu0
  %v7139 = vcombine.low %v7019, %v7083
  %v7141 = vunpack.c.l.s4 1983009808
  %v7142 = vunpack.c.0.s8 %v7141
  %v7143 = vlaneseq
  %v7144 = vshrl.u32 %v7143, 7
  %v7145 = vsub.s32 %v7142, %v7144
  %v7146 = vrot.slane %v7139, %v7145
  %v7147 = vcombine.low %v7051, %v7115
  %v7149 = vunpack.c.l.s4 1983009808
  %v7150 = vunpack.c.0.s8 %v7149
  %v7151 = vlaneseq
  %v7152 = vshrl.u32 %v7151, 7
  %v7153 = vsub.s32 %v7150, %v7152
  %v7154 = vrot.slane %v7147, %v7153
  %v7155 = vcombine.low %v7146, %v7154
  %v7157 = vunpack.c.l.s4 1934713408
  %v7158 = vunpack.c.0.s8 %v7157
  %v7159 = vlaneseq
  %v7160 = vshrl.u32 %v7159, 7
  %v7161 = vsub.s32 %v7158, %v7160
  %v7162 = vrot.slane %v7155, %v7161
  %v7163 = vcombine.high %v7162, 0
  %v7164 = vcombine.low %v7035, %v7099
  %v7166 = vunpack.c.l.s4 1983009808
  %v7167 = vunpack.c.0.s8 %v7166
  %v7168 = vlaneseq
  %v7169 = vshrl.u32 %v7168, 7
  %v7170 = vsub.s32 %v7167, %v7169
  %v7171 = vrot.slane %v7164, %v7170
  %v7172 = vcombine.low %v7067, %v7131
  %v7174 = vunpack.c.l.s4 1983009808
  %v7175 = vunpack.c.0.s8 %v7174
  %v7176 = vlaneseq
  %v7177 = vshrl.u32 %v7176, 7
  %v7178 = vsub.s32 %v7175, %v7177
  %v7179 = vrot.slane %v7172, %v7178
  %v7180 = vcombine.low %v7171, %v7179
  %v7182 = vunpack.c.l.s4 1934713408
  %v7183 = vunpack.c.0.s8 %v7182
  %v7184 = vlaneseq
  %v7185 = vshrl.u32 %v7184, 7
  %v7186 = vsub.s32 %v7183, %v7185
  %v7187 = vrot.slane %v7180, %v7186
  %v7188 = vcombine.high %v7187, 0
  %v7191 = vpack.i.b16 %v7187, %v7162
  %v7192 = vshrl.u32 %v7162, 16
  %v7193 = vshrl.u32 %v7187, 16
  %v7194 = vpack.i.b16 %v7193, %v7192
  %v7197 = vpack.i.b16 %v7188, %v7163
  %v7198 = vshrl.u32 %v7163, 16
  %v7199 = vshrl.u32 %v7188, 16
  %v7200 = vpack.i.b16 %v7199, %v7198
  %v7202 = vsel %vm1129, %v6773, 0
  %v7205 = vsel %vm1133, %v7191, 0
  %7207 = vmatprep.subr.bf16.mxu0 0
  %7208 = vmatpush1.bf16.msra.mxu0 0
  %7209 = vmatprep.subr.bf16.mxu0 0
  %7210 = vmatpush1.bf16.msra.mxu0 0
  %7211 = vmatprep.subr.bf16.mxu0 0
  %7212 = vmatpush1.bf16.msra.mxu0 0
  %7213 = vmatprep.subr.bf16.mxu0 0
  %7214 = vmatpush1.bf16.msra.mxu0 0
  %7215 = vmatprep.subr.bf16.mxu0 0
  %7216 = vmatpush1.bf16.msra.mxu0 0
  %7217 = vmatprep.subr.bf16.mxu0 0
  %7218 = vmatpush1.bf16.msra.mxu0 0
  %7219 = vmatprep.subr.bf16.mxu0 0
  %7220 = vmatpush1.bf16.msra.mxu0 0
  %7221 = vmatprep.subr.bf16.mxu0 0
  %7222 = vmatpush1.bf16.msra.mxu0 %v7205
  %7223 = vmatprep.subr.bf16.mxu0 0
  %7224 = vmatpush2.bf16.msra.mxu0 0
  %7225 = vmatprep.subr.bf16.mxu0 0
  %7226 = vmatpush2.bf16.msra.mxu0 0
  %7227 = vmatprep.subr.bf16.mxu0 0
  %7228 = vmatpush2.bf16.msra.mxu0 0
  %7229 = vmatprep.subr.bf16.mxu0 0
  %7230 = vmatpush2.bf16.msra.mxu0 0
  %7231 = vmatprep.subr.bf16.mxu0 0
  %7232 = vmatpush2.bf16.msra.mxu0 0
  %7233 = vmatprep.subr.bf16.mxu0 0
  %7234 = vmatpush2.bf16.msra.mxu0 0
  %7235 = vmatprep.subr.bf16.mxu0 0
  %7236 = vmatpush2.bf16.msra.mxu0 0
  %7237 = vmatprep.subr.bf16.mxu0 0
  %7238 = vmatpush2.bf16.msra.mxu0 0
  %7239 = vmatprep.mubr.bf16.mxu0 0
  %7240 = vmatmul.mubr.bf16.gmra.mxu0 %v7202
  %v7241 = vpop.f32.mrf.mxu0
  %v7242 = vadd.f32 %v2507, %v7241
  %v7243 = vpop.f32.mrf.mxu0
  %v7244 = vpop.f32.mrf.mxu0
  %v7245 = vpop.f32.mrf.mxu0
  %7246 = vdwg.mxu0
  %v7248 = vsel %vm1129, %v6776, 0
  %v7251 = vsel %vm1133, %v7194, 0
  %7253 = vmatprep.subr.bf16.mxu0 0
  %7254 = vmatpush1.bf16.msra.mxu0 0
  %7255 = vmatprep.subr.bf16.mxu0 0
  %7256 = vmatpush1.bf16.msra.mxu0 0
  %7257 = vmatprep.subr.bf16.mxu0 0
  %7258 = vmatpush1.bf16.msra.mxu0 0
  %7259 = vmatprep.subr.bf16.mxu0 0
  %7260 = vmatpush1.bf16.msra.mxu0 0
  %7261 = vmatprep.subr.bf16.mxu0 0
  %7262 = vmatpush1.bf16.msra.mxu0 0
  %7263 = vmatprep.subr.bf16.mxu0 0
  %7264 = vmatpush1.bf16.msra.mxu0 0
  %7265 = vmatprep.subr.bf16.mxu0 0
  %7266 = vmatpush1.bf16.msra.mxu0 0
  %7267 = vmatprep.subr.bf16.mxu0 0
  %7268 = vmatpush1.bf16.msra.mxu0 %v7251
  %7269 = vmatprep.subr.bf16.mxu0 0
  %7270 = vmatpush2.bf16.msra.mxu0 0
  %7271 = vmatprep.subr.bf16.mxu0 0
  %7272 = vmatpush2.bf16.msra.mxu0 0
  %7273 = vmatprep.subr.bf16.mxu0 0
  %7274 = vmatpush2.bf16.msra.mxu0 0
  %7275 = vmatprep.subr.bf16.mxu0 0
  %7276 = vmatpush2.bf16.msra.mxu0 0
  %7277 = vmatprep.subr.bf16.mxu0 0
  %7278 = vmatpush2.bf16.msra.mxu0 0
  %7279 = vmatprep.subr.bf16.mxu0 0
  %7280 = vmatpush2.bf16.msra.mxu0 0
  %7281 = vmatprep.subr.bf16.mxu0 0
  %7282 = vmatpush2.bf16.msra.mxu0 0
  %7283 = vmatprep.subr.bf16.mxu0 0
  %7284 = vmatpush2.bf16.msra.mxu0 0
  %7285 = vmatprep.mubr.bf16.mxu0 0
  %7286 = vmatmul.mubr.bf16.gmra.mxu0 %v7248
  %v7287 = vpop.f32.mrf.mxu0
  %v7288 = vadd.f32 %v2507, %v7287
  %v7289 = vpop.f32.mrf.mxu0
  %v7290 = vpop.f32.mrf.mxu0
  %v7291 = vpop.f32.mrf.mxu0
  %7292 = vdwg.mxu0
  %v7294 = vsel %vm1129, %v6779, 0
  %v7297 = vsel %vm1133, %v7197, 0
  %7299 = vmatprep.subr.bf16.mxu0 0
  %7300 = vmatpush1.bf16.msra.mxu0 0
  %7301 = vmatprep.subr.bf16.mxu0 0
  %7302 = vmatpush1.bf16.msra.mxu0 0
  %7303 = vmatprep.subr.bf16.mxu0 0
  %7304 = vmatpush1.bf16.msra.mxu0 0
  %7305 = vmatprep.subr.bf16.mxu0 0
  %7306 = vmatpush1.bf16.msra.mxu0 0
  %7307 = vmatprep.subr.bf16.mxu0 0
  %7308 = vmatpush1.bf16.msra.mxu0 0
  %7309 = vmatprep.subr.bf16.mxu0 0
  %7310 = vmatpush1.bf16.msra.mxu0 0
  %7311 = vmatprep.subr.bf16.mxu0 0
  %7312 = vmatpush1.bf16.msra.mxu0 0
  %7313 = vmatprep.subr.bf16.mxu0 0
  %7314 = vmatpush1.bf16.msra.mxu0 %v7297
  %7315 = vmatprep.subr.bf16.mxu0 0
  %7316 = vmatpush2.bf16.msra.mxu0 0
  %7317 = vmatprep.subr.bf16.mxu0 0
  %7318 = vmatpush2.bf16.msra.mxu0 0
  %7319 = vmatprep.subr.bf16.mxu0 0
  %7320 = vmatpush2.bf16.msra.mxu0 0
  %7321 = vmatprep.subr.bf16.mxu0 0
  %7322 = vmatpush2.bf16.msra.mxu0 0
  %7323 = vmatprep.subr.bf16.mxu0 0
  %7324 = vmatpush2.bf16.msra.mxu0 0
  %7325 = vmatprep.subr.bf16.mxu0 0
  %7326 = vmatpush2.bf16.msra.mxu0 0
  %7327 = vmatprep.subr.bf16.mxu0 0
  %7328 = vmatpush2.bf16.msra.mxu0 0
  %7329 = vmatprep.subr.bf16.mxu0 0
  %7330 = vmatpush2.bf16.msra.mxu0 0
  %7331 = vmatprep.mubr.bf16.mxu0 0
  %7332 = vmatmul.mubr.bf16.gmra.mxu0 %v7294
  %v7333 = vpop.f32.mrf.mxu0
  %v7334 = vadd.f32 %v2507, %v7333
  %v7335 = vpop.f32.mrf.mxu0
  %v7336 = vpop.f32.mrf.mxu0
  %v7337 = vpop.f32.mrf.mxu0
  %7338 = vdwg.mxu0
  %v7340 = vsel %vm1129, %v6782, 0
  %v7343 = vsel %vm1133, %v7200, 0
  %7345 = vmatprep.subr.bf16.mxu0 0
  %7346 = vmatpush1.bf16.msra.mxu0 0
  %7347 = vmatprep.subr.bf16.mxu0 0
  %7348 = vmatpush1.bf16.msra.mxu0 0
  %7349 = vmatprep.subr.bf16.mxu0 0
  %7350 = vmatpush1.bf16.msra.mxu0 0
  %7351 = vmatprep.subr.bf16.mxu0 0
  %7352 = vmatpush1.bf16.msra.mxu0 0
  %7353 = vmatprep.subr.bf16.mxu0 0
  %7354 = vmatpush1.bf16.msra.mxu0 0
  %7355 = vmatprep.subr.bf16.mxu0 0
  %7356 = vmatpush1.bf16.msra.mxu0 0
  %7357 = vmatprep.subr.bf16.mxu0 0
  %7358 = vmatpush1.bf16.msra.mxu0 0
  %7359 = vmatprep.subr.bf16.mxu0 0
  %7360 = vmatpush1.bf16.msra.mxu0 %v7343
  %7361 = vmatprep.subr.bf16.mxu0 0
  %7362 = vmatpush2.bf16.msra.mxu0 0
  %7363 = vmatprep.subr.bf16.mxu0 0
  %7364 = vmatpush2.bf16.msra.mxu0 0
  %7365 = vmatprep.subr.bf16.mxu0 0
  %7366 = vmatpush2.bf16.msra.mxu0 0
  %7367 = vmatprep.subr.bf16.mxu0 0
  %7368 = vmatpush2.bf16.msra.mxu0 0
  %7369 = vmatprep.subr.bf16.mxu0 0
  %7370 = vmatpush2.bf16.msra.mxu0 0
  %7371 = vmatprep.subr.bf16.mxu0 0
  %7372 = vmatpush2.bf16.msra.mxu0 0
  %7373 = vmatprep.subr.bf16.mxu0 0
  %7374 = vmatpush2.bf16.msra.mxu0 0
  %7375 = vmatprep.subr.bf16.mxu0 0
  %7376 = vmatpush2.bf16.msra.mxu0 0
  %7377 = vmatprep.mubr.bf16.mxu0 0
  %7378 = vmatmul.mubr.bf16.gmra.mxu0 %v7340
  %v7379 = vpop.f32.mrf.mxu0
  %v7380 = vadd.f32 %v2507, %v7379
  %v7381 = vpop.f32.mrf.mxu0
  %v7382 = vpop.f32.mrf.mxu0
  %v7383 = vpop.f32.mrf.mxu0
  %7384 = vdwg.mxu0
  %v7385 = vsel %vm1129, %v7242, -inf
  %7386 = vmax.xlane.f32.xlu0 %v7385
  %v7387 = vpop.xlane.xlu0 %7386
  %v7388 = vsel %vm1129, %v7288, -inf
  %7389 = vmax.xlane.f32.xlu0 %v7388
  %v7390 = vpop.xlane.xlu0 %7389
  %v7391 = vsel %vm1129, %v7334, -inf
  %7392 = vmax.xlane.f32.xlu0 %v7391
  %v7393 = vpop.xlane.xlu0 %7392
  %v7394 = vsel %vm1129, %v7380, -inf
  %7395 = vmax.xlane.f32.xlu0 %v7394
  %v7396 = vpop.xlane.xlu0 %7395
  %v7397 = vsub.f32 %v7242, %v7387
  %v7398 = vsub.f32 %v7288, %v7390
  %v7399 = vsub.f32 %v7334, %v7393
  %v7400 = vsub.f32 %v7380, %v7396
  %v7401 = vmul.f32 %v7397, 1.442695
  %v7402 = vpow.pop %v7401
  %v7403 = vmul.f32 %v7398, 1.442695
  %v7404 = vpow.pop %v7403
  %v7405 = vmul.f32 %v7399, 1.442695
  %v7406 = vpow.pop %v7405
  %v7407 = vmul.f32 %v7400, 1.442695
  %v7408 = vpow.pop %v7407
  %v7409 = vsel %vm1129, %v7402, 0.0
  %7410 = vadd.xlane.f32.xlu0 %v7409
  %v7411 = vpop.xlane.xlu0 %7410
  %v7412 = vsel %vm1129, %v7404, 0.0
  %7413 = vadd.xlane.f32.xlu0 %v7412
  %v7414 = vpop.xlane.xlu0 %7413
  %v7415 = vsel %vm1129, %v7406, 0.0
  %7416 = vadd.xlane.f32.xlu0 %v7415
  %v7417 = vpop.xlane.xlu0 %7416
  %v7418 = vsel %vm1129, %v7408, 0.0
  %7419 = vadd.xlane.f32.xlu0 %v7418
  %v7420 = vpop.xlane.xlu0 %7419
  %v7421 = vrcp.pop %v7411
  %v7422 = vrcp.pop %v7414
  %v7423 = vrcp.pop %v7417
  %v7424 = vrcp.pop %v7420
  %v7425 = vmul.f32 %v7402, %v7421
  %v7426 = vmul.f32 %v7404, %v7422
  %v7427 = vmul.f32 %v7406, %v7423
  %v7428 = vmul.f32 %v7408, %v7424
  %v7429 = vpack.c.bf16 %v7425, %v7425
  %v7430 = vpack.c.bf16 %v7426, %v7426
  %v7431 = vpack.c.bf16 %v7427, %v7427
  %v7432 = vpack.c.bf16 %v7428, %v7428
  %7433 = vxpose.xlu0.c.b16.start [1/8] %v6713, 128
  %7434 = vxpose.xlu0.c.b16.cont [2/8] 0, 128
  %7435 = vxpose.xlu0.c.b16.cont [3/8] 0, 128
  %7436 = vxpose.xlu0.c.b16.cont [4/8] 0, 128
  %7437 = vxpose.xlu0.c.b16.cont [5/8] 0, 128
  %7438 = vxpose.xlu0.c.b16.cont [6/8] 0, 128
  %7439 = vxpose.xlu0.c.b16.cont [7/8] 0, 128
  %7440 = vxpose.xlu0.c.b16.end [8/8] 0, 128
  %v7441 = vpop.trf.xlu0
  %v7442 = vpop.trf.xlu0
  %v7443 = vpop.trf.xlu0
  %v7444 = vpop.trf.xlu0
  %v7445 = vpop.trf.xlu0
  %v7446 = vpop.trf.xlu0
  %v7447 = vpop.trf.xlu0
  %v7448 = vpop.trf.xlu0
  %7449 = vxpose.xlu0.c.b16.start [1/8] %v6714, 128
  %7450 = vxpose.xlu0.c.b16.cont [2/8] 0, 128
  %7451 = vxpose.xlu0.c.b16.cont [3/8] 0, 128
  %7452 = vxpose.xlu0.c.b16.cont [4/8] 0, 128
  %7453 = vxpose.xlu0.c.b16.cont [5/8] 0, 128
  %7454 = vxpose.xlu0.c.b16.cont [6/8] 0, 128
  %7455 = vxpose.xlu0.c.b16.cont [7/8] 0, 128
  %7456 = vxpose.xlu0.c.b16.end [8/8] 0, 128
  %v7457 = vpop.trf.xlu0
  %v7458 = vpop.trf.xlu0
  %v7459 = vpop.trf.xlu0
  %v7460 = vpop.trf.xlu0
  %v7461 = vpop.trf.xlu0
  %v7462 = vpop.trf.xlu0
  %v7463 = vpop.trf.xlu0
  %v7464 = vpop.trf.xlu0
  %7465 = vxpose.xlu0.c.b16.start [1/8] %v6715, 128
  %7466 = vxpose.xlu0.c.b16.cont [2/8] 0, 128
  %7467 = vxpose.xlu0.c.b16.cont [3/8] 0, 128
  %7468 = vxpose.xlu0.c.b16.cont [4/8] 0, 128
  %7469 = vxpose.xlu0.c.b16.cont [5/8] 0, 128
  %7470 = vxpose.xlu0.c.b16.cont [6/8] 0, 128
  %7471 = vxpose.xlu0.c.b16.cont [7/8] 0, 128
  %7472 = vxpose.xlu0.c.b16.end [8/8] 0, 128
  %v7473 = vpop.trf.xlu0
  %v7474 = vpop.trf.xlu0
  %v7475 = vpop.trf.xlu0
  %v7476 = vpop.trf.xlu0
  %v7477 = vpop.trf.xlu0
  %v7478 = vpop.trf.xlu0
  %v7479 = vpop.trf.xlu0
  %v7480 = vpop.trf.xlu0
  %7481 = vxpose.xlu0.c.b16.start [1/8] %v6716, 128
  %7482 = vxpose.xlu0.c.b16.cont [2/8] 0, 128
  %7483 = vxpose.xlu0.c.b16.cont [3/8] 0, 128
  %7484 = vxpose.xlu0.c.b16.cont [4/8] 0, 128
  %7485 = vxpose.xlu0.c.b16.cont [5/8] 0, 128
  %7486 = vxpose.xlu0.c.b16.cont [6/8] 0, 128
  %7487 = vxpose.xlu0.c.b16.cont [7/8] 0, 128
  %7488 = vxpose.xlu0.c.b16.end [8/8] 0, 128
  %v7489 = vpop.trf.xlu0
  %v7490 = vpop.trf.xlu0
  %v7491 = vpop.trf.xlu0
  %v7492 = vpop.trf.xlu0
  %v7493 = vpop.trf.xlu0
  %v7494 = vpop.trf.xlu0
  %v7495 = vpop.trf.xlu0
  %v7496 = vpop.trf.xlu0
  %7497 = vxpose.xlu0.c.b16.start [1/8] %v6717, 128
  %7498 = vxpose.xlu0.c.b16.cont [2/8] 0, 128
  %7499 = vxpose.xlu0.c.b16.cont [3/8] 0, 128
  %7500 = vxpose.xlu0.c.b16.cont [4/8] 0, 128
  %7501 = vxpose.xlu0.c.b16.cont [5/8] 0, 128
  %7502 = vxpose.xlu0.c.b16.cont [6/8] 0, 128
  %7503 = vxpose.xlu0.c.b16.cont [7/8] 0, 128
  %7504 = vxpose.xlu0.c.b16.end [8/8] 0, 128
  %v7505 = vpop.trf.xlu0
  %v7506 = vpop.trf.xlu0
  %v7507 = vpop.trf.xlu0
  %v7508 = vpop.trf.xlu0
  %v7509 = vpop.trf.xlu0
  %v7510 = vpop.trf.xlu0
  %v7511 = vpop.trf.xlu0
  %v7512 = vpop.trf.xlu0
  %7513 = vxpose.xlu0.c.b16.start [1/8] %v6718, 128
  %7514 = vxpose.xlu0.c.b16.cont [2/8] 0, 128
  %7515 = vxpose.xlu0.c.b16.cont [3/8] 0, 128
  %7516 = vxpose.xlu0.c.b16.cont [4/8] 0, 128
  %7517 = vxpose.xlu0.c.b16.cont [5/8] 0, 128
  %7518 = vxpose.xlu0.c.b16.cont [6/8] 0, 128
  %7519 = vxpose.xlu0.c.b16.cont [7/8] 0, 128
  %7520 = vxpose.xlu0.c.b16.end [8/8] 0, 128
  %v7521 = vpop.trf.xlu0
  %v7522 = vpop.trf.xlu0
  %v7523 = vpop.trf.xlu0
  %v7524 = vpop.trf.xlu0
  %v7525 = vpop.trf.xlu0
  %v7526 = vpop.trf.xlu0
  %v7527 = vpop.trf.xlu0
  %v7528 = vpop.trf.xlu0
  %7529 = vxpose.xlu0.c.b16.start [1/8] %v6719, 128
  %7530 = vxpose.xlu0.c.b16.cont [2/8] 0, 128
  %7531 = vxpose.xlu0.c.b16.cont [3/8] 0, 128
  %7532 = vxpose.xlu0.c.b16.cont [4/8] 0, 128
  %7533 = vxpose.xlu0.c.b16.cont [5/8] 0, 128
  %7534 = vxpose.xlu0.c.b16.cont [6/8] 0, 128
  %7535 = vxpose.xlu0.c.b16.cont [7/8] 0, 128
  %7536 = vxpose.xlu0.c.b16.end [8/8] 0, 128
  %v7537 = vpop.trf.xlu0
  %v7538 = vpop.trf.xlu0
  %v7539 = vpop.trf.xlu0
  %v7540 = vpop.trf.xlu0
  %v7541 = vpop.trf.xlu0
  %v7542 = vpop.trf.xlu0
  %v7543 = vpop.trf.xlu0
  %v7544 = vpop.trf.xlu0
  %7545 = vxpose.xlu0.c.b16.start [1/8] %v6720, 128
  %7546 = vxpose.xlu0.c.b16.cont [2/8] 0, 128
  %7547 = vxpose.xlu0.c.b16.cont [3/8] 0, 128
  %7548 = vxpose.xlu0.c.b16.cont [4/8] 0, 128
  %7549 = vxpose.xlu0.c.b16.cont [5/8] 0, 128
  %7550 = vxpose.xlu0.c.b16.cont [6/8] 0, 128
  %7551 = vxpose.xlu0.c.b16.cont [7/8] 0, 128
  %7552 = vxpose.xlu0.c.b16.end [8/8] 0, 128
  %v7553 = vpop.trf.xlu0
  %v7554 = vpop.trf.xlu0
  %v7555 = vpop.trf.xlu0
  %v7556 = vpop.trf.xlu0
  %v7557 = vpop.trf.xlu0
  %v7558 = vpop.trf.xlu0
  %v7559 = vpop.trf.xlu0
  %v7560 = vpop.trf.xlu0
  %v7561 = vcombine.low %v7441, %v7505
  %v7563 = vunpack.c.l.s4 1983009808
  %v7564 = vunpack.c.0.s8 %v7563
  %v7565 = vlaneseq
  %v7566 = vshrl.u32 %v7565, 7
  %v7567 = vsub.s32 %v7564, %v7566
  %v7568 = vrot.slane %v7561, %v7567
  %v7569 = vcombine.low %v7473, %v7537
  %v7571 = vunpack.c.l.s4 1983009808
  %v7572 = vunpack.c.0.s8 %v7571
  %v7573 = vlaneseq
  %v7574 = vshrl.u32 %v7573, 7
  %v7575 = vsub.s32 %v7572, %v7574
  %v7576 = vrot.slane %v7569, %v7575
  %v7577 = vcombine.low %v7568, %v7576
  %v7578 = vcombine.high %v7568, %v7576
  %v7580 = vunpack.c.l.s4 1934713408
  %v7581 = vunpack.c.0.s8 %v7580
  %v7582 = vlaneseq
  %v7583 = vshrl.u32 %v7582, 7
  %v7584 = vsub.s32 %v7581, %v7583
  %v7585 = vrot.slane %v7577, %v7584
  %v7587 = vunpack.c.l.s4 1934713408
  %v7588 = vunpack.c.0.s8 %v7587
  %v7589 = vlaneseq
  %v7590 = vshrl.u32 %v7589, 7
  %v7591 = vsub.s32 %v7588, %v7590
  %v7592 = vrot.slane %v7578, %v7591
  %v7593 = vcombine.high %v7585, 0
  %v7594 = vcombine.high %v7592, 0
  %v7595 = vcombine.low %v7457, %v7521
  %v7597 = vunpack.c.l.s4 1983009808
  %v7598 = vunpack.c.0.s8 %v7597
  %v7599 = vlaneseq
  %v7600 = vshrl.u32 %v7599, 7
  %v7601 = vsub.s32 %v7598, %v7600
  %v7602 = vrot.slane %v7595, %v7601
  %v7603 = vcombine.low %v7489, %v7553
  %v7605 = vunpack.c.l.s4 1983009808
  %v7606 = vunpack.c.0.s8 %v7605
  %v7607 = vlaneseq
  %v7608 = vshrl.u32 %v7607, 7
  %v7609 = vsub.s32 %v7606, %v7608
  %v7610 = vrot.slane %v7603, %v7609
  %v7611 = vcombine.low %v7602, %v7610
  %v7612 = vcombine.high %v7602, %v7610
  %v7614 = vunpack.c.l.s4 1934713408
  %v7615 = vunpack.c.0.s8 %v7614
  %v7616 = vlaneseq
  %v7617 = vshrl.u32 %v7616, 7
  %v7618 = vsub.s32 %v7615, %v7617
  %v7619 = vrot.slane %v7611, %v7618
  %v7621 = vunpack.c.l.s4 1934713408
  %v7622 = vunpack.c.0.s8 %v7621
  %v7623 = vlaneseq
  %v7624 = vshrl.u32 %v7623, 7
  %v7625 = vsub.s32 %v7622, %v7624
  %v7626 = vrot.slane %v7612, %v7625
  %v7627 = vcombine.high %v7619, 0
  %v7628 = vcombine.high %v7626, 0
  %v7631 = vpack.i.b16 %v7619, %v7585
  %v7633 = vshrl.u32 %v7585, 16
  %v7634 = vshrl.u32 %v7619, 16
  %v7635 = vpack.i.b16 %v7634, %v7633
  %v7639 = vpack.i.b16 %v7627, %v7593
  %v7641 = vshrl.u32 %v7593, 16
  %v7642 = vshrl.u32 %v7627, 16
  %v7643 = vpack.i.b16 %v7642, %v7641
  %v7647 = vpack.i.b16 %v7626, %v7592
  %v7649 = vshrl.u32 %v7592, 16
  %v7650 = vshrl.u32 %v7626, 16
  %v7651 = vpack.i.b16 %v7650, %v7649
  %v7655 = vpack.i.b16 %v7628, %v7594
  %v7657 = vshrl.u32 %v7594, 16
  %v7658 = vshrl.u32 %v7628, 16
  %v7659 = vpack.i.b16 %v7658, %v7657
  %7661 = vxpose.xlu0.c.b16.start [1/8] %v7631, 128
  %7662 = vxpose.xlu0.c.b16.cont [2/8] 0, 128
  %7663 = vxpose.xlu0.c.b16.cont [3/8] 0, 128
  %7664 = vxpose.xlu0.c.b16.cont [4/8] 0, 128
  %7665 = vxpose.xlu0.c.b16.cont [5/8] 0, 128
  %7666 = vxpose.xlu0.c.b16.cont [6/8] 0, 128
  %7667 = vxpose.xlu0.c.b16.cont [7/8] 0, 128
  %7668 = vxpose.xlu0.c.b16.end [8/8] 0, 128
  %v7669 = vpop.trf.xlu0
  %v7670 = vpop.trf.xlu0
  %v7671 = vpop.trf.xlu0
  %v7672 = vpop.trf.xlu0
  %v7673 = vpop.trf.xlu0
  %v7674 = vpop.trf.xlu0
  %v7675 = vpop.trf.xlu0
  %v7676 = vpop.trf.xlu0
  %7677 = vxpose.xlu0.c.b16.start [1/8] %v7635, 128
  %7678 = vxpose.xlu0.c.b16.cont [2/8] 0, 128
  %7679 = vxpose.xlu0.c.b16.cont [3/8] 0, 128
  %7680 = vxpose.xlu0.c.b16.cont [4/8] 0, 128
  %7681 = vxpose.xlu0.c.b16.cont [5/8] 0, 128
  %7682 = vxpose.xlu0.c.b16.cont [6/8] 0, 128
  %7683 = vxpose.xlu0.c.b16.cont [7/8] 0, 128
  %7684 = vxpose.xlu0.c.b16.end [8/8] 0, 128
  %v7685 = vpop.trf.xlu0
  %v7686 = vpop.trf.xlu0
  %v7687 = vpop.trf.xlu0
  %v7688 = vpop.trf.xlu0
  %v7689 = vpop.trf.xlu0
  %v7690 = vpop.trf.xlu0
  %v7691 = vpop.trf.xlu0
  %v7692 = vpop.trf.xlu0
  %7693 = vxpose.xlu0.c.b16.start [1/8] %v7639, 128
  %7694 = vxpose.xlu0.c.b16.cont [2/8] 0, 128
  %7695 = vxpose.xlu0.c.b16.cont [3/8] 0, 128
  %7696 = vxpose.xlu0.c.b16.cont [4/8] 0, 128
  %7697 = vxpose.xlu0.c.b16.cont [5/8] 0, 128
  %7698 = vxpose.xlu0.c.b16.cont [6/8] 0, 128
  %7699 = vxpose.xlu0.c.b16.cont [7/8] 0, 128
  %7700 = vxpose.xlu0.c.b16.end [8/8] 0, 128
  %v7701 = vpop.trf.xlu0
  %v7702 = vpop.trf.xlu0
  %v7703 = vpop.trf.xlu0
  %v7704 = vpop.trf.xlu0
  %v7705 = vpop.trf.xlu0
  %v7706 = vpop.trf.xlu0
  %v7707 = vpop.trf.xlu0
  %v7708 = vpop.trf.xlu0
  %7709 = vxpose.xlu0.c.b16.start [1/8] %v7643, 128
  %7710 = vxpose.xlu0.c.b16.cont [2/8] 0, 128
  %7711 = vxpose.xlu0.c.b16.cont [3/8] 0, 128
  %7712 = vxpose.xlu0.c.b16.cont [4/8] 0, 128
  %7713 = vxpose.xlu0.c.b16.cont [5/8] 0, 128
  %7714 = vxpose.xlu0.c.b16.cont [6/8] 0, 128
  %7715 = vxpose.xlu0.c.b16.cont [7/8] 0, 128
  %7716 = vxpose.xlu0.c.b16.end [8/8] 0, 128
  %v7717 = vpop.trf.xlu0
  %v7718 = vpop.trf.xlu0
  %v7719 = vpop.trf.xlu0
  %v7720 = vpop.trf.xlu0
  %v7721 = vpop.trf.xlu0
  %v7722 = vpop.trf.xlu0
  %v7723 = vpop.trf.xlu0
  %v7724 = vpop.trf.xlu0
  %7725 = vxpose.xlu0.c.b16.start [1/8] %v7647, 128
  %7726 = vxpose.xlu0.c.b16.cont [2/8] 0, 128
  %7727 = vxpose.xlu0.c.b16.cont [3/8] 0, 128
  %7728 = vxpose.xlu0.c.b16.cont [4/8] 0, 128
  %7729 = vxpose.xlu0.c.b16.cont [5/8] 0, 128
  %7730 = vxpose.xlu0.c.b16.cont [6/8] 0, 128
  %7731 = vxpose.xlu0.c.b16.cont [7/8] 0, 128
  %7732 = vxpose.xlu0.c.b16.end [8/8] 0, 128
  %v7733 = vpop.trf.xlu0
  %v7734 = vpop.trf.xlu0
  %v7735 = vpop.trf.xlu0
  %v7736 = vpop.trf.xlu0
  %v7737 = vpop.trf.xlu0
  %v7738 = vpop.trf.xlu0
  %v7739 = vpop.trf.xlu0
  %v7740 = vpop.trf.xlu0
  %7741 = vxpose.xlu0.c.b16.start [1/8] %v7651, 128
  %7742 = vxpose.xlu0.c.b16.cont [2/8] 0, 128
  %7743 = vxpose.xlu0.c.b16.cont [3/8] 0, 128
  %7744 = vxpose.xlu0.c.b16.cont [4/8] 0, 128
  %7745 = vxpose.xlu0.c.b16.cont [5/8] 0, 128
  %7746 = vxpose.xlu0.c.b16.cont [6/8] 0, 128
  %7747 = vxpose.xlu0.c.b16.cont [7/8] 0, 128
  %7748 = vxpose.xlu0.c.b16.end [8/8] 0, 128
  %v7749 = vpop.trf.xlu0
  %v7750 = vpop.trf.xlu0
  %v7751 = vpop.trf.xlu0
  %v7752 = vpop.trf.xlu0
  %v7753 = vpop.trf.xlu0
  %v7754 = vpop.trf.xlu0
  %v7755 = vpop.trf.xlu0
  %v7756 = vpop.trf.xlu0
  %7757 = vxpose.xlu0.c.b16.start [1/8] %v7655, 128
  %7758 = vxpose.xlu0.c.b16.cont [2/8] 0, 128
  %7759 = vxpose.xlu0.c.b16.cont [3/8] 0, 128
  %7760 = vxpose.xlu0.c.b16.cont [4/8] 0, 128
  %7761 = vxpose.xlu0.c.b16.cont [5/8] 0, 128
  %7762 = vxpose.xlu0.c.b16.cont [6/8] 0, 128
  %7763 = vxpose.xlu0.c.b16.cont [7/8] 0, 128
  %7764 = vxpose.xlu0.c.b16.end [8/8] 0, 128
  %v7765 = vpop.trf.xlu0
  %v7766 = vpop.trf.xlu0
  %v7767 = vpop.trf.xlu0
  %v7768 = vpop.trf.xlu0
  %v7769 = vpop.trf.xlu0
  %v7770 = vpop.trf.xlu0
  %v7771 = vpop.trf.xlu0
  %v7772 = vpop.trf.xlu0
  %7773 = vxpose.xlu0.c.b16.start [1/8] %v7659, 128
  %7774 = vxpose.xlu0.c.b16.cont [2/8] 0, 128
  %7775 = vxpose.xlu0.c.b16.cont [3/8] 0, 128
  %7776 = vxpose.xlu0.c.b16.cont [4/8] 0, 128
  %7777 = vxpose.xlu0.c.b16.cont [5/8] 0, 128
  %7778 = vxpose.xlu0.c.b16.cont [6/8] 0, 128
  %7779 = vxpose.xlu0.c.b16.cont [7/8] 0, 128
  %7780 = vxpose.xlu0.c.b16.end [8/8] 0, 128
  %v7781 = vpop.trf.xlu0
  %v7782 = vpop.trf.xlu0
  %v7783 = vpop.trf.xlu0
  %v7784 = vpop.trf.xlu0
  %v7785 = vpop.trf.xlu0
  %v7786 = vpop.trf.xlu0
  %v7787 = vpop.trf.xlu0
  %v7788 = vpop.trf.xlu0
  %v7789 = vcombine.low %v7669, %v7733
  %v7791 = vunpack.c.l.s4 1983009808
  %v7792 = vunpack.c.0.s8 %v7791
  %v7793 = vlaneseq
  %v7794 = vshrl.u32 %v7793, 7
  %v7795 = vsub.s32 %v7792, %v7794
  %v7796 = vrot.slane %v7789, %v7795
  %v7797 = vcombine.low %v7701, %v7765
  %v7799 = vunpack.c.l.s4 1983009808
  %v7800 = vunpack.c.0.s8 %v7799
  %v7801 = vlaneseq
  %v7802 = vshrl.u32 %v7801, 7
  %v7803 = vsub.s32 %v7800, %v7802
  %v7804 = vrot.slane %v7797, %v7803
  %v7805 = vcombine.low %v7796, %v7804
  %v7807 = vunpack.c.l.s4 1934713408
  %v7808 = vunpack.c.0.s8 %v7807
  %v7809 = vlaneseq
  %v7810 = vshrl.u32 %v7809, 7
  %v7811 = vsub.s32 %v7808, %v7810
  %v7812 = vrot.slane %v7805, %v7811
  %v7813 = vcombine.high %v7812, 0
  %v7814 = vcombine.low %v7685, %v7749
  %v7816 = vunpack.c.l.s4 1983009808
  %v7817 = vunpack.c.0.s8 %v7816
  %v7818 = vlaneseq
  %v7819 = vshrl.u32 %v7818, 7
  %v7820 = vsub.s32 %v7817, %v7819
  %v7821 = vrot.slane %v7814, %v7820
  %v7822 = vcombine.low %v7717, %v7781
  %v7824 = vunpack.c.l.s4 1983009808
  %v7825 = vunpack.c.0.s8 %v7824
  %v7826 = vlaneseq
  %v7827 = vshrl.u32 %v7826, 7
  %v7828 = vsub.s32 %v7825, %v7827
  %v7829 = vrot.slane %v7822, %v7828
  %v7830 = vcombine.low %v7821, %v7829
  %v7832 = vunpack.c.l.s4 1934713408
  %v7833 = vunpack.c.0.s8 %v7832
  %v7834 = vlaneseq
  %v7835 = vshrl.u32 %v7834, 7
  %v7836 = vsub.s32 %v7833, %v7835
  %v7837 = vrot.slane %v7830, %v7836
  %v7838 = vcombine.high %v7837, 0
  %v7841 = vpack.i.b16 %v7837, %v7812
  %v7842 = vshrl.u32 %v7812, 16
  %v7843 = vshrl.u32 %v7837, 16
  %v7844 = vpack.i.b16 %v7843, %v7842
  %v7847 = vpack.i.b16 %v7838, %v7813
  %v7848 = vshrl.u32 %v7813, 16
  %v7849 = vshrl.u32 %v7838, 16
  %v7850 = vpack.i.b16 %v7849, %v7848
  %v7852 = vsel %vm1129, %v7841, 0
  %v7855 = vsel %vm1129, %v7429, 0
  %7857 = vmatprep.subr.bf16.mxu0 0
  %7858 = vmatpush1.bf16.xpose.msra.mxu0 0
  %7859 = vmatprep.subr.bf16.mxu0 0
  %7860 = vmatpush1.bf16.xpose.msra.mxu0 0
  %7861 = vmatprep.subr.bf16.mxu0 0
  %7862 = vmatpush1.bf16.xpose.msra.mxu0 0
  %7863 = vmatprep.subr.bf16.mxu0 0
  %7864 = vmatpush1.bf16.xpose.msra.mxu0 0
  %7865 = vmatprep.subr.bf16.mxu0 0
  %7866 = vmatpush1.bf16.xpose.msra.mxu0 0
  %7867 = vmatprep.subr.bf16.mxu0 0
  %7868 = vmatpush1.bf16.xpose.msra.mxu0 0
  %7869 = vmatprep.subr.bf16.mxu0 0
  %7870 = vmatpush1.bf16.xpose.msra.mxu0 0
  %7871 = vmatprep.subr.bf16.mxu0 0
  %7872 = vmatpush1.bf16.xpose.msra.mxu0 %v7855
  %7873 = vmatprep.subr.bf16.mxu0 0
  %7874 = vmatpush2.bf16.xpose.msra.mxu0 0
  %7875 = vmatprep.subr.bf16.mxu0 0
  %7876 = vmatpush2.bf16.xpose.msra.mxu0 0
  %7877 = vmatprep.subr.bf16.mxu0 0
  %7878 = vmatpush2.bf16.xpose.msra.mxu0 0
  %7879 = vmatprep.subr.bf16.mxu0 0
  %7880 = vmatpush2.bf16.xpose.msra.mxu0 0
  %7881 = vmatprep.subr.bf16.mxu0 0
  %7882 = vmatpush2.bf16.xpose.msra.mxu0 0
  %7883 = vmatprep.subr.bf16.mxu0 0
  %7884 = vmatpush2.bf16.xpose.msra.mxu0 0
  %7885 = vmatprep.subr.bf16.mxu0 0
  %7886 = vmatpush2.bf16.xpose.msra.mxu0 0
  %7887 = vmatprep.subr.bf16.mxu0 0
  %7888 = vmatpush2.bf16.xpose.msra.mxu0 0
  %7889 = vmatprep.mubr.bf16.mxu0 0
  %7890 = vmatmul.mubr.bf16.gmra.mxu0 %v7852
  %v7891 = vpop.f32.mrf.mxu0
  %v7892 = vadd.f32 0.0, %v7891
  %v7893 = vpop.f32.mrf.mxu0
  %v7894 = vpop.f32.mrf.mxu0
  %v7895 = vpop.f32.mrf.mxu0
  %7896 = vdwg.mxu0
  %v7898 = vsel %vm1129, %v7844, 0
  %v7901 = vsel %vm1129, %v7430, 0
  %7903 = vmatprep.subr.bf16.mxu0 0
  %7904 = vmatpush1.bf16.xpose.msra.mxu0 0
  %7905 = vmatprep.subr.bf16.mxu0 0
  %7906 = vmatpush1.bf16.xpose.msra.mxu0 0
  %7907 = vmatprep.subr.bf16.mxu0 0
  %7908 = vmatpush1.bf16.xpose.msra.mxu0 0
  %7909 = vmatprep.subr.bf16.mxu0 0
  %7910 = vmatpush1.bf16.xpose.msra.mxu0 0
  %7911 = vmatprep.subr.bf16.mxu0 0
  %7912 = vmatpush1.bf16.xpose.msra.mxu0 0
  %7913 = vmatprep.subr.bf16.mxu0 0
  %7914 = vmatpush1.bf16.xpose.msra.mxu0 0
  %7915 = vmatprep.subr.bf16.mxu0 0
  %7916 = vmatpush1.bf16.xpose.msra.mxu0 0
  %7917 = vmatprep.subr.bf16.mxu0 0
  %7918 = vmatpush1.bf16.xpose.msra.mxu0 %v7901
  %7919 = vmatprep.subr.bf16.mxu0 0
  %7920 = vmatpush2.bf16.xpose.msra.mxu0 0
  %7921 = vmatprep.subr.bf16.mxu0 0
  %7922 = vmatpush2.bf16.xpose.msra.mxu0 0
  %7923 = vmatprep.subr.bf16.mxu0 0
  %7924 = vmatpush2.bf16.xpose.msra.mxu0 0
  %7925 = vmatprep.subr.bf16.mxu0 0
  %7926 = vmatpush2.bf16.xpose.msra.mxu0 0
  %7927 = vmatprep.subr.bf16.mxu0 0
  %7928 = vmatpush2.bf16.xpose.msra.mxu0 0
  %7929 = vmatprep.subr.bf16.mxu0 0
  %7930 = vmatpush2.bf16.xpose.msra.mxu0 0
  %7931 = vmatprep.subr.bf16.mxu0 0
  %7932 = vmatpush2.bf16.xpose.msra.mxu0 0
  %7933 = vmatprep.subr.bf16.mxu0 0
  %7934 = vmatpush2.bf16.xpose.msra.mxu0 0
  %7935 = vmatprep.mubr.bf16.mxu0 0
  %7936 = vmatmul.mubr.bf16.gmra.mxu0 %v7898
  %v7937 = vpop.f32.mrf.mxu0
  %v7938 = vadd.f32 0.0, %v7937
  %v7939 = vpop.f32.mrf.mxu0
  %v7940 = vpop.f32.mrf.mxu0
  %v7941 = vpop.f32.mrf.mxu0
  %7942 = vdwg.mxu0
  %v7944 = vsel %vm1129, %v7847, 0
  %v7947 = vsel %vm1129, %v7431, 0
  %7949 = vmatprep.subr.bf16.mxu0 0
  %7950 = vmatpush1.bf16.xpose.msra.mxu0 0
  %7951 = vmatprep.subr.bf16.mxu0 0
  %7952 = vmatpush1.bf16.xpose.msra.mxu0 0
  %7953 = vmatprep.subr.bf16.mxu0 0
  %7954 = vmatpush1.bf16.xpose.msra.mxu0 0
  %7955 = vmatprep.subr.bf16.mxu0 0
  %7956 = vmatpush1.bf16.xpose.msra.mxu0 0
  %7957 = vmatprep.subr.bf16.mxu0 0
  %7958 = vmatpush1.bf16.xpose.msra.mxu0 0
  %7959 = vmatprep.subr.bf16.mxu0 0
  %7960 = vmatpush1.bf16.xpose.msra.mxu0 0
  %7961 = vmatprep.subr.bf16.mxu0 0
  %7962 = vmatpush1.bf16.xpose.msra.mxu0 0
  %7963 = vmatprep.subr.bf16.mxu0 0
  %7964 = vmatpush1.bf16.xpose.msra.mxu0 %v7947
  %7965 = vmatprep.subr.bf16.mxu0 0
  %7966 = vmatpush2.bf16.xpose.msra.mxu0 0
  %7967 = vmatprep.subr.bf16.mxu0 0
  %7968 = vmatpush2.bf16.xpose.msra.mxu0 0
  %7969 = vmatprep.subr.bf16.mxu0 0
  %7970 = vmatpush2.bf16.xpose.msra.mxu0 0
  %7971 = vmatprep.subr.bf16.mxu0 0
  %7972 = vmatpush2.bf16.xpose.msra.mxu0 0
  %7973 = vmatprep.subr.bf16.mxu0 0
  %7974 = vmatpush2.bf16.xpose.msra.mxu0 0
  %7975 = vmatprep.subr.bf16.mxu0 0
  %7976 = vmatpush2.bf16.xpose.msra.mxu0 0
  %7977 = vmatprep.subr.bf16.mxu0 0
  %7978 = vmatpush2.bf16.xpose.msra.mxu0 0
  %7979 = vmatprep.subr.bf16.mxu0 0
  %7980 = vmatpush2.bf16.xpose.msra.mxu0 0
  %7981 = vmatprep.mubr.bf16.mxu0 0
  %7982 = vmatmul.mubr.bf16.gmra.mxu0 %v7944
  %v7983 = vpop.f32.mrf.mxu0
  %v7984 = vadd.f32 0.0, %v7983
  %v7985 = vpop.f32.mrf.mxu0
  %v7986 = vpop.f32.mrf.mxu0
  %v7987 = vpop.f32.mrf.mxu0
  %7988 = vdwg.mxu0
  %v7990 = vsel %vm1129, %v7850, 0
  %v7993 = vsel %vm1129, %v7432, 0
  %7995 = vmatprep.subr.bf16.mxu0 0
  %7996 = vmatpush1.bf16.xpose.msra.mxu0 0
  %7997 = vmatprep.subr.bf16.mxu0 0
  %7998 = vmatpush1.bf16.xpose.msra.mxu0 0
  %7999 = vmatprep.subr.bf16.mxu0 0
  %8000 = vmatpush1.bf16.xpose.msra.mxu0 0
  %8001 = vmatprep.subr.bf16.mxu0 0
  %8002 = vmatpush1.bf16.xpose.msra.mxu0 0
  %8003 = vmatprep.subr.bf16.mxu0 0
  %8004 = vmatpush1.bf16.xpose.msra.mxu0 0
  %8005 = vmatprep.subr.bf16.mxu0 0
  %8006 = vmatpush1.bf16.xpose.msra.mxu0 0
  %8007 = vmatprep.subr.bf16.mxu0 0
  %8008 = vmatpush1.bf16.xpose.msra.mxu0 0
  %8009 = vmatprep.subr.bf16.mxu0 0
  %8010 = vmatpush1.bf16.xpose.msra.mxu0 %v7993
  %8011 = vmatprep.subr.bf16.mxu0 0
  %8012 = vmatpush2.bf16.xpose.msra.mxu0 0
  %8013 = vmatprep.subr.bf16.mxu0 0
  %8014 = vmatpush2.bf16.xpose.msra.mxu0 0
  %8015 = vmatprep.subr.bf16.mxu0 0
  %8016 = vmatpush2.bf16.xpose.msra.mxu0 0
  %8017 = vmatprep.subr.bf16.mxu0 0
  %8018 = vmatpush2.bf16.xpose.msra.mxu0 0
  %8019 = vmatprep.subr.bf16.mxu0 0
  %8020 = vmatpush2.bf16.xpose.msra.mxu0 0
  %8021 = vmatprep.subr.bf16.mxu0 0
  %8022 = vmatpush2.bf16.xpose.msra.mxu0 0
  %8023 = vmatprep.subr.bf16.mxu0 0
  %8024 = vmatpush2.bf16.xpose.msra.mxu0 0
  %8025 = vmatprep.subr.bf16.mxu0 0
  %8026 = vmatpush2.bf16.xpose.msra.mxu0 0
  %8027 = vmatprep.mubr.bf16.mxu0 0
  %8028 = vmatmul.mubr.bf16.gmra.mxu0 %v7990
  %v8029 = vpop.f32.mrf.mxu0
  %v8030 = vadd.f32 0.0, %v8029
  %v8031 = vpop.f32.mrf.mxu0
  %v8032 = vpop.f32.mrf.mxu0
  %v8033 = vpop.f32.mrf.mxu0
  %8034 = vdwg.mxu0
  %8035 = vxpose.xlu0.b32.start [1/16] %v7892, 128
  %8036 = vxpose.xlu0.b32.cont [2/16] 0.0, 128
  %8037 = vxpose.xlu0.b32.cont [3/16] 0.0, 128
  %8038 = vxpose.xlu0.b32.cont [4/16] 0.0, 128
  %8039 = vxpose.xlu0.b32.cont [5/16] 0.0, 128
  %8040 = vxpose.xlu0.b32.cont [6/16] 0.0, 128
  %8041 = vxpose.xlu0.b32.cont [7/16] 0.0, 128
  %8042 = vxpose.xlu0.b32.cont [8/16] 0.0, 128
  %8043 = vxpose.xlu0.b32.cont [9/16] 0.0, 128
  %8044 = vxpose.xlu0.b32.cont [10/16] 0.0, 128
  %8045 = vxpose.xlu0.b32.cont [11/16] 0.0, 128
  %8046 = vxpose.xlu0.b32.cont [12/16] 0.0, 128
  %8047 = vxpose.xlu0.b32.cont [13/16] 0.0, 128
  %8048 = vxpose.xlu0.b32.cont [14/16] 0.0, 128
  %8049 = vxpose.xlu0.b32.cont [15/16] 0.0, 128
  %8050 = vxpose.xlu0.b32.end [16/16] 0.0, 128
  %v8051 = vpop.trf.xlu0
  %v8052 = vpop.trf.xlu0
  %v8053 = vpop.trf.xlu0
  %v8054 = vpop.trf.xlu0
  %v8055 = vpop.trf.xlu0
  %v8056 = vpop.trf.xlu0
  %v8057 = vpop.trf.xlu0
  %v8058 = vpop.trf.xlu0
  %v8059 = vpop.trf.xlu0
  %v8060 = vpop.trf.xlu0
  %v8061 = vpop.trf.xlu0
  %v8062 = vpop.trf.xlu0
  %v8063 = vpop.trf.xlu0
  %v8064 = vpop.trf.xlu0
  %v8065 = vpop.trf.xlu0
  %v8066 = vpop.trf.xlu0
  %8067 = vxpose.xlu0.b32.start [1/16] %v7938, 128
  %8068 = vxpose.xlu0.b32.cont [2/16] 0.0, 128
  %8069 = vxpose.xlu0.b32.cont [3/16] 0.0, 128
  %8070 = vxpose.xlu0.b32.cont [4/16] 0.0, 128
  %8071 = vxpose.xlu0.b32.cont [5/16] 0.0, 128
  %8072 = vxpose.xlu0.b32.cont [6/16] 0.0, 128
  %8073 = vxpose.xlu0.b32.cont [7/16] 0.0, 128
  %8074 = vxpose.xlu0.b32.cont [8/16] 0.0, 128
  %8075 = vxpose.xlu0.b32.cont [9/16] 0.0, 128
  %8076 = vxpose.xlu0.b32.cont [10/16] 0.0, 128
  %8077 = vxpose.xlu0.b32.cont [11/16] 0.0, 128
  %8078 = vxpose.xlu0.b32.cont [12/16] 0.0, 128
  %8079 = vxpose.xlu0.b32.cont [13/16] 0.0, 128
  %8080 = vxpose.xlu0.b32.cont [14/16] 0.0, 128
  %8081 = vxpose.xlu0.b32.cont [15/16] 0.0, 128
  %8082 = vxpose.xlu0.b32.end [16/16] 0.0, 128
  %v8083 = vpop.trf.xlu0
  %v8084 = vpop.trf.xlu0
  %v8085 = vpop.trf.xlu0
  %v8086 = vpop.trf.xlu0
  %v8087 = vpop.trf.xlu0
  %v8088 = vpop.trf.xlu0
  %v8089 = vpop.trf.xlu0
  %v8090 = vpop.trf.xlu0
  %v8091 = vpop.trf.xlu0
  %v8092 = vpop.trf.xlu0
  %v8093 = vpop.trf.xlu0
  %v8094 = vpop.trf.xlu0
  %v8095 = vpop.trf.xlu0
  %v8096 = vpop.trf.xlu0
  %v8097 = vpop.trf.xlu0
  %v8098 = vpop.trf.xlu0
  %8099 = vxpose.xlu0.b32.start [1/16] %v7984, 128
  %8100 = vxpose.xlu0.b32.cont [2/16] 0.0, 128
  %8101 = vxpose.xlu0.b32.cont [3/16] 0.0, 128
  %8102 = vxpose.xlu0.b32.cont [4/16] 0.0, 128
  %8103 = vxpose.xlu0.b32.cont [5/16] 0.0, 128
  %8104 = vxpose.xlu0.b32.cont [6/16] 0.0, 128
  %8105 = vxpose.xlu0.b32.cont [7/16] 0.0, 128
  %8106 = vxpose.xlu0.b32.cont [8/16] 0.0, 128
  %8107 = vxpose.xlu0.b32.cont [9/16] 0.0, 128
  %8108 = vxpose.xlu0.b32.cont [10/16] 0.0, 128
  %8109 = vxpose.xlu0.b32.cont [11/16] 0.0, 128
  %8110 = vxpose.xlu0.b32.cont [12/16] 0.0, 128
  %8111 = vxpose.xlu0.b32.cont [13/16] 0.0, 128
  %8112 = vxpose.xlu0.b32.cont [14/16] 0.0, 128
  %8113 = vxpose.xlu0.b32.cont [15/16] 0.0, 128
  %8114 = vxpose.xlu0.b32.end [16/16] 0.0, 128
  %v8115 = vpop.trf.xlu0
  %v8116 = vpop.trf.xlu0
  %v8117 = vpop.trf.xlu0
  %v8118 = vpop.trf.xlu0
  %v8119 = vpop.trf.xlu0
  %v8120 = vpop.trf.xlu0
  %v8121 = vpop.trf.xlu0
  %v8122 = vpop.trf.xlu0
  %v8123 = vpop.trf.xlu0
  %v8124 = vpop.trf.xlu0
  %v8125 = vpop.trf.xlu0
  %v8126 = vpop.trf.xlu0
  %v8127 = vpop.trf.xlu0
  %v8128 = vpop.trf.xlu0
  %v8129 = vpop.trf.xlu0
  %v8130 = vpop.trf.xlu0
  %8131 = vxpose.xlu0.b32.start [1/16] %v8030, 128
  %8132 = vxpose.xlu0.b32.cont [2/16] 0.0, 128
  %8133 = vxpose.xlu0.b32.cont [3/16] 0.0, 128
  %8134 = vxpose.xlu0.b32.cont [4/16] 0.0, 128
  %8135 = vxpose.xlu0.b32.cont [5/16] 0.0, 128
  %8136 = vxpose.xlu0.b32.cont [6/16] 0.0, 128
  %8137 = vxpose.xlu0.b32.cont [7/16] 0.0, 128
  %8138 = vxpose.xlu0.b32.cont [8/16] 0.0, 128
  %8139 = vxpose.xlu0.b32.cont [9/16] 0.0, 128
  %8140 = vxpose.xlu0.b32.cont [10/16] 0.0, 128
  %8141 = vxpose.xlu0.b32.cont [11/16] 0.0, 128
  %8142 = vxpose.xlu0.b32.cont [12/16] 0.0, 128
  %8143 = vxpose.xlu0.b32.cont [13/16] 0.0, 128
  %8144 = vxpose.xlu0.b32.cont [14/16] 0.0, 128
  %8145 = vxpose.xlu0.b32.cont [15/16] 0.0, 128
  %8146 = vxpose.xlu0.b32.end [16/16] 0.0, 128
  %v8147 = vpop.trf.xlu0
  %v8148 = vpop.trf.xlu0
  %v8149 = vpop.trf.xlu0
  %v8150 = vpop.trf.xlu0
  %v8151 = vpop.trf.xlu0
  %v8152 = vpop.trf.xlu0
  %v8153 = vpop.trf.xlu0
  %v8154 = vpop.trf.xlu0
  %v8155 = vpop.trf.xlu0
  %v8156 = vpop.trf.xlu0
  %v8157 = vpop.trf.xlu0
  %v8158 = vpop.trf.xlu0
  %v8159 = vpop.trf.xlu0
  %v8160 = vpop.trf.xlu0
  %v8161 = vpop.trf.xlu0
  %v8162 = vpop.trf.xlu0
  %v8163 = vcombine.low %v8051, %v8115
  %v8164 = vcombine.high %v8051, %v8115
  %v8166 = vunpack.c.l.s4 1983009808
  %v8167 = vunpack.c.0.s8 %v8166
  %v8168 = vlaneseq
  %v8169 = vshrl.u32 %v8168, 7
  %v8170 = vsub.s32 %v8167, %v8169
  %v8171 = vrot.slane %v8163, %v8170
  %v8173 = vunpack.c.l.s4 1983009808
  %v8174 = vunpack.c.0.s8 %v8173
  %v8175 = vlaneseq
  %v8176 = vshrl.u32 %v8175, 7
  %v8177 = vsub.s32 %v8174, %v8176
  %v8178 = vrot.slane %v8164, %v8177
  %v8179 = vcombine.low %v8083, %v8147
  %v8180 = vcombine.high %v8083, %v8147
  %v8182 = vunpack.c.l.s4 1983009808
  %v8183 = vunpack.c.0.s8 %v8182
  %v8184 = vlaneseq
  %v8185 = vshrl.u32 %v8184, 7
  %v8186 = vsub.s32 %v8183, %v8185
  %v8187 = vrot.slane %v8179, %v8186
  %v8189 = vunpack.c.l.s4 1983009808
  %v8190 = vunpack.c.0.s8 %v8189
  %v8191 = vlaneseq
  %v8192 = vshrl.u32 %v8191, 7
  %v8193 = vsub.s32 %v8190, %v8192
  %v8194 = vrot.slane %v8180, %v8193
  %v8195 = vcombine.low %v8171, %v8187
  %v8196 = vcombine.high %v8171, %v8187
  %v8198 = vunpack.c.l.s4 1934713408
  %v8199 = vunpack.c.0.s8 %v8198
  %v8200 = vlaneseq
  %v8201 = vshrl.u32 %v8200, 7
  %v8202 = vsub.s32 %v8199, %v8201
  %v8203 = vrot.slane %v8195, %v8202
  %v8205 = vunpack.c.l.s4 1934713408
  %v8206 = vunpack.c.0.s8 %v8205
  %v8207 = vlaneseq
  %v8208 = vshrl.u32 %v8207, 7
  %v8209 = vsub.s32 %v8206, %v8208
  %v8210 = vrot.slane %v8196, %v8209
  %v8211 = vcombine.low %v8178, %v8194
  %v8212 = vcombine.high %v8178, %v8194
  %v8214 = vunpack.c.l.s4 1934713408
  %v8215 = vunpack.c.0.s8 %v8214
  %v8216 = vlaneseq
  %v8217 = vshrl.u32 %v8216, 7
  %v8218 = vsub.s32 %v8215, %v8217
  %v8219 = vrot.slane %v8211, %v8218
  %v8221 = vunpack.c.l.s4 1934713408
  %v8222 = vunpack.c.0.s8 %v8221
  %v8223 = vlaneseq
  %v8224 = vshrl.u32 %v8223, 7
  %v8225 = vsub.s32 %v8222, %v8224
  %v8226 = vrot.slane %v8212, %v8225
  %v8227 = vcombine.high %v8203, 0.0
  %v8228 = vcombine.high %v8210, 0.0
  %v8229 = vcombine.high %v8219, 0.0
  %v8230 = vcombine.high %v8226, 0.0
  %v8231 = vcombine.low %v8203, %v8210
  %v8233 = vunpack.c.l.s4 1983009808
  %v8234 = vunpack.c.0.s8 %v8233
  %v8235 = vlaneseq
  %v8236 = vshrl.u32 %v8235, 7
  %v8237 = vsub.s32 %v8234, %v8236
  %v8238 = vrot.slane %v8231, %v8237
  %v8239 = vcombine.low %v8227, %v8228
  %v8241 = vunpack.c.l.s4 1983009808
  %v8242 = vunpack.c.0.s8 %v8241
  %v8243 = vlaneseq
  %v8244 = vshrl.u32 %v8243, 7
  %v8245 = vsub.s32 %v8242, %v8244
  %v8246 = vrot.slane %v8239, %v8245
  %v8247 = vcombine.low %v8219, %v8226
  %v8249 = vunpack.c.l.s4 1983009808
  %v8250 = vunpack.c.0.s8 %v8249
  %v8251 = vlaneseq
  %v8252 = vshrl.u32 %v8251, 7
  %v8253 = vsub.s32 %v8250, %v8252
  %v8254 = vrot.slane %v8247, %v8253
  %v8255 = vcombine.low %v8229, %v8230
  %v8257 = vunpack.c.l.s4 1983009808
  %v8258 = vunpack.c.0.s8 %v8257
  %v8259 = vlaneseq
  %v8260 = vshrl.u32 %v8259, 7
  %v8261 = vsub.s32 %v8258, %v8260
  %v8262 = vrot.slane %v8255, %v8261
  %v8263 = vcombine.low %v8238, %v8246
  %v8264 = vcombine.high %v8238, %v8246
  %v8266 = vunpack.c.l.s4 1934713408
  %v8267 = vunpack.c.0.s8 %v8266
  %v8268 = vlaneseq
  %v8269 = vshrl.u32 %v8268, 7
  %v8270 = vsub.s32 %v8267, %v8269
  %v8271 = vrot.slane %v8263, %v8270
  %v8273 = vunpack.c.l.s4 1934713408
  %v8274 = vunpack.c.0.s8 %v8273
  %v8275 = vlaneseq
  %v8276 = vshrl.u32 %v8275, 7
  %v8277 = vsub.s32 %v8274, %v8276
  %v8278 = vrot.slane %v8264, %v8277
  %v8279 = vcombine.low %v8254, %v8262
  %v8280 = vcombine.high %v8254, %v8262
  %v8282 = vunpack.c.l.s4 1934713408
  %v8283 = vunpack.c.0.s8 %v8282
  %v8284 = vlaneseq
  %v8285 = vshrl.u32 %v8284, 7
  %v8286 = vsub.s32 %v8283, %v8285
  %v8287 = vrot.slane %v8279, %v8286
  %v8289 = vunpack.c.l.s4 1934713408
  %v8290 = vunpack.c.0.s8 %v8289
  %v8291 = vlaneseq
  %v8292 = vshrl.u32 %v8291, 7
  %v8293 = vsub.s32 %v8290, %v8292
  %v8294 = vrot.slane %v8280, %v8293
  %v8295 = vcombine.low %v8271, %v8287
  %v8296 = vcombine.high %v8271, %v8287
  %v8297 = vcombine.low %v8278, %v8294
  %v8298 = vcombine.high %v8278, %v8294
  %8300 = vrot.lane.b32.xlu0 %v8296, 8
  %v8301 = vpop.permute.xlu0 %8300
  %8304 = vrot.lane.b32.xlu0 %v8297, 16
  %v8305 = vpop.permute.xlu0 %8304
  %8308 = vrot.lane.b32.xlu0 %v8298, 24
  %v8309 = vpop.permute.xlu0 %8308
  %v8311 = vsel %vm1129, %v8295, %v8301
  %v8312 = vsel %vm2242, %v8311, %v8305
  %v8313 = vsel %vm2244, %v8312, %v8309
  %v8314 = vpack.c.bf16 %v8313, %v6462
  %s8315 = scalar_lea.vmem %s5, 112
  %v8316 = vld [vmem:[%s8315] sm:$0xf]
  %v8317 = vld [vmem:[%s8315 + $0x4] sm:$0xf]
  %v8318 = vld [vmem:[%s8315 + $0x8] sm:$0xf]
  %v8319 = vld [vmem:[%s8315 + $0xc] sm:$0xf]
  %v8320 = vld [vmem:[%s4 + $0x11] sm:$0x1]
  %v8321 = vlaneseq
  %v8322 = vshrl.u32 %v8321, 7
  %v8323 = vsub.s32 0, %v8322
  %v8324 = vrot.slane %v8320, %v8323
  %v8329 = vunpack.c.l.b16 %v8316
  %v8330 = vunpack.c.l.b16 %v8317
  %v8331 = vunpack.c.l.b16 %v8318
  %v8332 = vunpack.c.l.b16 %v8319
  %v8333 = vpack.c.b16 %v8330, %v8329
  %v8334 = vpack.c.b16 %v8332, %v8331
  %v8338 = vsel %vm151, %v8314, 0
  %8340 = vmatprep.subr.bf16.mxu0 0
  %8341 = vmatpush1.bf16.msra.mxu0 0
  %8342 = vmatprep.subr.bf16.mxu0 0
  %8343 = vmatpush1.bf16.msra.mxu0 0
  %8344 = vmatprep.subr.bf16.mxu0 0
  %8345 = vmatpush1.bf16.msra.mxu0 0
  %8346 = vmatprep.subr.bf16.mxu0 0
  %8347 = vmatpush1.bf16.msra.mxu0 0
  %8348 = vmatprep.subr.bf16.mxu0 0
  %8349 = vmatpush1.bf16.msra.mxu0 0
  %8350 = vmatprep.subr.bf16.mxu0 0
  %8351 = vmatpush1.bf16.msra.mxu0 0
  %8352 = vmatprep.subr.bf16.mxu0 0
  %8353 = vmatpush1.bf16.msra.mxu0 %v8334
  %8354 = vmatprep.subr.bf16.mxu0 0
  %8355 = vmatpush1.bf16.msra.mxu0 %v8333
  %8356 = vmatprep.subr.bf16.mxu0 0
  %8357 = vmatpush2.bf16.msra.mxu0 0
  %8358 = vmatprep.subr.bf16.mxu0 0
  %8359 = vmatpush2.bf16.msra.mxu0 0
  %8360 = vmatprep.subr.bf16.mxu0 0
  %8361 = vmatpush2.bf16.msra.mxu0 0
  %8362 = vmatprep.subr.bf16.mxu0 0
  %8363 = vmatpush2.bf16.msra.mxu0 0
  %8364 = vmatprep.subr.bf16.mxu0 0
  %8365 = vmatpush2.bf16.msra.mxu0 0
  %8366 = vmatprep.subr.bf16.mxu0 0
  %8367 = vmatpush2.bf16.msra.mxu0 0
  %8368 = vmatprep.subr.bf16.mxu0 0
  %8369 = vmatpush2.bf16.msra.mxu0 0
  %8370 = vmatprep.subr.bf16.mxu0 0
  %8371 = vmatpush2.bf16.msra.mxu0 0
  %8372 = vmatprep.mubr.bf16.mxu0 0
  %8373 = vmatmul.mubr.bf16.gmra.mxu0 %v8338
  %v8374 = vpop.f32.mrf.mxu0
  %v8375 = vadd.f32 %v8324, %v8374
  %v8376 = vpop.f32.mrf.mxu0
  %v8377 = vpop.f32.mrf.mxu0
  %v8378 = vadd.f32 %v8324, %v8377
  %v8379 = vpop.f32.mrf.mxu0
  %8380 = vdwg.mxu0
  %v8381 = vadd.f32 %v4417, %v8375
  %v8382 = vadd.f32 %v4418, %v8378
  %v8383 = vld [vmem:[%s4 + $0x12] sm:$0x1]
  %v8384 = vld [vmem:[%s4 + $0x13] sm:$0x1]
  %v8385 = vsel %vm151, %v8381, 0.0
  %8386 = vadd.xlane.f32.xlu0 %v8385
  %v8387 = vpop.xlane.xlu0 %8386
  %v8388 = vsel %vm151, %v8382, 0.0
  %8389 = vadd.xlane.f32.xlu0 %v8388
  %v8390 = vpop.xlane.xlu0 %8389
  %v8391 = vmul.f32 %v8387, %v158
  %v8392 = vmul.f32 %v8390, %v158
  %v8393 = vsub.f32 %v8381, %v8391
  %v8394 = vsub.f32 %v8382, %v8392
  %v8395 = vmul.f32 %v8393, %v8393
  %v8396 = vmul.f32 %v8394, %v8394
  %v8397 = vsel %vm151, %v8395, 0.0
  %8398 = vadd.xlane.f32.xlu0 %v8397
  %v8399 = vpop.xlane.xlu0 %8398
  %v8400 = vsel %vm151, %v8396, 0.0
  %8401 = vadd.xlane.f32.xlu0 %v8400
  %v8402 = vpop.xlane.xlu0 %8401
  %v8403 = vmul.f32 %v8399, %v158
  %v8404 = vmul.f32 %v8402, %v158
  %v8405 = vadd.f32 %v8403, 1e-12
  %v8406 = vadd.f32 %v8404, 1e-12
  %v8407 = vrsqrt.pop %v8405
  %v8408 = vrsqrt.pop %v8406
  %v8409 = vmul.f32 %v8393, %v8407
  %v8410 = vmul.f32 %v8394, %v8408
  %v8411 = vlaneseq
  %v8412 = vshrl.u32 %v8411, 7
  %v8413 = vsub.s32 0, %v8412
  %v8414 = vrot.slane %v8383, %v8413
  %v8415 = vmul.f32 %v8409, %v8414
  %v8416 = vmul.f32 %v8410, %v8414
  %v8417 = vlaneseq
  %v8418 = vshrl.u32 %v8417, 7
  %v8419 = vsub.s32 0, %v8418
  %v8420 = vrot.slane %v8384, %v8419
  %v8421 = vadd.f32 %v8415, %v8420
  %v8422 = vadd.f32 %v8416, %v8420
  %v8423 = vpack.c.bf16 %v8422, %v8421
  %s8424 = scalar_lea.vmem %s6, 16
  %v8425 = vld [vmem:[%s8424] sm:$0xf]
  %v8426 = vld [vmem:[%s8424 + $0x4] sm:$0xf]
  %v8427 = vld [vmem:[%s8424 + $0x8] sm:$0xf]
  %v8428 = vld [vmem:[%s8424 + $0xc] sm:$0xf]
  %v8429 = vld [vmem:[%s4 + $0x14] sm:$0x1]
  %v8430 = vlaneseq
  %v8431 = vshrl.u32 %v8430, 7
  %v8432 = vsub.s32 0, %v8431
  %v8433 = vrot.slane %v8429, %v8432
  %v8438 = vunpack.c.l.b16 %v8425
  %v8439 = vunpack.c.l.b16 %v8426
  %v8440 = vunpack.c.l.b16 %v8427
  %v8441 = vunpack.c.l.b16 %v8428
  %v8442 = vpack.c.b16 %v8439, %v8438
  %v8443 = vpack.c.b16 %v8441, %v8440
  %v8447 = vsel %vm151, %v8423, 0
  %8449 = vmatprep.subr.bf16.mxu0 0
  %8450 = vmatpush1.bf16.msra.mxu0 0
  %8451 = vmatprep.subr.bf16.mxu0 0
  %8452 = vmatpush1.bf16.msra.mxu0 0
  %8453 = vmatprep.subr.bf16.mxu0 0
  %8454 = vmatpush1.bf16.msra.mxu0 0
  %8455 = vmatprep.subr.bf16.mxu0 0
  %8456 = vmatpush1.bf16.msra.mxu0 0
  %8457 = vmatprep.subr.bf16.mxu0 0
  %8458 = vmatpush1.bf16.msra.mxu0 0
  %8459 = vmatprep.subr.bf16.mxu0 0
  %8460 = vmatpush1.bf16.msra.mxu0 0
  %8461 = vmatprep.subr.bf16.mxu0 0
  %8462 = vmatpush1.bf16.msra.mxu0 %v8443
  %8463 = vmatprep.subr.bf16.mxu0 0
  %8464 = vmatpush1.bf16.msra.mxu0 %v8442
  %8465 = vmatprep.subr.bf16.mxu0 0
  %8466 = vmatpush2.bf16.msra.mxu0 0
  %8467 = vmatprep.subr.bf16.mxu0 0
  %8468 = vmatpush2.bf16.msra.mxu0 0
  %8469 = vmatprep.subr.bf16.mxu0 0
  %8470 = vmatpush2.bf16.msra.mxu0 0
  %8471 = vmatprep.subr.bf16.mxu0 0
  %8472 = vmatpush2.bf16.msra.mxu0 0
  %8473 = vmatprep.subr.bf16.mxu0 0
  %8474 = vmatpush2.bf16.msra.mxu0 0
  %8475 = vmatprep.subr.bf16.mxu0 0
  %8476 = vmatpush2.bf16.msra.mxu0 0
  %8477 = vmatprep.subr.bf16.mxu0 0
  %8478 = vmatpush2.bf16.msra.mxu0 0
  %8479 = vmatprep.subr.bf16.mxu0 0
  %8480 = vmatpush2.bf16.msra.mxu0 0
  %8481 = vmatprep.mubr.bf16.mxu0 0
  %8482 = vmatmul.mubr.bf16.gmra.mxu0 %v8447
  %v8483 = vpop.f32.mrf.mxu0
  %v8484 = vadd.f32 %v8433, %v8483
  %v8485 = vpop.f32.mrf.mxu0
  %v8486 = vpop.f32.mrf.mxu0
  %v8487 = vadd.f32 %v8433, %v8486
  %v8488 = vpop.f32.mrf.mxu0
  %8489 = vdwg.mxu0
  %v8490 = vmul.f32 %v8484, %v8484
  %v8491 = vmul.f32 %v8487, %v8487
  %v8492 = vmul.f32 %v8484, %v8490
  %v8493 = vmul.f32 %v8487, %v8491
  %v8494 = vmul.f32 %v8492, 0.044715
  %v8495 = vmul.f32 %v8493, 0.044715
  %v8496 = vadd.f32 %v8484, %v8494
  %v8497 = vadd.f32 %v8487, %v8495
  %v8498 = vmul.f32 %v8496, 0.7978846
  %v8499 = vmul.f32 %v8497, 0.7978846
  %v8500 = vtanh.pop %v8498
  %v8501 = vtanh.pop %v8499
  %v8502 = vadd.f32 %v8500, 1.0
  %v8503 = vadd.f32 %v8501, 1.0
  %v8504 = vmul.f32 %v8502, 0.5
  %v8505 = vmul.f32 %v8503, 0.5
  %v8506 = vmul.f32 %v8484, %v8504
  %v8507 = vmul.f32 %v8487, %v8505
  %v8508 = vpack.c.bf16 %v8507, %v8506
  %s8509 = scalar_lea.vmem %s7, 32
  %v8510 = vld [vmem:[%s8509] sm:$0xf]
  %v8511 = vld [vmem:[%s8509 + $0x4] sm:$0xf]
  %v8512 = vld [vmem:[%s8509 + $0x8] sm:$0xf]
  %v8513 = vld [vmem:[%s8509 + $0xc] sm:$0xf]
  %v8514 = vld [vmem:[%s8509 + $0x10] sm:$0xf]
  %v8515 = vld [vmem:[%s8509 + $0x14] sm:$0xf]
  %v8516 = vld [vmem:[%s8509 + $0x18] sm:$0xf]
  %v8517 = vld [vmem:[%s8509 + $0x1c] sm:$0xf]
  %v8518 = vld [vmem:[%s4 + $0x15] sm:$0x1]
  %v8519 = vlaneseq
  %v8520 = vshrl.u32 %v8519, 7
  %v8521 = vsub.s32 0, %v8520
  %v8522 = vrot.slane %v8518, %v8521
  %v8531 = vunpack.c.l.b16 %v8510
  %v8532 = vunpack.c.l.b16 %v8511
  %v8533 = vunpack.c.l.b16 %v8512
  %v8534 = vunpack.c.l.b16 %v8513
  %v8535 = vunpack.c.l.b16 %v8514
  %v8536 = vunpack.c.l.b16 %v8515
  %v8537 = vunpack.c.l.b16 %v8516
  %v8538 = vunpack.c.l.b16 %v8517
  %v8539 = vpack.c.b16 %v8532, %v8531
  %v8540 = vpack.c.b16 %v8534, %v8533
  %v8541 = vpack.c.b16 %v8536, %v8535
  %v8542 = vpack.c.b16 %v8538, %v8537
  %v8548 = vsel %vm4332, %v8508, 0
  %8550 = vmatprep.subr.bf16.mxu0 0
  %8551 = vmatpush1.bf16.msra.mxu0 0
  %8552 = vmatprep.subr.bf16.mxu0 0
  %8553 = vmatpush1.bf16.msra.mxu0 0
  %8554 = vmatprep.subr.bf16.mxu0 0
  %8555 = vmatpush1.bf16.msra.mxu0 0
  %8556 = vmatprep.subr.bf16.mxu0 0
  %8557 = vmatpush1.bf16.msra.mxu0 0
  %8558 = vmatprep.subr.bf16.mxu0 0
  %8559 = vmatpush1.bf16.msra.mxu0 %v8542
  %8560 = vmatprep.subr.bf16.mxu0 0
  %8561 = vmatpush1.bf16.msra.mxu0 %v8541
  %8562 = vmatprep.subr.bf16.mxu0 0
  %8563 = vmatpush1.bf16.msra.mxu0 %v8540
  %8564 = vmatprep.subr.bf16.mxu0 0
  %8565 = vmatpush1.bf16.msra.mxu0 %v8539
  %8566 = vmatprep.subr.bf16.mxu0 0
  %8567 = vmatpush2.bf16.msra.mxu0 0
  %8568 = vmatprep.subr.bf16.mxu0 0
  %8569 = vmatpush2.bf16.msra.mxu0 0
  %8570 = vmatprep.subr.bf16.mxu0 0
  %8571 = vmatpush2.bf16.msra.mxu0 0
  %8572 = vmatprep.subr.bf16.mxu0 0
  %8573 = vmatpush2.bf16.msra.mxu0 0
  %8574 = vmatprep.subr.bf16.mxu0 0
  %8575 = vmatpush2.bf16.msra.mxu0 0
  %8576 = vmatprep.subr.bf16.mxu0 0
  %8577 = vmatpush2.bf16.msra.mxu0 0
  %8578 = vmatprep.subr.bf16.mxu0 0
  %8579 = vmatpush2.bf16.msra.mxu0 0
  %8580 = vmatprep.subr.bf16.mxu0 0
  %8581 = vmatpush2.bf16.msra.mxu0 0
  %8582 = vmatprep.mubr.bf16.mxu0 0
  %8583 = vmatmul.mubr.bf16.gmra.mxu0 %v8548
  %v8584 = vpop.f32.mrf.mxu0
  %v8585 = vadd.f32 %v8522, %v8584
  %v8586 = vpop.f32.mrf.mxu0
  %v8587 = vpop.f32.mrf.mxu0
  %v8588 = vadd.f32 %v8522, %v8587
  %v8589 = vpop.f32.mrf.mxu0
  %8590 = vdwg.mxu0
  %v8591 = vadd.f32 %v8421, %v8585
  %v8592 = vadd.f32 %v8422, %v8588
  %v8593 = vld [vmem:[%s4 + $0x16] sm:$0x1]
  %v8594 = vld [vmem:[%s4 + $0x17] sm:$0x1]
  %v8595 = vsel %vm151, %v8591, 0.0
  %8596 = vadd.xlane.f32.xlu0 %v8595
  %v8597 = vpop.xlane.xlu0 %8596
  %v8598 = vsel %vm151, %v8592, 0.0
  %8599 = vadd.xlane.f32.xlu0 %v8598
  %v8600 = vpop.xlane.xlu0 %8599
  %v8601 = vmul.f32 %v8597, %v158
  %v8602 = vmul.f32 %v8600, %v158
  %v8603 = vsub.f32 %v8591, %v8601
  %v8604 = vsub.f32 %v8592, %v8602
  %v8605 = vmul.f32 %v8603, %v8603
  %v8606 = vmul.f32 %v8604, %v8604
  %v8607 = vsel %vm151, %v8605, 0.0
  %8608 = vadd.xlane.f32.xlu0 %v8607
  %v8609 = vpop.xlane.xlu0 %8608
  %v8610 = vsel %vm151, %v8606, 0.0
  %8611 = vadd.xlane.f32.xlu0 %v8610
  %v8612 = vpop.xlane.xlu0 %8611
  %v8613 = vmul.f32 %v8609, %v158
  %v8614 = vmul.f32 %v8612, %v158
  %v8615 = vadd.f32 %v8613, 1e-12
  %v8616 = vadd.f32 %v8614, 1e-12
  %v8617 = vrsqrt.pop %v8615
  %v8618 = vrsqrt.pop %v8616
  %v8619 = vmul.f32 %v8603, %v8617
  %v8620 = vmul.f32 %v8604, %v8618
  %v8621 = vlaneseq
  %v8622 = vshrl.u32 %v8621, 7
  %v8623 = vsub.s32 0, %v8622
  %v8624 = vrot.slane %v8593, %v8623
  %v8625 = vmul.f32 %v8619, %v8624
  %v8626 = vmul.f32 %v8620, %v8624
  %v8627 = vlaneseq
  %v8628 = vshrl.u32 %v8627, 7
  %v8629 = vsub.s32 0, %v8628
  %v8630 = vrot.slane %v8594, %v8629
  %v8631 = vadd.f32 %v8625, %v8630
  %v8632 = vadd.f32 %v8626, %v8630
  %v8634 = vrot.slane %v8632, 7
  %v8636 = vsel %vm70, %v8631, %v8634
  %v8637 = vpack.c.bf16 %v8636, %v8636
  %s8638 = scalar_lea.vmem %s5, 128
  %v8639 = vld [vmem:[%s8638] sm:$0xf]
  %v8640 = vld [vmem:[%s8638 + $0x4] sm:$0xf]
  %v8641 = vld [vmem:[%s8638 + $0x8] sm:$0xf]
  %v8642 = vld [vmem:[%s8638 + $0xc] sm:$0xf]
  %v8643 = vld [vmem:[%s4 + $0x2] sm:$0x1]
  %v8644 = vlaneseq
  %v8645 = vshrl.u32 %v8644, 7
  %v8646 = vsub.s32 0, %v8645
  %v8647 = vrot.slane %v8643, %v8646
  %v8652 = vunpack.c.l.b16 %v8639
  %v8653 = vunpack.c.l.b16 %v8640
  %v8654 = vunpack.c.l.b16 %v8641
  %v8655 = vunpack.c.l.b16 %v8642
  %v8656 = vpack.c.b16 %v8653, %v8652
  %v8657 = vpack.c.b16 %v8655, %v8654
  %v8661 = vsel %vm151, %v8637, 0
  %8663 = vmatprep.subr.bf16.mxu0 0
  %8664 = vmatpush1.bf16.msra.mxu0 0
  %8665 = vmatprep.subr.bf16.mxu0 0
  %8666 = vmatpush1.bf16.msra.mxu0 0
  %8667 = vmatprep.subr.bf16.mxu0 0
  %8668 = vmatpush1.bf16.msra.mxu0 0
  %8669 = vmatprep.subr.bf16.mxu0 0
  %8670 = vmatpush1.bf16.msra.mxu0 0
  %8671 = vmatprep.subr.bf16.mxu0 0
  %8672 = vmatpush1.bf16.msra.mxu0 0
  %8673 = vmatprep.subr.bf16.mxu0 0
  %8674 = vmatpush1.bf16.msra.mxu0 0
  %8675 = vmatprep.subr.bf16.mxu0 0
  %8676 = vmatpush1.bf16.msra.mxu0 %v8657
  %8677 = vmatprep.subr.bf16.mxu0 0
  %8678 = vmatpush1.bf16.msra.mxu0 %v8656
  %8679 = vmatprep.subr.bf16.mxu0 0
  %8680 = vmatpush2.bf16.msra.mxu0 0
  %8681 = vmatprep.subr.bf16.mxu0 0
  %8682 = vmatpush2.bf16.msra.mxu0 0
  %8683 = vmatprep.subr.bf16.mxu0 0
  %8684 = vmatpush2.bf16.msra.mxu0 0
  %8685 = vmatprep.subr.bf16.mxu0 0
  %8686 = vmatpush2.bf16.msra.mxu0 0
  %8687 = vmatprep.subr.bf16.mxu0 0
  %8688 = vmatpush2.bf16.msra.mxu0 0
  %8689 = vmatprep.subr.bf16.mxu0 0
  %8690 = vmatpush2.bf16.msra.mxu0 0
  %8691 = vmatprep.subr.bf16.mxu0 0
  %8692 = vmatpush2.bf16.msra.mxu0 0
  %8693 = vmatprep.subr.bf16.mxu0 0
  %8694 = vmatpush2.bf16.msra.mxu0 0
  %8695 = vmatprep.mubr.bf16.mxu0 0
  %8696 = vmatmul.mubr.bf16.gmra.mxu0 %v8661
  %v8697 = vpop.f32.mrf.mxu0
  %v8698 = vadd.f32 %v8647, %v8697
  %v8699 = vpop.f32.mrf.mxu0
  %v8700 = vpop.f32.mrf.mxu0
  %v8701 = vpop.f32.mrf.mxu0
  %8702 = vdwg.mxu0
  %v8703 = vtanh.pop %v8698
  %v8704 = vpack.c.bf16 %v8703, %v8703
  %v8705 = vld [vmem:[%s8] sm:$0xf]
  %v8706 = vld [vmem:[%s8 + $0x4] sm:$0xf]
  %v8707 = vld [vmem:[%s8 + $0x8] sm:$0xf]
  %v8708 = vld [vmem:[%s8 + $0xc] sm:$0xf]
  %v8709 = vld [vmem:[%s4 + $0x3] sm:$0x1]
  %v8710 = vlaneseq
  %v8711 = vshrl.u32 %v8710, 7
  %v8712 = vsub.s32 0, %v8711
  %v8713 = vrot.slane %v8709, %v8712
  %v8718 = vunpack.c.l.b16 %v8705
  %v8719 = vunpack.c.l.b16 %v8706
  %v8720 = vunpack.c.l.b16 %v8707
  %v8721 = vunpack.c.l.b16 %v8708
  %v8722 = vpack.c.b16 %v8719, %v8718
  %v8723 = vpack.c.b16 %v8721, %v8720
  %v8727 = vsel %vm151, %v8704, 0
  %8729 = vmatprep.subr.bf16.mxu0 0
  %8730 = vmatpush1.bf16.msra.mxu0 0
  %8731 = vmatprep.subr.bf16.mxu0 0
  %8732 = vmatpush1.bf16.msra.mxu0 0
  %8733 = vmatprep.subr.bf16.mxu0 0
  %8734 = vmatpush1.bf16.msra.mxu0 0
  %8735 = vmatprep.subr.bf16.mxu0 0
  %8736 = vmatpush1.bf16.msra.mxu0 0
  %8737 = vmatprep.subr.bf16.mxu0 0
  %8738 = vmatpush1.bf16.msra.mxu0 0
  %8739 = vmatprep.subr.bf16.mxu0 0
  %8740 = vmatpush1.bf16.msra.mxu0 0
  %8741 = vmatprep.subr.bf16.mxu0 0
  %8742 = vmatpush1.bf16.msra.mxu0 %v8723
  %8743 = vmatprep.subr.bf16.mxu0 0
  %8744 = vmatpush1.bf16.msra.mxu0 %v8722
  %8745 = vmatprep.subr.bf16.mxu0 0
  %8746 = vmatpush2.bf16.msra.mxu0 0
  %8747 = vmatprep.subr.bf16.mxu0 0
  %8748 = vmatpush2.bf16.msra.mxu0 0
  %8749 = vmatprep.subr.bf16.mxu0 0
  %8750 = vmatpush2.bf16.msra.mxu0 0
  %8751 = vmatprep.subr.bf16.mxu0 0
  %8752 = vmatpush2.bf16.msra.mxu0 0
  %8753 = vmatprep.subr.bf16.mxu0 0
  %8754 = vmatpush2.bf16.msra.mxu0 0
  %8755 = vmatprep.subr.bf16.mxu0 0
  %8756 = vmatpush2.bf16.msra.mxu0 0
  %8757 = vmatprep.subr.bf16.mxu0 0
  %8758 = vmatpush2.bf16.msra.mxu0 0
  %8759 = vmatprep.subr.bf16.mxu0 0
  %8760 = vmatpush2.bf16.msra.mxu0 0
  %8761 = vmatprep.mubr.bf16.mxu0 0
  %8762 = vmatmul.mubr.bf16.gmra.mxu0 %v8727
  %v8763 = vpop.f32.mrf.mxu0
  %v8764 = vadd.f32 %v8713, %v8763
  %v8765 = vpop.f32.mrf.mxu0
  %v8766 = vpop.f32.mrf.mxu0
  %v8767 = vpop.f32.mrf.mxu0
  %8768 = vdwg.mxu0
  %8769 = vst [vmem:[%s9] sm:$0x3] %v8764
  // Predicated region
  $region38: #{multitask_mpnet_forward.1} parent=0 // pred_check
    _
  $region39: #{multitask_mpnet_forward.1} parent=0 // pred_check_branch
    %8771 = sbr.rel (0) target = $region41
  $region40: #{multitask_mpnet_forward.1} parent=0 // pred_region
    _
  $region41: #{multitask_mpnet_forward.1} parent=0 // pred_fallthru
    _
  // Predicated region
  $region42: #{multitask_mpnet_forward.1} parent=0 // pred_check
    _
  $region43: #{multitask_mpnet_forward.1} parent=0 // pred_check_branch
    %8773 = sbr.rel (0) target = $region45
  $region44: #{multitask_mpnet_forward.1} parent=0 // pred_region
    _
  $region45: #{multitask_mpnet_forward.1} parent=0 // pred_fallthru
    _

</llo_original>
